<compile_context>
chip_gen: v7x
topology: tpu7x:2x2x1
jax: 0.10.0
libtpu: 0.0.40
codegen_flags: <defaults>
</compile_context>

<pallas_src>
import jax
import jax.numpy as jnp
from jax import lax
from jax.experimental import pallas as pl
from jax.experimental.pallas import tpu as pltpu

HIDDEN = 1536           # hidden_dim_valence from the module
HALF = HIDDEN // 2      # 768 = pooled-output width of each backbone
LN_EPS = 1e-5           # nn.LayerNorm default eps


def _head_kernel(y_ref, z_ref, wtl_ref, wtr_ref, wbl_ref, wbr_ref,
                 vec_ref, b2_ref, out_ref):
    # y_ref, z_ref : (TB, 768) bf16   pooled BERT outputs (concat fused in-kernel)
    # wtl/wtr      : (768, 768) bf16  rows   0..767 of l_1_valence.weight.T, cols [:768] / [768:]
    # wbl/wbr      : (768, 768) bf16  rows 768..1535 of l_1_valence.weight.T, cols [:768] / [768:]
    # vec_ref      : (4, 1536) f32    rows = [b1, ln_gamma, ln_beta, valence.weight]
    # b2_ref       : (1,) f32 in SMEM (valence.bias)
    # out_ref      : (TB, 1) f32
    y_bf = y_ref[...]
    z_bf = z_ref[...]
    y = y_bf.astype(jnp.float32)          # f32 residual copies
    z = z_bf.astype(jnp.float32)

    vec = vec_ref[...]
    b1_l, b1_r = vec[0:1, :HALF], vec[0:1, HALF:]
    g_l,  g_r  = vec[1:2, :HALF], vec[1:2, HALF:]
    bt_l, bt_r = vec[2:3, :HALF], vec[2:3, HALF:]
    w2_l, w2_r = vec[3:4, :HALF], vec[3:4, HALF:]

    # Linear(1536, 1536) as four 768x768 quadrant matmuls (no activation concat):
    #   h[:, :768] = y @ Wtl + z @ Wbl,   h[:, 768:] = y @ Wtr + z @ Wbr
    h_l = jnp.dot(y_bf, wtl_ref[...], preferred_element_type=jnp.float32)
    h_l = h_l + jnp.dot(z_bf, wbl_ref[...], preferred_element_type=jnp.float32)
    h_l = h_l + b1_l + y                                  # bias + residual (left half)

    h_r = jnp.dot(y_bf, wtr_ref[...], preferred_element_type=jnp.float32)
    h_r = h_r + jnp.dot(z_bf, wbr_ref[...], preferred_element_type=jnp.float32)
    h_r = h_r + b1_r + z                                  # bias + residual (right half)

    # LayerNorm over the full 1536-feature axis, stats from the two halves, f32,
    # two-pass (subtract-mean-then-square) variance.
    inv_h = jnp.float32(1.0 / HIDDEN)
    s1 = (jnp.sum(h_l, axis=-1, keepdims=True)
          + jnp.sum(h_r, axis=-1, keepdims=True))
    mean = s1 * inv_h
    d_l = h_l - mean
    d_r = h_r - mean
    s2 = (jnp.sum(d_l * d_l, axis=-1, keepdims=True)
          + jnp.sum(d_r * d_r, axis=-1, keepdims=True))
    inv_std = lax.rsqrt(s2 * inv_h + LN_EPS)

    # Affine + ReLU per half, then Linear(1536, 1) as two lane reductions.
    a_l = jnp.maximum(d_l * inv_std * g_l + bt_l, 0.0)
    a_r = jnp.maximum(d_r * inv_std * g_r + bt_r, 0.0)
    v = (jnp.sum(a_l * w2_l, axis=-1, keepdims=True)
         + jnp.sum(a_r * w2_r, axis=-1, keepdims=True)
         + b2_ref[0])
    out_ref[...] = jax.nn.sigmoid(v)


def _round_up(x, m):
    return ((x + m - 1) // m) * m


def _vmem_capacity_bytes():
    """Physical VMEM of the current TPU generation; conservative fallback."""
    try:
        return int(pltpu.get_tpu_info().vmem_capacity_bytes)
    except Exception:
        return 64 << 20   # assume v7x-sized VMEM if the query is unavailable


def _choose_tile(B, small_vmem):
    """Batch tile: large to amortize per-step overhead, bounded by VMEM budget."""
    cap = 512 if small_vmem else 1024
    bp8 = _round_up(max(B, 1), 8)
    tb = min(cap, bp8)
    if small_vmem and bp8 >= 16:
        # v7x has 2 TensorCores: make sure the parallel grid has >= 2 steps.
        tb = min(tb, _round_up((bp8 + 1) // 2, 8))
    return tb


def _resident_spec(shape):
    """Constant-index (VMEM-resident) BlockSpec; single-buffered when supported."""
    ndim = len(shape)
    idx = lambda i, _n=ndim: (0,) * _n
    if hasattr(pl, "Buffered"):
        try:
            return pl.BlockSpec(shape, idx, pipeline_mode=pl.Buffered(1))
        except TypeError:
            pass
    return pl.BlockSpec(shape, idx)


def prepare_params(w1, b1, gamma, beta, w2, b2):
    """One-time prep: bf16 w1 split into quadrants + packed per-feature vectors."""
    w1 = jnp.asarray(w1, jnp.float32).astype(jnp.bfloat16)   # (H, H) = weight.T
    wtl = w1[:HALF, :HALF]
    wtr = w1[:HALF, HALF:]
    wbl = w1[HALF:, :HALF]
    wbr = w1[HALF:, HALF:]
    vecs = jnp.stack(
        [jnp.asarray(b1, jnp.float32).reshape(HIDDEN),
         jnp.asarray(gamma, jnp.float32).reshape(HIDDEN),
         jnp.asarray(beta, jnp.float32).reshape(HIDDEN),
         jnp.asarray(w2, jnp.float32).reshape(HIDDEN)],
        axis=0)                                               # (4, 1536) f32
    b2s = jnp.asarray(b2, jnp.float32).reshape((1,))
    return wtl, wtr, wbl, wbr, vecs, b2s


def bert_regression_head(y, z, prepared):
    """y, z: pooled BERT outputs, each [B, 768]. Returns valence [B, 1] f32."""
    wtl, wtr, wbl, wbr, vecs, b2 = prepared
    y = jnp.asarray(y).astype(jnp.bfloat16)   # bf16 activation stream into the kernel
    z = jnp.asarray(z).astype(jnp.bfloat16)
    B = y.shape[0]

    vmem_cap = _vmem_capacity_bytes()
    small_vmem = vmem_cap < (100 << 20)       # v7x-class (64 MiB) vs v5e/v6e (128 MiB)
    tb = _choose_tile(B, small_vmem)
    Bp = _round_up(B, tb)
    if Bp != B:
        pad = Bp - B
        y = jnp.pad(y, ((0, pad), (0, 0)))
        z = jnp.pad(z, ((0, pad), (0, 0)))
    grid = (Bp // tb,)

    out = pl.pallas_call(
        _head_kernel,
        out_shape=jax.ShapeDtypeStruct((Bp, 1), jnp.float32),
        grid=grid,
        in_specs=[
            pl.BlockSpec((tb, HALF), lambda i: (i, 0)),          # y tile (bf16)
            pl.BlockSpec((tb, HALF), lambda i: (i, 0)),          # z tile (bf16)
            _resident_spec((HALF, HALF)),                        # w1 quadrant TL
            _resident_spec((HALF, HALF)),                        # w1 quadrant TR
            _resident_spec((HALF, HALF)),                        # w1 quadrant BL
            _resident_spec((HALF, HALF)),                        # w1 quadrant BR
            _resident_spec((4, HIDDEN)),                         # packed b1/gamma/beta/w2
            pl.BlockSpec(memory_space=pltpu.MemorySpace.SMEM),   # b2 scalar in SMEM
        ],
        out_specs=pl.BlockSpec((tb, 1), lambda i: (i, 0)),
        compiler_params=pltpu.CompilerParams(
            dimension_semantics=("parallel",),
            vmem_limit_bytes=(40 << 20) if small_vmem else (48 << 20),
        ),
    )(y, z, wtl, wtr, wbl, wbr, vecs, b2)
    return out[:B]


def _reference(y, z, w1, b1, gamma, beta, w2, b2):
    """Pure-JAX reference with the same bf16 weight/activation quantization."""
    yb = jnp.asarray(y).astype(jnp.bfloat16)
    zb = jnp.asarray(z).astype(jnp.bfloat16)
    x_bf = jnp.concatenate([yb, zb], axis=1)
    h = jnp.dot(x_bf, jnp.asarray(w1, jnp.float32).astype(jnp.bfloat16),
                preferred_element_type=jnp.float32)
    h = h + b1 + x_bf.astype(jnp.float32)
    mean = jnp.mean(h, axis=-1, keepdims=True)
    var = jnp.mean((h - mean) ** 2, axis=-1, keepdims=True)
    hn = (h - mean) * lax.rsqrt(var + LN_EPS) * gamma + beta
    a = jnp.maximum(hn, 0.0)
    return jax.nn.sigmoid(a @ w2.reshape(HIDDEN, 1) + b2)


if __name__ == "__main__":
    key = jax.random.PRNGKey(0)
    kp1, kp2, kp3, kp4, ky, kz = jax.random.split(key, 6)

    B = 8
    scale = 1.0 / float(HIDDEN) ** 0.5
    # Synthetic parameters matching the module's __init__ shapes (w1 = weight.T).
    w1 = jax.random.uniform(kp1, (HIDDEN, HIDDEN), jnp.float32, -scale, scale)
    b1 = jax.random.uniform(kp2, (HIDDEN,), jnp.float32, -scale, scale)
    gamma = jnp.ones((HIDDEN,), jnp.float32)      # nn.LayerNorm init
    beta = jnp.zeros((HIDDEN,), jnp.float32)
    w2 = jax.random.uniform(kp3, (HIDDEN,), jnp.float32, -scale, scale)
    b2 = jax.random.uniform(kp4, (), jnp.float32, -scale, scale)

    # Synthetic pooled BERT outputs (stand-ins for bert1/bert2 pooler outputs).
    y = jax.random.normal(ky, (B, HALF), jnp.float32)
    z = jax.random.normal(kz, (B, HALF), jnp.float32)

    prepared = prepare_params(w1, b1, gamma, beta, w2, b2)

    valence = bert_regression_head(y, z, prepared)
    valence = jax.block_until_ready(valence)
    ref = _reference(y, z, w1, b1, gamma, beta, w2, b2)
    assert valence.shape == (B, 1)
    assert bool(jnp.all((valence >= 0.0) & (valence <= 1.0)))
    assert bool(jnp.allclose(valence, ref, atol=2e-3, rtol=2e-3))

    # Ragged batch (exercises the padding path; B=5 is not a multiple of 8).
    valence5 = jax.block_until_ready(bert_regression_head(y[:5], z[:5], prepared))
    assert valence5.shape == (5, 1)
    assert bool(jnp.allclose(valence5, ref[:5], atol=2e-3, rtol=2e-3))

    print("KERNEL_OK")
</pallas_src>

<mosaic_0001>
module attributes {stable_mosaic.version = 11 : i64} {
  func.func @_head_kernel(%arg0: i32, %arg1: memref<8x768xbf16, #tpu.memory_space<vmem>>, %arg2: memref<8x768xbf16, #tpu.memory_space<vmem>>, %arg3: memref<768x768xbf16, #tpu.memory_space<vmem>>, %arg4: memref<768x768xbf16, #tpu.memory_space<vmem>>, %arg5: memref<768x768xbf16, #tpu.memory_space<vmem>>, %arg6: memref<768x768xbf16, #tpu.memory_space<vmem>>, %arg7: memref<4x1536xf32, #tpu.memory_space<vmem>>, %arg8: memref<1xf32, #tpu.memory_space<smem>>, %arg9: memref<8x1xf32, #tpu.memory_space<vmem>>) attributes {dimension_semantics = [#tpu.dimension_semantics<parallel>], iteration_bounds = array<i64: 1>, scalar_prefetch = 0 : i64, scratch_operands = 0 : i64, tpu.core_type = #tpu.core_type<tc>, window_params = [{transform_indices = @transform_0, window_bounds = array<i64: 8, 768>}, {transform_indices = @transform_1, window_bounds = array<i64: 8, 768>}, {pipeline_mode = #tpu.pipeline_mode<synchronous>, transform_indices = @transform_2, window_bounds = array<i64: 768, 768>}, {pipeline_mode = #tpu.pipeline_mode<synchronous>, transform_indices = @transform_3, window_bounds = array<i64: 768, 768>}, {pipeline_mode = #tpu.pipeline_mode<synchronous>, transform_indices = @transform_4, window_bounds = array<i64: 768, 768>}, {pipeline_mode = #tpu.pipeline_mode<synchronous>, transform_indices = @transform_5, window_bounds = array<i64: 768, 768>}, {pipeline_mode = #tpu.pipeline_mode<synchronous>, transform_indices = @transform_6, window_bounds = array<i64: 4, 1536>}, {transform_indices = @transform_7, window_bounds = array<i64: 1>}, {transform_indices = @transform_8, window_bounds = array<i64: 8, 1>}]} {
    %c0 = arith.constant 0 : index
    %c0_0 = arith.constant 0 : index
    %0 = vector.load %arg1[%c0, %c0_0] : memref<8x768xbf16, #tpu.memory_space<vmem>>, vector<8x768xbf16>
    %c0_1 = arith.constant 0 : index
    %c0_2 = arith.constant 0 : index
    %1 = vector.load %arg2[%c0_1, %c0_2] : memref<8x768xbf16, #tpu.memory_space<vmem>>, vector<8x768xbf16>
    %2 = arith.extf %0 : vector<8x768xbf16> to vector<8x768xf32>
    %3 = arith.extf %1 : vector<8x768xbf16> to vector<8x768xf32>
    %c0_3 = arith.constant 0 : index
    %c0_4 = arith.constant 0 : index
    %4 = vector.load %arg7[%c0_3, %c0_4] : memref<4x1536xf32, #tpu.memory_space<vmem>>, vector<4x1536xf32>
    %5 = vector.extract_strided_slice %4 {offsets = [0, 0], sizes = [1, 768], strides = [1, 1]} : vector<4x1536xf32> to vector<1x768xf32>
    %6 = vector.extract_strided_slice %4 {offsets = [0, 768], sizes = [1, 768], strides = [1, 1]} : vector<4x1536xf32> to vector<1x768xf32>
    %7 = vector.extract_strided_slice %4 {offsets = [1, 0], sizes = [1, 768], strides = [1, 1]} : vector<4x1536xf32> to vector<1x768xf32>
    %8 = vector.extract_strided_slice %4 {offsets = [1, 768], sizes = [1, 768], strides = [1, 1]} : vector<4x1536xf32> to vector<1x768xf32>
    %9 = vector.extract_strided_slice %4 {offsets = [2, 0], sizes = [1, 768], strides = [1, 1]} : vector<4x1536xf32> to vector<1x768xf32>
    %10 = vector.extract_strided_slice %4 {offsets = [2, 768], sizes = [1, 768], strides = [1, 1]} : vector<4x1536xf32> to vector<1x768xf32>
    %11 = vector.extract_strided_slice %4 {offsets = [3, 0], sizes = [1, 768], strides = [1, 1]} : vector<4x1536xf32> to vector<1x768xf32>
    %12 = vector.extract_strided_slice %4 {offsets = [3, 768], sizes = [1, 768], strides = [1, 1]} : vector<4x1536xf32> to vector<1x768xf32>
    %c0_5 = arith.constant 0 : index
    %c0_6 = arith.constant 0 : index
    %13 = vector.load %arg3[%c0_5, %c0_6] : memref<768x768xbf16, #tpu.memory_space<vmem>>, vector<768x768xbf16>
    %cst = arith.constant dense<0.000000e+00> : vector<8x768xf32>
    %14 = tpu.matmul %0, %13, %cst {dimension_numbers = #tpu.dot_dimension_numbers<[1], [0], [0], [1], [0, 0, 1, 1], [], []>} : vector<8x768xbf16>, vector<768x768xbf16>, vector<8x768xf32> -> vector<8x768xf32>
    %c0_7 = arith.constant 0 : index
    %c0_8 = arith.constant 0 : index
    %15 = vector.load %arg5[%c0_7, %c0_8] : memref<768x768xbf16, #tpu.memory_space<vmem>>, vector<768x768xbf16>
    %cst_9 = arith.constant dense<0.000000e+00> : vector<8x768xf32>
    %16 = tpu.matmul %1, %15, %cst_9 {dimension_numbers = #tpu.dot_dimension_numbers<[1], [0], [0], [1], [0, 0, 1, 1], [], []>} : vector<8x768xbf16>, vector<768x768xbf16>, vector<8x768xf32> -> vector<8x768xf32>
    %17 = arith.addf %14, %16 : vector<8x768xf32>
    %18 = vector.broadcast %5 : vector<1x768xf32> to vector<8x768xf32>
    %19 = arith.addf %17, %18 : vector<8x768xf32>
    %20 = arith.addf %19, %2 : vector<8x768xf32>
    %c0_10 = arith.constant 0 : index
    %c0_11 = arith.constant 0 : index
    %21 = vector.load %arg4[%c0_10, %c0_11] : memref<768x768xbf16, #tpu.memory_space<vmem>>, vector<768x768xbf16>
    %cst_12 = arith.constant dense<0.000000e+00> : vector<8x768xf32>
    %22 = tpu.matmul %0, %21, %cst_12 {dimension_numbers = #tpu.dot_dimension_numbers<[1], [0], [0], [1], [0, 0, 1, 1], [], []>} : vector<8x768xbf16>, vector<768x768xbf16>, vector<8x768xf32> -> vector<8x768xf32>
    %c0_13 = arith.constant 0 : index
    %c0_14 = arith.constant 0 : index
    %23 = vector.load %arg6[%c0_13, %c0_14] : memref<768x768xbf16, #tpu.memory_space<vmem>>, vector<768x768xbf16>
    %cst_15 = arith.constant dense<0.000000e+00> : vector<8x768xf32>
    %24 = tpu.matmul %1, %23, %cst_15 {dimension_numbers = #tpu.dot_dimension_numbers<[1], [0], [0], [1], [0, 0, 1, 1], [], []>} : vector<8x768xbf16>, vector<768x768xbf16>, vector<8x768xf32> -> vector<8x768xf32>
    %25 = arith.addf %22, %24 : vector<8x768xf32>
    %26 = vector.broadcast %6 : vector<1x768xf32> to vector<8x768xf32>
    %27 = arith.addf %25, %26 : vector<8x768xf32>
    %28 = arith.addf %27, %3 : vector<8x768xf32>
    %cst_16 = arith.constant dense<0.000000e+00> : vector<8xf32>
    %29 = vector.multi_reduction <add>, %20, %cst_16 [1] : vector<8x768xf32> to vector<8xf32>
    %30 = vector.shape_cast %29 : vector<8xf32> to vector<8x1xf32>
    %cst_17 = arith.constant dense<0.000000e+00> : vector<8xf32>
    %31 = vector.multi_reduction <add>, %28, %cst_17 [1] : vector<8x768xf32> to vector<8xf32>
    %32 = vector.shape_cast %31 : vector<8xf32> to vector<8x1xf32>
    %33 = arith.addf %30, %32 : vector<8x1xf32>
    %cst_18 = arith.constant 6.51041686E-4 : f32
    %34 = vector.broadcast %cst_18 : f32 to vector<8x1xf32>
    %35 = arith.mulf %33, %34 : vector<8x1xf32>
    %36 = vector.broadcast %35 : vector<8x1xf32> to vector<8x768xf32>
    %37 = arith.subf %20, %36 : vector<8x768xf32>
    %38 = vector.broadcast %35 : vector<8x1xf32> to vector<8x768xf32>
    %39 = arith.subf %28, %38 : vector<8x768xf32>
    %40 = arith.mulf %37, %37 : vector<8x768xf32>
    %cst_19 = arith.constant dense<0.000000e+00> : vector<8xf32>
    %41 = vector.multi_reduction <add>, %40, %cst_19 [1] : vector<8x768xf32> to vector<8xf32>
    %42 = vector.shape_cast %41 : vector<8xf32> to vector<8x1xf32>
    %43 = arith.mulf %39, %39 : vector<8x768xf32>
    %cst_20 = arith.constant dense<0.000000e+00> : vector<8xf32>
    %44 = vector.multi_reduction <add>, %43, %cst_20 [1] : vector<8x768xf32> to vector<8xf32>
    %45 = vector.shape_cast %44 : vector<8xf32> to vector<8x1xf32>
    %46 = arith.addf %42, %45 : vector<8x1xf32>
    %cst_21 = arith.constant 6.51041686E-4 : f32
    %47 = vector.broadcast %cst_21 : f32 to vector<8x1xf32>
    %48 = arith.mulf %46, %47 : vector<8x1xf32>
    %cst_22 = arith.constant 9.99999974E-6 : f32
    %49 = vector.broadcast %cst_22 : f32 to vector<8x1xf32>
    %50 = arith.addf %48, %49 : vector<8x1xf32>
    %51 = math.rsqrt %50 : vector<8x1xf32>
    %52 = vector.broadcast %51 : vector<8x1xf32> to vector<8x768xf32>
    %53 = arith.mulf %37, %52 : vector<8x768xf32>
    %54 = vector.broadcast %7 : vector<1x768xf32> to vector<8x768xf32>
    %55 = arith.mulf %53, %54 : vector<8x768xf32>
    %56 = vector.broadcast %9 : vector<1x768xf32> to vector<8x768xf32>
    %57 = arith.addf %55, %56 : vector<8x768xf32>
    %cst_23 = arith.constant 0.000000e+00 : f32
    %58 = vector.broadcast %cst_23 : f32 to vector<8x768xf32>
    %59 = arith.maximumf %57, %58 : vector<8x768xf32>
    %60 = vector.broadcast %51 : vector<8x1xf32> to vector<8x768xf32>
    %61 = arith.mulf %39, %60 : vector<8x768xf32>
    %62 = vector.broadcast %8 : vector<1x768xf32> to vector<8x768xf32>
    %63 = arith.mulf %61, %62 : vector<8x768xf32>
    %64 = vector.broadcast %10 : vector<1x768xf32> to vector<8x768xf32>
    %65 = arith.addf %63, %64 : vector<8x768xf32>
    %cst_24 = arith.constant 0.000000e+00 : f32
    %66 = vector.broadcast %cst_24 : f32 to vector<8x768xf32>
    %67 = arith.maximumf %65, %66 : vector<8x768xf32>
    %68 = vector.broadcast %11 : vector<1x768xf32> to vector<8x768xf32>
    %69 = arith.mulf %59, %68 : vector<8x768xf32>
    %cst_25 = arith.constant dense<0.000000e+00> : vector<8xf32>
    %70 = vector.multi_reduction <add>, %69, %cst_25 [1] : vector<8x768xf32> to vector<8xf32>
    %71 = vector.shape_cast %70 : vector<8xf32> to vector<8x1xf32>
    %72 = vector.broadcast %12 : vector<1x768xf32> to vector<8x768xf32>
    %73 = arith.mulf %67, %72 : vector<8x768xf32>
    %cst_26 = arith.constant dense<0.000000e+00> : vector<8xf32>
    %74 = vector.multi_reduction <add>, %73, %cst_26 [1] : vector<8x768xf32> to vector<8xf32>
    %75 = vector.shape_cast %74 : vector<8xf32> to vector<8x1xf32>
    %76 = arith.addf %71, %75 : vector<8x1xf32>
    %c0_27 = arith.constant 0 : index
    %77 = memref.load %arg8[%c0_27] : memref<1xf32, #tpu.memory_space<smem>>
    %78 = vector.broadcast %77 : f32 to vector<8x1xf32>
    %79 = arith.addf %76, %78 : vector<8x1xf32>
    %80 = arith.negf %79 : vector<8x1xf32>
    %81 = math.exp %80 : vector<8x1xf32>
    %cst_28 = arith.constant 1.000000e+00 : f32
    %82 = vector.broadcast %cst_28 : f32 to vector<8x1xf32>
    %83 = arith.addf %82, %81 : vector<8x1xf32>
    %84 = arith.divf %82, %83 : vector<8x1xf32>
    %c0_29 = arith.constant 0 : index
    %c0_30 = arith.constant 0 : index
    %85 = vector.load %arg9[%c0_29, %c0_30] : memref<8x1xf32, #tpu.memory_space<vmem>>, vector<8x1xf32>
    tpu.vector_store %arg9[%c0_29, %c0_30], %84 {strides = array<i32>} : memref<8x1xf32, #tpu.memory_space<vmem>>, vector<8x1xf32>,
    return
  }
  func.func @transform_0(%arg0: i32) -> (i32, i32) {
    %c0_i32 = arith.constant 0 : i32
    %c0_i32_0 = arith.constant 0 : i32
    return %arg0, %c0_i32 : i32, i32
  }
  func.func @transform_1(%arg0: i32) -> (i32, i32) {
    %c0_i32 = arith.constant 0 : i32
    %c0_i32_0 = arith.constant 0 : i32
    return %arg0, %c0_i32 : i32, i32
  }
  func.func @transform_2(%arg0: i32) -> (i32, i32) {
    %c0_i32 = arith.constant 0 : i32
    %c0_i32_0 = arith.constant 0 : i32
    %c0_i32_1 = arith.constant 0 : i32
    return %c0_i32, %c0_i32_0 : i32, i32
  }
  func.func @transform_3(%arg0: i32) -> (i32, i32) {
    %c0_i32 = arith.constant 0 : i32
    %c0_i32_0 = arith.constant 0 : i32
    %c0_i32_1 = arith.constant 0 : i32
    return %c0_i32, %c0_i32_0 : i32, i32
  }
  func.func @transform_4(%arg0: i32) -> (i32, i32) {
    %c0_i32 = arith.constant 0 : i32
    %c0_i32_0 = arith.constant 0 : i32
    %c0_i32_1 = arith.constant 0 : i32
    return %c0_i32, %c0_i32_0 : i32, i32
  }
  func.func @transform_5(%arg0: i32) -> (i32, i32) {
    %c0_i32 = arith.constant 0 : i32
    %c0_i32_0 = arith.constant 0 : i32
    %c0_i32_1 = arith.constant 0 : i32
    return %c0_i32, %c0_i32_0 : i32, i32
  }
  func.func @transform_6(%arg0: i32) -> (i32, i32) {
    %c0_i32 = arith.constant 0 : i32
    %c0_i32_0 = arith.constant 0 : i32
    %c0_i32_1 = arith.constant 0 : i32
    return %c0_i32, %c0_i32_0 : i32, i32
  }
  func.func @transform_7(%arg0: i32) -> i32 {
    %c0_i32 = arith.constant 0 : i32
    %c0_i32_0 = arith.constant 0 : i32
    return %c0_i32 : i32
  }
  func.func @transform_8(%arg0: i32) -> (i32, i32) {
    %c0_i32 = arith.constant 0 : i32
    %c0_i32_0 = arith.constant 0 : i32
    return %arg0, %c0_i32 : i32, i32
  }
}

</mosaic_0001>

<llo_original>
// kernel: tpu_custom_call.1
$region0: #{tpu_custom_call.1}
  #allocation0 [shape = 'u32[]', space=smem, size = 0x4, offset = 0x4, fixed_abs, tag = 'smem constant byte address 0x4 - core index']
  #allocation1 [shape = 'u32[144,128]{1,0:T(1,128)}', space=vmem, size = 0x12000, scoped, tag = 'internal scratch']
  #allocation2 [shape = 'f32[1]{0:T(128)S(6)}', space=smem, size = 0x200, scoped, tag = 'scoped memory for tpu_custom_call.1']
  %s0 = inlined_call_operand.hbm [shape: bf16[8,768], index: 0, kind: input, shape index: {}]
  %s1 = inlined_call_operand.hbm [shape: bf16[8,768], index: 1, kind: input, shape index: {}]
  %s2 = inlined_call_operand.hbm [shape: bf16[768,768], index: 2, kind: input, shape index: {}]
  %s3 = inlined_call_operand.hbm [shape: bf16[768,768], index: 3, kind: input, shape index: {}]
  %s4 = inlined_call_operand.hbm [shape: bf16[768,768], index: 4, kind: input, shape index: {}]
  %s5 = inlined_call_operand.hbm [shape: bf16[768,768], index: 5, kind: input, shape index: {}]
  %s6 = inlined_call_operand.hbm [shape: f32[4,1536], index: 6, kind: input, shape index: {}]
  %s7 = inlined_call_operand.<no memory space> [shape: f32[1], index: 7, kind: input, shape index: {}]
  %s8 = inlined_call_operand.vmem [shape: f32[8,1], index: 8, kind: output, shape index: {}]
  %s9 = sld [smem:[#allocation0]]
  $region70: #{tpu_custom_call.1} parent=0
    _
  %s11 = ssub.s32 1, %s9
  %s12 = scalar_select 0, %s11, %s9
  %13 = sst [smem:[#allocation2]] %s7
  $region1: #{tpu_custom_call.1} parent=0
    #allocation3 [shape = 'u8[12288]{0}', space=vmem, size = 0x3000, scoped, tag = 'input window, operand 0, single buffered']
    #allocation4 [shape = 's32[1]{0}', space=sflag, size = 0x4, scoped, tag = 'scoped memory for tpu_custom_call.1']
    #allocation5 [shape = 'u8[12288]{0}', space=vmem, size = 0x3000, scoped, tag = 'input window, operand 1, single buffered']
    #allocation6 [shape = 's32[1]{0}', space=sflag, size = 0x4, scoped, tag = 'scoped memory for tpu_custom_call.1']
    #allocation7 [shape = 'u8[1179648]{0}', space=vmem, size = 0x120000, scoped, tag = 'input window, operand 2, single buffered']
    #allocation8 [shape = 'u8[1179648]{0}', space=vmem, size = 0x120000, scoped, tag = 'input window, operand 3, single buffered']
    #allocation9 [shape = 's32[1]{0}', space=sflag, size = 0x4, scoped, tag = 'scoped memory for tpu_custom_call.1']
    #allocation10 [shape = 'u8[1179648]{0}', space=vmem, size = 0x120000, scoped, tag = 'input window, operand 4, single buffered']
    #allocation11 [shape = 'u8[1179648]{0}', space=vmem, size = 0x120000, scoped, tag = 'input window, operand 5, single buffered']
    #allocation12 [shape = 's32[1]{0}', space=sflag, size = 0x4, scoped, tag = 'scoped memory for tpu_custom_call.1']
    #allocation13 [shape = 'u8[24576]{0}', space=vmem, size = 0x6000, scoped, tag = 'input window, operand 6, single buffered']
    %14 = vsyncpa [#allocation4], 0
    %15 = vsyncpa [#allocation6], 0
    %16 = vsyncpa [#allocation9], 0
    %17 = vsyncpa [#allocation12], 0
    // Predicated region
    $region2: #{tpu_custom_call.1} parent=1 // pred_check
      _
    $region3: #{tpu_custom_call.1} parent=1 // pred_check_branch
      %19 = sbr.rel (0) target = $region5
    $region4: #{tpu_custom_call.1} parent=1 // pred_region
      %s21 = ssub.s32 384, 384
      %22 = vsyncadd [#allocation4], %s21
      %s24 = sshll.u32 [#allocation3], 4
      %s25 = int_to_ptr.vmem [resolvable:$true] %s24
      %27 = dma.hbm_to_vmem [thread:$0]  %s0, 384, %s25, [#allocation4]
    $region5: #{tpu_custom_call.1} parent=1 // pred_fallthru
      _
    // Predicated region
    $region6: #{tpu_custom_call.1} parent=1 // pred_check
      _
    $region7: #{tpu_custom_call.1} parent=1 // pred_check_branch
      %29 = sbr.rel (0) target = $region9
    $region8: #{tpu_custom_call.1} parent=1 // pred_region
      %s31 = ssub.s32 384, 384
      %32 = vsyncadd [#allocation6], %s31
      %s34 = sshll.u32 [#allocation5], 4
      %s35 = int_to_ptr.vmem [resolvable:$true] %s34
      %37 = dma.hbm_to_vmem [thread:$0]  %s1, 384, %s35, [#allocation6]
    $region9: #{tpu_custom_call.1} parent=1 // pred_fallthru
      _
    // Predicated region
    $region10: #{tpu_custom_call.1} parent=1 // pred_check
      _
    $region11: #{tpu_custom_call.1} parent=1 // pred_check_branch
      %39 = sbr.rel (0) target = $region13
    $region12: #{tpu_custom_call.1} parent=1 // pred_region
      %s41 = ssub.s32 36864, 36864
      %42 = vsyncadd [#allocation6], %s41
      %s43 = sshll.u32 [#allocation7], 4
      %s44 = int_to_ptr.vmem [resolvable:$true] %s43
      %49 = dma.hbm_to_vmem [thread:$0]  %s2, 36864, %s44, [#allocation6], 384, 384, 24
    $region13: #{tpu_custom_call.1} parent=1 // pred_fallthru
      _
    // Predicated region
    $region14: #{tpu_custom_call.1} parent=1 // pred_check
      _
    $region15: #{tpu_custom_call.1} parent=1 // pred_check_branch
      %51 = sbr.rel (0) target = $region17
    $region16: #{tpu_custom_call.1} parent=1 // pred_region
      %s53 = ssub.s32 36864, 36864
      %54 = vsyncadd [#allocation9], %s53
      %s55 = sshll.u32 [#allocation8], 4
      %s56 = int_to_ptr.vmem [resolvable:$true] %s55
      %61 = dma.hbm_to_vmem [thread:$0]  %s3, 36864, %s56, [#allocation9], 384, 384, 24
    $region17: #{tpu_custom_call.1} parent=1 // pred_fallthru
      _
    // Predicated region
    $region18: #{tpu_custom_call.1} parent=1 // pred_check
      _
    $region19: #{tpu_custom_call.1} parent=1 // pred_check_branch
      %63 = sbr.rel (0) target = $region21
    $region20: #{tpu_custom_call.1} parent=1 // pred_region
      %s65 = ssub.s32 36864, 36864
      %66 = vsyncadd [#allocation9], %s65
      %s67 = sshll.u32 [#allocation10], 4
      %s68 = int_to_ptr.vmem [resolvable:$true] %s67
      %73 = dma.hbm_to_vmem [thread:$0]  %s4, 36864, %s68, [#allocation9], 384, 384, 24
    $region21: #{tpu_custom_call.1} parent=1 // pred_fallthru
      _
    // Predicated region
    $region22: #{tpu_custom_call.1} parent=1 // pred_check
      _
    $region23: #{tpu_custom_call.1} parent=1 // pred_check_branch
      %75 = sbr.rel (0) target = $region25
    $region24: #{tpu_custom_call.1} parent=1 // pred_region
      %s77 = ssub.s32 36864, 36864
      %78 = vsyncadd [#allocation12], %s77
      %s79 = sshll.u32 [#allocation11], 4
      %s80 = int_to_ptr.vmem [resolvable:$true] %s79
      %85 = dma.hbm_to_vmem [thread:$0]  %s5, 36864, %s80, [#allocation12], 384, 384, 24
    $region25: #{tpu_custom_call.1} parent=1 // pred_fallthru
      _
    // Predicated region
    $region26: #{tpu_custom_call.1} parent=1 // pred_check
      _
    $region27: #{tpu_custom_call.1} parent=1 // pred_check_branch
      %87 = sbr.rel (0) target = $region29
    $region28: #{tpu_custom_call.1} parent=1 // pred_region
      %s89 = ssub.s32 768, 768
      %90 = vsyncadd [#allocation12], %s89
      %s92 = sshll.u32 [#allocation13], 4
      %s93 = int_to_ptr.vmem [resolvable:$true] %s92
      %95 = dma.hbm_to_vmem [thread:$0]  %s6, 768, %s93, [#allocation12]
    $region29: #{tpu_custom_call.1} parent=1 // pred_fallthru
      _
    // Predicated region
    $region30: #{tpu_custom_call.1} parent=1 // pred_check
      _
    $region31: #{tpu_custom_call.1} parent=1 // pred_check_branch
      %97 = sbr.rel (0) target = $region33
    $region32: #{tpu_custom_call.1} parent=1 // pred_region
      _
    $region33: #{tpu_custom_call.1} parent=1 // pred_fallthru
      _
    // Predicated region
    $region34: #{tpu_custom_call.1} parent=1 // pred_check
      _
    $region35: #{tpu_custom_call.1} parent=1 // pred_check_branch
      %99 = sbr.rel (0) target = $region37
    $region36: #{tpu_custom_call.1} parent=1 // pred_region
      %100 = dma.done [#allocation4], 384
    $region37: #{tpu_custom_call.1} parent=1 // pred_fallthru
      _
    // Predicated region
    $region38: #{tpu_custom_call.1} parent=1 // pred_check
      _
    $region39: #{tpu_custom_call.1} parent=1 // pred_check_branch
      %102 = sbr.rel (0) target = $region41
    $region40: #{tpu_custom_call.1} parent=1 // pred_region
      %103 = dma.done [#allocation6], 384
    $region41: #{tpu_custom_call.1} parent=1 // pred_fallthru
      _
    // Predicated region
    $region42: #{tpu_custom_call.1} parent=1 // pred_check
      _
    $region43: #{tpu_custom_call.1} parent=1 // pred_check_branch
      %105 = sbr.rel (0) target = $region45
    $region44: #{tpu_custom_call.1} parent=1 // pred_region
      %106 = dma.done [#allocation6], 36864
    $region45: #{tpu_custom_call.1} parent=1 // pred_fallthru
      _
    // Predicated region
    $region46: #{tpu_custom_call.1} parent=1 // pred_check
      _
    $region47: #{tpu_custom_call.1} parent=1 // pred_check_branch
      %108 = sbr.rel (0) target = $region49
    $region48: #{tpu_custom_call.1} parent=1 // pred_region
      %109 = dma.done [#allocation9], 36864
    $region49: #{tpu_custom_call.1} parent=1 // pred_fallthru
      _
    // Predicated region
    $region50: #{tpu_custom_call.1} parent=1 // pred_check
      _
    $region51: #{tpu_custom_call.1} parent=1 // pred_check_branch
      %111 = sbr.rel (0) target = $region53
    $region52: #{tpu_custom_call.1} parent=1 // pred_region
      %112 = dma.done [#allocation9], 36864
    $region53: #{tpu_custom_call.1} parent=1 // pred_fallthru
      _
    // Predicated region
    $region54: #{tpu_custom_call.1} parent=1 // pred_check
      _
    $region55: #{tpu_custom_call.1} parent=1 // pred_check_branch
      %114 = sbr.rel (0) target = $region57
    $region56: #{tpu_custom_call.1} parent=1 // pred_region
      %115 = dma.done [#allocation12], 36864
    $region57: #{tpu_custom_call.1} parent=1 // pred_fallthru
      _
    // Predicated region
    $region58: #{tpu_custom_call.1} parent=1 // pred_check
      _
    $region59: #{tpu_custom_call.1} parent=1 // pred_check_branch
      %117 = sbr.rel (0) target = $region61
    $region60: #{tpu_custom_call.1} parent=1 // pred_region
      %118 = dma.done [#allocation12], 768
    $region61: #{tpu_custom_call.1} parent=1 // pred_fallthru
      _
    %v119 = vld [vmem:[#allocation3] sm:$0xff]
    %v120 = vld [vmem:[#allocation3 + $0x8] sm:$0xff]
    %v121 = vld [vmem:[#allocation3 + $0x10] sm:$0xff]
    %v122 = vld [vmem:[#allocation5] sm:$0xff]
    %v123 = vld [vmem:[#allocation5 + $0x8] sm:$0xff]
    %v124 = vld [vmem:[#allocation5 + $0x10] sm:$0xff]
    %v125 = vunpack.c.l.bf16 %v119
    %v126 = vunpack.c.h.bf16 %v119
    %v127 = vunpack.c.l.bf16 %v120
    %v128 = vunpack.c.h.bf16 %v120
    %v129 = vunpack.c.l.bf16 %v121
    %v130 = vunpack.c.h.bf16 %v121
    %v131 = vunpack.c.l.bf16 %v122
    %v132 = vunpack.c.h.bf16 %v122
    %v133 = vunpack.c.l.bf16 %v123
    %v134 = vunpack.c.h.bf16 %v123
    %v135 = vunpack.c.l.bf16 %v124
    %v136 = vunpack.c.h.bf16 %v124
    %v137 = vld [vmem:[#allocation13] sm:$0xff]
    %v138 = vld [vmem:[#allocation13 + $0x8] sm:$0xff]
    %v139 = vld [vmem:[#allocation13 + $0x10] sm:$0xff]
    %v140 = vld [vmem:[#allocation13 + $0x18] sm:$0xff]
    %v141 = vld [vmem:[#allocation13 + $0x20] sm:$0xff]
    %v142 = vld [vmem:[#allocation13 + $0x28] sm:$0xff]
    %v143 = vld [vmem:[#allocation7] sm:$0xff]
    %v144 = vld [vmem:[#allocation7 + $0x8] sm:$0xff]
    %v145 = vld [vmem:[#allocation7 + $0x10] sm:$0xff]
    %v146 = vld [vmem:[#allocation7 + $0x18] sm:$0xff]
    %v147 = vld [vmem:[#allocation7 + $0x20] sm:$0xff]
    %v148 = vld [vmem:[#allocation7 + $0x28] sm:$0xff]
    %v149 = vld [vmem:[#allocation7 + $0x30] sm:$0xff]
    %v150 = vld [vmem:[#allocation7 + $0x38] sm:$0xff]
    %v151 = vld [vmem:[#allocation7 + $0x40] sm:$0xff]
    %v152 = vld [vmem:[#allocation7 + $0x48] sm:$0xff]
    %v153 = vld [vmem:[#allocation7 + $0x50] sm:$0xff]
    %v154 = vld [vmem:[#allocation7 + $0x58] sm:$0xff]
    %v155 = vld [vmem:[#allocation7 + $0x60] sm:$0xff]
    %v156 = vld [vmem:[#allocation7 + $0x68] sm:$0xff]
    %v157 = vld [vmem:[#allocation7 + $0x70] sm:$0xff]
    %v158 = vld [vmem:[#allocation7 + $0x78] sm:$0xff]
    %v159 = vld [vmem:[#allocation7 + $0x80] sm:$0xff]
    %v160 = vld [vmem:[#allocation7 + $0x88] sm:$0xff]
    %v161 = vld [vmem:[#allocation7 + $0x90] sm:$0xff]
    %v162 = vld [vmem:[#allocation7 + $0x98] sm:$0xff]
    %v163 = vld [vmem:[#allocation7 + $0xa0] sm:$0xff]
    %v164 = vld [vmem:[#allocation7 + $0xa8] sm:$0xff]
    %v165 = vld [vmem:[#allocation7 + $0xb0] sm:$0xff]
    %v166 = vld [vmem:[#allocation7 + $0xb8] sm:$0xff]
    %v167 = vld [vmem:[#allocation7 + $0xc0] sm:$0xff]
    %v168 = vld [vmem:[#allocation7 + $0xc8] sm:$0xff]
    %v169 = vld [vmem:[#allocation7 + $0xd0] sm:$0xff]
    %v170 = vld [vmem:[#allocation7 + $0xd8] sm:$0xff]
    %v171 = vld [vmem:[#allocation7 + $0xe0] sm:$0xff]
    %v172 = vld [vmem:[#allocation7 + $0xe8] sm:$0xff]
    %v173 = vld [vmem:[#allocation7 + $0xf0] sm:$0xff]
    %v174 = vld [vmem:[#allocation7 + $0xf8] sm:$0xff]
    %v175 = vld [vmem:[#allocation7 + $0x100] sm:$0xff]
    %v176 = vld [vmem:[#allocation7 + $0x108] sm:$0xff]
    %v177 = vld [vmem:[#allocation7 + $0x110] sm:$0xff]
    %v178 = vld [vmem:[#allocation7 + $0x118] sm:$0xff]
    %v179 = vld [vmem:[#allocation7 + $0x120] sm:$0xff]
    %v180 = vld [vmem:[#allocation7 + $0x128] sm:$0xff]
    %v181 = vld [vmem:[#allocation7 + $0x130] sm:$0xff]
    %v182 = vld [vmem:[#allocation7 + $0x138] sm:$0xff]
    %v183 = vld [vmem:[#allocation7 + $0x140] sm:$0xff]
    %v184 = vld [vmem:[#allocation7 + $0x148] sm:$0xff]
    %v185 = vld [vmem:[#allocation7 + $0x150] sm:$0xff]
    %v186 = vld [vmem:[#allocation7 + $0x158] sm:$0xff]
    %v187 = vld [vmem:[#allocation7 + $0x160] sm:$0xff]
    %v188 = vld [vmem:[#allocation7 + $0x168] sm:$0xff]
    %v189 = vld [vmem:[#allocation7 + $0x170] sm:$0xff]
    %v190 = vld [vmem:[#allocation7 + $0x178] sm:$0xff]
    %v191 = vld [vmem:[#allocation7 + $0x180] sm:$0xff]
    %v192 = vld [vmem:[#allocation7 + $0x188] sm:$0xff]
    %v193 = vld [vmem:[#allocation7 + $0x190] sm:$0xff]
    %v194 = vld [vmem:[#allocation7 + $0x198] sm:$0xff]
    %v195 = vld [vmem:[#allocation7 + $0x1a0] sm:$0xff]
    %v196 = vld [vmem:[#allocation7 + $0x1a8] sm:$0xff]
    %v197 = vld [vmem:[#allocation7 + $0x1b0] sm:$0xff]
    %v198 = vld [vmem:[#allocation7 + $0x1b8] sm:$0xff]
    %v199 = vld [vmem:[#allocation7 + $0x1c0] sm:$0xff]
    %v200 = vld [vmem:[#allocation7 + $0x1c8] sm:$0xff]
    %v201 = vld [vmem:[#allocation7 + $0x1d0] sm:$0xff]
    %v202 = vld [vmem:[#allocation7 + $0x1d8] sm:$0xff]
    %v203 = vld [vmem:[#allocation7 + $0x1e0] sm:$0xff]
    %v204 = vld [vmem:[#allocation7 + $0x1e8] sm:$0xff]
    %v205 = vld [vmem:[#allocation7 + $0x1f0] sm:$0xff]
    %v206 = vld [vmem:[#allocation7 + $0x1f8] sm:$0xff]
    %v207 = vld [vmem:[#allocation7 + $0x200] sm:$0xff]
    %v208 = vld [vmem:[#allocation7 + $0x208] sm:$0xff]
    %v209 = vld [vmem:[#allocation7 + $0x210] sm:$0xff]
    %v210 = vld [vmem:[#allocation7 + $0x218] sm:$0xff]
    %v211 = vld [vmem:[#allocation7 + $0x220] sm:$0xff]
    %v212 = vld [vmem:[#allocation7 + $0x228] sm:$0xff]
    %v213 = vld [vmem:[#allocation7 + $0x230] sm:$0xff]
    %v214 = vld [vmem:[#allocation7 + $0x238] sm:$0xff]
    %v215 = vld [vmem:[#allocation7 + $0x240] sm:$0xff]
    %v216 = vld [vmem:[#allocation7 + $0x248] sm:$0xff]
    %v217 = vld [vmem:[#allocation7 + $0x250] sm:$0xff]
    %v218 = vld [vmem:[#allocation7 + $0x258] sm:$0xff]
    %v219 = vld [vmem:[#allocation7 + $0x260] sm:$0xff]
    %v220 = vld [vmem:[#allocation7 + $0x268] sm:$0xff]
    %v221 = vld [vmem:[#allocation7 + $0x270] sm:$0xff]
    %v222 = vld [vmem:[#allocation7 + $0x278] sm:$0xff]
    %v223 = vld [vmem:[#allocation7 + $0x280] sm:$0xff]
    %v224 = vld [vmem:[#allocation7 + $0x288] sm:$0xff]
    %v225 = vld [vmem:[#allocation7 + $0x290] sm:$0xff]
    %v226 = vld [vmem:[#allocation7 + $0x298] sm:$0xff]
    %v227 = vld [vmem:[#allocation7 + $0x2a0] sm:$0xff]
    %v228 = vld [vmem:[#allocation7 + $0x2a8] sm:$0xff]
    %v229 = vld [vmem:[#allocation7 + $0x2b0] sm:$0xff]
    %v230 = vld [vmem:[#allocation7 + $0x2b8] sm:$0xff]
    %v231 = vld [vmem:[#allocation7 + $0x2c0] sm:$0xff]
    %v232 = vld [vmem:[#allocation7 + $0x2c8] sm:$0xff]
    %v233 = vld [vmem:[#allocation7 + $0x2d0] sm:$0xff]
    %v234 = vld [vmem:[#allocation7 + $0x2d8] sm:$0xff]
    %v235 = vld [vmem:[#allocation7 + $0x2e0] sm:$0xff]
    %v236 = vld [vmem:[#allocation7 + $0x2e8] sm:$0xff]
    %v237 = vld [vmem:[#allocation7 + $0x2f0] sm:$0xff]
    %v238 = vld [vmem:[#allocation7 + $0x2f8] sm:$0xff]
    %v239 = vld [vmem:[#allocation7 + $0x300] sm:$0xff]
    %v240 = vld [vmem:[#allocation7 + $0x308] sm:$0xff]
    %v241 = vld [vmem:[#allocation7 + $0x310] sm:$0xff]
    %v242 = vld [vmem:[#allocation7 + $0x318] sm:$0xff]
    %v243 = vld [vmem:[#allocation7 + $0x320] sm:$0xff]
    %v244 = vld [vmem:[#allocation7 + $0x328] sm:$0xff]
    %v245 = vld [vmem:[#allocation7 + $0x330] sm:$0xff]
    %v246 = vld [vmem:[#allocation7 + $0x338] sm:$0xff]
    %v247 = vld [vmem:[#allocation7 + $0x340] sm:$0xff]
    %v248 = vld [vmem:[#allocation7 + $0x348] sm:$0xff]
    %v249 = vld [vmem:[#allocation7 + $0x350] sm:$0xff]
    %v250 = vld [vmem:[#allocation7 + $0x358] sm:$0xff]
    %v251 = vld [vmem:[#allocation7 + $0x360] sm:$0xff]
    %v252 = vld [vmem:[#allocation7 + $0x368] sm:$0xff]
    %v253 = vld [vmem:[#allocation7 + $0x370] sm:$0xff]
    %v254 = vld [vmem:[#allocation7 + $0x378] sm:$0xff]
    %v255 = vld [vmem:[#allocation7 + $0x380] sm:$0xff]
    %v256 = vld [vmem:[#allocation7 + $0x388] sm:$0xff]
    %v257 = vld [vmem:[#allocation7 + $0x390] sm:$0xff]
    %v258 = vld [vmem:[#allocation7 + $0x398] sm:$0xff]
    %v259 = vld [vmem:[#allocation7 + $0x3a0] sm:$0xff]
    %v260 = vld [vmem:[#allocation7 + $0x3a8] sm:$0xff]
    %v261 = vld [vmem:[#allocation7 + $0x3b0] sm:$0xff]
    %v262 = vld [vmem:[#allocation7 + $0x3b8] sm:$0xff]
    %v263 = vld [vmem:[#allocation7 + $0x3c0] sm:$0xff]
    %v264 = vld [vmem:[#allocation7 + $0x3c8] sm:$0xff]
    %v265 = vld [vmem:[#allocation7 + $0x3d0] sm:$0xff]
    %v266 = vld [vmem:[#allocation7 + $0x3d8] sm:$0xff]
    %v267 = vld [vmem:[#allocation7 + $0x3e0] sm:$0xff]
    %v268 = vld [vmem:[#allocation7 + $0x3e8] sm:$0xff]
    %v269 = vld [vmem:[#allocation7 + $0x3f0] sm:$0xff]
    %v270 = vld [vmem:[#allocation7 + $0x3f8] sm:$0xff]
    %v271 = vld [vmem:[#allocation7 + $0x400] sm:$0xff]
    %v272 = vld [vmem:[#allocation7 + $0x408] sm:$0xff]
    %v273 = vld [vmem:[#allocation7 + $0x410] sm:$0xff]
    %v274 = vld [vmem:[#allocation7 + $0x418] sm:$0xff]
    %v275 = vld [vmem:[#allocation7 + $0x420] sm:$0xff]
    %v276 = vld [vmem:[#allocation7 + $0x428] sm:$0xff]
    %v277 = vld [vmem:[#allocation7 + $0x430] sm:$0xff]
    %v278 = vld [vmem:[#allocation7 + $0x438] sm:$0xff]
    %v279 = vld [vmem:[#allocation7 + $0x440] sm:$0xff]
    %v280 = vld [vmem:[#allocation7 + $0x448] sm:$0xff]
    %v281 = vld [vmem:[#allocation7 + $0x450] sm:$0xff]
    %v282 = vld [vmem:[#allocation7 + $0x458] sm:$0xff]
    %v283 = vld [vmem:[#allocation7 + $0x460] sm:$0xff]
    %v284 = vld [vmem:[#allocation7 + $0x468] sm:$0xff]
    %v285 = vld [vmem:[#allocation7 + $0x470] sm:$0xff]
    %v286 = vld [vmem:[#allocation7 + $0x478] sm:$0xff]
    %v287 = vld [vmem:[#allocation7 + $0x480] sm:$0xff]
    %v288 = vld [vmem:[#allocation7 + $0x488] sm:$0xff]
    %v289 = vld [vmem:[#allocation7 + $0x490] sm:$0xff]
    %v290 = vld [vmem:[#allocation7 + $0x498] sm:$0xff]
    %v291 = vld [vmem:[#allocation7 + $0x4a0] sm:$0xff]
    %v292 = vld [vmem:[#allocation7 + $0x4a8] sm:$0xff]
    %v293 = vld [vmem:[#allocation7 + $0x4b0] sm:$0xff]
    %v294 = vld [vmem:[#allocation7 + $0x4b8] sm:$0xff]
    %v295 = vld [vmem:[#allocation7 + $0x4c0] sm:$0xff]
    %v296 = vld [vmem:[#allocation7 + $0x4c8] sm:$0xff]
    %v297 = vld [vmem:[#allocation7 + $0x4d0] sm:$0xff]
    %v298 = vld [vmem:[#allocation7 + $0x4d8] sm:$0xff]
    %v299 = vld [vmem:[#allocation7 + $0x4e0] sm:$0xff]
    %v300 = vld [vmem:[#allocation7 + $0x4e8] sm:$0xff]
    %v301 = vld [vmem:[#allocation7 + $0x4f0] sm:$0xff]
    %v302 = vld [vmem:[#allocation7 + $0x4f8] sm:$0xff]
    %v303 = vld [vmem:[#allocation7 + $0x500] sm:$0xff]
    %v304 = vld [vmem:[#allocation7 + $0x508] sm:$0xff]
    %v305 = vld [vmem:[#allocation7 + $0x510] sm:$0xff]
    %v306 = vld [vmem:[#allocation7 + $0x518] sm:$0xff]
    %v307 = vld [vmem:[#allocation7 + $0x520] sm:$0xff]
    %v308 = vld [vmem:[#allocation7 + $0x528] sm:$0xff]
    %v309 = vld [vmem:[#allocation7 + $0x530] sm:$0xff]
    %v310 = vld [vmem:[#allocation7 + $0x538] sm:$0xff]
    %v311 = vld [vmem:[#allocation7 + $0x540] sm:$0xff]
    %v312 = vld [vmem:[#allocation7 + $0x548] sm:$0xff]
    %v313 = vld [vmem:[#allocation7 + $0x550] sm:$0xff]
    %v314 = vld [vmem:[#allocation7 + $0x558] sm:$0xff]
    %v315 = vld [vmem:[#allocation7 + $0x560] sm:$0xff]
    %v316 = vld [vmem:[#allocation7 + $0x568] sm:$0xff]
    %v317 = vld [vmem:[#allocation7 + $0x570] sm:$0xff]
    %v318 = vld [vmem:[#allocation7 + $0x578] sm:$0xff]
    %v319 = vld [vmem:[#allocation7 + $0x580] sm:$0xff]
    %v320 = vld [vmem:[#allocation7 + $0x588] sm:$0xff]
    %v321 = vld [vmem:[#allocation7 + $0x590] sm:$0xff]
    %v322 = vld [vmem:[#allocation7 + $0x598] sm:$0xff]
    %v323 = vld [vmem:[#allocation7 + $0x5a0] sm:$0xff]
    %v324 = vld [vmem:[#allocation7 + $0x5a8] sm:$0xff]
    %v325 = vld [vmem:[#allocation7 + $0x5b0] sm:$0xff]
    %v326 = vld [vmem:[#allocation7 + $0x5b8] sm:$0xff]
    %v327 = vld [vmem:[#allocation7 + $0x5c0] sm:$0xff]
    %v328 = vld [vmem:[#allocation7 + $0x5c8] sm:$0xff]
    %v329 = vld [vmem:[#allocation7 + $0x5d0] sm:$0xff]
    %v330 = vld [vmem:[#allocation7 + $0x5d8] sm:$0xff]
    %v331 = vld [vmem:[#allocation7 + $0x5e0] sm:$0xff]
    %v332 = vld [vmem:[#allocation7 + $0x5e8] sm:$0xff]
    %v333 = vld [vmem:[#allocation7 + $0x5f0] sm:$0xff]
    %v334 = vld [vmem:[#allocation7 + $0x5f8] sm:$0xff]
    %v335 = vld [vmem:[#allocation7 + $0x600] sm:$0xff]
    %v336 = vld [vmem:[#allocation7 + $0x608] sm:$0xff]
    %v337 = vld [vmem:[#allocation7 + $0x610] sm:$0xff]
    %v338 = vld [vmem:[#allocation7 + $0x618] sm:$0xff]
    %v339 = vld [vmem:[#allocation7 + $0x620] sm:$0xff]
    %v340 = vld [vmem:[#allocation7 + $0x628] sm:$0xff]
    %v341 = vld [vmem:[#allocation7 + $0x630] sm:$0xff]
    %v342 = vld [vmem:[#allocation7 + $0x638] sm:$0xff]
    %v343 = vld [vmem:[#allocation7 + $0x640] sm:$0xff]
    %v344 = vld [vmem:[#allocation7 + $0x648] sm:$0xff]
    %v345 = vld [vmem:[#allocation7 + $0x650] sm:$0xff]
    %v346 = vld [vmem:[#allocation7 + $0x658] sm:$0xff]
    %v347 = vld [vmem:[#allocation7 + $0x660] sm:$0xff]
    %v348 = vld [vmem:[#allocation7 + $0x668] sm:$0xff]
    %v349 = vld [vmem:[#allocation7 + $0x670] sm:$0xff]
    %v350 = vld [vmem:[#allocation7 + $0x678] sm:$0xff]
    %v351 = vld [vmem:[#allocation7 + $0x680] sm:$0xff]
    %v352 = vld [vmem:[#allocation7 + $0x688] sm:$0xff]
    %v353 = vld [vmem:[#allocation7 + $0x690] sm:$0xff]
    %v354 = vld [vmem:[#allocation7 + $0x698] sm:$0xff]
    %v355 = vld [vmem:[#allocation7 + $0x6a0] sm:$0xff]
    %v356 = vld [vmem:[#allocation7 + $0x6a8] sm:$0xff]
    %v357 = vld [vmem:[#allocation7 + $0x6b0] sm:$0xff]
    %v358 = vld [vmem:[#allocation7 + $0x6b8] sm:$0xff]
    %v359 = vld [vmem:[#allocation7 + $0x6c0] sm:$0xff]
    %v360 = vld [vmem:[#allocation7 + $0x6c8] sm:$0xff]
    %v361 = vld [vmem:[#allocation7 + $0x6d0] sm:$0xff]
    %v362 = vld [vmem:[#allocation7 + $0x6d8] sm:$0xff]
    %v363 = vld [vmem:[#allocation7 + $0x6e0] sm:$0xff]
    %v364 = vld [vmem:[#allocation7 + $0x6e8] sm:$0xff]
    %v365 = vld [vmem:[#allocation7 + $0x6f0] sm:$0xff]
    %v366 = vld [vmem:[#allocation7 + $0x6f8] sm:$0xff]
    %v367 = vld [vmem:[#allocation7 + $0x700] sm:$0xff]
    %v368 = vld [vmem:[#allocation7 + $0x708] sm:$0xff]
    %v369 = vld [vmem:[#allocation7 + $0x710] sm:$0xff]
    %v370 = vld [vmem:[#allocation7 + $0x718] sm:$0xff]
    %v371 = vld [vmem:[#allocation7 + $0x720] sm:$0xff]
    %v372 = vld [vmem:[#allocation7 + $0x728] sm:$0xff]
    %v373 = vld [vmem:[#allocation7 + $0x730] sm:$0xff]
    %v374 = vld [vmem:[#allocation7 + $0x738] sm:$0xff]
    %v375 = vld [vmem:[#allocation7 + $0x740] sm:$0xff]
    %v376 = vld [vmem:[#allocation7 + $0x748] sm:$0xff]
    %v377 = vld [vmem:[#allocation7 + $0x750] sm:$0xff]
    %v378 = vld [vmem:[#allocation7 + $0x758] sm:$0xff]
    %v379 = vld [vmem:[#allocation7 + $0x760] sm:$0xff]
    %v380 = vld [vmem:[#allocation7 + $0x768] sm:$0xff]
    %v381 = vld [vmem:[#allocation7 + $0x770] sm:$0xff]
    %v382 = vld [vmem:[#allocation7 + $0x778] sm:$0xff]
    %v383 = vld [vmem:[#allocation7 + $0x780] sm:$0xff]
    %v384 = vld [vmem:[#allocation7 + $0x788] sm:$0xff]
    %v385 = vld [vmem:[#allocation7 + $0x790] sm:$0xff]
    %v386 = vld [vmem:[#allocation7 + $0x798] sm:$0xff]
    %v387 = vld [vmem:[#allocation7 + $0x7a0] sm:$0xff]
    %v388 = vld [vmem:[#allocation7 + $0x7a8] sm:$0xff]
    %v389 = vld [vmem:[#allocation7 + $0x7b0] sm:$0xff]
    %v390 = vld [vmem:[#allocation7 + $0x7b8] sm:$0xff]
    %v391 = vld [vmem:[#allocation7 + $0x7c0] sm:$0xff]
    %v392 = vld [vmem:[#allocation7 + $0x7c8] sm:$0xff]
    %v393 = vld [vmem:[#allocation7 + $0x7d0] sm:$0xff]
    %v394 = vld [vmem:[#allocation7 + $0x7d8] sm:$0xff]
    %v395 = vld [vmem:[#allocation7 + $0x7e0] sm:$0xff]
    %v396 = vld [vmem:[#allocation7 + $0x7e8] sm:$0xff]
    %v397 = vld [vmem:[#allocation7 + $0x7f0] sm:$0xff]
    %v398 = vld [vmem:[#allocation7 + $0x7f8] sm:$0xff]
    %v399 = vld [vmem:[#allocation7 + $0x800] sm:$0xff]
    %v400 = vld [vmem:[#allocation7 + $0x808] sm:$0xff]
    %v401 = vld [vmem:[#allocation7 + $0x810] sm:$0xff]
    %v402 = vld [vmem:[#allocation7 + $0x818] sm:$0xff]
    %v403 = vld [vmem:[#allocation7 + $0x820] sm:$0xff]
    %v404 = vld [vmem:[#allocation7 + $0x828] sm:$0xff]
    %v405 = vld [vmem:[#allocation7 + $0x830] sm:$0xff]
    %v406 = vld [vmem:[#allocation7 + $0x838] sm:$0xff]
    %v407 = vld [vmem:[#allocation7 + $0x840] sm:$0xff]
    %v408 = vld [vmem:[#allocation7 + $0x848] sm:$0xff]
    %v409 = vld [vmem:[#allocation7 + $0x850] sm:$0xff]
    %v410 = vld [vmem:[#allocation7 + $0x858] sm:$0xff]
    %v411 = vld [vmem:[#allocation7 + $0x860] sm:$0xff]
    %v412 = vld [vmem:[#allocation7 + $0x868] sm:$0xff]
    %v413 = vld [vmem:[#allocation7 + $0x870] sm:$0xff]
    %v414 = vld [vmem:[#allocation7 + $0x878] sm:$0xff]
    %v415 = vld [vmem:[#allocation7 + $0x880] sm:$0xff]
    %v416 = vld [vmem:[#allocation7 + $0x888] sm:$0xff]
    %v417 = vld [vmem:[#allocation7 + $0x890] sm:$0xff]
    %v418 = vld [vmem:[#allocation7 + $0x898] sm:$0xff]
    %v419 = vld [vmem:[#allocation7 + $0x8a0] sm:$0xff]
    %v420 = vld [vmem:[#allocation7 + $0x8a8] sm:$0xff]
    %v421 = vld [vmem:[#allocation7 + $0x8b0] sm:$0xff]
    %v422 = vld [vmem:[#allocation7 + $0x8b8] sm:$0xff]
    %v423 = vld [vmem:[#allocation7 + $0x8c0] sm:$0xff]
    %v424 = vld [vmem:[#allocation7 + $0x8c8] sm:$0xff]
    %v425 = vld [vmem:[#allocation7 + $0x8d0] sm:$0xff]
    %v426 = vld [vmem:[#allocation7 + $0x8d8] sm:$0xff]
    %v427 = vld [vmem:[#allocation7 + $0x8e0] sm:$0xff]
    %v428 = vld [vmem:[#allocation7 + $0x8e8] sm:$0xff]
    %v429 = vld [vmem:[#allocation7 + $0x8f0] sm:$0xff]
    %v430 = vld [vmem:[#allocation7 + $0x8f8] sm:$0xff]
    %v431 = vld [vmem:[#allocation10] sm:$0xff]
    %v432 = vld [vmem:[#allocation10 + $0x8] sm:$0xff]
    %v433 = vld [vmem:[#allocation10 + $0x10] sm:$0xff]
    %v434 = vld [vmem:[#allocation10 + $0x18] sm:$0xff]
    %v435 = vld [vmem:[#allocation10 + $0x20] sm:$0xff]
    %v436 = vld [vmem:[#allocation10 + $0x28] sm:$0xff]
    %v437 = vld [vmem:[#allocation10 + $0x30] sm:$0xff]
    %v438 = vld [vmem:[#allocation10 + $0x38] sm:$0xff]
    %v439 = vld [vmem:[#allocation10 + $0x40] sm:$0xff]
    %v440 = vld [vmem:[#allocation10 + $0x48] sm:$0xff]
    %v441 = vld [vmem:[#allocation10 + $0x50] sm:$0xff]
    %v442 = vld [vmem:[#allocation10 + $0x58] sm:$0xff]
    %v443 = vld [vmem:[#allocation10 + $0x60] sm:$0xff]
    %v444 = vld [vmem:[#allocation10 + $0x68] sm:$0xff]
    %v445 = vld [vmem:[#allocation10 + $0x70] sm:$0xff]
    %v446 = vld [vmem:[#allocation10 + $0x78] sm:$0xff]
    %v447 = vld [vmem:[#allocation10 + $0x80] sm:$0xff]
    %v448 = vld [vmem:[#allocation10 + $0x88] sm:$0xff]
    %v449 = vld [vmem:[#allocation10 + $0x90] sm:$0xff]
    %v450 = vld [vmem:[#allocation10 + $0x98] sm:$0xff]
    %v451 = vld [vmem:[#allocation10 + $0xa0] sm:$0xff]
    %v452 = vld [vmem:[#allocation10 + $0xa8] sm:$0xff]
    %v453 = vld [vmem:[#allocation10 + $0xb0] sm:$0xff]
    %v454 = vld [vmem:[#allocation10 + $0xb8] sm:$0xff]
    %v455 = vld [vmem:[#allocation10 + $0xc0] sm:$0xff]
    %v456 = vld [vmem:[#allocation10 + $0xc8] sm:$0xff]
    %v457 = vld [vmem:[#allocation10 + $0xd0] sm:$0xff]
    %v458 = vld [vmem:[#allocation10 + $0xd8] sm:$0xff]
    %v459 = vld [vmem:[#allocation10 + $0xe0] sm:$0xff]
    %v460 = vld [vmem:[#allocation10 + $0xe8] sm:$0xff]
    %v461 = vld [vmem:[#allocation10 + $0xf0] sm:$0xff]
    %v462 = vld [vmem:[#allocation10 + $0xf8] sm:$0xff]
    %v463 = vld [vmem:[#allocation10 + $0x100] sm:$0xff]
    %v464 = vld [vmem:[#allocation10 + $0x108] sm:$0xff]
    %v465 = vld [vmem:[#allocation10 + $0x110] sm:$0xff]
    %v466 = vld [vmem:[#allocation10 + $0x118] sm:$0xff]
    %v467 = vld [vmem:[#allocation10 + $0x120] sm:$0xff]
    %v468 = vld [vmem:[#allocation10 + $0x128] sm:$0xff]
    %v469 = vld [vmem:[#allocation10 + $0x130] sm:$0xff]
    %v470 = vld [vmem:[#allocation10 + $0x138] sm:$0xff]
    %v471 = vld [vmem:[#allocation10 + $0x140] sm:$0xff]
    %v472 = vld [vmem:[#allocation10 + $0x148] sm:$0xff]
    %v473 = vld [vmem:[#allocation10 + $0x150] sm:$0xff]
    %v474 = vld [vmem:[#allocation10 + $0x158] sm:$0xff]
    %v475 = vld [vmem:[#allocation10 + $0x160] sm:$0xff]
    %v476 = vld [vmem:[#allocation10 + $0x168] sm:$0xff]
    %v477 = vld [vmem:[#allocation10 + $0x170] sm:$0xff]
    %v478 = vld [vmem:[#allocation10 + $0x178] sm:$0xff]
    %v479 = vld [vmem:[#allocation10 + $0x180] sm:$0xff]
    %v480 = vld [vmem:[#allocation10 + $0x188] sm:$0xff]
    %v481 = vld [vmem:[#allocation10 + $0x190] sm:$0xff]
    %v482 = vld [vmem:[#allocation10 + $0x198] sm:$0xff]
    %v483 = vld [vmem:[#allocation10 + $0x1a0] sm:$0xff]
    %v484 = vld [vmem:[#allocation10 + $0x1a8] sm:$0xff]
    %v485 = vld [vmem:[#allocation10 + $0x1b0] sm:$0xff]
    %v486 = vld [vmem:[#allocation10 + $0x1b8] sm:$0xff]
    %v487 = vld [vmem:[#allocation10 + $0x1c0] sm:$0xff]
    %v488 = vld [vmem:[#allocation10 + $0x1c8] sm:$0xff]
    %v489 = vld [vmem:[#allocation10 + $0x1d0] sm:$0xff]
    %v490 = vld [vmem:[#allocation10 + $0x1d8] sm:$0xff]
    %v491 = vld [vmem:[#allocation10 + $0x1e0] sm:$0xff]
    %v492 = vld [vmem:[#allocation10 + $0x1e8] sm:$0xff]
    %v493 = vld [vmem:[#allocation10 + $0x1f0] sm:$0xff]
    %v494 = vld [vmem:[#allocation10 + $0x1f8] sm:$0xff]
    %v495 = vld [vmem:[#allocation10 + $0x200] sm:$0xff]
    %v496 = vld [vmem:[#allocation10 + $0x208] sm:$0xff]
    %v497 = vld [vmem:[#allocation10 + $0x210] sm:$0xff]
    %v498 = vld [vmem:[#allocation10 + $0x218] sm:$0xff]
    %v499 = vld [vmem:[#allocation10 + $0x220] sm:$0xff]
    %v500 = vld [vmem:[#allocation10 + $0x228] sm:$0xff]
    %v501 = vld [vmem:[#allocation10 + $0x230] sm:$0xff]
    %v502 = vld [vmem:[#allocation10 + $0x238] sm:$0xff]
    %v503 = vld [vmem:[#allocation10 + $0x240] sm:$0xff]
    %v504 = vld [vmem:[#allocation10 + $0x248] sm:$0xff]
    %v505 = vld [vmem:[#allocation10 + $0x250] sm:$0xff]
    %v506 = vld [vmem:[#allocation10 + $0x258] sm:$0xff]
    %v507 = vld [vmem:[#allocation10 + $0x260] sm:$0xff]
    %v508 = vld [vmem:[#allocation10 + $0x268] sm:$0xff]
    %v509 = vld [vmem:[#allocation10 + $0x270] sm:$0xff]
    %v510 = vld [vmem:[#allocation10 + $0x278] sm:$0xff]
    %v511 = vld [vmem:[#allocation10 + $0x280] sm:$0xff]
    %v512 = vld [vmem:[#allocation10 + $0x288] sm:$0xff]
    %v513 = vld [vmem:[#allocation10 + $0x290] sm:$0xff]
    %v514 = vld [vmem:[#allocation10 + $0x298] sm:$0xff]
    %v515 = vld [vmem:[#allocation10 + $0x2a0] sm:$0xff]
    %v516 = vld [vmem:[#allocation10 + $0x2a8] sm:$0xff]
    %v517 = vld [vmem:[#allocation10 + $0x2b0] sm:$0xff]
    %v518 = vld [vmem:[#allocation10 + $0x2b8] sm:$0xff]
    %v519 = vld [vmem:[#allocation10 + $0x2c0] sm:$0xff]
    %v520 = vld [vmem:[#allocation10 + $0x2c8] sm:$0xff]
    %v521 = vld [vmem:[#allocation10 + $0x2d0] sm:$0xff]
    %v522 = vld [vmem:[#allocation10 + $0x2d8] sm:$0xff]
    %v523 = vld [vmem:[#allocation10 + $0x2e0] sm:$0xff]
    %v524 = vld [vmem:[#allocation10 + $0x2e8] sm:$0xff]
    %v525 = vld [vmem:[#allocation10 + $0x2f0] sm:$0xff]
    %v526 = vld [vmem:[#allocation10 + $0x2f8] sm:$0xff]
    %v527 = vld [vmem:[#allocation10 + $0x300] sm:$0xff]
    %v528 = vld [vmem:[#allocation10 + $0x308] sm:$0xff]
    %v529 = vld [vmem:[#allocation10 + $0x310] sm:$0xff]
    %v530 = vld [vmem:[#allocation10 + $0x318] sm:$0xff]
    %v531 = vld [vmem:[#allocation10 + $0x320] sm:$0xff]
    %v532 = vld [vmem:[#allocation10 + $0x328] sm:$0xff]
    %v533 = vld [vmem:[#allocation10 + $0x330] sm:$0xff]
    %v534 = vld [vmem:[#allocation10 + $0x338] sm:$0xff]
    %v535 = vld [vmem:[#allocation10 + $0x340] sm:$0xff]
    %v536 = vld [vmem:[#allocation10 + $0x348] sm:$0xff]
    %v537 = vld [vmem:[#allocation10 + $0x350] sm:$0xff]
    %v538 = vld [vmem:[#allocation10 + $0x358] sm:$0xff]
    %v539 = vld [vmem:[#allocation10 + $0x360] sm:$0xff]
    %v540 = vld [vmem:[#allocation10 + $0x368] sm:$0xff]
    %v541 = vld [vmem:[#allocation10 + $0x370] sm:$0xff]
    %v542 = vld [vmem:[#allocation10 + $0x378] sm:$0xff]
    %v543 = vld [vmem:[#allocation10 + $0x380] sm:$0xff]
    %v544 = vld [vmem:[#allocation10 + $0x388] sm:$0xff]
    %v545 = vld [vmem:[#allocation10 + $0x390] sm:$0xff]
    %v546 = vld [vmem:[#allocation10 + $0x398] sm:$0xff]
    %v547 = vld [vmem:[#allocation10 + $0x3a0] sm:$0xff]
    %v548 = vld [vmem:[#allocation10 + $0x3a8] sm:$0xff]
    %v549 = vld [vmem:[#allocation10 + $0x3b0] sm:$0xff]
    %v550 = vld [vmem:[#allocation10 + $0x3b8] sm:$0xff]
    %v551 = vld [vmem:[#allocation10 + $0x3c0] sm:$0xff]
    %v552 = vld [vmem:[#allocation10 + $0x3c8] sm:$0xff]
    %v553 = vld [vmem:[#allocation10 + $0x3d0] sm:$0xff]
    %v554 = vld [vmem:[#allocation10 + $0x3d8] sm:$0xff]
    %v555 = vld [vmem:[#allocation10 + $0x3e0] sm:$0xff]
    %v556 = vld [vmem:[#allocation10 + $0x3e8] sm:$0xff]
    %v557 = vld [vmem:[#allocation10 + $0x3f0] sm:$0xff]
    %v558 = vld [vmem:[#allocation10 + $0x3f8] sm:$0xff]
    %v559 = vld [vmem:[#allocation10 + $0x400] sm:$0xff]
    %v560 = vld [vmem:[#allocation10 + $0x408] sm:$0xff]
    %v561 = vld [vmem:[#allocation10 + $0x410] sm:$0xff]
    %v562 = vld [vmem:[#allocation10 + $0x418] sm:$0xff]
    %v563 = vld [vmem:[#allocation10 + $0x420] sm:$0xff]
    %v564 = vld [vmem:[#allocation10 + $0x428] sm:$0xff]
    %v565 = vld [vmem:[#allocation10 + $0x430] sm:$0xff]
    %v566 = vld [vmem:[#allocation10 + $0x438] sm:$0xff]
    %v567 = vld [vmem:[#allocation10 + $0x440] sm:$0xff]
    %v568 = vld [vmem:[#allocation10 + $0x448] sm:$0xff]
    %v569 = vld [vmem:[#allocation10 + $0x450] sm:$0xff]
    %v570 = vld [vmem:[#allocation10 + $0x458] sm:$0xff]
    %v571 = vld [vmem:[#allocation10 + $0x460] sm:$0xff]
    %v572 = vld [vmem:[#allocation10 + $0x468] sm:$0xff]
    %v573 = vld [vmem:[#allocation10 + $0x470] sm:$0xff]
    %v574 = vld [vmem:[#allocation10 + $0x478] sm:$0xff]
    %v575 = vld [vmem:[#allocation10 + $0x480] sm:$0xff]
    %v576 = vld [vmem:[#allocation10 + $0x488] sm:$0xff]
    %v577 = vld [vmem:[#allocation10 + $0x490] sm:$0xff]
    %v578 = vld [vmem:[#allocation10 + $0x498] sm:$0xff]
    %v579 = vld [vmem:[#allocation10 + $0x4a0] sm:$0xff]
    %v580 = vld [vmem:[#allocation10 + $0x4a8] sm:$0xff]
    %v581 = vld [vmem:[#allocation10 + $0x4b0] sm:$0xff]
    %v582 = vld [vmem:[#allocation10 + $0x4b8] sm:$0xff]
    %v583 = vld [vmem:[#allocation10 + $0x4c0] sm:$0xff]
    %v584 = vld [vmem:[#allocation10 + $0x4c8] sm:$0xff]
    %v585 = vld [vmem:[#allocation10 + $0x4d0] sm:$0xff]
    %v586 = vld [vmem:[#allocation10 + $0x4d8] sm:$0xff]
    %v587 = vld [vmem:[#allocation10 + $0x4e0] sm:$0xff]
    %v588 = vld [vmem:[#allocation10 + $0x4e8] sm:$0xff]
    %v589 = vld [vmem:[#allocation10 + $0x4f0] sm:$0xff]
    %v590 = vld [vmem:[#allocation10 + $0x4f8] sm:$0xff]
    %v591 = vld [vmem:[#allocation10 + $0x500] sm:$0xff]
    %v592 = vld [vmem:[#allocation10 + $0x508] sm:$0xff]
    %v593 = vld [vmem:[#allocation10 + $0x510] sm:$0xff]
    %v594 = vld [vmem:[#allocation10 + $0x518] sm:$0xff]
    %v595 = vld [vmem:[#allocation10 + $0x520] sm:$0xff]
    %v596 = vld [vmem:[#allocation10 + $0x528] sm:$0xff]
    %v597 = vld [vmem:[#allocation10 + $0x530] sm:$0xff]
    %v598 = vld [vmem:[#allocation10 + $0x538] sm:$0xff]
    %v599 = vld [vmem:[#allocation10 + $0x540] sm:$0xff]
    %v600 = vld [vmem:[#allocation10 + $0x548] sm:$0xff]
    %v601 = vld [vmem:[#allocation10 + $0x550] sm:$0xff]
    %v602 = vld [vmem:[#allocation10 + $0x558] sm:$0xff]
    %v603 = vld [vmem:[#allocation10 + $0x560] sm:$0xff]
    %v604 = vld [vmem:[#allocation10 + $0x568] sm:$0xff]
    %v605 = vld [vmem:[#allocation10 + $0x570] sm:$0xff]
    %v606 = vld [vmem:[#allocation10 + $0x578] sm:$0xff]
    %v607 = vld [vmem:[#allocation10 + $0x580] sm:$0xff]
    %v608 = vld [vmem:[#allocation10 + $0x588] sm:$0xff]
    %v609 = vld [vmem:[#allocation10 + $0x590] sm:$0xff]
    %v610 = vld [vmem:[#allocation10 + $0x598] sm:$0xff]
    %v611 = vld [vmem:[#allocation10 + $0x5a0] sm:$0xff]
    %v612 = vld [vmem:[#allocation10 + $0x5a8] sm:$0xff]
    %v613 = vld [vmem:[#allocation10 + $0x5b0] sm:$0xff]
    %v614 = vld [vmem:[#allocation10 + $0x5b8] sm:$0xff]
    %v615 = vld [vmem:[#allocation10 + $0x5c0] sm:$0xff]
    %v616 = vld [vmem:[#allocation10 + $0x5c8] sm:$0xff]
    %v617 = vld [vmem:[#allocation10 + $0x5d0] sm:$0xff]
    %v618 = vld [vmem:[#allocation10 + $0x5d8] sm:$0xff]
    %v619 = vld [vmem:[#allocation10 + $0x5e0] sm:$0xff]
    %v620 = vld [vmem:[#allocation10 + $0x5e8] sm:$0xff]
    %v621 = vld [vmem:[#allocation10 + $0x5f0] sm:$0xff]
    %v622 = vld [vmem:[#allocation10 + $0x5f8] sm:$0xff]
    %v623 = vld [vmem:[#allocation10 + $0x600] sm:$0xff]
    %v624 = vld [vmem:[#allocation10 + $0x608] sm:$0xff]
    %v625 = vld [vmem:[#allocation10 + $0x610] sm:$0xff]
    %v626 = vld [vmem:[#allocation10 + $0x618] sm:$0xff]
    %v627 = vld [vmem:[#allocation10 + $0x620] sm:$0xff]
    %v628 = vld [vmem:[#allocation10 + $0x628] sm:$0xff]
    %v629 = vld [vmem:[#allocation10 + $0x630] sm:$0xff]
    %v630 = vld [vmem:[#allocation10 + $0x638] sm:$0xff]
    %v631 = vld [vmem:[#allocation10 + $0x640] sm:$0xff]
    %v632 = vld [vmem:[#allocation10 + $0x648] sm:$0xff]
    %v633 = vld [vmem:[#allocation10 + $0x650] sm:$0xff]
    %v634 = vld [vmem:[#allocation10 + $0x658] sm:$0xff]
    %v635 = vld [vmem:[#allocation10 + $0x660] sm:$0xff]
    %v636 = vld [vmem:[#allocation10 + $0x668] sm:$0xff]
    %v637 = vld [vmem:[#allocation10 + $0x670] sm:$0xff]
    %v638 = vld [vmem:[#allocation10 + $0x678] sm:$0xff]
    %v639 = vld [vmem:[#allocation10 + $0x680] sm:$0xff]
    %v640 = vld [vmem:[#allocation10 + $0x688] sm:$0xff]
    %v641 = vld [vmem:[#allocation10 + $0x690] sm:$0xff]
    %v642 = vld [vmem:[#allocation10 + $0x698] sm:$0xff]
    %v643 = vld [vmem:[#allocation10 + $0x6a0] sm:$0xff]
    %v644 = vld [vmem:[#allocation10 + $0x6a8] sm:$0xff]
    %v645 = vld [vmem:[#allocation10 + $0x6b0] sm:$0xff]
    %v646 = vld [vmem:[#allocation10 + $0x6b8] sm:$0xff]
    %v647 = vld [vmem:[#allocation10 + $0x6c0] sm:$0xff]
    %v648 = vld [vmem:[#allocation10 + $0x6c8] sm:$0xff]
    %v649 = vld [vmem:[#allocation10 + $0x6d0] sm:$0xff]
    %v650 = vld [vmem:[#allocation10 + $0x6d8] sm:$0xff]
    %v651 = vld [vmem:[#allocation10 + $0x6e0] sm:$0xff]
    %v652 = vld [vmem:[#allocation10 + $0x6e8] sm:$0xff]
    %v653 = vld [vmem:[#allocation10 + $0x6f0] sm:$0xff]
    %v654 = vld [vmem:[#allocation10 + $0x6f8] sm:$0xff]
    %v655 = vld [vmem:[#allocation10 + $0x700] sm:$0xff]
    %v656 = vld [vmem:[#allocation10 + $0x708] sm:$0xff]
    %v657 = vld [vmem:[#allocation10 + $0x710] sm:$0xff]
    %v658 = vld [vmem:[#allocation10 + $0x718] sm:$0xff]
    %v659 = vld [vmem:[#allocation10 + $0x720] sm:$0xff]
    %v660 = vld [vmem:[#allocation10 + $0x728] sm:$0xff]
    %v661 = vld [vmem:[#allocation10 + $0x730] sm:$0xff]
    %v662 = vld [vmem:[#allocation10 + $0x738] sm:$0xff]
    %v663 = vld [vmem:[#allocation10 + $0x740] sm:$0xff]
    %v664 = vld [vmem:[#allocation10 + $0x748] sm:$0xff]
    %v665 = vld [vmem:[#allocation10 + $0x750] sm:$0xff]
    %v666 = vld [vmem:[#allocation10 + $0x758] sm:$0xff]
    %v667 = vld [vmem:[#allocation10 + $0x760] sm:$0xff]
    %v668 = vld [vmem:[#allocation10 + $0x768] sm:$0xff]
    %v669 = vld [vmem:[#allocation10 + $0x770] sm:$0xff]
    %v670 = vld [vmem:[#allocation10 + $0x778] sm:$0xff]
    %v671 = vld [vmem:[#allocation10 + $0x780] sm:$0xff]
    %v672 = vld [vmem:[#allocation10 + $0x788] sm:$0xff]
    %v673 = vld [vmem:[#allocation10 + $0x790] sm:$0xff]
    %v674 = vld [vmem:[#allocation10 + $0x798] sm:$0xff]
    %v675 = vld [vmem:[#allocation10 + $0x7a0] sm:$0xff]
    %v676 = vld [vmem:[#allocation10 + $0x7a8] sm:$0xff]
    %v677 = vld [vmem:[#allocation10 + $0x7b0] sm:$0xff]
    %v678 = vld [vmem:[#allocation10 + $0x7b8] sm:$0xff]
    %v679 = vld [vmem:[#allocation10 + $0x7c0] sm:$0xff]
    %v680 = vld [vmem:[#allocation10 + $0x7c8] sm:$0xff]
    %v681 = vld [vmem:[#allocation10 + $0x7d0] sm:$0xff]
    %v682 = vld [vmem:[#allocation10 + $0x7d8] sm:$0xff]
    %v683 = vld [vmem:[#allocation10 + $0x7e0] sm:$0xff]
    %v684 = vld [vmem:[#allocation10 + $0x7e8] sm:$0xff]
    %v685 = vld [vmem:[#allocation10 + $0x7f0] sm:$0xff]
    %v686 = vld [vmem:[#allocation10 + $0x7f8] sm:$0xff]
    %v687 = vld [vmem:[#allocation10 + $0x800] sm:$0xff]
    %v688 = vld [vmem:[#allocation10 + $0x808] sm:$0xff]
    %v689 = vld [vmem:[#allocation10 + $0x810] sm:$0xff]
    %v690 = vld [vmem:[#allocation10 + $0x818] sm:$0xff]
    %v691 = vld [vmem:[#allocation10 + $0x820] sm:$0xff]
    %v692 = vld [vmem:[#allocation10 + $0x828] sm:$0xff]
    %v693 = vld [vmem:[#allocation10 + $0x830] sm:$0xff]
    %v694 = vld [vmem:[#allocation10 + $0x838] sm:$0xff]
    %v695 = vld [vmem:[#allocation10 + $0x840] sm:$0xff]
    %v696 = vld [vmem:[#allocation10 + $0x848] sm:$0xff]
    %v697 = vld [vmem:[#allocation10 + $0x850] sm:$0xff]
    %v698 = vld [vmem:[#allocation10 + $0x858] sm:$0xff]
    %v699 = vld [vmem:[#allocation10 + $0x860] sm:$0xff]
    %v700 = vld [vmem:[#allocation10 + $0x868] sm:$0xff]
    %v701 = vld [vmem:[#allocation10 + $0x870] sm:$0xff]
    %v702 = vld [vmem:[#allocation10 + $0x878] sm:$0xff]
    %v703 = vld [vmem:[#allocation10 + $0x880] sm:$0xff]
    %v704 = vld [vmem:[#allocation10 + $0x888] sm:$0xff]
    %v705 = vld [vmem:[#allocation10 + $0x890] sm:$0xff]
    %v706 = vld [vmem:[#allocation10 + $0x898] sm:$0xff]
    %v707 = vld [vmem:[#allocation10 + $0x8a0] sm:$0xff]
    %v708 = vld [vmem:[#allocation10 + $0x8a8] sm:$0xff]
    %v709 = vld [vmem:[#allocation10 + $0x8b0] sm:$0xff]
    %v710 = vld [vmem:[#allocation10 + $0x8b8] sm:$0xff]
    %v711 = vld [vmem:[#allocation10 + $0x8c0] sm:$0xff]
    %v712 = vld [vmem:[#allocation10 + $0x8c8] sm:$0xff]
    %v713 = vld [vmem:[#allocation10 + $0x8d0] sm:$0xff]
    %v714 = vld [vmem:[#allocation10 + $0x8d8] sm:$0xff]
    %v715 = vld [vmem:[#allocation10 + $0x8e0] sm:$0xff]
    %v716 = vld [vmem:[#allocation10 + $0x8e8] sm:$0xff]
    %v717 = vld [vmem:[#allocation10 + $0x8f0] sm:$0xff]
    %v718 = vld [vmem:[#allocation10 + $0x8f8] sm:$0xff]
    %v722 = vunpack.c.l.b16 %v122
    %v723 = vunpack.c.h.b16 %v122
    %v724 = vunpack.c.l.b16 %v123
    %v725 = vunpack.c.h.b16 %v123
    %v726 = vunpack.c.l.b16 %v124
    %v727 = vunpack.c.h.b16 %v124
    %v728 = vpack.c.b16 %v722, %v722
    %v729 = vpack.c.b16 %v723, %v723
    %v730 = vpack.c.b16 %v724, %v724
    %v731 = vpack.c.b16 %v725, %v725
    %v732 = vpack.c.b16 %v726, %v726
    %v733 = vpack.c.b16 %v727, %v727
    %v1028 = vunpack.c.l.b16 %v431
    %v1029 = vunpack.c.h.b16 %v431
    %v1030 = vunpack.c.l.b16 %v432
    %v1031 = vunpack.c.h.b16 %v432
    %v1032 = vunpack.c.l.b16 %v433
    %v1033 = vunpack.c.h.b16 %v433
    %v1034 = vunpack.c.l.b16 %v434
    %v1035 = vunpack.c.h.b16 %v434
    %v1036 = vunpack.c.l.b16 %v435
    %v1037 = vunpack.c.h.b16 %v435
    %v1038 = vunpack.c.l.b16 %v436
    %v1039 = vunpack.c.h.b16 %v436
    %v1040 = vunpack.c.l.b16 %v437
    %v1041 = vunpack.c.h.b16 %v437
    %v1042 = vunpack.c.l.b16 %v438
    %v1043 = vunpack.c.h.b16 %v438
    %v1044 = vunpack.c.l.b16 %v439
    %v1045 = vunpack.c.h.b16 %v439
    %v1046 = vunpack.c.l.b16 %v440
    %v1047 = vunpack.c.h.b16 %v440
    %v1048 = vunpack.c.l.b16 %v441
    %v1049 = vunpack.c.h.b16 %v441
    %v1050 = vunpack.c.l.b16 %v442
    %v1051 = vunpack.c.h.b16 %v442
    %v1052 = vunpack.c.l.b16 %v443
    %v1053 = vunpack.c.h.b16 %v443
    %v1054 = vunpack.c.l.b16 %v444
    %v1055 = vunpack.c.h.b16 %v444
    %v1056 = vunpack.c.l.b16 %v445
    %v1057 = vunpack.c.h.b16 %v445
    %v1058 = vunpack.c.l.b16 %v446
    %v1059 = vunpack.c.h.b16 %v446
    %v1060 = vunpack.c.l.b16 %v447
    %v1061 = vunpack.c.h.b16 %v447
    %v1062 = vunpack.c.l.b16 %v448
    %v1063 = vunpack.c.h.b16 %v448
    %v1064 = vunpack.c.l.b16 %v449
    %v1065 = vunpack.c.h.b16 %v449
    %v1066 = vunpack.c.l.b16 %v450
    %v1067 = vunpack.c.h.b16 %v450
    %v1068 = vunpack.c.l.b16 %v451
    %v1069 = vunpack.c.h.b16 %v451
    %v1070 = vunpack.c.l.b16 %v452
    %v1071 = vunpack.c.h.b16 %v452
    %v1072 = vunpack.c.l.b16 %v453
    %v1073 = vunpack.c.h.b16 %v453
    %v1074 = vunpack.c.l.b16 %v454
    %v1075 = vunpack.c.h.b16 %v454
    %v1076 = vunpack.c.l.b16 %v455
    %v1077 = vunpack.c.h.b16 %v455
    %v1078 = vunpack.c.l.b16 %v456
    %v1079 = vunpack.c.h.b16 %v456
    %v1080 = vunpack.c.l.b16 %v457
    %v1081 = vunpack.c.h.b16 %v457
    %v1082 = vunpack.c.l.b16 %v458
    %v1083 = vunpack.c.h.b16 %v458
    %v1084 = vunpack.c.l.b16 %v459
    %v1085 = vunpack.c.h.b16 %v459
    %v1086 = vunpack.c.l.b16 %v460
    %v1087 = vunpack.c.h.b16 %v460
    %v1088 = vunpack.c.l.b16 %v461
    %v1089 = vunpack.c.h.b16 %v461
    %v1090 = vunpack.c.l.b16 %v462
    %v1091 = vunpack.c.h.b16 %v462
    %v1092 = vunpack.c.l.b16 %v463
    %v1093 = vunpack.c.h.b16 %v463
    %v1094 = vunpack.c.l.b16 %v464
    %v1095 = vunpack.c.h.b16 %v464
    %v1096 = vunpack.c.l.b16 %v465
    %v1097 = vunpack.c.h.b16 %v465
    %v1098 = vunpack.c.l.b16 %v466
    %v1099 = vunpack.c.h.b16 %v466
    %v1100 = vunpack.c.l.b16 %v467
    %v1101 = vunpack.c.h.b16 %v467
    %v1102 = vunpack.c.l.b16 %v468
    %v1103 = vunpack.c.h.b16 %v468
    %v1104 = vunpack.c.l.b16 %v469
    %v1105 = vunpack.c.h.b16 %v469
    %v1106 = vunpack.c.l.b16 %v470
    %v1107 = vunpack.c.h.b16 %v470
    %v1108 = vunpack.c.l.b16 %v471
    %v1109 = vunpack.c.h.b16 %v471
    %v1110 = vunpack.c.l.b16 %v472
    %v1111 = vunpack.c.h.b16 %v472
    %v1112 = vunpack.c.l.b16 %v473
    %v1113 = vunpack.c.h.b16 %v473
    %v1114 = vunpack.c.l.b16 %v474
    %v1115 = vunpack.c.h.b16 %v474
    %v1116 = vunpack.c.l.b16 %v475
    %v1117 = vunpack.c.h.b16 %v475
    %v1118 = vunpack.c.l.b16 %v476
    %v1119 = vunpack.c.h.b16 %v476
    %v1120 = vunpack.c.l.b16 %v477
    %v1121 = vunpack.c.h.b16 %v477
    %v1122 = vunpack.c.l.b16 %v478
    %v1123 = vunpack.c.h.b16 %v478
    %v1124 = vunpack.c.l.b16 %v479
    %v1125 = vunpack.c.h.b16 %v479
    %v1126 = vunpack.c.l.b16 %v480
    %v1127 = vunpack.c.h.b16 %v480
    %v1128 = vunpack.c.l.b16 %v481
    %v1129 = vunpack.c.h.b16 %v481
    %v1130 = vunpack.c.l.b16 %v482
    %v1131 = vunpack.c.h.b16 %v482
    %v1132 = vunpack.c.l.b16 %v483
    %v1133 = vunpack.c.h.b16 %v483
    %v1134 = vunpack.c.l.b16 %v484
    %v1135 = vunpack.c.h.b16 %v484
    %v1136 = vunpack.c.l.b16 %v485
    %v1137 = vunpack.c.h.b16 %v485
    %v1138 = vunpack.c.l.b16 %v486
    %v1139 = vunpack.c.h.b16 %v486
    %v1140 = vunpack.c.l.b16 %v487
    %v1141 = vunpack.c.h.b16 %v487
    %v1142 = vunpack.c.l.b16 %v488
    %v1143 = vunpack.c.h.b16 %v488
    %v1144 = vunpack.c.l.b16 %v489
    %v1145 = vunpack.c.h.b16 %v489
    %v1146 = vunpack.c.l.b16 %v490
    %v1147 = vunpack.c.h.b16 %v490
    %v1148 = vunpack.c.l.b16 %v491
    %v1149 = vunpack.c.h.b16 %v491
    %v1150 = vunpack.c.l.b16 %v492
    %v1151 = vunpack.c.h.b16 %v492
    %v1152 = vunpack.c.l.b16 %v493
    %v1153 = vunpack.c.h.b16 %v493
    %v1154 = vunpack.c.l.b16 %v494
    %v1155 = vunpack.c.h.b16 %v494
    %v1156 = vunpack.c.l.b16 %v495
    %v1157 = vunpack.c.h.b16 %v495
    %v1158 = vunpack.c.l.b16 %v496
    %v1159 = vunpack.c.h.b16 %v496
    %v1160 = vunpack.c.l.b16 %v497
    %v1161 = vunpack.c.h.b16 %v497
    %v1162 = vunpack.c.l.b16 %v498
    %v1163 = vunpack.c.h.b16 %v498
    %v1164 = vunpack.c.l.b16 %v499
    %v1165 = vunpack.c.h.b16 %v499
    %v1166 = vunpack.c.l.b16 %v500
    %v1167 = vunpack.c.h.b16 %v500
    %v1168 = vunpack.c.l.b16 %v501
    %v1169 = vunpack.c.h.b16 %v501
    %v1170 = vunpack.c.l.b16 %v502
    %v1171 = vunpack.c.h.b16 %v502
    %v1172 = vunpack.c.l.b16 %v503
    %v1173 = vunpack.c.h.b16 %v503
    %v1174 = vunpack.c.l.b16 %v504
    %v1175 = vunpack.c.h.b16 %v504
    %v1176 = vunpack.c.l.b16 %v505
    %v1177 = vunpack.c.h.b16 %v505
    %v1178 = vunpack.c.l.b16 %v506
    %v1179 = vunpack.c.h.b16 %v506
    %v1180 = vunpack.c.l.b16 %v507
    %v1181 = vunpack.c.h.b16 %v507
    %v1182 = vunpack.c.l.b16 %v508
    %v1183 = vunpack.c.h.b16 %v508
    %v1184 = vunpack.c.l.b16 %v509
    %v1185 = vunpack.c.h.b16 %v509
    %v1186 = vunpack.c.l.b16 %v510
    %v1187 = vunpack.c.h.b16 %v510
    %v1188 = vunpack.c.l.b16 %v511
    %v1189 = vunpack.c.h.b16 %v511
    %v1190 = vunpack.c.l.b16 %v512
    %v1191 = vunpack.c.h.b16 %v512
    %v1192 = vunpack.c.l.b16 %v513
    %v1193 = vunpack.c.h.b16 %v513
    %v1194 = vunpack.c.l.b16 %v514
    %v1195 = vunpack.c.h.b16 %v514
    %v1196 = vunpack.c.l.b16 %v515
    %v1197 = vunpack.c.h.b16 %v515
    %v1198 = vunpack.c.l.b16 %v516
    %v1199 = vunpack.c.h.b16 %v516
    %v1200 = vunpack.c.l.b16 %v517
    %v1201 = vunpack.c.h.b16 %v517
    %v1202 = vunpack.c.l.b16 %v518
    %v1203 = vunpack.c.h.b16 %v518
    %v1204 = vunpack.c.l.b16 %v519
    %v1205 = vunpack.c.h.b16 %v519
    %v1206 = vunpack.c.l.b16 %v520
    %v1207 = vunpack.c.h.b16 %v520
    %v1208 = vunpack.c.l.b16 %v521
    %v1209 = vunpack.c.h.b16 %v521
    %v1210 = vunpack.c.l.b16 %v522
    %v1211 = vunpack.c.h.b16 %v522
    %v1212 = vunpack.c.l.b16 %v523
    %v1213 = vunpack.c.h.b16 %v523
    %v1214 = vunpack.c.l.b16 %v524
    %v1215 = vunpack.c.h.b16 %v524
    %v1216 = vunpack.c.l.b16 %v525
    %v1217 = vunpack.c.h.b16 %v525
    %v1218 = vunpack.c.l.b16 %v526
    %v1219 = vunpack.c.h.b16 %v526
    %v1220 = vunpack.c.l.b16 %v527
    %v1221 = vunpack.c.h.b16 %v527
    %v1222 = vunpack.c.l.b16 %v528
    %v1223 = vunpack.c.h.b16 %v528
    %v1224 = vunpack.c.l.b16 %v529
    %v1225 = vunpack.c.h.b16 %v529
    %v1226 = vunpack.c.l.b16 %v530
    %v1227 = vunpack.c.h.b16 %v530
    %v1228 = vunpack.c.l.b16 %v531
    %v1229 = vunpack.c.h.b16 %v531
    %v1230 = vunpack.c.l.b16 %v532
    %v1231 = vunpack.c.h.b16 %v532
    %v1232 = vunpack.c.l.b16 %v533
    %v1233 = vunpack.c.h.b16 %v533
    %v1234 = vunpack.c.l.b16 %v534
    %v1235 = vunpack.c.h.b16 %v534
    %v1236 = vunpack.c.l.b16 %v535
    %v1237 = vunpack.c.h.b16 %v535
    %v1238 = vunpack.c.l.b16 %v536
    %v1239 = vunpack.c.h.b16 %v536
    %v1240 = vunpack.c.l.b16 %v537
    %v1241 = vunpack.c.h.b16 %v537
    %v1242 = vunpack.c.l.b16 %v538
    %v1243 = vunpack.c.h.b16 %v538
    %v1244 = vunpack.c.l.b16 %v539
    %v1245 = vunpack.c.h.b16 %v539
    %v1246 = vunpack.c.l.b16 %v540
    %v1247 = vunpack.c.h.b16 %v540
    %v1248 = vunpack.c.l.b16 %v541
    %v1249 = vunpack.c.h.b16 %v541
    %v1250 = vunpack.c.l.b16 %v542
    %v1251 = vunpack.c.h.b16 %v542
    %v1252 = vunpack.c.l.b16 %v543
    %v1253 = vunpack.c.h.b16 %v543
    %v1254 = vunpack.c.l.b16 %v544
    %v1255 = vunpack.c.h.b16 %v544
    %v1256 = vunpack.c.l.b16 %v545
    %v1257 = vunpack.c.h.b16 %v545
    %v1258 = vunpack.c.l.b16 %v546
    %v1259 = vunpack.c.h.b16 %v546
    %v1260 = vunpack.c.l.b16 %v547
    %v1261 = vunpack.c.h.b16 %v547
    %v1262 = vunpack.c.l.b16 %v548
    %v1263 = vunpack.c.h.b16 %v548
    %v1264 = vunpack.c.l.b16 %v549
    %v1265 = vunpack.c.h.b16 %v549
    %v1266 = vunpack.c.l.b16 %v550
    %v1267 = vunpack.c.h.b16 %v550
    %v1268 = vunpack.c.l.b16 %v551
    %v1269 = vunpack.c.h.b16 %v551
    %v1270 = vunpack.c.l.b16 %v552
    %v1271 = vunpack.c.h.b16 %v552
    %v1272 = vunpack.c.l.b16 %v553
    %v1273 = vunpack.c.h.b16 %v553
    %v1274 = vunpack.c.l.b16 %v554
    %v1275 = vunpack.c.h.b16 %v554
    %v1276 = vunpack.c.l.b16 %v555
    %v1277 = vunpack.c.h.b16 %v555
    %v1278 = vunpack.c.l.b16 %v556
    %v1279 = vunpack.c.h.b16 %v556
    %v1280 = vunpack.c.l.b16 %v557
    %v1281 = vunpack.c.h.b16 %v557
    %v1282 = vunpack.c.l.b16 %v558
    %v1283 = vunpack.c.h.b16 %v558
    %v1284 = vunpack.c.l.b16 %v559
    %v1285 = vunpack.c.h.b16 %v559
    %v1286 = vunpack.c.l.b16 %v560
    %v1287 = vunpack.c.h.b16 %v560
    %v1288 = vunpack.c.l.b16 %v561
    %v1289 = vunpack.c.h.b16 %v561
    %v1290 = vunpack.c.l.b16 %v562
    %v1291 = vunpack.c.h.b16 %v562
    %v1292 = vunpack.c.l.b16 %v563
    %v1293 = vunpack.c.h.b16 %v563
    %v1294 = vunpack.c.l.b16 %v564
    %v1295 = vunpack.c.h.b16 %v564
    %v1296 = vunpack.c.l.b16 %v565
    %v1297 = vunpack.c.h.b16 %v565
    %v1298 = vunpack.c.l.b16 %v566
    %v1299 = vunpack.c.h.b16 %v566
    %v1300 = vunpack.c.l.b16 %v567
    %v1301 = vunpack.c.h.b16 %v567
    %v1302 = vunpack.c.l.b16 %v568
    %v1303 = vunpack.c.h.b16 %v568
    %v1304 = vunpack.c.l.b16 %v569
    %v1305 = vunpack.c.h.b16 %v569
    %v1306 = vunpack.c.l.b16 %v570
    %v1307 = vunpack.c.h.b16 %v570
    %v1308 = vunpack.c.l.b16 %v571
    %v1309 = vunpack.c.h.b16 %v571
    %v1310 = vunpack.c.l.b16 %v572
    %v1311 = vunpack.c.h.b16 %v572
    %v1312 = vunpack.c.l.b16 %v573
    %v1313 = vunpack.c.h.b16 %v573
    %v1314 = vunpack.c.l.b16 %v574
    %v1315 = vunpack.c.h.b16 %v574
    %v1316 = vunpack.c.l.b16 %v575
    %v1317 = vunpack.c.h.b16 %v575
    %v1318 = vunpack.c.l.b16 %v576
    %v1319 = vunpack.c.h.b16 %v576
    %v1320 = vunpack.c.l.b16 %v577
    %v1321 = vunpack.c.h.b16 %v577
    %v1322 = vunpack.c.l.b16 %v578
    %v1323 = vunpack.c.h.b16 %v578
    %v1324 = vunpack.c.l.b16 %v579
    %v1325 = vunpack.c.h.b16 %v579
    %v1326 = vunpack.c.l.b16 %v580
    %v1327 = vunpack.c.h.b16 %v580
    %v1328 = vunpack.c.l.b16 %v581
    %v1329 = vunpack.c.h.b16 %v581
    %v1330 = vunpack.c.l.b16 %v582
    %v1331 = vunpack.c.h.b16 %v582
    %v1332 = vunpack.c.l.b16 %v583
    %v1333 = vunpack.c.h.b16 %v583
    %v1334 = vunpack.c.l.b16 %v584
    %v1335 = vunpack.c.h.b16 %v584
    %v1336 = vunpack.c.l.b16 %v585
    %v1337 = vunpack.c.h.b16 %v585
    %v1338 = vunpack.c.l.b16 %v586
    %v1339 = vunpack.c.h.b16 %v586
    %v1340 = vunpack.c.l.b16 %v587
    %v1341 = vunpack.c.h.b16 %v587
    %v1342 = vunpack.c.l.b16 %v588
    %v1343 = vunpack.c.h.b16 %v588
    %v1344 = vunpack.c.l.b16 %v589
    %v1345 = vunpack.c.h.b16 %v589
    %v1346 = vunpack.c.l.b16 %v590
    %v1347 = vunpack.c.h.b16 %v590
    %v1348 = vunpack.c.l.b16 %v591
    %v1349 = vunpack.c.h.b16 %v591
    %v1350 = vunpack.c.l.b16 %v592
    %v1351 = vunpack.c.h.b16 %v592
    %v1352 = vunpack.c.l.b16 %v593
    %v1353 = vunpack.c.h.b16 %v593
    %v1354 = vunpack.c.l.b16 %v594
    %v1355 = vunpack.c.h.b16 %v594
    %v1356 = vunpack.c.l.b16 %v595
    %v1357 = vunpack.c.h.b16 %v595
    %v1358 = vunpack.c.l.b16 %v596
    %v1359 = vunpack.c.h.b16 %v596
    %v1360 = vunpack.c.l.b16 %v597
    %v1361 = vunpack.c.h.b16 %v597
    %v1362 = vunpack.c.l.b16 %v598
    %v1363 = vunpack.c.h.b16 %v598
    %v1364 = vunpack.c.l.b16 %v599
    %v1365 = vunpack.c.h.b16 %v599
    %v1366 = vunpack.c.l.b16 %v600
    %v1367 = vunpack.c.h.b16 %v600
    %v1368 = vunpack.c.l.b16 %v601
    %v1369 = vunpack.c.h.b16 %v601
    %v1370 = vunpack.c.l.b16 %v602
    %v1371 = vunpack.c.h.b16 %v602
    %v1372 = vunpack.c.l.b16 %v603
    %v1373 = vunpack.c.h.b16 %v603
    %v1374 = vunpack.c.l.b16 %v604
    %v1375 = vunpack.c.h.b16 %v604
    %v1376 = vunpack.c.l.b16 %v605
    %v1377 = vunpack.c.h.b16 %v605
    %v1378 = vunpack.c.l.b16 %v606
    %v1379 = vunpack.c.h.b16 %v606
    %v1380 = vunpack.c.l.b16 %v607
    %v1381 = vunpack.c.h.b16 %v607
    %v1382 = vunpack.c.l.b16 %v608
    %v1383 = vunpack.c.h.b16 %v608
    %v1384 = vunpack.c.l.b16 %v609
    %v1385 = vunpack.c.h.b16 %v609
    %v1386 = vunpack.c.l.b16 %v610
    %v1387 = vunpack.c.h.b16 %v610
    %v1388 = vunpack.c.l.b16 %v611
    %v1389 = vunpack.c.h.b16 %v611
    %v1390 = vunpack.c.l.b16 %v612
    %v1391 = vunpack.c.h.b16 %v612
    %v1392 = vunpack.c.l.b16 %v613
    %v1393 = vunpack.c.h.b16 %v613
    %v1394 = vunpack.c.l.b16 %v614
    %v1395 = vunpack.c.h.b16 %v614
    %v1396 = vunpack.c.l.b16 %v615
    %v1397 = vunpack.c.h.b16 %v615
    %v1398 = vunpack.c.l.b16 %v616
    %v1399 = vunpack.c.h.b16 %v616
    %v1400 = vunpack.c.l.b16 %v617
    %v1401 = vunpack.c.h.b16 %v617
    %v1402 = vunpack.c.l.b16 %v618
    %v1403 = vunpack.c.h.b16 %v618
    %v1404 = vunpack.c.l.b16 %v619
    %v1405 = vunpack.c.h.b16 %v619
    %v1406 = vunpack.c.l.b16 %v620
    %v1407 = vunpack.c.h.b16 %v620
    %v1408 = vunpack.c.l.b16 %v621
    %v1409 = vunpack.c.h.b16 %v621
    %v1410 = vunpack.c.l.b16 %v622
    %v1411 = vunpack.c.h.b16 %v622
    %v1412 = vunpack.c.l.b16 %v623
    %v1413 = vunpack.c.h.b16 %v623
    %v1414 = vunpack.c.l.b16 %v624
    %v1415 = vunpack.c.h.b16 %v624
    %v1416 = vunpack.c.l.b16 %v625
    %v1417 = vunpack.c.h.b16 %v625
    %v1418 = vunpack.c.l.b16 %v626
    %v1419 = vunpack.c.h.b16 %v626
    %v1420 = vunpack.c.l.b16 %v627
    %v1421 = vunpack.c.h.b16 %v627
    %v1422 = vunpack.c.l.b16 %v628
    %v1423 = vunpack.c.h.b16 %v628
    %v1424 = vunpack.c.l.b16 %v629
    %v1425 = vunpack.c.h.b16 %v629
    %v1426 = vunpack.c.l.b16 %v630
    %v1427 = vunpack.c.h.b16 %v630
    %v1428 = vunpack.c.l.b16 %v631
    %v1429 = vunpack.c.h.b16 %v631
    %v1430 = vunpack.c.l.b16 %v632
    %v1431 = vunpack.c.h.b16 %v632
    %v1432 = vunpack.c.l.b16 %v633
    %v1433 = vunpack.c.h.b16 %v633
    %v1434 = vunpack.c.l.b16 %v634
    %v1435 = vunpack.c.h.b16 %v634
    %v1436 = vunpack.c.l.b16 %v635
    %v1437 = vunpack.c.h.b16 %v635
    %v1438 = vunpack.c.l.b16 %v636
    %v1439 = vunpack.c.h.b16 %v636
    %v1440 = vunpack.c.l.b16 %v637
    %v1441 = vunpack.c.h.b16 %v637
    %v1442 = vunpack.c.l.b16 %v638
    %v1443 = vunpack.c.h.b16 %v638
    %v1444 = vunpack.c.l.b16 %v639
    %v1445 = vunpack.c.h.b16 %v639
    %v1446 = vunpack.c.l.b16 %v640
    %v1447 = vunpack.c.h.b16 %v640
    %v1448 = vunpack.c.l.b16 %v641
    %v1449 = vunpack.c.h.b16 %v641
    %v1450 = vunpack.c.l.b16 %v642
    %v1451 = vunpack.c.h.b16 %v642
    %v1452 = vunpack.c.l.b16 %v643
    %v1453 = vunpack.c.h.b16 %v643
    %v1454 = vunpack.c.l.b16 %v644
    %v1455 = vunpack.c.h.b16 %v644
    %v1456 = vunpack.c.l.b16 %v645
    %v1457 = vunpack.c.h.b16 %v645
    %v1458 = vunpack.c.l.b16 %v646
    %v1459 = vunpack.c.h.b16 %v646
    %v1460 = vunpack.c.l.b16 %v647
    %v1461 = vunpack.c.h.b16 %v647
    %v1462 = vunpack.c.l.b16 %v648
    %v1463 = vunpack.c.h.b16 %v648
    %v1464 = vunpack.c.l.b16 %v649
    %v1465 = vunpack.c.h.b16 %v649
    %v1466 = vunpack.c.l.b16 %v650
    %v1467 = vunpack.c.h.b16 %v650
    %v1468 = vunpack.c.l.b16 %v651
    %v1469 = vunpack.c.h.b16 %v651
    %v1470 = vunpack.c.l.b16 %v652
    %v1471 = vunpack.c.h.b16 %v652
    %v1472 = vunpack.c.l.b16 %v653
    %v1473 = vunpack.c.h.b16 %v653
    %v1474 = vunpack.c.l.b16 %v654
    %v1475 = vunpack.c.h.b16 %v654
    %v1476 = vunpack.c.l.b16 %v655
    %v1477 = vunpack.c.h.b16 %v655
    %v1478 = vunpack.c.l.b16 %v656
    %v1479 = vunpack.c.h.b16 %v656
    %v1480 = vunpack.c.l.b16 %v657
    %v1481 = vunpack.c.h.b16 %v657
    %v1482 = vunpack.c.l.b16 %v658
    %v1483 = vunpack.c.h.b16 %v658
    %v1484 = vunpack.c.l.b16 %v659
    %v1485 = vunpack.c.h.b16 %v659
    %v1486 = vunpack.c.l.b16 %v660
    %v1487 = vunpack.c.h.b16 %v660
    %v1488 = vunpack.c.l.b16 %v661
    %v1489 = vunpack.c.h.b16 %v661
    %v1490 = vunpack.c.l.b16 %v662
    %v1491 = vunpack.c.h.b16 %v662
    %v1492 = vunpack.c.l.b16 %v663
    %v1493 = vunpack.c.h.b16 %v663
    %v1494 = vunpack.c.l.b16 %v664
    %v1495 = vunpack.c.h.b16 %v664
    %v1496 = vunpack.c.l.b16 %v665
    %v1497 = vunpack.c.h.b16 %v665
    %v1498 = vunpack.c.l.b16 %v666
    %v1499 = vunpack.c.h.b16 %v666
    %v1500 = vunpack.c.l.b16 %v667
    %v1501 = vunpack.c.h.b16 %v667
    %v1502 = vunpack.c.l.b16 %v668
    %v1503 = vunpack.c.h.b16 %v668
    %v1504 = vunpack.c.l.b16 %v669
    %v1505 = vunpack.c.h.b16 %v669
    %v1506 = vunpack.c.l.b16 %v670
    %v1507 = vunpack.c.h.b16 %v670
    %v1508 = vunpack.c.l.b16 %v671
    %v1509 = vunpack.c.h.b16 %v671
    %v1510 = vunpack.c.l.b16 %v672
    %v1511 = vunpack.c.h.b16 %v672
    %v1512 = vunpack.c.l.b16 %v673
    %v1513 = vunpack.c.h.b16 %v673
    %v1514 = vunpack.c.l.b16 %v674
    %v1515 = vunpack.c.h.b16 %v674
    %v1516 = vunpack.c.l.b16 %v675
    %v1517 = vunpack.c.h.b16 %v675
    %v1518 = vunpack.c.l.b16 %v676
    %v1519 = vunpack.c.h.b16 %v676
    %v1520 = vunpack.c.l.b16 %v677
    %v1521 = vunpack.c.h.b16 %v677
    %v1522 = vunpack.c.l.b16 %v678
    %v1523 = vunpack.c.h.b16 %v678
    %v1524 = vunpack.c.l.b16 %v679
    %v1525 = vunpack.c.h.b16 %v679
    %v1526 = vunpack.c.l.b16 %v680
    %v1527 = vunpack.c.h.b16 %v680
    %v1528 = vunpack.c.l.b16 %v681
    %v1529 = vunpack.c.h.b16 %v681
    %v1530 = vunpack.c.l.b16 %v682
    %v1531 = vunpack.c.h.b16 %v682
    %v1532 = vunpack.c.l.b16 %v683
    %v1533 = vunpack.c.h.b16 %v683
    %v1534 = vunpack.c.l.b16 %v684
    %v1535 = vunpack.c.h.b16 %v684
    %v1536 = vunpack.c.l.b16 %v685
    %v1537 = vunpack.c.h.b16 %v685
    %v1538 = vunpack.c.l.b16 %v686
    %v1539 = vunpack.c.h.b16 %v686
    %v1540 = vunpack.c.l.b16 %v687
    %v1541 = vunpack.c.h.b16 %v687
    %v1542 = vunpack.c.l.b16 %v688
    %v1543 = vunpack.c.h.b16 %v688
    %v1544 = vunpack.c.l.b16 %v689
    %v1545 = vunpack.c.h.b16 %v689
    %v1546 = vunpack.c.l.b16 %v690
    %v1547 = vunpack.c.h.b16 %v690
    %v1548 = vunpack.c.l.b16 %v691
    %v1549 = vunpack.c.h.b16 %v691
    %v1550 = vunpack.c.l.b16 %v692
    %v1551 = vunpack.c.h.b16 %v692
    %v1552 = vunpack.c.l.b16 %v693
    %v1553 = vunpack.c.h.b16 %v693
    %v1554 = vunpack.c.l.b16 %v694
    %v1555 = vunpack.c.h.b16 %v694
    %v1556 = vunpack.c.l.b16 %v695
    %v1557 = vunpack.c.h.b16 %v695
    %v1558 = vunpack.c.l.b16 %v696
    %v1559 = vunpack.c.h.b16 %v696
    %v1560 = vunpack.c.l.b16 %v697
    %v1561 = vunpack.c.h.b16 %v697
    %v1562 = vunpack.c.l.b16 %v698
    %v1563 = vunpack.c.h.b16 %v698
    %v1564 = vunpack.c.l.b16 %v699
    %v1565 = vunpack.c.h.b16 %v699
    %v1566 = vunpack.c.l.b16 %v700
    %v1567 = vunpack.c.h.b16 %v700
    %v1568 = vunpack.c.l.b16 %v701
    %v1569 = vunpack.c.h.b16 %v701
    %v1570 = vunpack.c.l.b16 %v702
    %v1571 = vunpack.c.h.b16 %v702
    %v1572 = vunpack.c.l.b16 %v703
    %v1573 = vunpack.c.h.b16 %v703
    %v1574 = vunpack.c.l.b16 %v704
    %v1575 = vunpack.c.h.b16 %v704
    %v1576 = vunpack.c.l.b16 %v705
    %v1577 = vunpack.c.h.b16 %v705
    %v1578 = vunpack.c.l.b16 %v706
    %v1579 = vunpack.c.h.b16 %v706
    %v1580 = vunpack.c.l.b16 %v707
    %v1581 = vunpack.c.h.b16 %v707
    %v1582 = vunpack.c.l.b16 %v708
    %v1583 = vunpack.c.h.b16 %v708
    %v1584 = vunpack.c.l.b16 %v709
    %v1585 = vunpack.c.h.b16 %v709
    %v1586 = vunpack.c.l.b16 %v710
    %v1587 = vunpack.c.h.b16 %v710
    %v1588 = vunpack.c.l.b16 %v711
    %v1589 = vunpack.c.h.b16 %v711
    %v1590 = vunpack.c.l.b16 %v712
    %v1591 = vunpack.c.h.b16 %v712
    %v1592 = vunpack.c.l.b16 %v713
    %v1593 = vunpack.c.h.b16 %v713
    %v1594 = vunpack.c.l.b16 %v714
    %v1595 = vunpack.c.h.b16 %v714
    %v1596 = vunpack.c.l.b16 %v715
    %v1597 = vunpack.c.h.b16 %v715
    %v1598 = vunpack.c.l.b16 %v716
    %v1599 = vunpack.c.h.b16 %v716
    %v1600 = vunpack.c.l.b16 %v717
    %v1601 = vunpack.c.h.b16 %v717
    %v1602 = vunpack.c.l.b16 %v718
    %v1603 = vunpack.c.h.b16 %v718
    %v1604 = vpack.c.b16 %v1034, %v1028
    %v1605 = vpack.c.b16 %v1035, %v1029
    %v1606 = vpack.c.b16 %v1036, %v1030
    %v1607 = vpack.c.b16 %v1037, %v1031
    %v1608 = vpack.c.b16 %v1038, %v1032
    %v1609 = vpack.c.b16 %v1039, %v1033
    %v1610 = vpack.c.b16 %v1046, %v1040
    %v1611 = vpack.c.b16 %v1047, %v1041
    %v1612 = vpack.c.b16 %v1048, %v1042
    %v1613 = vpack.c.b16 %v1049, %v1043
    %v1614 = vpack.c.b16 %v1050, %v1044
    %v1615 = vpack.c.b16 %v1051, %v1045
    %v1616 = vpack.c.b16 %v1058, %v1052
    %v1617 = vpack.c.b16 %v1059, %v1053
    %v1618 = vpack.c.b16 %v1060, %v1054
    %v1619 = vpack.c.b16 %v1061, %v1055
    %v1620 = vpack.c.b16 %v1062, %v1056
    %v1621 = vpack.c.b16 %v1063, %v1057
    %v1622 = vpack.c.b16 %v1070, %v1064
    %v1623 = vpack.c.b16 %v1071, %v1065
    %v1624 = vpack.c.b16 %v1072, %v1066
    %v1625 = vpack.c.b16 %v1073, %v1067
    %v1626 = vpack.c.b16 %v1074, %v1068
    %v1627 = vpack.c.b16 %v1075, %v1069
    %v1628 = vpack.c.b16 %v1082, %v1076
    %v1629 = vpack.c.b16 %v1083, %v1077
    %v1630 = vpack.c.b16 %v1084, %v1078
    %v1631 = vpack.c.b16 %v1085, %v1079
    %v1632 = vpack.c.b16 %v1086, %v1080
    %v1633 = vpack.c.b16 %v1087, %v1081
    %v1634 = vpack.c.b16 %v1094, %v1088
    %v1635 = vpack.c.b16 %v1095, %v1089
    %v1636 = vpack.c.b16 %v1096, %v1090
    %v1637 = vpack.c.b16 %v1097, %v1091
    %v1638 = vpack.c.b16 %v1098, %v1092
    %v1639 = vpack.c.b16 %v1099, %v1093
    %v1640 = vpack.c.b16 %v1106, %v1100
    %v1641 = vpack.c.b16 %v1107, %v1101
    %v1642 = vpack.c.b16 %v1108, %v1102
    %v1643 = vpack.c.b16 %v1109, %v1103
    %v1644 = vpack.c.b16 %v1110, %v1104
    %v1645 = vpack.c.b16 %v1111, %v1105
    %v1646 = vpack.c.b16 %v1118, %v1112
    %v1647 = vpack.c.b16 %v1119, %v1113
    %v1648 = vpack.c.b16 %v1120, %v1114
    %v1649 = vpack.c.b16 %v1121, %v1115
    %v1650 = vpack.c.b16 %v1122, %v1116
    %v1651 = vpack.c.b16 %v1123, %v1117
    %v1652 = vpack.c.b16 %v1130, %v1124
    %v1653 = vpack.c.b16 %v1131, %v1125
    %v1654 = vpack.c.b16 %v1132, %v1126
    %v1655 = vpack.c.b16 %v1133, %v1127
    %v1656 = vpack.c.b16 %v1134, %v1128
    %v1657 = vpack.c.b16 %v1135, %v1129
    %v1658 = vpack.c.b16 %v1142, %v1136
    %v1659 = vpack.c.b16 %v1143, %v1137
    %v1660 = vpack.c.b16 %v1144, %v1138
    %v1661 = vpack.c.b16 %v1145, %v1139
    %v1662 = vpack.c.b16 %v1146, %v1140
    %v1663 = vpack.c.b16 %v1147, %v1141
    %v1664 = vpack.c.b16 %v1154, %v1148
    %v1665 = vpack.c.b16 %v1155, %v1149
    %v1666 = vpack.c.b16 %v1156, %v1150
    %v1667 = vpack.c.b16 %v1157, %v1151
    %v1668 = vpack.c.b16 %v1158, %v1152
    %v1669 = vpack.c.b16 %v1159, %v1153
    %v1670 = vpack.c.b16 %v1166, %v1160
    %v1671 = vpack.c.b16 %v1167, %v1161
    %v1672 = vpack.c.b16 %v1168, %v1162
    %v1673 = vpack.c.b16 %v1169, %v1163
    %v1674 = vpack.c.b16 %v1170, %v1164
    %v1675 = vpack.c.b16 %v1171, %v1165
    %v1676 = vpack.c.b16 %v1178, %v1172
    %v1677 = vpack.c.b16 %v1179, %v1173
    %v1678 = vpack.c.b16 %v1180, %v1174
    %v1679 = vpack.c.b16 %v1181, %v1175
    %v1680 = vpack.c.b16 %v1182, %v1176
    %v1681 = vpack.c.b16 %v1183, %v1177
    %v1682 = vpack.c.b16 %v1190, %v1184
    %v1683 = vpack.c.b16 %v1191, %v1185
    %v1684 = vpack.c.b16 %v1192, %v1186
    %v1685 = vpack.c.b16 %v1193, %v1187
    %v1686 = vpack.c.b16 %v1194, %v1188
    %v1687 = vpack.c.b16 %v1195, %v1189
    %v1688 = vpack.c.b16 %v1202, %v1196
    %v1689 = vpack.c.b16 %v1203, %v1197
    %v1690 = vpack.c.b16 %v1204, %v1198
    %v1691 = vpack.c.b16 %v1205, %v1199
    %v1692 = vpack.c.b16 %v1206, %v1200
    %v1693 = vpack.c.b16 %v1207, %v1201
    %v1694 = vpack.c.b16 %v1214, %v1208
    %v1695 = vpack.c.b16 %v1215, %v1209
    %v1696 = vpack.c.b16 %v1216, %v1210
    %v1697 = vpack.c.b16 %v1217, %v1211
    %v1698 = vpack.c.b16 %v1218, %v1212
    %v1699 = vpack.c.b16 %v1219, %v1213
    %v1700 = vpack.c.b16 %v1226, %v1220
    %v1701 = vpack.c.b16 %v1227, %v1221
    %v1702 = vpack.c.b16 %v1228, %v1222
    %v1703 = vpack.c.b16 %v1229, %v1223
    %v1704 = vpack.c.b16 %v1230, %v1224
    %v1705 = vpack.c.b16 %v1231, %v1225
    %v1706 = vpack.c.b16 %v1238, %v1232
    %v1707 = vpack.c.b16 %v1239, %v1233
    %v1708 = vpack.c.b16 %v1240, %v1234
    %v1709 = vpack.c.b16 %v1241, %v1235
    %v1710 = vpack.c.b16 %v1242, %v1236
    %v1711 = vpack.c.b16 %v1243, %v1237
    %v1712 = vpack.c.b16 %v1250, %v1244
    %v1713 = vpack.c.b16 %v1251, %v1245
    %v1714 = vpack.c.b16 %v1252, %v1246
    %v1715 = vpack.c.b16 %v1253, %v1247
    %v1716 = vpack.c.b16 %v1254, %v1248
    %v1717 = vpack.c.b16 %v1255, %v1249
    %v1718 = vpack.c.b16 %v1262, %v1256
    %v1719 = vpack.c.b16 %v1263, %v1257
    %v1720 = vpack.c.b16 %v1264, %v1258
    %v1721 = vpack.c.b16 %v1265, %v1259
    %v1722 = vpack.c.b16 %v1266, %v1260
    %v1723 = vpack.c.b16 %v1267, %v1261
    %v1724 = vpack.c.b16 %v1274, %v1268
    %v1725 = vpack.c.b16 %v1275, %v1269
    %v1726 = vpack.c.b16 %v1276, %v1270
    %v1727 = vpack.c.b16 %v1277, %v1271
    %v1728 = vpack.c.b16 %v1278, %v1272
    %v1729 = vpack.c.b16 %v1279, %v1273
    %v1730 = vpack.c.b16 %v1286, %v1280
    %v1731 = vpack.c.b16 %v1287, %v1281
    %v1732 = vpack.c.b16 %v1288, %v1282
    %v1733 = vpack.c.b16 %v1289, %v1283
    %v1734 = vpack.c.b16 %v1290, %v1284
    %v1735 = vpack.c.b16 %v1291, %v1285
    %v1736 = vpack.c.b16 %v1298, %v1292
    %v1737 = vpack.c.b16 %v1299, %v1293
    %v1738 = vpack.c.b16 %v1300, %v1294
    %v1739 = vpack.c.b16 %v1301, %v1295
    %v1740 = vpack.c.b16 %v1302, %v1296
    %v1741 = vpack.c.b16 %v1303, %v1297
    %v1742 = vpack.c.b16 %v1310, %v1304
    %v1743 = vpack.c.b16 %v1311, %v1305
    %v1744 = vpack.c.b16 %v1312, %v1306
    %v1745 = vpack.c.b16 %v1313, %v1307
    %v1746 = vpack.c.b16 %v1314, %v1308
    %v1747 = vpack.c.b16 %v1315, %v1309
    %v1748 = vpack.c.b16 %v1322, %v1316
    %v1749 = vpack.c.b16 %v1323, %v1317
    %v1750 = vpack.c.b16 %v1324, %v1318
    %v1751 = vpack.c.b16 %v1325, %v1319
    %v1752 = vpack.c.b16 %v1326, %v1320
    %v1753 = vpack.c.b16 %v1327, %v1321
    %v1754 = vpack.c.b16 %v1334, %v1328
    %v1755 = vpack.c.b16 %v1335, %v1329
    %v1756 = vpack.c.b16 %v1336, %v1330
    %v1757 = vpack.c.b16 %v1337, %v1331
    %v1758 = vpack.c.b16 %v1338, %v1332
    %v1759 = vpack.c.b16 %v1339, %v1333
    %v1760 = vpack.c.b16 %v1346, %v1340
    %v1761 = vpack.c.b16 %v1347, %v1341
    %v1762 = vpack.c.b16 %v1348, %v1342
    %v1763 = vpack.c.b16 %v1349, %v1343
    %v1764 = vpack.c.b16 %v1350, %v1344
    %v1765 = vpack.c.b16 %v1351, %v1345
    %v1766 = vpack.c.b16 %v1358, %v1352
    %v1767 = vpack.c.b16 %v1359, %v1353
    %v1768 = vpack.c.b16 %v1360, %v1354
    %v1769 = vpack.c.b16 %v1361, %v1355
    %v1770 = vpack.c.b16 %v1362, %v1356
    %v1771 = vpack.c.b16 %v1363, %v1357
    %v1772 = vpack.c.b16 %v1370, %v1364
    %v1773 = vpack.c.b16 %v1371, %v1365
    %v1774 = vpack.c.b16 %v1372, %v1366
    %v1775 = vpack.c.b16 %v1373, %v1367
    %v1776 = vpack.c.b16 %v1374, %v1368
    %v1777 = vpack.c.b16 %v1375, %v1369
    %v1778 = vpack.c.b16 %v1382, %v1376
    %v1779 = vpack.c.b16 %v1383, %v1377
    %v1780 = vpack.c.b16 %v1384, %v1378
    %v1781 = vpack.c.b16 %v1385, %v1379
    %v1782 = vpack.c.b16 %v1386, %v1380
    %v1783 = vpack.c.b16 %v1387, %v1381
    %v1784 = vpack.c.b16 %v1394, %v1388
    %v1785 = vpack.c.b16 %v1395, %v1389
    %v1786 = vpack.c.b16 %v1396, %v1390
    %v1787 = vpack.c.b16 %v1397, %v1391
    %v1788 = vpack.c.b16 %v1398, %v1392
    %v1789 = vpack.c.b16 %v1399, %v1393
    %v1790 = vpack.c.b16 %v1406, %v1400
    %v1791 = vpack.c.b16 %v1407, %v1401
    %v1792 = vpack.c.b16 %v1408, %v1402
    %v1793 = vpack.c.b16 %v1409, %v1403
    %v1794 = vpack.c.b16 %v1410, %v1404
    %v1795 = vpack.c.b16 %v1411, %v1405
    %v1796 = vpack.c.b16 %v1418, %v1412
    %v1797 = vpack.c.b16 %v1419, %v1413
    %v1798 = vpack.c.b16 %v1420, %v1414
    %v1799 = vpack.c.b16 %v1421, %v1415
    %v1800 = vpack.c.b16 %v1422, %v1416
    %v1801 = vpack.c.b16 %v1423, %v1417
    %v1802 = vpack.c.b16 %v1430, %v1424
    %v1803 = vpack.c.b16 %v1431, %v1425
    %v1804 = vpack.c.b16 %v1432, %v1426
    %v1805 = vpack.c.b16 %v1433, %v1427
    %v1806 = vpack.c.b16 %v1434, %v1428
    %v1807 = vpack.c.b16 %v1435, %v1429
    %v1808 = vpack.c.b16 %v1442, %v1436
    %v1809 = vpack.c.b16 %v1443, %v1437
    %v1810 = vpack.c.b16 %v1444, %v1438
    %v1811 = vpack.c.b16 %v1445, %v1439
    %v1812 = vpack.c.b16 %v1446, %v1440
    %v1813 = vpack.c.b16 %v1447, %v1441
    %v1814 = vpack.c.b16 %v1454, %v1448
    %v1815 = vpack.c.b16 %v1455, %v1449
    %v1816 = vpack.c.b16 %v1456, %v1450
    %v1817 = vpack.c.b16 %v1457, %v1451
    %v1818 = vpack.c.b16 %v1458, %v1452
    %v1819 = vpack.c.b16 %v1459, %v1453
    %v1820 = vpack.c.b16 %v1466, %v1460
    %v1821 = vpack.c.b16 %v1467, %v1461
    %v1822 = vpack.c.b16 %v1468, %v1462
    %v1823 = vpack.c.b16 %v1469, %v1463
    %v1824 = vpack.c.b16 %v1470, %v1464
    %v1825 = vpack.c.b16 %v1471, %v1465
    %v1826 = vpack.c.b16 %v1478, %v1472
    %v1827 = vpack.c.b16 %v1479, %v1473
    %v1828 = vpack.c.b16 %v1480, %v1474
    %v1829 = vpack.c.b16 %v1481, %v1475
    %v1830 = vpack.c.b16 %v1482, %v1476
    %v1831 = vpack.c.b16 %v1483, %v1477
    %v1832 = vpack.c.b16 %v1490, %v1484
    %v1833 = vpack.c.b16 %v1491, %v1485
    %v1834 = vpack.c.b16 %v1492, %v1486
    %v1835 = vpack.c.b16 %v1493, %v1487
    %v1836 = vpack.c.b16 %v1494, %v1488
    %v1837 = vpack.c.b16 %v1495, %v1489
    %v1838 = vpack.c.b16 %v1502, %v1496
    %v1839 = vpack.c.b16 %v1503, %v1497
    %v1840 = vpack.c.b16 %v1504, %v1498
    %v1841 = vpack.c.b16 %v1505, %v1499
    %v1842 = vpack.c.b16 %v1506, %v1500
    %v1843 = vpack.c.b16 %v1507, %v1501
    %v1844 = vpack.c.b16 %v1514, %v1508
    %v1845 = vpack.c.b16 %v1515, %v1509
    %v1846 = vpack.c.b16 %v1516, %v1510
    %v1847 = vpack.c.b16 %v1517, %v1511
    %v1848 = vpack.c.b16 %v1518, %v1512
    %v1849 = vpack.c.b16 %v1519, %v1513
    %v1850 = vpack.c.b16 %v1526, %v1520
    %v1851 = vpack.c.b16 %v1527, %v1521
    %v1852 = vpack.c.b16 %v1528, %v1522
    %v1853 = vpack.c.b16 %v1529, %v1523
    %v1854 = vpack.c.b16 %v1530, %v1524
    %v1855 = vpack.c.b16 %v1531, %v1525
    %v1856 = vpack.c.b16 %v1538, %v1532
    %v1857 = vpack.c.b16 %v1539, %v1533
    %v1858 = vpack.c.b16 %v1540, %v1534
    %v1859 = vpack.c.b16 %v1541, %v1535
    %v1860 = vpack.c.b16 %v1542, %v1536
    %v1861 = vpack.c.b16 %v1543, %v1537
    %v1862 = vpack.c.b16 %v1550, %v1544
    %v1863 = vpack.c.b16 %v1551, %v1545
    %v1864 = vpack.c.b16 %v1552, %v1546
    %v1865 = vpack.c.b16 %v1553, %v1547
    %v1866 = vpack.c.b16 %v1554, %v1548
    %v1867 = vpack.c.b16 %v1555, %v1549
    %v1868 = vpack.c.b16 %v1562, %v1556
    %v1869 = vpack.c.b16 %v1563, %v1557
    %v1870 = vpack.c.b16 %v1564, %v1558
    %v1871 = vpack.c.b16 %v1565, %v1559
    %v1872 = vpack.c.b16 %v1566, %v1560
    %v1873 = vpack.c.b16 %v1567, %v1561
    %v1874 = vpack.c.b16 %v1574, %v1568
    %v1875 = vpack.c.b16 %v1575, %v1569
    %v1876 = vpack.c.b16 %v1576, %v1570
    %v1877 = vpack.c.b16 %v1577, %v1571
    %v1878 = vpack.c.b16 %v1578, %v1572
    %v1879 = vpack.c.b16 %v1579, %v1573
    %v1880 = vpack.c.b16 %v1586, %v1580
    %v1881 = vpack.c.b16 %v1587, %v1581
    %v1882 = vpack.c.b16 %v1588, %v1582
    %v1883 = vpack.c.b16 %v1589, %v1583
    %v1884 = vpack.c.b16 %v1590, %v1584
    %v1885 = vpack.c.b16 %v1591, %v1585
    %v1886 = vpack.c.b16 %v1598, %v1592
    %v1887 = vpack.c.b16 %v1599, %v1593
    %v1888 = vpack.c.b16 %v1600, %v1594
    %v1889 = vpack.c.b16 %v1601, %v1595
    %v1890 = vpack.c.b16 %v1602, %v1596
    %v1891 = vpack.c.b16 %v1603, %v1597
    %2180 = vmatprep.subr.bf16.mxu0 %v1605
    %2181 = vmatpush1.bf16.msra.mxu0 %v1604
    %2182 = vmatprep.subr.bf16.mxu0 %v1611
    %2183 = vmatpush1.bf16.msra.mxu0 %v1610
    %2184 = vmatprep.subr.bf16.mxu0 %v1617
    %2185 = vmatpush1.bf16.msra.mxu0 %v1616
    %2186 = vmatprep.subr.bf16.mxu0 %v1623
    %2187 = vmatpush1.bf16.msra.mxu0 %v1622
    %2188 = vmatprep.subr.bf16.mxu0 %v1629
    %2189 = vmatpush1.bf16.msra.mxu0 %v1628
    %2190 = vmatprep.subr.bf16.mxu0 %v1635
    %2191 = vmatpush1.bf16.msra.mxu0 %v1634
    %2192 = vmatprep.subr.bf16.mxu0 %v1641
    %2193 = vmatpush1.bf16.msra.mxu0 %v1640
    %2194 = vmatprep.subr.bf16.mxu0 %v1647
    %2195 = vmatpush1.bf16.msra.mxu0 %v1646
    %2196 = vmatprep.subr.bf16.mxu0 %v1653
    %2197 = vmatpush1.bf16.msra.mxu0 %v1652
    %2198 = vmatprep.subr.bf16.mxu0 %v1659
    %2199 = vmatpush1.bf16.msra.mxu0 %v1658
    %2200 = vmatprep.subr.bf16.mxu0 %v1665
    %2201 = vmatpush1.bf16.msra.mxu0 %v1664
    %2202 = vmatprep.subr.bf16.mxu0 %v1671
    %2203 = vmatpush1.bf16.msra.mxu0 %v1670
    %2204 = vmatprep.subr.bf16.mxu0 %v1677
    %2205 = vmatpush1.bf16.msra.mxu0 %v1676
    %2206 = vmatprep.subr.bf16.mxu0 %v1683
    %2207 = vmatpush1.bf16.msra.mxu0 %v1682
    %2208 = vmatprep.subr.bf16.mxu0 %v1689
    %2209 = vmatpush1.bf16.msra.mxu0 %v1688
    %2210 = vmatprep.subr.bf16.mxu0 %v1695
    %2211 = vmatpush1.bf16.msra.mxu0 %v1694
    %2212 = vmatprep.mubr.bf16.mxu0 %v729
    %2213 = vmatmul.mubr.bf16.gmra.mrb[0].mxu0 %v728
    %v2214 = vpop.f32.mrb[0].mxu0
    %v2215 = vadd.f32 0.0, %v2214
    %v2216 = vpop.f32.mrb[0].mxu0
    %v2217 = vadd.f32 0.0, %v2216
    %v2218 = vpop.f32.mrb[0].mxu0
    %v2219 = vpop.f32.mrb[0].mxu0
    %2220 = vdwg.mxu0
    %2221 = vmatprep.subr.bf16.mxu0 %v1701
    %2222 = vmatpush1.bf16.msra.mxu0 %v1700
    %2223 = vmatprep.subr.bf16.mxu0 %v1707
    %2224 = vmatpush1.bf16.msra.mxu0 %v1706
    %2225 = vmatprep.subr.bf16.mxu0 %v1713
    %2226 = vmatpush1.bf16.msra.mxu0 %v1712
    %2227 = vmatprep.subr.bf16.mxu0 %v1719
    %2228 = vmatpush1.bf16.msra.mxu0 %v1718
    %2229 = vmatprep.subr.bf16.mxu0 %v1725
    %2230 = vmatpush1.bf16.msra.mxu0 %v1724
    %2231 = vmatprep.subr.bf16.mxu0 %v1731
    %2232 = vmatpush1.bf16.msra.mxu0 %v1730
    %2233 = vmatprep.subr.bf16.mxu0 %v1737
    %2234 = vmatpush1.bf16.msra.mxu0 %v1736
    %2235 = vmatprep.subr.bf16.mxu0 %v1743
    %2236 = vmatpush1.bf16.msra.mxu0 %v1742
    %2237 = vmatprep.subr.bf16.mxu0 %v1749
    %2238 = vmatpush1.bf16.msra.mxu0 %v1748
    %2239 = vmatprep.subr.bf16.mxu0 %v1755
    %2240 = vmatpush1.bf16.msra.mxu0 %v1754
    %2241 = vmatprep.subr.bf16.mxu0 %v1761
    %2242 = vmatpush1.bf16.msra.mxu0 %v1760
    %2243 = vmatprep.subr.bf16.mxu0 %v1767
    %2244 = vmatpush1.bf16.msra.mxu0 %v1766
    %2245 = vmatprep.subr.bf16.mxu0 %v1773
    %2246 = vmatpush1.bf16.msra.mxu0 %v1772
    %2247 = vmatprep.subr.bf16.mxu0 %v1779
    %2248 = vmatpush1.bf16.msra.mxu0 %v1778
    %2249 = vmatprep.subr.bf16.mxu0 %v1785
    %2250 = vmatpush1.bf16.msra.mxu0 %v1784
    %2251 = vmatprep.subr.bf16.mxu0 %v1791
    %2252 = vmatpush1.bf16.msra.mxu0 %v1790
    %2253 = vmatprep.mubr.bf16.mxu0 %v731
    %2254 = vmatmul.mubr.bf16.gmra.mrb[0].mxu0 %v730
    %v2255 = vpop.f32.mrb[0].mxu0
    %v2256 = vadd.f32 %v2215, %v2255
    %v2257 = vpop.f32.mrb[0].mxu0
    %v2258 = vadd.f32 %v2217, %v2257
    %v2259 = vpop.f32.mrb[0].mxu0
    %v2260 = vpop.f32.mrb[0].mxu0
    %2261 = vdwg.mxu0
    %2262 = vmatprep.subr.bf16.mxu0 %v1797
    %2263 = vmatpush1.bf16.msra.mxu0 %v1796
    %2264 = vmatprep.subr.bf16.mxu0 %v1803
    %2265 = vmatpush1.bf16.msra.mxu0 %v1802
    %2266 = vmatprep.subr.bf16.mxu0 %v1809
    %2267 = vmatpush1.bf16.msra.mxu0 %v1808
    %2268 = vmatprep.subr.bf16.mxu0 %v1815
    %2269 = vmatpush1.bf16.msra.mxu0 %v1814
    %2270 = vmatprep.subr.bf16.mxu0 %v1821
    %2271 = vmatpush1.bf16.msra.mxu0 %v1820
    %2272 = vmatprep.subr.bf16.mxu0 %v1827
    %2273 = vmatpush1.bf16.msra.mxu0 %v1826
    %2274 = vmatprep.subr.bf16.mxu0 %v1833
    %2275 = vmatpush1.bf16.msra.mxu0 %v1832
    %2276 = vmatprep.subr.bf16.mxu0 %v1839
    %2277 = vmatpush1.bf16.msra.mxu0 %v1838
    %2278 = vmatprep.subr.bf16.mxu0 %v1845
    %2279 = vmatpush1.bf16.msra.mxu0 %v1844
    %2280 = vmatprep.subr.bf16.mxu0 %v1851
    %2281 = vmatpush1.bf16.msra.mxu0 %v1850
    %2282 = vmatprep.subr.bf16.mxu0 %v1857
    %2283 = vmatpush1.bf16.msra.mxu0 %v1856
    %2284 = vmatprep.subr.bf16.mxu0 %v1863
    %2285 = vmatpush1.bf16.msra.mxu0 %v1862
    %2286 = vmatprep.subr.bf16.mxu0 %v1869
    %2287 = vmatpush1.bf16.msra.mxu0 %v1868
    %2288 = vmatprep.subr.bf16.mxu0 %v1875
    %2289 = vmatpush1.bf16.msra.mxu0 %v1874
    %2290 = vmatprep.subr.bf16.mxu0 %v1881
    %2291 = vmatpush1.bf16.msra.mxu0 %v1880
    %2292 = vmatprep.subr.bf16.mxu0 %v1887
    %2293 = vmatpush1.bf16.msra.mxu0 %v1886
    %2294 = vmatprep.mubr.bf16.mxu0 %v733
    %2295 = vmatmul.mubr.bf16.gmra.mrb[0].mxu0 %v732
    %v2296 = vpop.f32.mrb[0].mxu0
    %v2297 = vadd.f32 %v2256, %v2296
    %v2298 = vpop.f32.mrb[0].mxu0
    %v2299 = vadd.f32 %v2258, %v2298
    %v2300 = vpop.f32.mrb[0].mxu0
    %v2301 = vpop.f32.mrb[0].mxu0
    %2302 = vdwg.mxu0
    %2303 = vmatprep.subr.bf16.mxu0 %v1607
    %2304 = vmatpush1.bf16.msra.mxu0 %v1606
    %2305 = vmatprep.subr.bf16.mxu0 %v1613
    %2306 = vmatpush1.bf16.msra.mxu0 %v1612
    %2307 = vmatprep.subr.bf16.mxu0 %v1619
    %2308 = vmatpush1.bf16.msra.mxu0 %v1618
    %2309 = vmatprep.subr.bf16.mxu0 %v1625
    %2310 = vmatpush1.bf16.msra.mxu0 %v1624
    %2311 = vmatprep.subr.bf16.mxu0 %v1631
    %2312 = vmatpush1.bf16.msra.mxu0 %v1630
    %2313 = vmatprep.subr.bf16.mxu0 %v1637
    %2314 = vmatpush1.bf16.msra.mxu0 %v1636
    %2315 = vmatprep.subr.bf16.mxu0 %v1643
    %2316 = vmatpush1.bf16.msra.mxu0 %v1642
    %2317 = vmatprep.subr.bf16.mxu0 %v1649
    %2318 = vmatpush1.bf16.msra.mxu0 %v1648
    %2319 = vmatprep.subr.bf16.mxu0 %v1655
    %2320 = vmatpush1.bf16.msra.mxu0 %v1654
    %2321 = vmatprep.subr.bf16.mxu0 %v1661
    %2322 = vmatpush1.bf16.msra.mxu0 %v1660
    %2323 = vmatprep.subr.bf16.mxu0 %v1667
    %2324 = vmatpush1.bf16.msra.mxu0 %v1666
    %2325 = vmatprep.subr.bf16.mxu0 %v1673
    %2326 = vmatpush1.bf16.msra.mxu0 %v1672
    %2327 = vmatprep.subr.bf16.mxu0 %v1679
    %2328 = vmatpush1.bf16.msra.mxu0 %v1678
    %2329 = vmatprep.subr.bf16.mxu0 %v1685
    %2330 = vmatpush1.bf16.msra.mxu0 %v1684
    %2331 = vmatprep.subr.bf16.mxu0 %v1691
    %2332 = vmatpush1.bf16.msra.mxu0 %v1690
    %2333 = vmatprep.subr.bf16.mxu0 %v1697
    %2334 = vmatpush1.bf16.msra.mxu0 %v1696
    %2335 = vmatprep.mubr.bf16.mxu0 %v729
    %2336 = vmatmul.mubr.bf16.gmra.mrb[0].mxu0 %v728
    %v2337 = vpop.f32.mrb[0].mxu0
    %v2338 = vadd.f32 0.0, %v2337
    %v2339 = vpop.f32.mrb[0].mxu0
    %v2340 = vadd.f32 0.0, %v2339
    %v2341 = vpop.f32.mrb[0].mxu0
    %v2342 = vpop.f32.mrb[0].mxu0
    %2343 = vdwg.mxu0
    %2344 = vmatprep.subr.bf16.mxu0 %v1703
    %2345 = vmatpush1.bf16.msra.mxu0 %v1702
    %2346 = vmatprep.subr.bf16.mxu0 %v1709
    %2347 = vmatpush1.bf16.msra.mxu0 %v1708
    %2348 = vmatprep.subr.bf16.mxu0 %v1715
    %2349 = vmatpush1.bf16.msra.mxu0 %v1714
    %2350 = vmatprep.subr.bf16.mxu0 %v1721
    %2351 = vmatpush1.bf16.msra.mxu0 %v1720
    %2352 = vmatprep.subr.bf16.mxu0 %v1727
    %2353 = vmatpush1.bf16.msra.mxu0 %v1726
    %2354 = vmatprep.subr.bf16.mxu0 %v1733
    %2355 = vmatpush1.bf16.msra.mxu0 %v1732
    %2356 = vmatprep.subr.bf16.mxu0 %v1739
    %2357 = vmatpush1.bf16.msra.mxu0 %v1738
    %2358 = vmatprep.subr.bf16.mxu0 %v1745
    %2359 = vmatpush1.bf16.msra.mxu0 %v1744
    %2360 = vmatprep.subr.bf16.mxu0 %v1751
    %2361 = vmatpush1.bf16.msra.mxu0 %v1750
    %2362 = vmatprep.subr.bf16.mxu0 %v1757
    %2363 = vmatpush1.bf16.msra.mxu0 %v1756
    %2364 = vmatprep.subr.bf16.mxu0 %v1763
    %2365 = vmatpush1.bf16.msra.mxu0 %v1762
    %2366 = vmatprep.subr.bf16.mxu0 %v1769
    %2367 = vmatpush1.bf16.msra.mxu0 %v1768
    %2368 = vmatprep.subr.bf16.mxu0 %v1775
    %2369 = vmatpush1.bf16.msra.mxu0 %v1774
    %2370 = vmatprep.subr.bf16.mxu0 %v1781
    %2371 = vmatpush1.bf16.msra.mxu0 %v1780
    %2372 = vmatprep.subr.bf16.mxu0 %v1787
    %2373 = vmatpush1.bf16.msra.mxu0 %v1786
    %2374 = vmatprep.subr.bf16.mxu0 %v1793
    %2375 = vmatpush1.bf16.msra.mxu0 %v1792
    %2376 = vmatprep.mubr.bf16.mxu0 %v731
    %2377 = vmatmul.mubr.bf16.gmra.mrb[0].mxu0 %v730
    %v2378 = vpop.f32.mrb[0].mxu0
    %v2379 = vadd.f32 %v2338, %v2378
    %v2380 = vpop.f32.mrb[0].mxu0
    %v2381 = vadd.f32 %v2340, %v2380
    %v2382 = vpop.f32.mrb[0].mxu0
    %v2383 = vpop.f32.mrb[0].mxu0
    %2384 = vdwg.mxu0
    %2385 = vmatprep.subr.bf16.mxu0 %v1799
    %2386 = vmatpush1.bf16.msra.mxu0 %v1798
    %2387 = vmatprep.subr.bf16.mxu0 %v1805
    %2388 = vmatpush1.bf16.msra.mxu0 %v1804
    %2389 = vmatprep.subr.bf16.mxu0 %v1811
    %2390 = vmatpush1.bf16.msra.mxu0 %v1810
    %2391 = vmatprep.subr.bf16.mxu0 %v1817
    %2392 = vmatpush1.bf16.msra.mxu0 %v1816
    %2393 = vmatprep.subr.bf16.mxu0 %v1823
    %2394 = vmatpush1.bf16.msra.mxu0 %v1822
    %2395 = vmatprep.subr.bf16.mxu0 %v1829
    %2396 = vmatpush1.bf16.msra.mxu0 %v1828
    %2397 = vmatprep.subr.bf16.mxu0 %v1835
    %2398 = vmatpush1.bf16.msra.mxu0 %v1834
    %2399 = vmatprep.subr.bf16.mxu0 %v1841
    %2400 = vmatpush1.bf16.msra.mxu0 %v1840
    %2401 = vmatprep.subr.bf16.mxu0 %v1847
    %2402 = vmatpush1.bf16.msra.mxu0 %v1846
    %2403 = vmatprep.subr.bf16.mxu0 %v1853
    %2404 = vmatpush1.bf16.msra.mxu0 %v1852
    %2405 = vmatprep.subr.bf16.mxu0 %v1859
    %2406 = vmatpush1.bf16.msra.mxu0 %v1858
    %2407 = vmatprep.subr.bf16.mxu0 %v1865
    %2408 = vmatpush1.bf16.msra.mxu0 %v1864
    %2409 = vmatprep.subr.bf16.mxu0 %v1871
    %2410 = vmatpush1.bf16.msra.mxu0 %v1870
    %2411 = vmatprep.subr.bf16.mxu0 %v1877
    %2412 = vmatpush1.bf16.msra.mxu0 %v1876
    %2413 = vmatprep.subr.bf16.mxu0 %v1883
    %2414 = vmatpush1.bf16.msra.mxu0 %v1882
    %2415 = vmatprep.subr.bf16.mxu0 %v1889
    %2416 = vmatpush1.bf16.msra.mxu0 %v1888
    %2417 = vmatprep.mubr.bf16.mxu0 %v733
    %2418 = vmatmul.mubr.bf16.gmra.mrb[0].mxu0 %v732
    %v2419 = vpop.f32.mrb[0].mxu0
    %v2420 = vadd.f32 %v2379, %v2419
    %v2421 = vpop.f32.mrb[0].mxu0
    %v2422 = vadd.f32 %v2381, %v2421
    %v2423 = vpop.f32.mrb[0].mxu0
    %v2424 = vpop.f32.mrb[0].mxu0
    %2425 = vdwg.mxu0
    %2426 = vmatprep.subr.bf16.mxu0 %v1609
    %2427 = vmatpush1.bf16.msra.mxu0 %v1608
    %2428 = vmatprep.subr.bf16.mxu0 %v1615
    %2429 = vmatpush1.bf16.msra.mxu0 %v1614
    %2430 = vmatprep.subr.bf16.mxu0 %v1621
    %2431 = vmatpush1.bf16.msra.mxu0 %v1620
    %2432 = vmatprep.subr.bf16.mxu0 %v1627
    %2433 = vmatpush1.bf16.msra.mxu0 %v1626
    %2434 = vmatprep.subr.bf16.mxu0 %v1633
    %2435 = vmatpush1.bf16.msra.mxu0 %v1632
    %2436 = vmatprep.subr.bf16.mxu0 %v1639
    %2437 = vmatpush1.bf16.msra.mxu0 %v1638
    %2438 = vmatprep.subr.bf16.mxu0 %v1645
    %2439 = vmatpush1.bf16.msra.mxu0 %v1644
    %2440 = vmatprep.subr.bf16.mxu0 %v1651
    %2441 = vmatpush1.bf16.msra.mxu0 %v1650
    %2442 = vmatprep.subr.bf16.mxu0 %v1657
    %2443 = vmatpush1.bf16.msra.mxu0 %v1656
    %2444 = vmatprep.subr.bf16.mxu0 %v1663
    %2445 = vmatpush1.bf16.msra.mxu0 %v1662
    %2446 = vmatprep.subr.bf16.mxu0 %v1669
    %2447 = vmatpush1.bf16.msra.mxu0 %v1668
    %2448 = vmatprep.subr.bf16.mxu0 %v1675
    %2449 = vmatpush1.bf16.msra.mxu0 %v1674
    %2450 = vmatprep.subr.bf16.mxu0 %v1681
    %2451 = vmatpush1.bf16.msra.mxu0 %v1680
    %2452 = vmatprep.subr.bf16.mxu0 %v1687
    %2453 = vmatpush1.bf16.msra.mxu0 %v1686
    %2454 = vmatprep.subr.bf16.mxu0 %v1693
    %2455 = vmatpush1.bf16.msra.mxu0 %v1692
    %2456 = vmatprep.subr.bf16.mxu0 %v1699
    %2457 = vmatpush1.bf16.msra.mxu0 %v1698
    %2458 = vmatprep.mubr.bf16.mxu0 %v729
    %2459 = vmatmul.mubr.bf16.gmra.mrb[0].mxu0 %v728
    %v2460 = vpop.f32.mrb[0].mxu0
    %v2461 = vadd.f32 0.0, %v2460
    %v2462 = vpop.f32.mrb[0].mxu0
    %v2463 = vadd.f32 0.0, %v2462
    %v2464 = vpop.f32.mrb[0].mxu0
    %v2465 = vpop.f32.mrb[0].mxu0
    %2466 = vdwg.mxu0
    %2467 = vmatprep.subr.bf16.mxu0 %v1705
    %2468 = vmatpush1.bf16.msra.mxu0 %v1704
    %2469 = vmatprep.subr.bf16.mxu0 %v1711
    %2470 = vmatpush1.bf16.msra.mxu0 %v1710
    %2471 = vmatprep.subr.bf16.mxu0 %v1717
    %2472 = vmatpush1.bf16.msra.mxu0 %v1716
    %2473 = vmatprep.subr.bf16.mxu0 %v1723
    %2474 = vmatpush1.bf16.msra.mxu0 %v1722
    %2475 = vmatprep.subr.bf16.mxu0 %v1729
    %2476 = vmatpush1.bf16.msra.mxu0 %v1728
    %2477 = vmatprep.subr.bf16.mxu0 %v1735
    %2478 = vmatpush1.bf16.msra.mxu0 %v1734
    %2479 = vmatprep.subr.bf16.mxu0 %v1741
    %2480 = vmatpush1.bf16.msra.mxu0 %v1740
    %2481 = vmatprep.subr.bf16.mxu0 %v1747
    %2482 = vmatpush1.bf16.msra.mxu0 %v1746
    %2483 = vmatprep.subr.bf16.mxu0 %v1753
    %2484 = vmatpush1.bf16.msra.mxu0 %v1752
    %2485 = vmatprep.subr.bf16.mxu0 %v1759
    %2486 = vmatpush1.bf16.msra.mxu0 %v1758
    %2487 = vmatprep.subr.bf16.mxu0 %v1765
    %2488 = vmatpush1.bf16.msra.mxu0 %v1764
    %2489 = vmatprep.subr.bf16.mxu0 %v1771
    %2490 = vmatpush1.bf16.msra.mxu0 %v1770
    %2491 = vmatprep.subr.bf16.mxu0 %v1777
    %2492 = vmatpush1.bf16.msra.mxu0 %v1776
    %2493 = vmatprep.subr.bf16.mxu0 %v1783
    %2494 = vmatpush1.bf16.msra.mxu0 %v1782
    %2495 = vmatprep.subr.bf16.mxu0 %v1789
    %2496 = vmatpush1.bf16.msra.mxu0 %v1788
    %2497 = vmatprep.subr.bf16.mxu0 %v1795
    %2498 = vmatpush1.bf16.msra.mxu0 %v1794
    %2499 = vmatprep.mubr.bf16.mxu0 %v731
    %2500 = vmatmul.mubr.bf16.gmra.mrb[0].mxu0 %v730
    %v2501 = vpop.f32.mrb[0].mxu0
    %v2502 = vadd.f32 %v2461, %v2501
    %v2503 = vpop.f32.mrb[0].mxu0
    %v2504 = vadd.f32 %v2463, %v2503
    %v2505 = vpop.f32.mrb[0].mxu0
    %v2506 = vpop.f32.mrb[0].mxu0
    %2507 = vdwg.mxu0
    %2508 = vmatprep.subr.bf16.mxu0 %v1801
    %2509 = vmatpush1.bf16.msra.mxu0 %v1800
    %2510 = vmatprep.subr.bf16.mxu0 %v1807
    %2511 = vmatpush1.bf16.msra.mxu0 %v1806
    %2512 = vmatprep.subr.bf16.mxu0 %v1813
    %2513 = vmatpush1.bf16.msra.mxu0 %v1812
    %2514 = vmatprep.subr.bf16.mxu0 %v1819
    %2515 = vmatpush1.bf16.msra.mxu0 %v1818
    %2516 = vmatprep.subr.bf16.mxu0 %v1825
    %2517 = vmatpush1.bf16.msra.mxu0 %v1824
    %2518 = vmatprep.subr.bf16.mxu0 %v1831
    %2519 = vmatpush1.bf16.msra.mxu0 %v1830
    %2520 = vmatprep.subr.bf16.mxu0 %v1837
    %2521 = vmatpush1.bf16.msra.mxu0 %v1836
    %2522 = vmatprep.subr.bf16.mxu0 %v1843
    %2523 = vmatpush1.bf16.msra.mxu0 %v1842
    %2524 = vmatprep.subr.bf16.mxu0 %v1849
    %2525 = vmatpush1.bf16.msra.mxu0 %v1848
    %2526 = vmatprep.subr.bf16.mxu0 %v1855
    %2527 = vmatpush1.bf16.msra.mxu0 %v1854
    %2528 = vmatprep.subr.bf16.mxu0 %v1861
    %2529 = vmatpush1.bf16.msra.mxu0 %v1860
    %2530 = vmatprep.subr.bf16.mxu0 %v1867
    %2531 = vmatpush1.bf16.msra.mxu0 %v1866
    %2532 = vmatprep.subr.bf16.mxu0 %v1873
    %2533 = vmatpush1.bf16.msra.mxu0 %v1872
    %2534 = vmatprep.subr.bf16.mxu0 %v1879
    %2535 = vmatpush1.bf16.msra.mxu0 %v1878
    %2536 = vmatprep.subr.bf16.mxu0 %v1885
    %2537 = vmatpush1.bf16.msra.mxu0 %v1884
    %2538 = vmatprep.subr.bf16.mxu0 %v1891
    %2539 = vmatpush1.bf16.msra.mxu0 %v1890
    %2540 = vmatprep.mubr.bf16.mxu0 %v733
    %2541 = vmatmul.mubr.bf16.gmra.mrb[0].mxu0 %v732
    %v2542 = vpop.f32.mrb[0].mxu0
    %v2543 = vadd.f32 %v2502, %v2542
    %v2544 = vpop.f32.mrb[0].mxu0
    %v2545 = vadd.f32 %v2504, %v2544
    %v2546 = vpop.f32.mrb[0].mxu0
    %v2547 = vpop.f32.mrb[0].mxu0
    %2548 = vdwg.mxu0
    %v2552 = vunpack.c.l.b16 %v119
    %v2553 = vunpack.c.h.b16 %v119
    %v2554 = vunpack.c.l.b16 %v120
    %v2555 = vunpack.c.h.b16 %v120
    %v2556 = vunpack.c.l.b16 %v121
    %v2557 = vunpack.c.h.b16 %v121
    %v2558 = vpack.c.b16 %v2552, %v2552
    %v2559 = vpack.c.b16 %v2553, %v2553
    %v2560 = vpack.c.b16 %v2554, %v2554
    %v2561 = vpack.c.b16 %v2555, %v2555
    %v2562 = vpack.c.b16 %v2556, %v2556
    %v2563 = vpack.c.b16 %v2557, %v2557
    %v2858 = vunpack.c.l.b16 %v143
    %v2859 = vunpack.c.h.b16 %v143
    %v2860 = vunpack.c.l.b16 %v144
    %v2861 = vunpack.c.h.b16 %v144
    %v2862 = vunpack.c.l.b16 %v145
    %v2863 = vunpack.c.h.b16 %v145
    %v2864 = vunpack.c.l.b16 %v146
    %v2865 = vunpack.c.h.b16 %v146
    %v2866 = vunpack.c.l.b16 %v147
    %v2867 = vunpack.c.h.b16 %v147
    %v2868 = vunpack.c.l.b16 %v148
    %v2869 = vunpack.c.h.b16 %v148
    %v2870 = vunpack.c.l.b16 %v149
    %v2871 = vunpack.c.h.b16 %v149
    %v2872 = vunpack.c.l.b16 %v150
    %v2873 = vunpack.c.h.b16 %v150
    %v2874 = vunpack.c.l.b16 %v151
    %v2875 = vunpack.c.h.b16 %v151
    %v2876 = vunpack.c.l.b16 %v152
    %v2877 = vunpack.c.h.b16 %v152
    %v2878 = vunpack.c.l.b16 %v153
    %v2879 = vunpack.c.h.b16 %v153
    %v2880 = vunpack.c.l.b16 %v154
    %v2881 = vunpack.c.h.b16 %v154
    %v2882 = vunpack.c.l.b16 %v155
    %v2883 = vunpack.c.h.b16 %v155
    %v2884 = vunpack.c.l.b16 %v156
    %v2885 = vunpack.c.h.b16 %v156
    %v2886 = vunpack.c.l.b16 %v157
    %v2887 = vunpack.c.h.b16 %v157
    %v2888 = vunpack.c.l.b16 %v158
    %v2889 = vunpack.c.h.b16 %v158
    %v2890 = vunpack.c.l.b16 %v159
    %v2891 = vunpack.c.h.b16 %v159
    %v2892 = vunpack.c.l.b16 %v160
    %v2893 = vunpack.c.h.b16 %v160
    %v2894 = vunpack.c.l.b16 %v161
    %v2895 = vunpack.c.h.b16 %v161
    %v2896 = vunpack.c.l.b16 %v162
    %v2897 = vunpack.c.h.b16 %v162
    %v2898 = vunpack.c.l.b16 %v163
    %v2899 = vunpack.c.h.b16 %v163
    %v2900 = vunpack.c.l.b16 %v164
    %v2901 = vunpack.c.h.b16 %v164
    %v2902 = vunpack.c.l.b16 %v165
    %v2903 = vunpack.c.h.b16 %v165
    %v2904 = vunpack.c.l.b16 %v166
    %v2905 = vunpack.c.h.b16 %v166
    %v2906 = vunpack.c.l.b16 %v167
    %v2907 = vunpack.c.h.b16 %v167
    %v2908 = vunpack.c.l.b16 %v168
    %v2909 = vunpack.c.h.b16 %v168
    %v2910 = vunpack.c.l.b16 %v169
    %v2911 = vunpack.c.h.b16 %v169
    %v2912 = vunpack.c.l.b16 %v170
    %v2913 = vunpack.c.h.b16 %v170
    %v2914 = vunpack.c.l.b16 %v171
    %v2915 = vunpack.c.h.b16 %v171
    %v2916 = vunpack.c.l.b16 %v172
    %v2917 = vunpack.c.h.b16 %v172
    %v2918 = vunpack.c.l.b16 %v173
    %v2919 = vunpack.c.h.b16 %v173
    %v2920 = vunpack.c.l.b16 %v174
    %v2921 = vunpack.c.h.b16 %v174
    %v2922 = vunpack.c.l.b16 %v175
    %v2923 = vunpack.c.h.b16 %v175
    %v2924 = vunpack.c.l.b16 %v176
    %v2925 = vunpack.c.h.b16 %v176
    %v2926 = vunpack.c.l.b16 %v177
    %v2927 = vunpack.c.h.b16 %v177
    %v2928 = vunpack.c.l.b16 %v178
    %v2929 = vunpack.c.h.b16 %v178
    %v2930 = vunpack.c.l.b16 %v179
    %v2931 = vunpack.c.h.b16 %v179
    %v2932 = vunpack.c.l.b16 %v180
    %v2933 = vunpack.c.h.b16 %v180
    %v2934 = vunpack.c.l.b16 %v181
    %v2935 = vunpack.c.h.b16 %v181
    %v2936 = vunpack.c.l.b16 %v182
    %v2937 = vunpack.c.h.b16 %v182
    %v2938 = vunpack.c.l.b16 %v183
    %v2939 = vunpack.c.h.b16 %v183
    %v2940 = vunpack.c.l.b16 %v184
    %v2941 = vunpack.c.h.b16 %v184
    %v2942 = vunpack.c.l.b16 %v185
    %v2943 = vunpack.c.h.b16 %v185
    %v2944 = vunpack.c.l.b16 %v186
    %v2945 = vunpack.c.h.b16 %v186
    %v2946 = vunpack.c.l.b16 %v187
    %v2947 = vunpack.c.h.b16 %v187
    %v2948 = vunpack.c.l.b16 %v188
    %v2949 = vunpack.c.h.b16 %v188
    %v2950 = vunpack.c.l.b16 %v189
    %v2951 = vunpack.c.h.b16 %v189
    %v2952 = vunpack.c.l.b16 %v190
    %v2953 = vunpack.c.h.b16 %v190
    %v2954 = vunpack.c.l.b16 %v191
    %v2955 = vunpack.c.h.b16 %v191
    %v2956 = vunpack.c.l.b16 %v192
    %v2957 = vunpack.c.h.b16 %v192
    %v2958 = vunpack.c.l.b16 %v193
    %v2959 = vunpack.c.h.b16 %v193
    %v2960 = vunpack.c.l.b16 %v194
    %v2961 = vunpack.c.h.b16 %v194
    %v2962 = vunpack.c.l.b16 %v195
    %v2963 = vunpack.c.h.b16 %v195
    %v2964 = vunpack.c.l.b16 %v196
    %v2965 = vunpack.c.h.b16 %v196
    %v2966 = vunpack.c.l.b16 %v197
    %v2967 = vunpack.c.h.b16 %v197
    %v2968 = vunpack.c.l.b16 %v198
    %v2969 = vunpack.c.h.b16 %v198
    %v2970 = vunpack.c.l.b16 %v199
    %v2971 = vunpack.c.h.b16 %v199
    %v2972 = vunpack.c.l.b16 %v200
    %v2973 = vunpack.c.h.b16 %v200
    %v2974 = vunpack.c.l.b16 %v201
    %v2975 = vunpack.c.h.b16 %v201
    %v2976 = vunpack.c.l.b16 %v202
    %v2977 = vunpack.c.h.b16 %v202
    %v2978 = vunpack.c.l.b16 %v203
    %v2979 = vunpack.c.h.b16 %v203
    %v2980 = vunpack.c.l.b16 %v204
    %v2981 = vunpack.c.h.b16 %v204
    %v2982 = vunpack.c.l.b16 %v205
    %v2983 = vunpack.c.h.b16 %v205
    %v2984 = vunpack.c.l.b16 %v206
    %v2985 = vunpack.c.h.b16 %v206
    %v2986 = vunpack.c.l.b16 %v207
    %v2987 = vunpack.c.h.b16 %v207
    %v2988 = vunpack.c.l.b16 %v208
    %v2989 = vunpack.c.h.b16 %v208
    %v2990 = vunpack.c.l.b16 %v209
    %v2991 = vunpack.c.h.b16 %v209
    %v2992 = vunpack.c.l.b16 %v210
    %v2993 = vunpack.c.h.b16 %v210
    %v2994 = vunpack.c.l.b16 %v211
    %v2995 = vunpack.c.h.b16 %v211
    %v2996 = vunpack.c.l.b16 %v212
    %v2997 = vunpack.c.h.b16 %v212
    %v2998 = vunpack.c.l.b16 %v213
    %v2999 = vunpack.c.h.b16 %v213
    %v3000 = vunpack.c.l.b16 %v214
    %v3001 = vunpack.c.h.b16 %v214
    %v3002 = vunpack.c.l.b16 %v215
    %v3003 = vunpack.c.h.b16 %v215
    %v3004 = vunpack.c.l.b16 %v216
    %v3005 = vunpack.c.h.b16 %v216
    %v3006 = vunpack.c.l.b16 %v217
    %v3007 = vunpack.c.h.b16 %v217
    %v3008 = vunpack.c.l.b16 %v218
    %v3009 = vunpack.c.h.b16 %v218
    %v3010 = vunpack.c.l.b16 %v219
    %v3011 = vunpack.c.h.b16 %v219
    %v3012 = vunpack.c.l.b16 %v220
    %v3013 = vunpack.c.h.b16 %v220
    %v3014 = vunpack.c.l.b16 %v221
    %v3015 = vunpack.c.h.b16 %v221
    %v3016 = vunpack.c.l.b16 %v222
    %v3017 = vunpack.c.h.b16 %v222
    %v3018 = vunpack.c.l.b16 %v223
    %v3019 = vunpack.c.h.b16 %v223
    %v3020 = vunpack.c.l.b16 %v224
    %v3021 = vunpack.c.h.b16 %v224
    %v3022 = vunpack.c.l.b16 %v225
    %v3023 = vunpack.c.h.b16 %v225
    %v3024 = vunpack.c.l.b16 %v226
    %v3025 = vunpack.c.h.b16 %v226
    %v3026 = vunpack.c.l.b16 %v227
    %v3027 = vunpack.c.h.b16 %v227
    %v3028 = vunpack.c.l.b16 %v228
    %v3029 = vunpack.c.h.b16 %v228
    %v3030 = vunpack.c.l.b16 %v229
    %v3031 = vunpack.c.h.b16 %v229
    %v3032 = vunpack.c.l.b16 %v230
    %v3033 = vunpack.c.h.b16 %v230
    %v3034 = vunpack.c.l.b16 %v231
    %v3035 = vunpack.c.h.b16 %v231
    %v3036 = vunpack.c.l.b16 %v232
    %v3037 = vunpack.c.h.b16 %v232
    %v3038 = vunpack.c.l.b16 %v233
    %v3039 = vunpack.c.h.b16 %v233
    %v3040 = vunpack.c.l.b16 %v234
    %v3041 = vunpack.c.h.b16 %v234
    %v3042 = vunpack.c.l.b16 %v235
    %v3043 = vunpack.c.h.b16 %v235
    %v3044 = vunpack.c.l.b16 %v236
    %v3045 = vunpack.c.h.b16 %v236
    %v3046 = vunpack.c.l.b16 %v237
    %v3047 = vunpack.c.h.b16 %v237
    %v3048 = vunpack.c.l.b16 %v238
    %v3049 = vunpack.c.h.b16 %v238
    %v3050 = vunpack.c.l.b16 %v239
    %v3051 = vunpack.c.h.b16 %v239
    %v3052 = vunpack.c.l.b16 %v240
    %v3053 = vunpack.c.h.b16 %v240
    %v3054 = vunpack.c.l.b16 %v241
    %v3055 = vunpack.c.h.b16 %v241
    %v3056 = vunpack.c.l.b16 %v242
    %v3057 = vunpack.c.h.b16 %v242
    %v3058 = vunpack.c.l.b16 %v243
    %v3059 = vunpack.c.h.b16 %v243
    %v3060 = vunpack.c.l.b16 %v244
    %v3061 = vunpack.c.h.b16 %v244
    %v3062 = vunpack.c.l.b16 %v245
    %v3063 = vunpack.c.h.b16 %v245
    %v3064 = vunpack.c.l.b16 %v246
    %v3065 = vunpack.c.h.b16 %v246
    %v3066 = vunpack.c.l.b16 %v247
    %v3067 = vunpack.c.h.b16 %v247
    %v3068 = vunpack.c.l.b16 %v248
    %v3069 = vunpack.c.h.b16 %v248
    %v3070 = vunpack.c.l.b16 %v249
    %v3071 = vunpack.c.h.b16 %v249
    %v3072 = vunpack.c.l.b16 %v250
    %v3073 = vunpack.c.h.b16 %v250
    %v3074 = vunpack.c.l.b16 %v251
    %v3075 = vunpack.c.h.b16 %v251
    %v3076 = vunpack.c.l.b16 %v252
    %v3077 = vunpack.c.h.b16 %v252
    %v3078 = vunpack.c.l.b16 %v253
    %v3079 = vunpack.c.h.b16 %v253
    %v3080 = vunpack.c.l.b16 %v254
    %v3081 = vunpack.c.h.b16 %v254
    %v3082 = vunpack.c.l.b16 %v255
    %v3083 = vunpack.c.h.b16 %v255
    %v3084 = vunpack.c.l.b16 %v256
    %v3085 = vunpack.c.h.b16 %v256
    %v3086 = vunpack.c.l.b16 %v257
    %v3087 = vunpack.c.h.b16 %v257
    %v3088 = vunpack.c.l.b16 %v258
    %v3089 = vunpack.c.h.b16 %v258
    %v3090 = vunpack.c.l.b16 %v259
    %v3091 = vunpack.c.h.b16 %v259
    %v3092 = vunpack.c.l.b16 %v260
    %v3093 = vunpack.c.h.b16 %v260
    %v3094 = vunpack.c.l.b16 %v261
    %v3095 = vunpack.c.h.b16 %v261
    %v3096 = vunpack.c.l.b16 %v262
    %v3097 = vunpack.c.h.b16 %v262
    %v3098 = vunpack.c.l.b16 %v263
    %v3099 = vunpack.c.h.b16 %v263
    %v3100 = vunpack.c.l.b16 %v264
    %v3101 = vunpack.c.h.b16 %v264
    %v3102 = vunpack.c.l.b16 %v265
    %v3103 = vunpack.c.h.b16 %v265
    %v3104 = vunpack.c.l.b16 %v266
    %v3105 = vunpack.c.h.b16 %v266
    %v3106 = vunpack.c.l.b16 %v267
    %v3107 = vunpack.c.h.b16 %v267
    %v3108 = vunpack.c.l.b16 %v268
    %v3109 = vunpack.c.h.b16 %v268
    %v3110 = vunpack.c.l.b16 %v269
    %v3111 = vunpack.c.h.b16 %v269
    %v3112 = vunpack.c.l.b16 %v270
    %v3113 = vunpack.c.h.b16 %v270
    %v3114 = vunpack.c.l.b16 %v271
    %v3115 = vunpack.c.h.b16 %v271
    %v3116 = vunpack.c.l.b16 %v272
    %v3117 = vunpack.c.h.b16 %v272
    %v3118 = vunpack.c.l.b16 %v273
    %v3119 = vunpack.c.h.b16 %v273
    %v3120 = vunpack.c.l.b16 %v274
    %v3121 = vunpack.c.h.b16 %v274
    %v3122 = vunpack.c.l.b16 %v275
    %v3123 = vunpack.c.h.b16 %v275
    %v3124 = vunpack.c.l.b16 %v276
    %v3125 = vunpack.c.h.b16 %v276
    %v3126 = vunpack.c.l.b16 %v277
    %v3127 = vunpack.c.h.b16 %v277
    %v3128 = vunpack.c.l.b16 %v278
    %v3129 = vunpack.c.h.b16 %v278
    %v3130 = vunpack.c.l.b16 %v279
    %v3131 = vunpack.c.h.b16 %v279
    %v3132 = vunpack.c.l.b16 %v280
    %v3133 = vunpack.c.h.b16 %v280
    %v3134 = vunpack.c.l.b16 %v281
    %v3135 = vunpack.c.h.b16 %v281
    %v3136 = vunpack.c.l.b16 %v282
    %v3137 = vunpack.c.h.b16 %v282
    %v3138 = vunpack.c.l.b16 %v283
    %v3139 = vunpack.c.h.b16 %v283
    %v3140 = vunpack.c.l.b16 %v284
    %v3141 = vunpack.c.h.b16 %v284
    %v3142 = vunpack.c.l.b16 %v285
    %v3143 = vunpack.c.h.b16 %v285
    %v3144 = vunpack.c.l.b16 %v286
    %v3145 = vunpack.c.h.b16 %v286
    %v3146 = vunpack.c.l.b16 %v287
    %v3147 = vunpack.c.h.b16 %v287
    %v3148 = vunpack.c.l.b16 %v288
    %v3149 = vunpack.c.h.b16 %v288
    %v3150 = vunpack.c.l.b16 %v289
    %v3151 = vunpack.c.h.b16 %v289
    %v3152 = vunpack.c.l.b16 %v290
    %v3153 = vunpack.c.h.b16 %v290
    %v3154 = vunpack.c.l.b16 %v291
    %v3155 = vunpack.c.h.b16 %v291
    %v3156 = vunpack.c.l.b16 %v292
    %v3157 = vunpack.c.h.b16 %v292
    %v3158 = vunpack.c.l.b16 %v293
    %v3159 = vunpack.c.h.b16 %v293
    %v3160 = vunpack.c.l.b16 %v294
    %v3161 = vunpack.c.h.b16 %v294
    %v3162 = vunpack.c.l.b16 %v295
    %v3163 = vunpack.c.h.b16 %v295
    %v3164 = vunpack.c.l.b16 %v296
    %v3165 = vunpack.c.h.b16 %v296
    %v3166 = vunpack.c.l.b16 %v297
    %v3167 = vunpack.c.h.b16 %v297
    %v3168 = vunpack.c.l.b16 %v298
    %v3169 = vunpack.c.h.b16 %v298
    %v3170 = vunpack.c.l.b16 %v299
    %v3171 = vunpack.c.h.b16 %v299
    %v3172 = vunpack.c.l.b16 %v300
    %v3173 = vunpack.c.h.b16 %v300
    %v3174 = vunpack.c.l.b16 %v301
    %v3175 = vunpack.c.h.b16 %v301
    %v3176 = vunpack.c.l.b16 %v302
    %v3177 = vunpack.c.h.b16 %v302
    %v3178 = vunpack.c.l.b16 %v303
    %v3179 = vunpack.c.h.b16 %v303
    %v3180 = vunpack.c.l.b16 %v304
    %v3181 = vunpack.c.h.b16 %v304
    %v3182 = vunpack.c.l.b16 %v305
    %v3183 = vunpack.c.h.b16 %v305
    %v3184 = vunpack.c.l.b16 %v306
    %v3185 = vunpack.c.h.b16 %v306
    %v3186 = vunpack.c.l.b16 %v307
    %v3187 = vunpack.c.h.b16 %v307
    %v3188 = vunpack.c.l.b16 %v308
    %v3189 = vunpack.c.h.b16 %v308
    %v3190 = vunpack.c.l.b16 %v309
    %v3191 = vunpack.c.h.b16 %v309
    %v3192 = vunpack.c.l.b16 %v310
    %v3193 = vunpack.c.h.b16 %v310
    %v3194 = vunpack.c.l.b16 %v311
    %v3195 = vunpack.c.h.b16 %v311
    %v3196 = vunpack.c.l.b16 %v312
    %v3197 = vunpack.c.h.b16 %v312
    %v3198 = vunpack.c.l.b16 %v313
    %v3199 = vunpack.c.h.b16 %v313
    %v3200 = vunpack.c.l.b16 %v314
    %v3201 = vunpack.c.h.b16 %v314
    %v3202 = vunpack.c.l.b16 %v315
    %v3203 = vunpack.c.h.b16 %v315
    %v3204 = vunpack.c.l.b16 %v316
    %v3205 = vunpack.c.h.b16 %v316
    %v3206 = vunpack.c.l.b16 %v317
    %v3207 = vunpack.c.h.b16 %v317
    %v3208 = vunpack.c.l.b16 %v318
    %v3209 = vunpack.c.h.b16 %v318
    %v3210 = vunpack.c.l.b16 %v319
    %v3211 = vunpack.c.h.b16 %v319
    %v3212 = vunpack.c.l.b16 %v320
    %v3213 = vunpack.c.h.b16 %v320
    %v3214 = vunpack.c.l.b16 %v321
    %v3215 = vunpack.c.h.b16 %v321
    %v3216 = vunpack.c.l.b16 %v322
    %v3217 = vunpack.c.h.b16 %v322
    %v3218 = vunpack.c.l.b16 %v323
    %v3219 = vunpack.c.h.b16 %v323
    %v3220 = vunpack.c.l.b16 %v324
    %v3221 = vunpack.c.h.b16 %v324
    %v3222 = vunpack.c.l.b16 %v325
    %v3223 = vunpack.c.h.b16 %v325
    %v3224 = vunpack.c.l.b16 %v326
    %v3225 = vunpack.c.h.b16 %v326
    %v3226 = vunpack.c.l.b16 %v327
    %v3227 = vunpack.c.h.b16 %v327
    %v3228 = vunpack.c.l.b16 %v328
    %v3229 = vunpack.c.h.b16 %v328
    %v3230 = vunpack.c.l.b16 %v329
    %v3231 = vunpack.c.h.b16 %v329
    %v3232 = vunpack.c.l.b16 %v330
    %v3233 = vunpack.c.h.b16 %v330
    %v3234 = vunpack.c.l.b16 %v331
    %v3235 = vunpack.c.h.b16 %v331
    %v3236 = vunpack.c.l.b16 %v332
    %v3237 = vunpack.c.h.b16 %v332
    %v3238 = vunpack.c.l.b16 %v333
    %v3239 = vunpack.c.h.b16 %v333
    %v3240 = vunpack.c.l.b16 %v334
    %v3241 = vunpack.c.h.b16 %v334
    %v3242 = vunpack.c.l.b16 %v335
    %v3243 = vunpack.c.h.b16 %v335
    %v3244 = vunpack.c.l.b16 %v336
    %v3245 = vunpack.c.h.b16 %v336
    %v3246 = vunpack.c.l.b16 %v337
    %v3247 = vunpack.c.h.b16 %v337
    %v3248 = vunpack.c.l.b16 %v338
    %v3249 = vunpack.c.h.b16 %v338
    %v3250 = vunpack.c.l.b16 %v339
    %v3251 = vunpack.c.h.b16 %v339
    %v3252 = vunpack.c.l.b16 %v340
    %v3253 = vunpack.c.h.b16 %v340
    %v3254 = vunpack.c.l.b16 %v341
    %v3255 = vunpack.c.h.b16 %v341
    %v3256 = vunpack.c.l.b16 %v342
    %v3257 = vunpack.c.h.b16 %v342
    %v3258 = vunpack.c.l.b16 %v343
    %v3259 = vunpack.c.h.b16 %v343
    %v3260 = vunpack.c.l.b16 %v344
    %v3261 = vunpack.c.h.b16 %v344
    %v3262 = vunpack.c.l.b16 %v345
    %v3263 = vunpack.c.h.b16 %v345
    %v3264 = vunpack.c.l.b16 %v346
    %v3265 = vunpack.c.h.b16 %v346
    %v3266 = vunpack.c.l.b16 %v347
    %v3267 = vunpack.c.h.b16 %v347
    %v3268 = vunpack.c.l.b16 %v348
    %v3269 = vunpack.c.h.b16 %v348
    %v3270 = vunpack.c.l.b16 %v349
    %v3271 = vunpack.c.h.b16 %v349
    %v3272 = vunpack.c.l.b16 %v350
    %v3273 = vunpack.c.h.b16 %v350
    %v3274 = vunpack.c.l.b16 %v351
    %v3275 = vunpack.c.h.b16 %v351
    %v3276 = vunpack.c.l.b16 %v352
    %v3277 = vunpack.c.h.b16 %v352
    %v3278 = vunpack.c.l.b16 %v353
    %v3279 = vunpack.c.h.b16 %v353
    %v3280 = vunpack.c.l.b16 %v354
    %v3281 = vunpack.c.h.b16 %v354
    %v3282 = vunpack.c.l.b16 %v355
    %v3283 = vunpack.c.h.b16 %v355
    %v3284 = vunpack.c.l.b16 %v356
    %v3285 = vunpack.c.h.b16 %v356
    %v3286 = vunpack.c.l.b16 %v357
    %v3287 = vunpack.c.h.b16 %v357
    %v3288 = vunpack.c.l.b16 %v358
    %v3289 = vunpack.c.h.b16 %v358
    %v3290 = vunpack.c.l.b16 %v359
    %v3291 = vunpack.c.h.b16 %v359
    %v3292 = vunpack.c.l.b16 %v360
    %v3293 = vunpack.c.h.b16 %v360
    %v3294 = vunpack.c.l.b16 %v361
    %v3295 = vunpack.c.h.b16 %v361
    %v3296 = vunpack.c.l.b16 %v362
    %v3297 = vunpack.c.h.b16 %v362
    %v3298 = vunpack.c.l.b16 %v363
    %v3299 = vunpack.c.h.b16 %v363
    %v3300 = vunpack.c.l.b16 %v364
    %v3301 = vunpack.c.h.b16 %v364
    %v3302 = vunpack.c.l.b16 %v365
    %v3303 = vunpack.c.h.b16 %v365
    %v3304 = vunpack.c.l.b16 %v366
    %v3305 = vunpack.c.h.b16 %v366
    %v3306 = vunpack.c.l.b16 %v367
    %v3307 = vunpack.c.h.b16 %v367
    %v3308 = vunpack.c.l.b16 %v368
    %v3309 = vunpack.c.h.b16 %v368
    %v3310 = vunpack.c.l.b16 %v369
    %v3311 = vunpack.c.h.b16 %v369
    %v3312 = vunpack.c.l.b16 %v370
    %v3313 = vunpack.c.h.b16 %v370
    %v3314 = vunpack.c.l.b16 %v371
    %v3315 = vunpack.c.h.b16 %v371
    %v3316 = vunpack.c.l.b16 %v372
    %v3317 = vunpack.c.h.b16 %v372
    %v3318 = vunpack.c.l.b16 %v373
    %v3319 = vunpack.c.h.b16 %v373
    %v3320 = vunpack.c.l.b16 %v374
    %v3321 = vunpack.c.h.b16 %v374
    %v3322 = vunpack.c.l.b16 %v375
    %v3323 = vunpack.c.h.b16 %v375
    %v3324 = vunpack.c.l.b16 %v376
    %v3325 = vunpack.c.h.b16 %v376
    %v3326 = vunpack.c.l.b16 %v377
    %v3327 = vunpack.c.h.b16 %v377
    %v3328 = vunpack.c.l.b16 %v378
    %v3329 = vunpack.c.h.b16 %v378
    %v3330 = vunpack.c.l.b16 %v379
    %v3331 = vunpack.c.h.b16 %v379
    %v3332 = vunpack.c.l.b16 %v380
    %v3333 = vunpack.c.h.b16 %v380
    %v3334 = vunpack.c.l.b16 %v381
    %v3335 = vunpack.c.h.b16 %v381
    %v3336 = vunpack.c.l.b16 %v382
    %v3337 = vunpack.c.h.b16 %v382
    %v3338 = vunpack.c.l.b16 %v383
    %v3339 = vunpack.c.h.b16 %v383
    %v3340 = vunpack.c.l.b16 %v384
    %v3341 = vunpack.c.h.b16 %v384
    %v3342 = vunpack.c.l.b16 %v385
    %v3343 = vunpack.c.h.b16 %v385
    %v3344 = vunpack.c.l.b16 %v386
    %v3345 = vunpack.c.h.b16 %v386
    %v3346 = vunpack.c.l.b16 %v387
    %v3347 = vunpack.c.h.b16 %v387
    %v3348 = vunpack.c.l.b16 %v388
    %v3349 = vunpack.c.h.b16 %v388
    %v3350 = vunpack.c.l.b16 %v389
    %v3351 = vunpack.c.h.b16 %v389
    %v3352 = vunpack.c.l.b16 %v390
    %v3353 = vunpack.c.h.b16 %v390
    %v3354 = vunpack.c.l.b16 %v391
    %v3355 = vunpack.c.h.b16 %v391
    %v3356 = vunpack.c.l.b16 %v392
    %v3357 = vunpack.c.h.b16 %v392
    %v3358 = vunpack.c.l.b16 %v393
    %v3359 = vunpack.c.h.b16 %v393
    %v3360 = vunpack.c.l.b16 %v394
    %v3361 = vunpack.c.h.b16 %v394
    %v3362 = vunpack.c.l.b16 %v395
    %v3363 = vunpack.c.h.b16 %v395
    %v3364 = vunpack.c.l.b16 %v396
    %v3365 = vunpack.c.h.b16 %v396
    %v3366 = vunpack.c.l.b16 %v397
    %v3367 = vunpack.c.h.b16 %v397
    %v3368 = vunpack.c.l.b16 %v398
    %v3369 = vunpack.c.h.b16 %v398
    %v3370 = vunpack.c.l.b16 %v399
    %v3371 = vunpack.c.h.b16 %v399
    %v3372 = vunpack.c.l.b16 %v400
    %v3373 = vunpack.c.h.b16 %v400
    %v3374 = vunpack.c.l.b16 %v401
    %v3375 = vunpack.c.h.b16 %v401
    %v3376 = vunpack.c.l.b16 %v402
    %v3377 = vunpack.c.h.b16 %v402
    %v3378 = vunpack.c.l.b16 %v403
    %v3379 = vunpack.c.h.b16 %v403
    %v3380 = vunpack.c.l.b16 %v404
    %v3381 = vunpack.c.h.b16 %v404
    %v3382 = vunpack.c.l.b16 %v405
    %v3383 = vunpack.c.h.b16 %v405
    %v3384 = vunpack.c.l.b16 %v406
    %v3385 = vunpack.c.h.b16 %v406
    %v3386 = vunpack.c.l.b16 %v407
    %v3387 = vunpack.c.h.b16 %v407
    %v3388 = vunpack.c.l.b16 %v408
    %v3389 = vunpack.c.h.b16 %v408
    %v3390 = vunpack.c.l.b16 %v409
    %v3391 = vunpack.c.h.b16 %v409
    %v3392 = vunpack.c.l.b16 %v410
    %v3393 = vunpack.c.h.b16 %v410
    %v3394 = vunpack.c.l.b16 %v411
    %v3395 = vunpack.c.h.b16 %v411
    %v3396 = vunpack.c.l.b16 %v412
    %v3397 = vunpack.c.h.b16 %v412
    %v3398 = vunpack.c.l.b16 %v413
    %v3399 = vunpack.c.h.b16 %v413
    %v3400 = vunpack.c.l.b16 %v414
    %v3401 = vunpack.c.h.b16 %v414
    %v3402 = vunpack.c.l.b16 %v415
    %v3403 = vunpack.c.h.b16 %v415
    %v3404 = vunpack.c.l.b16 %v416
    %v3405 = vunpack.c.h.b16 %v416
    %v3406 = vunpack.c.l.b16 %v417
    %v3407 = vunpack.c.h.b16 %v417
    %v3408 = vunpack.c.l.b16 %v418
    %v3409 = vunpack.c.h.b16 %v418
    %v3410 = vunpack.c.l.b16 %v419
    %v3411 = vunpack.c.h.b16 %v419
    %v3412 = vunpack.c.l.b16 %v420
    %v3413 = vunpack.c.h.b16 %v420
    %v3414 = vunpack.c.l.b16 %v421
    %v3415 = vunpack.c.h.b16 %v421
    %v3416 = vunpack.c.l.b16 %v422
    %v3417 = vunpack.c.h.b16 %v422
    %v3418 = vunpack.c.l.b16 %v423
    %v3419 = vunpack.c.h.b16 %v423
    %v3420 = vunpack.c.l.b16 %v424
    %v3421 = vunpack.c.h.b16 %v424
    %v3422 = vunpack.c.l.b16 %v425
    %v3423 = vunpack.c.h.b16 %v425
    %v3424 = vunpack.c.l.b16 %v426
    %v3425 = vunpack.c.h.b16 %v426
    %v3426 = vunpack.c.l.b16 %v427
    %v3427 = vunpack.c.h.b16 %v427
    %v3428 = vunpack.c.l.b16 %v428
    %v3429 = vunpack.c.h.b16 %v428
    %v3430 = vunpack.c.l.b16 %v429
    %v3431 = vunpack.c.h.b16 %v429
    %v3432 = vunpack.c.l.b16 %v430
    %v3433 = vunpack.c.h.b16 %v430
    %v3434 = vpack.c.b16 %v2864, %v2858
    %v3435 = vpack.c.b16 %v2865, %v2859
    %v3436 = vpack.c.b16 %v2866, %v2860
    %v3437 = vpack.c.b16 %v2867, %v2861
    %v3438 = vpack.c.b16 %v2868, %v2862
    %v3439 = vpack.c.b16 %v2869, %v2863
    %v3440 = vpack.c.b16 %v2876, %v2870
    %v3441 = vpack.c.b16 %v2877, %v2871
    %v3442 = vpack.c.b16 %v2878, %v2872
    %v3443 = vpack.c.b16 %v2879, %v2873
    %v3444 = vpack.c.b16 %v2880, %v2874
    %v3445 = vpack.c.b16 %v2881, %v2875
    %v3446 = vpack.c.b16 %v2888, %v2882
    %v3447 = vpack.c.b16 %v2889, %v2883
    %v3448 = vpack.c.b16 %v2890, %v2884
    %v3449 = vpack.c.b16 %v2891, %v2885
    %v3450 = vpack.c.b16 %v2892, %v2886
    %v3451 = vpack.c.b16 %v2893, %v2887
    %v3452 = vpack.c.b16 %v2900, %v2894
    %v3453 = vpack.c.b16 %v2901, %v2895
    %v3454 = vpack.c.b16 %v2902, %v2896
    %v3455 = vpack.c.b16 %v2903, %v2897
    %v3456 = vpack.c.b16 %v2904, %v2898
    %v3457 = vpack.c.b16 %v2905, %v2899
    %v3458 = vpack.c.b16 %v2912, %v2906
    %v3459 = vpack.c.b16 %v2913, %v2907
    %v3460 = vpack.c.b16 %v2914, %v2908
    %v3461 = vpack.c.b16 %v2915, %v2909
    %v3462 = vpack.c.b16 %v2916, %v2910
    %v3463 = vpack.c.b16 %v2917, %v2911
    %v3464 = vpack.c.b16 %v2924, %v2918
    %v3465 = vpack.c.b16 %v2925, %v2919
    %v3466 = vpack.c.b16 %v2926, %v2920
    %v3467 = vpack.c.b16 %v2927, %v2921
    %v3468 = vpack.c.b16 %v2928, %v2922
    %v3469 = vpack.c.b16 %v2929, %v2923
    %v3470 = vpack.c.b16 %v2936, %v2930
    %v3471 = vpack.c.b16 %v2937, %v2931
    %v3472 = vpack.c.b16 %v2938, %v2932
    %v3473 = vpack.c.b16 %v2939, %v2933
    %v3474 = vpack.c.b16 %v2940, %v2934
    %v3475 = vpack.c.b16 %v2941, %v2935
    %v3476 = vpack.c.b16 %v2948, %v2942
    %v3477 = vpack.c.b16 %v2949, %v2943
    %v3478 = vpack.c.b16 %v2950, %v2944
    %v3479 = vpack.c.b16 %v2951, %v2945
    %v3480 = vpack.c.b16 %v2952, %v2946
    %v3481 = vpack.c.b16 %v2953, %v2947
    %v3482 = vpack.c.b16 %v2960, %v2954
    %v3483 = vpack.c.b16 %v2961, %v2955
    %v3484 = vpack.c.b16 %v2962, %v2956
    %v3485 = vpack.c.b16 %v2963, %v2957
    %v3486 = vpack.c.b16 %v2964, %v2958
    %v3487 = vpack.c.b16 %v2965, %v2959
    %v3488 = vpack.c.b16 %v2972, %v2966
    %v3489 = vpack.c.b16 %v2973, %v2967
    %v3490 = vpack.c.b16 %v2974, %v2968
    %v3491 = vpack.c.b16 %v2975, %v2969
    %v3492 = vpack.c.b16 %v2976, %v2970
    %v3493 = vpack.c.b16 %v2977, %v2971
    %v3494 = vpack.c.b16 %v2984, %v2978
    %v3495 = vpack.c.b16 %v2985, %v2979
    %v3496 = vpack.c.b16 %v2986, %v2980
    %v3497 = vpack.c.b16 %v2987, %v2981
    %v3498 = vpack.c.b16 %v2988, %v2982
    %v3499 = vpack.c.b16 %v2989, %v2983
    %v3500 = vpack.c.b16 %v2996, %v2990
    %v3501 = vpack.c.b16 %v2997, %v2991
    %v3502 = vpack.c.b16 %v2998, %v2992
    %v3503 = vpack.c.b16 %v2999, %v2993
    %v3504 = vpack.c.b16 %v3000, %v2994
    %v3505 = vpack.c.b16 %v3001, %v2995
    %v3506 = vpack.c.b16 %v3008, %v3002
    %v3507 = vpack.c.b16 %v3009, %v3003
    %v3508 = vpack.c.b16 %v3010, %v3004
    %v3509 = vpack.c.b16 %v3011, %v3005
    %v3510 = vpack.c.b16 %v3012, %v3006
    %v3511 = vpack.c.b16 %v3013, %v3007
    %v3512 = vpack.c.b16 %v3020, %v3014
    %v3513 = vpack.c.b16 %v3021, %v3015
    %v3514 = vpack.c.b16 %v3022, %v3016
    %v3515 = vpack.c.b16 %v3023, %v3017
    %v3516 = vpack.c.b16 %v3024, %v3018
    %v3517 = vpack.c.b16 %v3025, %v3019
    %v3518 = vpack.c.b16 %v3032, %v3026
    %v3519 = vpack.c.b16 %v3033, %v3027
    %v3520 = vpack.c.b16 %v3034, %v3028
    %v3521 = vpack.c.b16 %v3035, %v3029
    %v3522 = vpack.c.b16 %v3036, %v3030
    %v3523 = vpack.c.b16 %v3037, %v3031
    %v3524 = vpack.c.b16 %v3044, %v3038
    %v3525 = vpack.c.b16 %v3045, %v3039
    %v3526 = vpack.c.b16 %v3046, %v3040
    %v3527 = vpack.c.b16 %v3047, %v3041
    %v3528 = vpack.c.b16 %v3048, %v3042
    %v3529 = vpack.c.b16 %v3049, %v3043
    %v3530 = vpack.c.b16 %v3056, %v3050
    %v3531 = vpack.c.b16 %v3057, %v3051
    %v3532 = vpack.c.b16 %v3058, %v3052
    %v3533 = vpack.c.b16 %v3059, %v3053
    %v3534 = vpack.c.b16 %v3060, %v3054
    %v3535 = vpack.c.b16 %v3061, %v3055
    %v3536 = vpack.c.b16 %v3068, %v3062
    %v3537 = vpack.c.b16 %v3069, %v3063
    %v3538 = vpack.c.b16 %v3070, %v3064
    %v3539 = vpack.c.b16 %v3071, %v3065
    %v3540 = vpack.c.b16 %v3072, %v3066
    %v3541 = vpack.c.b16 %v3073, %v3067
    %v3542 = vpack.c.b16 %v3080, %v3074
    %v3543 = vpack.c.b16 %v3081, %v3075
    %v3544 = vpack.c.b16 %v3082, %v3076
    %v3545 = vpack.c.b16 %v3083, %v3077
    %v3546 = vpack.c.b16 %v3084, %v3078
    %v3547 = vpack.c.b16 %v3085, %v3079
    %v3548 = vpack.c.b16 %v3092, %v3086
    %v3549 = vpack.c.b16 %v3093, %v3087
    %v3550 = vpack.c.b16 %v3094, %v3088
    %v3551 = vpack.c.b16 %v3095, %v3089
    %v3552 = vpack.c.b16 %v3096, %v3090
    %v3553 = vpack.c.b16 %v3097, %v3091
    %v3554 = vpack.c.b16 %v3104, %v3098
    %v3555 = vpack.c.b16 %v3105, %v3099
    %v3556 = vpack.c.b16 %v3106, %v3100
    %v3557 = vpack.c.b16 %v3107, %v3101
    %v3558 = vpack.c.b16 %v3108, %v3102
    %v3559 = vpack.c.b16 %v3109, %v3103
    %v3560 = vpack.c.b16 %v3116, %v3110
    %v3561 = vpack.c.b16 %v3117, %v3111
    %v3562 = vpack.c.b16 %v3118, %v3112
    %v3563 = vpack.c.b16 %v3119, %v3113
    %v3564 = vpack.c.b16 %v3120, %v3114
    %v3565 = vpack.c.b16 %v3121, %v3115
    %v3566 = vpack.c.b16 %v3128, %v3122
    %v3567 = vpack.c.b16 %v3129, %v3123
    %v3568 = vpack.c.b16 %v3130, %v3124
    %v3569 = vpack.c.b16 %v3131, %v3125
    %v3570 = vpack.c.b16 %v3132, %v3126
    %v3571 = vpack.c.b16 %v3133, %v3127
    %v3572 = vpack.c.b16 %v3140, %v3134
    %v3573 = vpack.c.b16 %v3141, %v3135
    %v3574 = vpack.c.b16 %v3142, %v3136
    %v3575 = vpack.c.b16 %v3143, %v3137
    %v3576 = vpack.c.b16 %v3144, %v3138
    %v3577 = vpack.c.b16 %v3145, %v3139
    %v3578 = vpack.c.b16 %v3152, %v3146
    %v3579 = vpack.c.b16 %v3153, %v3147
    %v3580 = vpack.c.b16 %v3154, %v3148
    %v3581 = vpack.c.b16 %v3155, %v3149
    %v3582 = vpack.c.b16 %v3156, %v3150
    %v3583 = vpack.c.b16 %v3157, %v3151
    %v3584 = vpack.c.b16 %v3164, %v3158
    %v3585 = vpack.c.b16 %v3165, %v3159
    %v3586 = vpack.c.b16 %v3166, %v3160
    %v3587 = vpack.c.b16 %v3167, %v3161
    %v3588 = vpack.c.b16 %v3168, %v3162
    %v3589 = vpack.c.b16 %v3169, %v3163
    %v3590 = vpack.c.b16 %v3176, %v3170
    %v3591 = vpack.c.b16 %v3177, %v3171
    %v3592 = vpack.c.b16 %v3178, %v3172
    %v3593 = vpack.c.b16 %v3179, %v3173
    %v3594 = vpack.c.b16 %v3180, %v3174
    %v3595 = vpack.c.b16 %v3181, %v3175
    %v3596 = vpack.c.b16 %v3188, %v3182
    %v3597 = vpack.c.b16 %v3189, %v3183
    %v3598 = vpack.c.b16 %v3190, %v3184
    %v3599 = vpack.c.b16 %v3191, %v3185
    %v3600 = vpack.c.b16 %v3192, %v3186
    %v3601 = vpack.c.b16 %v3193, %v3187
    %v3602 = vpack.c.b16 %v3200, %v3194
    %v3603 = vpack.c.b16 %v3201, %v3195
    %v3604 = vpack.c.b16 %v3202, %v3196
    %v3605 = vpack.c.b16 %v3203, %v3197
    %v3606 = vpack.c.b16 %v3204, %v3198
    %v3607 = vpack.c.b16 %v3205, %v3199
    %v3608 = vpack.c.b16 %v3212, %v3206
    %v3609 = vpack.c.b16 %v3213, %v3207
    %v3610 = vpack.c.b16 %v3214, %v3208
    %v3611 = vpack.c.b16 %v3215, %v3209
    %v3612 = vpack.c.b16 %v3216, %v3210
    %v3613 = vpack.c.b16 %v3217, %v3211
    %v3614 = vpack.c.b16 %v3224, %v3218
    %v3615 = vpack.c.b16 %v3225, %v3219
    %v3616 = vpack.c.b16 %v3226, %v3220
    %v3617 = vpack.c.b16 %v3227, %v3221
    %v3618 = vpack.c.b16 %v3228, %v3222
    %v3619 = vpack.c.b16 %v3229, %v3223
    %v3620 = vpack.c.b16 %v3236, %v3230
    %v3621 = vpack.c.b16 %v3237, %v3231
    %v3622 = vpack.c.b16 %v3238, %v3232
    %v3623 = vpack.c.b16 %v3239, %v3233
    %v3624 = vpack.c.b16 %v3240, %v3234
    %v3625 = vpack.c.b16 %v3241, %v3235
    %v3626 = vpack.c.b16 %v3248, %v3242
    %v3627 = vpack.c.b16 %v3249, %v3243
    %v3628 = vpack.c.b16 %v3250, %v3244
    %v3629 = vpack.c.b16 %v3251, %v3245
    %v3630 = vpack.c.b16 %v3252, %v3246
    %v3631 = vpack.c.b16 %v3253, %v3247
    %v3632 = vpack.c.b16 %v3260, %v3254
    %v3633 = vpack.c.b16 %v3261, %v3255
    %v3634 = vpack.c.b16 %v3262, %v3256
    %v3635 = vpack.c.b16 %v3263, %v3257
    %v3636 = vpack.c.b16 %v3264, %v3258
    %v3637 = vpack.c.b16 %v3265, %v3259
    %v3638 = vpack.c.b16 %v3272, %v3266
    %v3639 = vpack.c.b16 %v3273, %v3267
    %v3640 = vpack.c.b16 %v3274, %v3268
    %v3641 = vpack.c.b16 %v3275, %v3269
    %v3642 = vpack.c.b16 %v3276, %v3270
    %v3643 = vpack.c.b16 %v3277, %v3271
    %v3644 = vpack.c.b16 %v3284, %v3278
    %v3645 = vpack.c.b16 %v3285, %v3279
    %v3646 = vpack.c.b16 %v3286, %v3280
    %v3647 = vpack.c.b16 %v3287, %v3281
    %v3648 = vpack.c.b16 %v3288, %v3282
    %v3649 = vpack.c.b16 %v3289, %v3283
    %v3650 = vpack.c.b16 %v3296, %v3290
    %v3651 = vpack.c.b16 %v3297, %v3291
    %v3652 = vpack.c.b16 %v3298, %v3292
    %v3653 = vpack.c.b16 %v3299, %v3293
    %v3654 = vpack.c.b16 %v3300, %v3294
    %v3655 = vpack.c.b16 %v3301, %v3295
    %v3656 = vpack.c.b16 %v3308, %v3302
    %v3657 = vpack.c.b16 %v3309, %v3303
    %v3658 = vpack.c.b16 %v3310, %v3304
    %v3659 = vpack.c.b16 %v3311, %v3305
    %v3660 = vpack.c.b16 %v3312, %v3306
    %v3661 = vpack.c.b16 %v3313, %v3307
    %v3662 = vpack.c.b16 %v3320, %v3314
    %v3663 = vpack.c.b16 %v3321, %v3315
    %v3664 = vpack.c.b16 %v3322, %v3316
    %v3665 = vpack.c.b16 %v3323, %v3317
    %v3666 = vpack.c.b16 %v3324, %v3318
    %v3667 = vpack.c.b16 %v3325, %v3319
    %v3668 = vpack.c.b16 %v3332, %v3326
    %v3669 = vpack.c.b16 %v3333, %v3327
    %v3670 = vpack.c.b16 %v3334, %v3328
    %v3671 = vpack.c.b16 %v3335, %v3329
    %v3672 = vpack.c.b16 %v3336, %v3330
    %v3673 = vpack.c.b16 %v3337, %v3331
    %v3674 = vpack.c.b16 %v3344, %v3338
    %v3675 = vpack.c.b16 %v3345, %v3339
    %v3676 = vpack.c.b16 %v3346, %v3340
    %v3677 = vpack.c.b16 %v3347, %v3341
    %v3678 = vpack.c.b16 %v3348, %v3342
    %v3679 = vpack.c.b16 %v3349, %v3343
    %v3680 = vpack.c.b16 %v3356, %v3350
    %v3681 = vpack.c.b16 %v3357, %v3351
    %v3682 = vpack.c.b16 %v3358, %v3352
    %v3683 = vpack.c.b16 %v3359, %v3353
    %v3684 = vpack.c.b16 %v3360, %v3354
    %v3685 = vpack.c.b16 %v3361, %v3355
    %v3686 = vpack.c.b16 %v3368, %v3362
    %v3687 = vpack.c.b16 %v3369, %v3363
    %v3688 = vpack.c.b16 %v3370, %v3364
    %v3689 = vpack.c.b16 %v3371, %v3365
    %v3690 = vpack.c.b16 %v3372, %v3366
    %v3691 = vpack.c.b16 %v3373, %v3367
    %v3692 = vpack.c.b16 %v3380, %v3374
    %v3693 = vpack.c.b16 %v3381, %v3375
    %v3694 = vpack.c.b16 %v3382, %v3376
    %v3695 = vpack.c.b16 %v3383, %v3377
    %v3696 = vpack.c.b16 %v3384, %v3378
    %v3697 = vpack.c.b16 %v3385, %v3379
    %v3698 = vpack.c.b16 %v3392, %v3386
    %v3699 = vpack.c.b16 %v3393, %v3387
    %v3700 = vpack.c.b16 %v3394, %v3388
    %v3701 = vpack.c.b16 %v3395, %v3389
    %v3702 = vpack.c.b16 %v3396, %v3390
    %v3703 = vpack.c.b16 %v3397, %v3391
    %v3704 = vpack.c.b16 %v3404, %v3398
    %v3705 = vpack.c.b16 %v3405, %v3399
    %v3706 = vpack.c.b16 %v3406, %v3400
    %v3707 = vpack.c.b16 %v3407, %v3401
    %v3708 = vpack.c.b16 %v3408, %v3402
    %v3709 = vpack.c.b16 %v3409, %v3403
    %v3710 = vpack.c.b16 %v3416, %v3410
    %v3711 = vpack.c.b16 %v3417, %v3411
    %v3712 = vpack.c.b16 %v3418, %v3412
    %v3713 = vpack.c.b16 %v3419, %v3413
    %v3714 = vpack.c.b16 %v3420, %v3414
    %v3715 = vpack.c.b16 %v3421, %v3415
    %v3716 = vpack.c.b16 %v3428, %v3422
    %v3717 = vpack.c.b16 %v3429, %v3423
    %v3718 = vpack.c.b16 %v3430, %v3424
    %v3719 = vpack.c.b16 %v3431, %v3425
    %v3720 = vpack.c.b16 %v3432, %v3426
    %v3721 = vpack.c.b16 %v3433, %v3427
    %4010 = vmatprep.subr.bf16.mxu0 %v3435
    %4011 = vmatpush1.bf16.msra.mxu0 %v3434
    %4012 = vmatprep.subr.bf16.mxu0 %v3441
    %4013 = vmatpush1.bf16.msra.mxu0 %v3440
    %4014 = vmatprep.subr.bf16.mxu0 %v3447
    %4015 = vmatpush1.bf16.msra.mxu0 %v3446
    %4016 = vmatprep.subr.bf16.mxu0 %v3453
    %4017 = vmatpush1.bf16.msra.mxu0 %v3452
    %4018 = vmatprep.subr.bf16.mxu0 %v3459
    %4019 = vmatpush1.bf16.msra.mxu0 %v3458
    %4020 = vmatprep.subr.bf16.mxu0 %v3465
    %4021 = vmatpush1.bf16.msra.mxu0 %v3464
    %4022 = vmatprep.subr.bf16.mxu0 %v3471
    %4023 = vmatpush1.bf16.msra.mxu0 %v3470
    %4024 = vmatprep.subr.bf16.mxu0 %v3477
    %4025 = vmatpush1.bf16.msra.mxu0 %v3476
    %4026 = vmatprep.subr.bf16.mxu0 %v3483
    %4027 = vmatpush1.bf16.msra.mxu0 %v3482
    %4028 = vmatprep.subr.bf16.mxu0 %v3489
    %4029 = vmatpush1.bf16.msra.mxu0 %v3488
    %4030 = vmatprep.subr.bf16.mxu0 %v3495
    %4031 = vmatpush1.bf16.msra.mxu0 %v3494
    %4032 = vmatprep.subr.bf16.mxu0 %v3501
    %4033 = vmatpush1.bf16.msra.mxu0 %v3500
    %4034 = vmatprep.subr.bf16.mxu0 %v3507
    %4035 = vmatpush1.bf16.msra.mxu0 %v3506
    %4036 = vmatprep.subr.bf16.mxu0 %v3513
    %4037 = vmatpush1.bf16.msra.mxu0 %v3512
    %4038 = vmatprep.subr.bf16.mxu0 %v3519
    %4039 = vmatpush1.bf16.msra.mxu0 %v3518
    %4040 = vmatprep.subr.bf16.mxu0 %v3525
    %4041 = vmatpush1.bf16.msra.mxu0 %v3524
    %4042 = vmatprep.mubr.bf16.mxu0 %v2559
    %4043 = vmatmul.mubr.bf16.gmra.mrb[0].mxu0 %v2558
    %v4044 = vpop.f32.mrb[0].mxu0
    %v4045 = vadd.f32 %v2297, %v4044
    %v4046 = vpop.f32.mrb[0].mxu0
    %v4047 = vadd.f32 %v2299, %v4046
    %v4048 = vpop.f32.mrb[0].mxu0
    %v4049 = vpop.f32.mrb[0].mxu0
    %4050 = vdwg.mxu0
    %4051 = vmatprep.subr.bf16.mxu0 %v3531
    %4052 = vmatpush1.bf16.msra.mxu0 %v3530
    %4053 = vmatprep.subr.bf16.mxu0 %v3537
    %4054 = vmatpush1.bf16.msra.mxu0 %v3536
    %4055 = vmatprep.subr.bf16.mxu0 %v3543
    %4056 = vmatpush1.bf16.msra.mxu0 %v3542
    %4057 = vmatprep.subr.bf16.mxu0 %v3549
    %4058 = vmatpush1.bf16.msra.mxu0 %v3548
    %4059 = vmatprep.subr.bf16.mxu0 %v3555
    %4060 = vmatpush1.bf16.msra.mxu0 %v3554
    %4061 = vmatprep.subr.bf16.mxu0 %v3561
    %4062 = vmatpush1.bf16.msra.mxu0 %v3560
    %4063 = vmatprep.subr.bf16.mxu0 %v3567
    %4064 = vmatpush1.bf16.msra.mxu0 %v3566
    %4065 = vmatprep.subr.bf16.mxu0 %v3573
    %4066 = vmatpush1.bf16.msra.mxu0 %v3572
    %4067 = vmatprep.subr.bf16.mxu0 %v3579
    %4068 = vmatpush1.bf16.msra.mxu0 %v3578
    %4069 = vmatprep.subr.bf16.mxu0 %v3585
    %4070 = vmatpush1.bf16.msra.mxu0 %v3584
    %4071 = vmatprep.subr.bf16.mxu0 %v3591
    %4072 = vmatpush1.bf16.msra.mxu0 %v3590
    %4073 = vmatprep.subr.bf16.mxu0 %v3597
    %4074 = vmatpush1.bf16.msra.mxu0 %v3596
    %4075 = vmatprep.subr.bf16.mxu0 %v3603
    %4076 = vmatpush1.bf16.msra.mxu0 %v3602
    %4077 = vmatprep.subr.bf16.mxu0 %v3609
    %4078 = vmatpush1.bf16.msra.mxu0 %v3608
    %4079 = vmatprep.subr.bf16.mxu0 %v3615
    %4080 = vmatpush1.bf16.msra.mxu0 %v3614
    %4081 = vmatprep.subr.bf16.mxu0 %v3621
    %4082 = vmatpush1.bf16.msra.mxu0 %v3620
    %4083 = vmatprep.mubr.bf16.mxu0 %v2561
    %4084 = vmatmul.mubr.bf16.gmra.mrb[0].mxu0 %v2560
    %v4085 = vpop.f32.mrb[0].mxu0
    %v4086 = vadd.f32 %v4045, %v4085
    %v4087 = vpop.f32.mrb[0].mxu0
    %v4088 = vadd.f32 %v4047, %v4087
    %v4089 = vpop.f32.mrb[0].mxu0
    %v4090 = vpop.f32.mrb[0].mxu0
    %4091 = vdwg.mxu0
    %4092 = vmatprep.subr.bf16.mxu0 %v3627
    %4093 = vmatpush1.bf16.msra.mxu0 %v3626
    %4094 = vmatprep.subr.bf16.mxu0 %v3633
    %4095 = vmatpush1.bf16.msra.mxu0 %v3632
    %4096 = vmatprep.subr.bf16.mxu0 %v3639
    %4097 = vmatpush1.bf16.msra.mxu0 %v3638
    %4098 = vmatprep.subr.bf16.mxu0 %v3645
    %4099 = vmatpush1.bf16.msra.mxu0 %v3644
    %4100 = vmatprep.subr.bf16.mxu0 %v3651
    %4101 = vmatpush1.bf16.msra.mxu0 %v3650
    %4102 = vmatprep.subr.bf16.mxu0 %v3657
    %4103 = vmatpush1.bf16.msra.mxu0 %v3656
    %4104 = vmatprep.subr.bf16.mxu0 %v3663
    %4105 = vmatpush1.bf16.msra.mxu0 %v3662
    %4106 = vmatprep.subr.bf16.mxu0 %v3669
    %4107 = vmatpush1.bf16.msra.mxu0 %v3668
    %4108 = vmatprep.subr.bf16.mxu0 %v3675
    %4109 = vmatpush1.bf16.msra.mxu0 %v3674
    %4110 = vmatprep.subr.bf16.mxu0 %v3681
    %4111 = vmatpush1.bf16.msra.mxu0 %v3680
    %4112 = vmatprep.subr.bf16.mxu0 %v3687
    %4113 = vmatpush1.bf16.msra.mxu0 %v3686
    %4114 = vmatprep.subr.bf16.mxu0 %v3693
    %4115 = vmatpush1.bf16.msra.mxu0 %v3692
    %4116 = vmatprep.subr.bf16.mxu0 %v3699
    %4117 = vmatpush1.bf16.msra.mxu0 %v3698
    %4118 = vmatprep.subr.bf16.mxu0 %v3705
    %4119 = vmatpush1.bf16.msra.mxu0 %v3704
    %4120 = vmatprep.subr.bf16.mxu0 %v3711
    %4121 = vmatpush1.bf16.msra.mxu0 %v3710
    %4122 = vmatprep.subr.bf16.mxu0 %v3717
    %4123 = vmatpush1.bf16.msra.mxu0 %v3716
    %4124 = vmatprep.mubr.bf16.mxu0 %v2563
    %4125 = vmatmul.mubr.bf16.gmra.mrb[0].mxu0 %v2562
    %v4126 = vpop.f32.mrb[0].mxu0
    %v4127 = vadd.f32 %v4086, %v4126
    %v4128 = vpop.f32.mrb[0].mxu0
    %v4129 = vadd.f32 %v4088, %v4128
    %v4130 = vpop.f32.mrb[0].mxu0
    %v4131 = vpop.f32.mrb[0].mxu0
    %4132 = vdwg.mxu0
    %4133 = vmatprep.subr.bf16.mxu0 %v3437
    %4134 = vmatpush1.bf16.msra.mxu0 %v3436
    %4135 = vmatprep.subr.bf16.mxu0 %v3443
    %4136 = vmatpush1.bf16.msra.mxu0 %v3442
    %4137 = vmatprep.subr.bf16.mxu0 %v3449
    %4138 = vmatpush1.bf16.msra.mxu0 %v3448
    %4139 = vmatprep.subr.bf16.mxu0 %v3455
    %4140 = vmatpush1.bf16.msra.mxu0 %v3454
    %4141 = vmatprep.subr.bf16.mxu0 %v3461
    %4142 = vmatpush1.bf16.msra.mxu0 %v3460
    %4143 = vmatprep.subr.bf16.mxu0 %v3467
    %4144 = vmatpush1.bf16.msra.mxu0 %v3466
    %4145 = vmatprep.subr.bf16.mxu0 %v3473
    %4146 = vmatpush1.bf16.msra.mxu0 %v3472
    %4147 = vmatprep.subr.bf16.mxu0 %v3479
    %4148 = vmatpush1.bf16.msra.mxu0 %v3478
    %4149 = vmatprep.subr.bf16.mxu0 %v3485
    %4150 = vmatpush1.bf16.msra.mxu0 %v3484
    %4151 = vmatprep.subr.bf16.mxu0 %v3491
    %4152 = vmatpush1.bf16.msra.mxu0 %v3490
    %4153 = vmatprep.subr.bf16.mxu0 %v3497
    %4154 = vmatpush1.bf16.msra.mxu0 %v3496
    %4155 = vmatprep.subr.bf16.mxu0 %v3503
    %4156 = vmatpush1.bf16.msra.mxu0 %v3502
    %4157 = vmatprep.subr.bf16.mxu0 %v3509
    %4158 = vmatpush1.bf16.msra.mxu0 %v3508
    %4159 = vmatprep.subr.bf16.mxu0 %v3515
    %4160 = vmatpush1.bf16.msra.mxu0 %v3514
    %4161 = vmatprep.subr.bf16.mxu0 %v3521
    %4162 = vmatpush1.bf16.msra.mxu0 %v3520
    %4163 = vmatprep.subr.bf16.mxu0 %v3527
    %4164 = vmatpush1.bf16.msra.mxu0 %v3526
    %4165 = vmatprep.mubr.bf16.mxu0 %v2559
    %4166 = vmatmul.mubr.bf16.gmra.mrb[0].mxu0 %v2558
    %v4167 = vpop.f32.mrb[0].mxu0
    %v4168 = vadd.f32 %v2420, %v4167
    %v4169 = vpop.f32.mrb[0].mxu0
    %v4170 = vadd.f32 %v2422, %v4169
    %v4171 = vpop.f32.mrb[0].mxu0
    %v4172 = vpop.f32.mrb[0].mxu0
    %4173 = vdwg.mxu0
    %4174 = vmatprep.subr.bf16.mxu0 %v3533
    %4175 = vmatpush1.bf16.msra.mxu0 %v3532
    %4176 = vmatprep.subr.bf16.mxu0 %v3539
    %4177 = vmatpush1.bf16.msra.mxu0 %v3538
    %4178 = vmatprep.subr.bf16.mxu0 %v3545
    %4179 = vmatpush1.bf16.msra.mxu0 %v3544
    %4180 = vmatprep.subr.bf16.mxu0 %v3551
    %4181 = vmatpush1.bf16.msra.mxu0 %v3550
    %4182 = vmatprep.subr.bf16.mxu0 %v3557
    %4183 = vmatpush1.bf16.msra.mxu0 %v3556
    %4184 = vmatprep.subr.bf16.mxu0 %v3563
    %4185 = vmatpush1.bf16.msra.mxu0 %v3562
    %4186 = vmatprep.subr.bf16.mxu0 %v3569
    %4187 = vmatpush1.bf16.msra.mxu0 %v3568
    %4188 = vmatprep.subr.bf16.mxu0 %v3575
    %4189 = vmatpush1.bf16.msra.mxu0 %v3574
    %4190 = vmatprep.subr.bf16.mxu0 %v3581
    %4191 = vmatpush1.bf16.msra.mxu0 %v3580
    %4192 = vmatprep.subr.bf16.mxu0 %v3587
    %4193 = vmatpush1.bf16.msra.mxu0 %v3586
    %4194 = vmatprep.subr.bf16.mxu0 %v3593
    %4195 = vmatpush1.bf16.msra.mxu0 %v3592
    %4196 = vmatprep.subr.bf16.mxu0 %v3599
    %4197 = vmatpush1.bf16.msra.mxu0 %v3598
    %4198 = vmatprep.subr.bf16.mxu0 %v3605
    %4199 = vmatpush1.bf16.msra.mxu0 %v3604
    %4200 = vmatprep.subr.bf16.mxu0 %v3611
    %4201 = vmatpush1.bf16.msra.mxu0 %v3610
    %4202 = vmatprep.subr.bf16.mxu0 %v3617
    %4203 = vmatpush1.bf16.msra.mxu0 %v3616
    %4204 = vmatprep.subr.bf16.mxu0 %v3623
    %4205 = vmatpush1.bf16.msra.mxu0 %v3622
    %4206 = vmatprep.mubr.bf16.mxu0 %v2561
    %4207 = vmatmul.mubr.bf16.gmra.mrb[0].mxu0 %v2560
    %v4208 = vpop.f32.mrb[0].mxu0
    %v4209 = vadd.f32 %v4168, %v4208
    %v4210 = vpop.f32.mrb[0].mxu0
    %v4211 = vadd.f32 %v4170, %v4210
    %v4212 = vpop.f32.mrb[0].mxu0
    %v4213 = vpop.f32.mrb[0].mxu0
    %4214 = vdwg.mxu0
    %4215 = vmatprep.subr.bf16.mxu0 %v3629
    %4216 = vmatpush1.bf16.msra.mxu0 %v3628
    %4217 = vmatprep.subr.bf16.mxu0 %v3635
    %4218 = vmatpush1.bf16.msra.mxu0 %v3634
    %4219 = vmatprep.subr.bf16.mxu0 %v3641
    %4220 = vmatpush1.bf16.msra.mxu0 %v3640
    %4221 = vmatprep.subr.bf16.mxu0 %v3647
    %4222 = vmatpush1.bf16.msra.mxu0 %v3646
    %4223 = vmatprep.subr.bf16.mxu0 %v3653
    %4224 = vmatpush1.bf16.msra.mxu0 %v3652
    %4225 = vmatprep.subr.bf16.mxu0 %v3659
    %4226 = vmatpush1.bf16.msra.mxu0 %v3658
    %4227 = vmatprep.subr.bf16.mxu0 %v3665
    %4228 = vmatpush1.bf16.msra.mxu0 %v3664
    %4229 = vmatprep.subr.bf16.mxu0 %v3671
    %4230 = vmatpush1.bf16.msra.mxu0 %v3670
    %4231 = vmatprep.subr.bf16.mxu0 %v3677
    %4232 = vmatpush1.bf16.msra.mxu0 %v3676
    %4233 = vmatprep.subr.bf16.mxu0 %v3683
    %4234 = vmatpush1.bf16.msra.mxu0 %v3682
    %4235 = vmatprep.subr.bf16.mxu0 %v3689
    %4236 = vmatpush1.bf16.msra.mxu0 %v3688
    %4237 = vmatprep.subr.bf16.mxu0 %v3695
    %4238 = vmatpush1.bf16.msra.mxu0 %v3694
    %4239 = vmatprep.subr.bf16.mxu0 %v3701
    %4240 = vmatpush1.bf16.msra.mxu0 %v3700
    %4241 = vmatprep.subr.bf16.mxu0 %v3707
    %4242 = vmatpush1.bf16.msra.mxu0 %v3706
    %4243 = vmatprep.subr.bf16.mxu0 %v3713
    %4244 = vmatpush1.bf16.msra.mxu0 %v3712
    %4245 = vmatprep.subr.bf16.mxu0 %v3719
    %4246 = vmatpush1.bf16.msra.mxu0 %v3718
    %4247 = vmatprep.mubr.bf16.mxu0 %v2563
    %4248 = vmatmul.mubr.bf16.gmra.mrb[0].mxu0 %v2562
    %v4249 = vpop.f32.mrb[0].mxu0
    %v4250 = vadd.f32 %v4209, %v4249
    %v4251 = vpop.f32.mrb[0].mxu0
    %v4252 = vadd.f32 %v4211, %v4251
    %v4253 = vpop.f32.mrb[0].mxu0
    %v4254 = vpop.f32.mrb[0].mxu0
    %4255 = vdwg.mxu0
    %4256 = vmatprep.subr.bf16.mxu0 %v3439
    %4257 = vmatpush1.bf16.msra.mxu0 %v3438
    %4258 = vmatprep.subr.bf16.mxu0 %v3445
    %4259 = vmatpush1.bf16.msra.mxu0 %v3444
    %4260 = vmatprep.subr.bf16.mxu0 %v3451
    %4261 = vmatpush1.bf16.msra.mxu0 %v3450
    %4262 = vmatprep.subr.bf16.mxu0 %v3457
    %4263 = vmatpush1.bf16.msra.mxu0 %v3456
    %4264 = vmatprep.subr.bf16.mxu0 %v3463
    %4265 = vmatpush1.bf16.msra.mxu0 %v3462
    %4266 = vmatprep.subr.bf16.mxu0 %v3469
    %4267 = vmatpush1.bf16.msra.mxu0 %v3468
    %4268 = vmatprep.subr.bf16.mxu0 %v3475
    %4269 = vmatpush1.bf16.msra.mxu0 %v3474
    %4270 = vmatprep.subr.bf16.mxu0 %v3481
    %4271 = vmatpush1.bf16.msra.mxu0 %v3480
    %4272 = vmatprep.subr.bf16.mxu0 %v3487
    %4273 = vmatpush1.bf16.msra.mxu0 %v3486
    %4274 = vmatprep.subr.bf16.mxu0 %v3493
    %4275 = vmatpush1.bf16.msra.mxu0 %v3492
    %4276 = vmatprep.subr.bf16.mxu0 %v3499
    %4277 = vmatpush1.bf16.msra.mxu0 %v3498
    %4278 = vmatprep.subr.bf16.mxu0 %v3505
    %4279 = vmatpush1.bf16.msra.mxu0 %v3504
    %4280 = vmatprep.subr.bf16.mxu0 %v3511
    %4281 = vmatpush1.bf16.msra.mxu0 %v3510
    %4282 = vmatprep.subr.bf16.mxu0 %v3517
    %4283 = vmatpush1.bf16.msra.mxu0 %v3516
    %4284 = vmatprep.subr.bf16.mxu0 %v3523
    %4285 = vmatpush1.bf16.msra.mxu0 %v3522
    %4286 = vmatprep.subr.bf16.mxu0 %v3529
    %4287 = vmatpush1.bf16.msra.mxu0 %v3528
    %4288 = vmatprep.mubr.bf16.mxu0 %v2559
    %4289 = vmatmul.mubr.bf16.gmra.mrb[0].mxu0 %v2558
    %v4290 = vpop.f32.mrb[0].mxu0
    %v4291 = vadd.f32 %v2543, %v4290
    %v4292 = vpop.f32.mrb[0].mxu0
    %v4293 = vadd.f32 %v2545, %v4292
    %v4294 = vpop.f32.mrb[0].mxu0
    %v4295 = vpop.f32.mrb[0].mxu0
    %4296 = vdwg.mxu0
    %4297 = vmatprep.subr.bf16.mxu0 %v3535
    %4298 = vmatpush1.bf16.msra.mxu0 %v3534
    %4299 = vmatprep.subr.bf16.mxu0 %v3541
    %4300 = vmatpush1.bf16.msra.mxu0 %v3540
    %4301 = vmatprep.subr.bf16.mxu0 %v3547
    %4302 = vmatpush1.bf16.msra.mxu0 %v3546
    %4303 = vmatprep.subr.bf16.mxu0 %v3553
    %4304 = vmatpush1.bf16.msra.mxu0 %v3552
    %4305 = vmatprep.subr.bf16.mxu0 %v3559
    %4306 = vmatpush1.bf16.msra.mxu0 %v3558
    %4307 = vmatprep.subr.bf16.mxu0 %v3565
    %4308 = vmatpush1.bf16.msra.mxu0 %v3564
    %4309 = vmatprep.subr.bf16.mxu0 %v3571
    %4310 = vmatpush1.bf16.msra.mxu0 %v3570
    %4311 = vmatprep.subr.bf16.mxu0 %v3577
    %4312 = vmatpush1.bf16.msra.mxu0 %v3576
    %4313 = vmatprep.subr.bf16.mxu0 %v3583
    %4314 = vmatpush1.bf16.msra.mxu0 %v3582
    %4315 = vmatprep.subr.bf16.mxu0 %v3589
    %4316 = vmatpush1.bf16.msra.mxu0 %v3588
    %4317 = vmatprep.subr.bf16.mxu0 %v3595
    %4318 = vmatpush1.bf16.msra.mxu0 %v3594
    %4319 = vmatprep.subr.bf16.mxu0 %v3601
    %4320 = vmatpush1.bf16.msra.mxu0 %v3600
    %4321 = vmatprep.subr.bf16.mxu0 %v3607
    %4322 = vmatpush1.bf16.msra.mxu0 %v3606
    %4323 = vmatprep.subr.bf16.mxu0 %v3613
    %4324 = vmatpush1.bf16.msra.mxu0 %v3612
    %4325 = vmatprep.subr.bf16.mxu0 %v3619
    %4326 = vmatpush1.bf16.msra.mxu0 %v3618
    %4327 = vmatprep.subr.bf16.mxu0 %v3625
    %4328 = vmatpush1.bf16.msra.mxu0 %v3624
    %4329 = vmatprep.mubr.bf16.mxu0 %v2561
    %4330 = vmatmul.mubr.bf16.gmra.mrb[0].mxu0 %v2560
    %v4331 = vpop.f32.mrb[0].mxu0
    %v4332 = vadd.f32 %v4291, %v4331
    %v4333 = vpop.f32.mrb[0].mxu0
    %v4334 = vadd.f32 %v4293, %v4333
    %v4335 = vpop.f32.mrb[0].mxu0
    %v4336 = vpop.f32.mrb[0].mxu0
    %4337 = vdwg.mxu0
    %4338 = vmatprep.subr.bf16.mxu0 %v3631
    %4339 = vmatpush1.bf16.msra.mxu0 %v3630
    %4340 = vmatprep.subr.bf16.mxu0 %v3637
    %4341 = vmatpush1.bf16.msra.mxu0 %v3636
    %4342 = vmatprep.subr.bf16.mxu0 %v3643
    %4343 = vmatpush1.bf16.msra.mxu0 %v3642
    %4344 = vmatprep.subr.bf16.mxu0 %v3649
    %4345 = vmatpush1.bf16.msra.mxu0 %v3648
    %4346 = vmatprep.subr.bf16.mxu0 %v3655
    %4347 = vmatpush1.bf16.msra.mxu0 %v3654
    %4348 = vmatprep.subr.bf16.mxu0 %v3661
    %4349 = vmatpush1.bf16.msra.mxu0 %v3660
    %4350 = vmatprep.subr.bf16.mxu0 %v3667
    %4351 = vmatpush1.bf16.msra.mxu0 %v3666
    %4352 = vmatprep.subr.bf16.mxu0 %v3673
    %4353 = vmatpush1.bf16.msra.mxu0 %v3672
    %4354 = vmatprep.subr.bf16.mxu0 %v3679
    %4355 = vmatpush1.bf16.msra.mxu0 %v3678
    %4356 = vmatprep.subr.bf16.mxu0 %v3685
    %4357 = vmatpush1.bf16.msra.mxu0 %v3684
    %4358 = vmatprep.subr.bf16.mxu0 %v3691
    %4359 = vmatpush1.bf16.msra.mxu0 %v3690
    %4360 = vmatprep.subr.bf16.mxu0 %v3697
    %4361 = vmatpush1.bf16.msra.mxu0 %v3696
    %4362 = vmatprep.subr.bf16.mxu0 %v3703
    %4363 = vmatpush1.bf16.msra.mxu0 %v3702
    %4364 = vmatprep.subr.bf16.mxu0 %v3709
    %4365 = vmatpush1.bf16.msra.mxu0 %v3708
    %4366 = vmatprep.subr.bf16.mxu0 %v3715
    %4367 = vmatpush1.bf16.msra.mxu0 %v3714
    %4368 = vmatprep.subr.bf16.mxu0 %v3721
    %4369 = vmatpush1.bf16.msra.mxu0 %v3720
    %4370 = vmatprep.mubr.bf16.mxu0 %v2563
    %4371 = vmatmul.mubr.bf16.gmra.mrb[0].mxu0 %v2562
    %v4372 = vpop.f32.mrb[0].mxu0
    %v4373 = vadd.f32 %v4332, %v4372
    %v4374 = vpop.f32.mrb[0].mxu0
    %v4375 = vadd.f32 %v4334, %v4374
    %v4376 = vpop.f32.mrb[0].mxu0
    %v4377 = vpop.f32.mrb[0].mxu0
    %4378 = vdwg.mxu0
    %v4382 = vlaneseq
    %v4383 = vshrl.u32 %v4382, 7
    %v4384 = vsub.s32 0, %v4383
    %v4385 = vrot.slane %v137, %v4384
    %v4386 = vlaneseq
    %v4387 = vshrl.u32 %v4386, 7
    %v4388 = vsub.s32 4, %v4387
    %v4389 = vrot.slane %v137, %v4388
    %v4390 = vlaneseq
    %v4391 = vshrl.u32 %v4390, 7
    %v4392 = vsub.s32 0, %v4391
    %v4393 = vrot.slane %v138, %v4392
    %v4394 = vlaneseq
    %v4395 = vshrl.u32 %v4394, 7
    %v4396 = vsub.s32 4, %v4395
    %v4397 = vrot.slane %v138, %v4396
    %v4398 = vlaneseq
    %v4399 = vshrl.u32 %v4398, 7
    %v4400 = vsub.s32 0, %v4399
    %v4401 = vrot.slane %v139, %v4400
    %v4402 = vlaneseq
    %v4403 = vshrl.u32 %v4402, 7
    %v4404 = vsub.s32 4, %v4403
    %v4405 = vrot.slane %v139, %v4404
    %v4412 = vlaneseq
    %v4413 = vshrl.u32 %v4412, 7
    %v4414 = vsub.s32 0, %v4413
    %v4415 = vrot.slane %v4385, %v4414
    %v4416 = vlaneseq
    %v4417 = vshrl.u32 %v4416, 7
    %v4418 = vsub.s32 0, %v4417
    %v4419 = vrot.slane %v4389, %v4418
    %v4420 = vlaneseq
    %v4421 = vshrl.u32 %v4420, 7
    %v4422 = vsub.s32 0, %v4421
    %v4423 = vrot.slane %v4393, %v4422
    %v4424 = vlaneseq
    %v4425 = vshrl.u32 %v4424, 7
    %v4426 = vsub.s32 0, %v4425
    %v4427 = vrot.slane %v4397, %v4426
    %v4428 = vlaneseq
    %v4429 = vshrl.u32 %v4428, 7
    %v4430 = vsub.s32 0, %v4429
    %v4431 = vrot.slane %v4401, %v4430
    %v4432 = vlaneseq
    %v4433 = vshrl.u32 %v4432, 7
    %v4434 = vsub.s32 0, %v4433
    %v4435 = vrot.slane %v4405, %v4434
    %v4436 = vadd.f32 %v4127, %v4415
    %v4437 = vadd.f32 %v4129, %v4419
    %v4438 = vadd.f32 %v4250, %v4423
    %v4439 = vadd.f32 %v4252, %v4427
    %v4440 = vadd.f32 %v4373, %v4431
    %v4441 = vadd.f32 %v4375, %v4435
    %v4442 = vadd.f32 %v4436, %v125
    %v4443 = vadd.f32 %v4437, %v126
    %v4444 = vadd.f32 %v4438, %v127
    %v4445 = vadd.f32 %v4439, %v128
    %v4446 = vadd.f32 %v4440, %v129
    %v4447 = vadd.f32 %v4441, %v130
    %v4448 = vld [vmem:[#allocation8] sm:$0xff]
    %v4449 = vld [vmem:[#allocation8 + $0x8] sm:$0xff]
    %v4450 = vld [vmem:[#allocation8 + $0x10] sm:$0xff]
    %v4451 = vld [vmem:[#allocation8 + $0x18] sm:$0xff]
    %v4452 = vld [vmem:[#allocation8 + $0x20] sm:$0xff]
    %v4453 = vld [vmem:[#allocation8 + $0x28] sm:$0xff]
    %v4454 = vld [vmem:[#allocation8 + $0x30] sm:$0xff]
    %v4455 = vld [vmem:[#allocation8 + $0x38] sm:$0xff]
    %v4456 = vld [vmem:[#allocation8 + $0x40] sm:$0xff]
    %v4457 = vld [vmem:[#allocation8 + $0x48] sm:$0xff]
    %v4458 = vld [vmem:[#allocation8 + $0x50] sm:$0xff]
    %v4459 = vld [vmem:[#allocation8 + $0x58] sm:$0xff]
    %v4460 = vld [vmem:[#allocation8 + $0x60] sm:$0xff]
    %v4461 = vld [vmem:[#allocation8 + $0x68] sm:$0xff]
    %v4462 = vld [vmem:[#allocation8 + $0x70] sm:$0xff]
    %v4463 = vld [vmem:[#allocation8 + $0x78] sm:$0xff]
    %v4464 = vld [vmem:[#allocation8 + $0x80] sm:$0xff]
    %v4465 = vld [vmem:[#allocation8 + $0x88] sm:$0xff]
    %v4466 = vld [vmem:[#allocation8 + $0x90] sm:$0xff]
    %v4467 = vld [vmem:[#allocation8 + $0x98] sm:$0xff]
    %v4468 = vld [vmem:[#allocation8 + $0xa0] sm:$0xff]
    %v4469 = vld [vmem:[#allocation8 + $0xa8] sm:$0xff]
    %v4470 = vld [vmem:[#allocation8 + $0xb0] sm:$0xff]
    %v4471 = vld [vmem:[#allocation8 + $0xb8] sm:$0xff]
    %v4472 = vld [vmem:[#allocation8 + $0xc0] sm:$0xff]
    %v4473 = vld [vmem:[#allocation8 + $0xc8] sm:$0xff]
    %v4474 = vld [vmem:[#allocation8 + $0xd0] sm:$0xff]
    %v4475 = vld [vmem:[#allocation8 + $0xd8] sm:$0xff]
    %v4476 = vld [vmem:[#allocation8 + $0xe0] sm:$0xff]
    %v4477 = vld [vmem:[#allocation8 + $0xe8] sm:$0xff]
    %v4478 = vld [vmem:[#allocation8 + $0xf0] sm:$0xff]
    %v4479 = vld [vmem:[#allocation8 + $0xf8] sm:$0xff]
    %v4480 = vld [vmem:[#allocation8 + $0x100] sm:$0xff]
    %v4481 = vld [vmem:[#allocation8 + $0x108] sm:$0xff]
    %v4482 = vld [vmem:[#allocation8 + $0x110] sm:$0xff]
    %v4483 = vld [vmem:[#allocation8 + $0x118] sm:$0xff]
    %v4484 = vld [vmem:[#allocation8 + $0x120] sm:$0xff]
    %v4485 = vld [vmem:[#allocation8 + $0x128] sm:$0xff]
    %v4486 = vld [vmem:[#allocation8 + $0x130] sm:$0xff]
    %v4487 = vld [vmem:[#allocation8 + $0x138] sm:$0xff]
    %v4488 = vld [vmem:[#allocation8 + $0x140] sm:$0xff]
    %v4489 = vld [vmem:[#allocation8 + $0x148] sm:$0xff]
    %v4490 = vld [vmem:[#allocation8 + $0x150] sm:$0xff]
    %v4491 = vld [vmem:[#allocation8 + $0x158] sm:$0xff]
    %v4492 = vld [vmem:[#allocation8 + $0x160] sm:$0xff]
    %v4493 = vld [vmem:[#allocation8 + $0x168] sm:$0xff]
    %v4494 = vld [vmem:[#allocation8 + $0x170] sm:$0xff]
    %v4495 = vld [vmem:[#allocation8 + $0x178] sm:$0xff]
    %v4496 = vld [vmem:[#allocation8 + $0x180] sm:$0xff]
    %v4497 = vld [vmem:[#allocation8 + $0x188] sm:$0xff]
    %v4498 = vld [vmem:[#allocation8 + $0x190] sm:$0xff]
    %v4499 = vld [vmem:[#allocation8 + $0x198] sm:$0xff]
    %v4500 = vld [vmem:[#allocation8 + $0x1a0] sm:$0xff]
    %v4501 = vld [vmem:[#allocation8 + $0x1a8] sm:$0xff]
    %v4502 = vld [vmem:[#allocation8 + $0x1b0] sm:$0xff]
    %v4503 = vld [vmem:[#allocation8 + $0x1b8] sm:$0xff]
    %v4504 = vld [vmem:[#allocation8 + $0x1c0] sm:$0xff]
    %v4505 = vld [vmem:[#allocation8 + $0x1c8] sm:$0xff]
    %v4506 = vld [vmem:[#allocation8 + $0x1d0] sm:$0xff]
    %v4507 = vld [vmem:[#allocation8 + $0x1d8] sm:$0xff]
    %v4508 = vld [vmem:[#allocation8 + $0x1e0] sm:$0xff]
    %v4509 = vld [vmem:[#allocation8 + $0x1e8] sm:$0xff]
    %v4510 = vld [vmem:[#allocation8 + $0x1f0] sm:$0xff]
    %v4511 = vld [vmem:[#allocation8 + $0x1f8] sm:$0xff]
    %v4512 = vld [vmem:[#allocation8 + $0x200] sm:$0xff]
    %v4513 = vld [vmem:[#allocation8 + $0x208] sm:$0xff]
    %v4514 = vld [vmem:[#allocation8 + $0x210] sm:$0xff]
    %v4515 = vld [vmem:[#allocation8 + $0x218] sm:$0xff]
    %v4516 = vld [vmem:[#allocation8 + $0x220] sm:$0xff]
    %v4517 = vld [vmem:[#allocation8 + $0x228] sm:$0xff]
    %v4518 = vld [vmem:[#allocation8 + $0x230] sm:$0xff]
    %v4519 = vld [vmem:[#allocation8 + $0x238] sm:$0xff]
    %v4520 = vld [vmem:[#allocation8 + $0x240] sm:$0xff]
    %v4521 = vld [vmem:[#allocation8 + $0x248] sm:$0xff]
    %v4522 = vld [vmem:[#allocation8 + $0x250] sm:$0xff]
    %v4523 = vld [vmem:[#allocation8 + $0x258] sm:$0xff]
    %v4524 = vld [vmem:[#allocation8 + $0x260] sm:$0xff]
    %v4525 = vld [vmem:[#allocation8 + $0x268] sm:$0xff]
    %v4526 = vld [vmem:[#allocation8 + $0x270] sm:$0xff]
    %v4527 = vld [vmem:[#allocation8 + $0x278] sm:$0xff]
    %v4528 = vld [vmem:[#allocation8 + $0x280] sm:$0xff]
    %v4529 = vld [vmem:[#allocation8 + $0x288] sm:$0xff]
    %v4530 = vld [vmem:[#allocation8 + $0x290] sm:$0xff]
    %v4531 = vld [vmem:[#allocation8 + $0x298] sm:$0xff]
    %v4532 = vld [vmem:[#allocation8 + $0x2a0] sm:$0xff]
    %v4533 = vld [vmem:[#allocation8 + $0x2a8] sm:$0xff]
    %v4534 = vld [vmem:[#allocation8 + $0x2b0] sm:$0xff]
    %v4535 = vld [vmem:[#allocation8 + $0x2b8] sm:$0xff]
    %v4536 = vld [vmem:[#allocation8 + $0x2c0] sm:$0xff]
    %v4537 = vld [vmem:[#allocation8 + $0x2c8] sm:$0xff]
    %v4538 = vld [vmem:[#allocation8 + $0x2d0] sm:$0xff]
    %v4539 = vld [vmem:[#allocation8 + $0x2d8] sm:$0xff]
    %v4540 = vld [vmem:[#allocation8 + $0x2e0] sm:$0xff]
    %v4541 = vld [vmem:[#allocation8 + $0x2e8] sm:$0xff]
    %v4542 = vld [vmem:[#allocation8 + $0x2f0] sm:$0xff]
    %v4543 = vld [vmem:[#allocation8 + $0x2f8] sm:$0xff]
    %v4544 = vld [vmem:[#allocation8 + $0x300] sm:$0xff]
    %v4545 = vld [vmem:[#allocation8 + $0x308] sm:$0xff]
    %v4546 = vld [vmem:[#allocation8 + $0x310] sm:$0xff]
    %v4547 = vld [vmem:[#allocation8 + $0x318] sm:$0xff]
    %v4548 = vld [vmem:[#allocation8 + $0x320] sm:$0xff]
    %v4549 = vld [vmem:[#allocation8 + $0x328] sm:$0xff]
    %v4550 = vld [vmem:[#allocation8 + $0x330] sm:$0xff]
    %v4551 = vld [vmem:[#allocation8 + $0x338] sm:$0xff]
    %v4552 = vld [vmem:[#allocation8 + $0x340] sm:$0xff]
    %v4553 = vld [vmem:[#allocation8 + $0x348] sm:$0xff]
    %v4554 = vld [vmem:[#allocation8 + $0x350] sm:$0xff]
    %v4555 = vld [vmem:[#allocation8 + $0x358] sm:$0xff]
    %v4556 = vld [vmem:[#allocation8 + $0x360] sm:$0xff]
    %v4557 = vld [vmem:[#allocation8 + $0x368] sm:$0xff]
    %v4558 = vld [vmem:[#allocation8 + $0x370] sm:$0xff]
    %v4559 = vld [vmem:[#allocation8 + $0x378] sm:$0xff]
    %v4560 = vld [vmem:[#allocation8 + $0x380] sm:$0xff]
    %v4561 = vld [vmem:[#allocation8 + $0x388] sm:$0xff]
    %v4562 = vld [vmem:[#allocation8 + $0x390] sm:$0xff]
    %v4563 = vld [vmem:[#allocation8 + $0x398] sm:$0xff]
    %v4564 = vld [vmem:[#allocation8 + $0x3a0] sm:$0xff]
    %v4565 = vld [vmem:[#allocation8 + $0x3a8] sm:$0xff]
    %v4566 = vld [vmem:[#allocation8 + $0x3b0] sm:$0xff]
    %v4567 = vld [vmem:[#allocation8 + $0x3b8] sm:$0xff]
    %v4568 = vld [vmem:[#allocation8 + $0x3c0] sm:$0xff]
    %v4569 = vld [vmem:[#allocation8 + $0x3c8] sm:$0xff]
    %v4570 = vld [vmem:[#allocation8 + $0x3d0] sm:$0xff]
    %v4571 = vld [vmem:[#allocation8 + $0x3d8] sm:$0xff]
    %v4572 = vld [vmem:[#allocation8 + $0x3e0] sm:$0xff]
    %v4573 = vld [vmem:[#allocation8 + $0x3e8] sm:$0xff]
    %v4574 = vld [vmem:[#allocation8 + $0x3f0] sm:$0xff]
    %v4575 = vld [vmem:[#allocation8 + $0x3f8] sm:$0xff]
    %v4576 = vld [vmem:[#allocation8 + $0x400] sm:$0xff]
    %v4577 = vld [vmem:[#allocation8 + $0x408] sm:$0xff]
    %v4578 = vld [vmem:[#allocation8 + $0x410] sm:$0xff]
    %v4579 = vld [vmem:[#allocation8 + $0x418] sm:$0xff]
    %v4580 = vld [vmem:[#allocation8 + $0x420] sm:$0xff]
    %v4581 = vld [vmem:[#allocation8 + $0x428] sm:$0xff]
    %v4582 = vld [vmem:[#allocation8 + $0x430] sm:$0xff]
    %v4583 = vld [vmem:[#allocation8 + $0x438] sm:$0xff]
    %v4584 = vld [vmem:[#allocation8 + $0x440] sm:$0xff]
    %v4585 = vld [vmem:[#allocation8 + $0x448] sm:$0xff]
    %v4586 = vld [vmem:[#allocation8 + $0x450] sm:$0xff]
    %v4587 = vld [vmem:[#allocation8 + $0x458] sm:$0xff]
    %v4588 = vld [vmem:[#allocation8 + $0x460] sm:$0xff]
    %v4589 = vld [vmem:[#allocation8 + $0x468] sm:$0xff]
    %v4590 = vld [vmem:[#allocation8 + $0x470] sm:$0xff]
    %v4591 = vld [vmem:[#allocation8 + $0x478] sm:$0xff]
    %v4592 = vld [vmem:[#allocation8 + $0x480] sm:$0xff]
    %v4593 = vld [vmem:[#allocation8 + $0x488] sm:$0xff]
    %v4594 = vld [vmem:[#allocation8 + $0x490] sm:$0xff]
    %v4595 = vld [vmem:[#allocation8 + $0x498] sm:$0xff]
    %v4596 = vld [vmem:[#allocation8 + $0x4a0] sm:$0xff]
    %v4597 = vld [vmem:[#allocation8 + $0x4a8] sm:$0xff]
    %v4598 = vld [vmem:[#allocation8 + $0x4b0] sm:$0xff]
    %v4599 = vld [vmem:[#allocation8 + $0x4b8] sm:$0xff]
    %v4600 = vld [vmem:[#allocation8 + $0x4c0] sm:$0xff]
    %v4601 = vld [vmem:[#allocation8 + $0x4c8] sm:$0xff]
    %v4602 = vld [vmem:[#allocation8 + $0x4d0] sm:$0xff]
    %v4603 = vld [vmem:[#allocation8 + $0x4d8] sm:$0xff]
    %v4604 = vld [vmem:[#allocation8 + $0x4e0] sm:$0xff]
    %v4605 = vld [vmem:[#allocation8 + $0x4e8] sm:$0xff]
    %v4606 = vld [vmem:[#allocation8 + $0x4f0] sm:$0xff]
    %v4607 = vld [vmem:[#allocation8 + $0x4f8] sm:$0xff]
    %v4608 = vld [vmem:[#allocation8 + $0x500] sm:$0xff]
    %v4609 = vld [vmem:[#allocation8 + $0x508] sm:$0xff]
    %v4610 = vld [vmem:[#allocation8 + $0x510] sm:$0xff]
    %v4611 = vld [vmem:[#allocation8 + $0x518] sm:$0xff]
    %v4612 = vld [vmem:[#allocation8 + $0x520] sm:$0xff]
    %v4613 = vld [vmem:[#allocation8 + $0x528] sm:$0xff]
    %v4614 = vld [vmem:[#allocation8 + $0x530] sm:$0xff]
    %v4615 = vld [vmem:[#allocation8 + $0x538] sm:$0xff]
    %v4616 = vld [vmem:[#allocation8 + $0x540] sm:$0xff]
    %v4617 = vld [vmem:[#allocation8 + $0x548] sm:$0xff]
    %v4618 = vld [vmem:[#allocation8 + $0x550] sm:$0xff]
    %v4619 = vld [vmem:[#allocation8 + $0x558] sm:$0xff]
    %v4620 = vld [vmem:[#allocation8 + $0x560] sm:$0xff]
    %v4621 = vld [vmem:[#allocation8 + $0x568] sm:$0xff]
    %v4622 = vld [vmem:[#allocation8 + $0x570] sm:$0xff]
    %v4623 = vld [vmem:[#allocation8 + $0x578] sm:$0xff]
    %v4624 = vld [vmem:[#allocation8 + $0x580] sm:$0xff]
    %v4625 = vld [vmem:[#allocation8 + $0x588] sm:$0xff]
    %v4626 = vld [vmem:[#allocation8 + $0x590] sm:$0xff]
    %v4627 = vld [vmem:[#allocation8 + $0x598] sm:$0xff]
    %v4628 = vld [vmem:[#allocation8 + $0x5a0] sm:$0xff]
    %v4629 = vld [vmem:[#allocation8 + $0x5a8] sm:$0xff]
    %v4630 = vld [vmem:[#allocation8 + $0x5b0] sm:$0xff]
    %v4631 = vld [vmem:[#allocation8 + $0x5b8] sm:$0xff]
    %v4632 = vld [vmem:[#allocation8 + $0x5c0] sm:$0xff]
    %v4633 = vld [vmem:[#allocation8 + $0x5c8] sm:$0xff]
    %v4634 = vld [vmem:[#allocation8 + $0x5d0] sm:$0xff]
    %v4635 = vld [vmem:[#allocation8 + $0x5d8] sm:$0xff]
    %v4636 = vld [vmem:[#allocation8 + $0x5e0] sm:$0xff]
    %v4637 = vld [vmem:[#allocation8 + $0x5e8] sm:$0xff]
    %v4638 = vld [vmem:[#allocation8 + $0x5f0] sm:$0xff]
    %v4639 = vld [vmem:[#allocation8 + $0x5f8] sm:$0xff]
    %v4640 = vld [vmem:[#allocation8 + $0x600] sm:$0xff]
    %v4641 = vld [vmem:[#allocation8 + $0x608] sm:$0xff]
    %v4642 = vld [vmem:[#allocation8 + $0x610] sm:$0xff]
    %v4643 = vld [vmem:[#allocation8 + $0x618] sm:$0xff]
    %v4644 = vld [vmem:[#allocation8 + $0x620] sm:$0xff]
    %v4645 = vld [vmem:[#allocation8 + $0x628] sm:$0xff]
    %v4646 = vld [vmem:[#allocation8 + $0x630] sm:$0xff]
    %v4647 = vld [vmem:[#allocation8 + $0x638] sm:$0xff]
    %v4648 = vld [vmem:[#allocation8 + $0x640] sm:$0xff]
    %v4649 = vld [vmem:[#allocation8 + $0x648] sm:$0xff]
    %v4650 = vld [vmem:[#allocation8 + $0x650] sm:$0xff]
    %v4651 = vld [vmem:[#allocation8 + $0x658] sm:$0xff]
    %v4652 = vld [vmem:[#allocation8 + $0x660] sm:$0xff]
    %v4653 = vld [vmem:[#allocation8 + $0x668] sm:$0xff]
    %v4654 = vld [vmem:[#allocation8 + $0x670] sm:$0xff]
    %v4655 = vld [vmem:[#allocation8 + $0x678] sm:$0xff]
    %v4656 = vld [vmem:[#allocation8 + $0x680] sm:$0xff]
    %v4657 = vld [vmem:[#allocation8 + $0x688] sm:$0xff]
    %v4658 = vld [vmem:[#allocation8 + $0x690] sm:$0xff]
    %v4659 = vld [vmem:[#allocation8 + $0x698] sm:$0xff]
    %v4660 = vld [vmem:[#allocation8 + $0x6a0] sm:$0xff]
    %v4661 = vld [vmem:[#allocation8 + $0x6a8] sm:$0xff]
    %v4662 = vld [vmem:[#allocation8 + $0x6b0] sm:$0xff]
    %v4663 = vld [vmem:[#allocation8 + $0x6b8] sm:$0xff]
    %v4664 = vld [vmem:[#allocation8 + $0x6c0] sm:$0xff]
    %v4665 = vld [vmem:[#allocation8 + $0x6c8] sm:$0xff]
    %v4666 = vld [vmem:[#allocation8 + $0x6d0] sm:$0xff]
    %v4667 = vld [vmem:[#allocation8 + $0x6d8] sm:$0xff]
    %v4668 = vld [vmem:[#allocation8 + $0x6e0] sm:$0xff]
    %v4669 = vld [vmem:[#allocation8 + $0x6e8] sm:$0xff]
    %v4670 = vld [vmem:[#allocation8 + $0x6f0] sm:$0xff]
    %v4671 = vld [vmem:[#allocation8 + $0x6f8] sm:$0xff]
    %v4672 = vld [vmem:[#allocation8 + $0x700] sm:$0xff]
    %v4673 = vld [vmem:[#allocation8 + $0x708] sm:$0xff]
    %v4674 = vld [vmem:[#allocation8 + $0x710] sm:$0xff]
    %v4675 = vld [vmem:[#allocation8 + $0x718] sm:$0xff]
    %v4676 = vld [vmem:[#allocation8 + $0x720] sm:$0xff]
    %v4677 = vld [vmem:[#allocation8 + $0x728] sm:$0xff]
    %v4678 = vld [vmem:[#allocation8 + $0x730] sm:$0xff]
    %v4679 = vld [vmem:[#allocation8 + $0x738] sm:$0xff]
    %v4680 = vld [vmem:[#allocation8 + $0x740] sm:$0xff]
    %v4681 = vld [vmem:[#allocation8 + $0x748] sm:$0xff]
    %v4682 = vld [vmem:[#allocation8 + $0x750] sm:$0xff]
    %v4683 = vld [vmem:[#allocation8 + $0x758] sm:$0xff]
    %v4684 = vld [vmem:[#allocation8 + $0x760] sm:$0xff]
    %v4685 = vld [vmem:[#allocation8 + $0x768] sm:$0xff]
    %v4686 = vld [vmem:[#allocation8 + $0x770] sm:$0xff]
    %v4687 = vld [vmem:[#allocation8 + $0x778] sm:$0xff]
    %v4688 = vld [vmem:[#allocation8 + $0x780] sm:$0xff]
    %v4689 = vld [vmem:[#allocation8 + $0x788] sm:$0xff]
    %v4690 = vld [vmem:[#allocation8 + $0x790] sm:$0xff]
    %v4691 = vld [vmem:[#allocation8 + $0x798] sm:$0xff]
    %v4692 = vld [vmem:[#allocation8 + $0x7a0] sm:$0xff]
    %v4693 = vld [vmem:[#allocation8 + $0x7a8] sm:$0xff]
    %v4694 = vld [vmem:[#allocation8 + $0x7b0] sm:$0xff]
    %v4695 = vld [vmem:[#allocation8 + $0x7b8] sm:$0xff]
    %v4696 = vld [vmem:[#allocation8 + $0x7c0] sm:$0xff]
    %v4697 = vld [vmem:[#allocation8 + $0x7c8] sm:$0xff]
    %v4698 = vld [vmem:[#allocation8 + $0x7d0] sm:$0xff]
    %v4699 = vld [vmem:[#allocation8 + $0x7d8] sm:$0xff]
    %v4700 = vld [vmem:[#allocation8 + $0x7e0] sm:$0xff]
    %v4701 = vld [vmem:[#allocation8 + $0x7e8] sm:$0xff]
    %v4702 = vld [vmem:[#allocation8 + $0x7f0] sm:$0xff]
    %v4703 = vld [vmem:[#allocation8 + $0x7f8] sm:$0xff]
    %v4704 = vld [vmem:[#allocation8 + $0x800] sm:$0xff]
    %v4705 = vld [vmem:[#allocation8 + $0x808] sm:$0xff]
    %v4706 = vld [vmem:[#allocation8 + $0x810] sm:$0xff]
    %v4707 = vld [vmem:[#allocation8 + $0x818] sm:$0xff]
    %v4708 = vld [vmem:[#allocation8 + $0x820] sm:$0xff]
    %v4709 = vld [vmem:[#allocation8 + $0x828] sm:$0xff]
    %v4710 = vld [vmem:[#allocation8 + $0x830] sm:$0xff]
    %v4711 = vld [vmem:[#allocation8 + $0x838] sm:$0xff]
    %v4712 = vld [vmem:[#allocation8 + $0x840] sm:$0xff]
    %v4713 = vld [vmem:[#allocation8 + $0x848] sm:$0xff]
    %v4714 = vld [vmem:[#allocation8 + $0x850] sm:$0xff]
    %v4715 = vld [vmem:[#allocation8 + $0x858] sm:$0xff]
    %v4716 = vld [vmem:[#allocation8 + $0x860] sm:$0xff]
    %v4717 = vld [vmem:[#allocation8 + $0x868] sm:$0xff]
    %v4718 = vld [vmem:[#allocation8 + $0x870] sm:$0xff]
    %v4719 = vld [vmem:[#allocation8 + $0x878] sm:$0xff]
    %v4720 = vld [vmem:[#allocation8 + $0x880] sm:$0xff]
    %v4721 = vld [vmem:[#allocation8 + $0x888] sm:$0xff]
    %v4722 = vld [vmem:[#allocation8 + $0x890] sm:$0xff]
    %v4723 = vld [vmem:[#allocation8 + $0x898] sm:$0xff]
    %v4724 = vld [vmem:[#allocation8 + $0x8a0] sm:$0xff]
    %v4725 = vld [vmem:[#allocation8 + $0x8a8] sm:$0xff]
    %v4726 = vld [vmem:[#allocation8 + $0x8b0] sm:$0xff]
    %v4727 = vld [vmem:[#allocation8 + $0x8b8] sm:$0xff]
    %v4728 = vld [vmem:[#allocation8 + $0x8c0] sm:$0xff]
    %v4729 = vld [vmem:[#allocation8 + $0x8c8] sm:$0xff]
    %v4730 = vld [vmem:[#allocation8 + $0x8d0] sm:$0xff]
    %v4731 = vld [vmem:[#allocation8 + $0x8d8] sm:$0xff]
    %v4732 = vld [vmem:[#allocation8 + $0x8e0] sm:$0xff]
    %v4733 = vld [vmem:[#allocation8 + $0x8e8] sm:$0xff]
    %v4734 = vld [vmem:[#allocation8 + $0x8f0] sm:$0xff]
    %v4735 = vld [vmem:[#allocation8 + $0x8f8] sm:$0xff]
    %v4736 = vld [vmem:[#allocation11] sm:$0xff]
    %v4737 = vld [vmem:[#allocation11 + $0x8] sm:$0xff]
    %v4738 = vld [vmem:[#allocation11 + $0x10] sm:$0xff]
    %v4739 = vld [vmem:[#allocation11 + $0x18] sm:$0xff]
    %v4740 = vld [vmem:[#allocation11 + $0x20] sm:$0xff]
    %v4741 = vld [vmem:[#allocation11 + $0x28] sm:$0xff]
    %v4742 = vld [vmem:[#allocation11 + $0x30] sm:$0xff]
    %v4743 = vld [vmem:[#allocation11 + $0x38] sm:$0xff]
    %v4744 = vld [vmem:[#allocation11 + $0x40] sm:$0xff]
    %v4745 = vld [vmem:[#allocation11 + $0x48] sm:$0xff]
    %v4746 = vld [vmem:[#allocation11 + $0x50] sm:$0xff]
    %v4747 = vld [vmem:[#allocation11 + $0x58] sm:$0xff]
    %v4748 = vld [vmem:[#allocation11 + $0x60] sm:$0xff]
    %v4749 = vld [vmem:[#allocation11 + $0x68] sm:$0xff]
    %v4750 = vld [vmem:[#allocation11 + $0x70] sm:$0xff]
    %v4751 = vld [vmem:[#allocation11 + $0x78] sm:$0xff]
    %v4752 = vld [vmem:[#allocation11 + $0x80] sm:$0xff]
    %v4753 = vld [vmem:[#allocation11 + $0x88] sm:$0xff]
    %v4754 = vld [vmem:[#allocation11 + $0x90] sm:$0xff]
    %v4755 = vld [vmem:[#allocation11 + $0x98] sm:$0xff]
    %v4756 = vld [vmem:[#allocation11 + $0xa0] sm:$0xff]
    %v4757 = vld [vmem:[#allocation11 + $0xa8] sm:$0xff]
    %v4758 = vld [vmem:[#allocation11 + $0xb0] sm:$0xff]
    %v4759 = vld [vmem:[#allocation11 + $0xb8] sm:$0xff]
    %v4760 = vld [vmem:[#allocation11 + $0xc0] sm:$0xff]
    %v4761 = vld [vmem:[#allocation11 + $0xc8] sm:$0xff]
    %v4762 = vld [vmem:[#allocation11 + $0xd0] sm:$0xff]
    %v4763 = vld [vmem:[#allocation11 + $0xd8] sm:$0xff]
    %v4764 = vld [vmem:[#allocation11 + $0xe0] sm:$0xff]
    %v4765 = vld [vmem:[#allocation11 + $0xe8] sm:$0xff]
    %v4766 = vld [vmem:[#allocation11 + $0xf0] sm:$0xff]
    %v4767 = vld [vmem:[#allocation11 + $0xf8] sm:$0xff]
    %v4768 = vld [vmem:[#allocation11 + $0x100] sm:$0xff]
    %v4769 = vld [vmem:[#allocation11 + $0x108] sm:$0xff]
    %v4770 = vld [vmem:[#allocation11 + $0x110] sm:$0xff]
    %v4771 = vld [vmem:[#allocation11 + $0x118] sm:$0xff]
    %v4772 = vld [vmem:[#allocation11 + $0x120] sm:$0xff]
    %v4773 = vld [vmem:[#allocation11 + $0x128] sm:$0xff]
    %v4774 = vld [vmem:[#allocation11 + $0x130] sm:$0xff]
    %v4775 = vld [vmem:[#allocation11 + $0x138] sm:$0xff]
    %v4776 = vld [vmem:[#allocation11 + $0x140] sm:$0xff]
    %v4777 = vld [vmem:[#allocation11 + $0x148] sm:$0xff]
    %v4778 = vld [vmem:[#allocation11 + $0x150] sm:$0xff]
    %v4779 = vld [vmem:[#allocation11 + $0x158] sm:$0xff]
    %v4780 = vld [vmem:[#allocation11 + $0x160] sm:$0xff]
    %v4781 = vld [vmem:[#allocation11 + $0x168] sm:$0xff]
    %v4782 = vld [vmem:[#allocation11 + $0x170] sm:$0xff]
    %v4783 = vld [vmem:[#allocation11 + $0x178] sm:$0xff]
    %v4784 = vld [vmem:[#allocation11 + $0x180] sm:$0xff]
    %v4785 = vld [vmem:[#allocation11 + $0x188] sm:$0xff]
    %v4786 = vld [vmem:[#allocation11 + $0x190] sm:$0xff]
    %v4787 = vld [vmem:[#allocation11 + $0x198] sm:$0xff]
    %v4788 = vld [vmem:[#allocation11 + $0x1a0] sm:$0xff]
    %v4789 = vld [vmem:[#allocation11 + $0x1a8] sm:$0xff]
    %v4790 = vld [vmem:[#allocation11 + $0x1b0] sm:$0xff]
    %v4791 = vld [vmem:[#allocation11 + $0x1b8] sm:$0xff]
    %v4792 = vld [vmem:[#allocation11 + $0x1c0] sm:$0xff]
    %v4793 = vld [vmem:[#allocation11 + $0x1c8] sm:$0xff]
    %v4794 = vld [vmem:[#allocation11 + $0x1d0] sm:$0xff]
    %v4795 = vld [vmem:[#allocation11 + $0x1d8] sm:$0xff]
    %v4796 = vld [vmem:[#allocation11 + $0x1e0] sm:$0xff]
    %v4797 = vld [vmem:[#allocation11 + $0x1e8] sm:$0xff]
    %v4798 = vld [vmem:[#allocation11 + $0x1f0] sm:$0xff]
    %v4799 = vld [vmem:[#allocation11 + $0x1f8] sm:$0xff]
    %v4800 = vld [vmem:[#allocation11 + $0x200] sm:$0xff]
    %v4801 = vld [vmem:[#allocation11 + $0x208] sm:$0xff]
    %v4802 = vld [vmem:[#allocation11 + $0x210] sm:$0xff]
    %v4803 = vld [vmem:[#allocation11 + $0x218] sm:$0xff]
    %v4804 = vld [vmem:[#allocation11 + $0x220] sm:$0xff]
    %v4805 = vld [vmem:[#allocation11 + $0x228] sm:$0xff]
    %v4806 = vld [vmem:[#allocation11 + $0x230] sm:$0xff]
    %v4807 = vld [vmem:[#allocation11 + $0x238] sm:$0xff]
    %v4808 = vld [vmem:[#allocation11 + $0x240] sm:$0xff]
    %v4809 = vld [vmem:[#allocation11 + $0x248] sm:$0xff]
    %v4810 = vld [vmem:[#allocation11 + $0x250] sm:$0xff]
    %v4811 = vld [vmem:[#allocation11 + $0x258] sm:$0xff]
    %v4812 = vld [vmem:[#allocation11 + $0x260] sm:$0xff]
    %v4813 = vld [vmem:[#allocation11 + $0x268] sm:$0xff]
    %v4814 = vld [vmem:[#allocation11 + $0x270] sm:$0xff]
    %v4815 = vld [vmem:[#allocation11 + $0x278] sm:$0xff]
    %v4816 = vld [vmem:[#allocation11 + $0x280] sm:$0xff]
    %v4817 = vld [vmem:[#allocation11 + $0x288] sm:$0xff]
    %v4818 = vld [vmem:[#allocation11 + $0x290] sm:$0xff]
    %v4819 = vld [vmem:[#allocation11 + $0x298] sm:$0xff]
    %v4820 = vld [vmem:[#allocation11 + $0x2a0] sm:$0xff]
    %v4821 = vld [vmem:[#allocation11 + $0x2a8] sm:$0xff]
    %v4822 = vld [vmem:[#allocation11 + $0x2b0] sm:$0xff]
    %v4823 = vld [vmem:[#allocation11 + $0x2b8] sm:$0xff]
    %v4824 = vld [vmem:[#allocation11 + $0x2c0] sm:$0xff]
    %v4825 = vld [vmem:[#allocation11 + $0x2c8] sm:$0xff]
    %v4826 = vld [vmem:[#allocation11 + $0x2d0] sm:$0xff]
    %v4827 = vld [vmem:[#allocation11 + $0x2d8] sm:$0xff]
    %v4828 = vld [vmem:[#allocation11 + $0x2e0] sm:$0xff]
    %v4829 = vld [vmem:[#allocation11 + $0x2e8] sm:$0xff]
    %v4830 = vld [vmem:[#allocation11 + $0x2f0] sm:$0xff]
    %v4831 = vld [vmem:[#allocation11 + $0x2f8] sm:$0xff]
    %v4832 = vld [vmem:[#allocation11 + $0x300] sm:$0xff]
    %v4833 = vld [vmem:[#allocation11 + $0x308] sm:$0xff]
    %v4834 = vld [vmem:[#allocation11 + $0x310] sm:$0xff]
    %v4835 = vld [vmem:[#allocation11 + $0x318] sm:$0xff]
    %v4836 = vld [vmem:[#allocation11 + $0x320] sm:$0xff]
    %v4837 = vld [vmem:[#allocation11 + $0x328] sm:$0xff]
    %v4838 = vld [vmem:[#allocation11 + $0x330] sm:$0xff]
    %v4839 = vld [vmem:[#allocation11 + $0x338] sm:$0xff]
    %v4840 = vld [vmem:[#allocation11 + $0x340] sm:$0xff]
    %v4841 = vld [vmem:[#allocation11 + $0x348] sm:$0xff]
    %v4842 = vld [vmem:[#allocation11 + $0x350] sm:$0xff]
    %v4843 = vld [vmem:[#allocation11 + $0x358] sm:$0xff]
    %v4844 = vld [vmem:[#allocation11 + $0x360] sm:$0xff]
    %v4845 = vld [vmem:[#allocation11 + $0x368] sm:$0xff]
    %v4846 = vld [vmem:[#allocation11 + $0x370] sm:$0xff]
    %v4847 = vld [vmem:[#allocation11 + $0x378] sm:$0xff]
    %v4848 = vld [vmem:[#allocation11 + $0x380] sm:$0xff]
    %v4849 = vld [vmem:[#allocation11 + $0x388] sm:$0xff]
    %v4850 = vld [vmem:[#allocation11 + $0x390] sm:$0xff]
    %v4851 = vld [vmem:[#allocation11 + $0x398] sm:$0xff]
    %v4852 = vld [vmem:[#allocation11 + $0x3a0] sm:$0xff]
    %v4853 = vld [vmem:[#allocation11 + $0x3a8] sm:$0xff]
    %v4854 = vld [vmem:[#allocation11 + $0x3b0] sm:$0xff]
    %v4855 = vld [vmem:[#allocation11 + $0x3b8] sm:$0xff]
    %v4856 = vld [vmem:[#allocation11 + $0x3c0] sm:$0xff]
    %v4857 = vld [vmem:[#allocation11 + $0x3c8] sm:$0xff]
    %v4858 = vld [vmem:[#allocation11 + $0x3d0] sm:$0xff]
    %v4859 = vld [vmem:[#allocation11 + $0x3d8] sm:$0xff]
    %v4860 = vld [vmem:[#allocation11 + $0x3e0] sm:$0xff]
    %v4861 = vld [vmem:[#allocation11 + $0x3e8] sm:$0xff]
    %v4862 = vld [vmem:[#allocation11 + $0x3f0] sm:$0xff]
    %v4863 = vld [vmem:[#allocation11 + $0x3f8] sm:$0xff]
    %v4864 = vld [vmem:[#allocation11 + $0x400] sm:$0xff]
    %v4865 = vld [vmem:[#allocation11 + $0x408] sm:$0xff]
    %v4866 = vld [vmem:[#allocation11 + $0x410] sm:$0xff]
    %v4867 = vld [vmem:[#allocation11 + $0x418] sm:$0xff]
    %v4868 = vld [vmem:[#allocation11 + $0x420] sm:$0xff]
    %v4869 = vld [vmem:[#allocation11 + $0x428] sm:$0xff]
    %v4870 = vld [vmem:[#allocation11 + $0x430] sm:$0xff]
    %v4871 = vld [vmem:[#allocation11 + $0x438] sm:$0xff]
    %v4872 = vld [vmem:[#allocation11 + $0x440] sm:$0xff]
    %v4873 = vld [vmem:[#allocation11 + $0x448] sm:$0xff]
    %v4874 = vld [vmem:[#allocation11 + $0x450] sm:$0xff]
    %v4875 = vld [vmem:[#allocation11 + $0x458] sm:$0xff]
    %v4876 = vld [vmem:[#allocation11 + $0x460] sm:$0xff]
    %v4877 = vld [vmem:[#allocation11 + $0x468] sm:$0xff]
    %v4878 = vld [vmem:[#allocation11 + $0x470] sm:$0xff]
    %v4879 = vld [vmem:[#allocation11 + $0x478] sm:$0xff]
    %v4880 = vld [vmem:[#allocation11 + $0x480] sm:$0xff]
    %v4881 = vld [vmem:[#allocation11 + $0x488] sm:$0xff]
    %v4882 = vld [vmem:[#allocation11 + $0x490] sm:$0xff]
    %v4883 = vld [vmem:[#allocation11 + $0x498] sm:$0xff]
    %v4884 = vld [vmem:[#allocation11 + $0x4a0] sm:$0xff]
    %v4885 = vld [vmem:[#allocation11 + $0x4a8] sm:$0xff]
    %v4886 = vld [vmem:[#allocation11 + $0x4b0] sm:$0xff]
    %v4887 = vld [vmem:[#allocation11 + $0x4b8] sm:$0xff]
    %v4888 = vld [vmem:[#allocation11 + $0x4c0] sm:$0xff]
    %v4889 = vld [vmem:[#allocation11 + $0x4c8] sm:$0xff]
    %v4890 = vld [vmem:[#allocation11 + $0x4d0] sm:$0xff]
    %v4891 = vld [vmem:[#allocation11 + $0x4d8] sm:$0xff]
    %v4892 = vld [vmem:[#allocation11 + $0x4e0] sm:$0xff]
    %v4893 = vld [vmem:[#allocation11 + $0x4e8] sm:$0xff]
    %v4894 = vld [vmem:[#allocation11 + $0x4f0] sm:$0xff]
    %v4895 = vld [vmem:[#allocation11 + $0x4f8] sm:$0xff]
    %v4896 = vld [vmem:[#allocation11 + $0x500] sm:$0xff]
    %v4897 = vld [vmem:[#allocation11 + $0x508] sm:$0xff]
    %v4898 = vld [vmem:[#allocation11 + $0x510] sm:$0xff]
    %v4899 = vld [vmem:[#allocation11 + $0x518] sm:$0xff]
    %v4900 = vld [vmem:[#allocation11 + $0x520] sm:$0xff]
    %v4901 = vld [vmem:[#allocation11 + $0x528] sm:$0xff]
    %v4902 = vld [vmem:[#allocation11 + $0x530] sm:$0xff]
    %v4903 = vld [vmem:[#allocation11 + $0x538] sm:$0xff]
    %v4904 = vld [vmem:[#allocation11 + $0x540] sm:$0xff]
    %v4905 = vld [vmem:[#allocation11 + $0x548] sm:$0xff]
    %v4906 = vld [vmem:[#allocation11 + $0x550] sm:$0xff]
    %v4907 = vld [vmem:[#allocation11 + $0x558] sm:$0xff]
    %v4908 = vld [vmem:[#allocation11 + $0x560] sm:$0xff]
    %v4909 = vld [vmem:[#allocation11 + $0x568] sm:$0xff]
    %v4910 = vld [vmem:[#allocation11 + $0x570] sm:$0xff]
    %v4911 = vld [vmem:[#allocation11 + $0x578] sm:$0xff]
    %v4912 = vld [vmem:[#allocation11 + $0x580] sm:$0xff]
    %v4913 = vld [vmem:[#allocation11 + $0x588] sm:$0xff]
    %v4914 = vld [vmem:[#allocation11 + $0x590] sm:$0xff]
    %v4915 = vld [vmem:[#allocation11 + $0x598] sm:$0xff]
    %v4916 = vld [vmem:[#allocation11 + $0x5a0] sm:$0xff]
    %v4917 = vld [vmem:[#allocation11 + $0x5a8] sm:$0xff]
    %v4918 = vld [vmem:[#allocation11 + $0x5b0] sm:$0xff]
    %v4919 = vld [vmem:[#allocation11 + $0x5b8] sm:$0xff]
    %v4920 = vld [vmem:[#allocation11 + $0x5c0] sm:$0xff]
    %v4921 = vld [vmem:[#allocation11 + $0x5c8] sm:$0xff]
    %v4922 = vld [vmem:[#allocation11 + $0x5d0] sm:$0xff]
    %v4923 = vld [vmem:[#allocation11 + $0x5d8] sm:$0xff]
    %v4924 = vld [vmem:[#allocation11 + $0x5e0] sm:$0xff]
    %v4925 = vld [vmem:[#allocation11 + $0x5e8] sm:$0xff]
    %v4926 = vld [vmem:[#allocation11 + $0x5f0] sm:$0xff]
    %v4927 = vld [vmem:[#allocation11 + $0x5f8] sm:$0xff]
    %v4928 = vld [vmem:[#allocation11 + $0x600] sm:$0xff]
    %v4929 = vld [vmem:[#allocation11 + $0x608] sm:$0xff]
    %v4930 = vld [vmem:[#allocation11 + $0x610] sm:$0xff]
    %v4931 = vld [vmem:[#allocation11 + $0x618] sm:$0xff]
    %v4932 = vld [vmem:[#allocation11 + $0x620] sm:$0xff]
    %v4933 = vld [vmem:[#allocation11 + $0x628] sm:$0xff]
    %v4934 = vld [vmem:[#allocation11 + $0x630] sm:$0xff]
    %v4935 = vld [vmem:[#allocation11 + $0x638] sm:$0xff]
    %v4936 = vld [vmem:[#allocation11 + $0x640] sm:$0xff]
    %v4937 = vld [vmem:[#allocation11 + $0x648] sm:$0xff]
    %v4938 = vld [vmem:[#allocation11 + $0x650] sm:$0xff]
    %v4939 = vld [vmem:[#allocation11 + $0x658] sm:$0xff]
    %v4940 = vld [vmem:[#allocation11 + $0x660] sm:$0xff]
    %v4941 = vld [vmem:[#allocation11 + $0x668] sm:$0xff]
    %v4942 = vld [vmem:[#allocation11 + $0x670] sm:$0xff]
    %v4943 = vld [vmem:[#allocation11 + $0x678] sm:$0xff]
    %v4944 = vld [vmem:[#allocation11 + $0x680] sm:$0xff]
    %v4945 = vld [vmem:[#allocation11 + $0x688] sm:$0xff]
    %v4946 = vld [vmem:[#allocation11 + $0x690] sm:$0xff]
    %v4947 = vld [vmem:[#allocation11 + $0x698] sm:$0xff]
    %v4948 = vld [vmem:[#allocation11 + $0x6a0] sm:$0xff]
    %v4949 = vld [vmem:[#allocation11 + $0x6a8] sm:$0xff]
    %v4950 = vld [vmem:[#allocation11 + $0x6b0] sm:$0xff]
    %v4951 = vld [vmem:[#allocation11 + $0x6b8] sm:$0xff]
    %v4952 = vld [vmem:[#allocation11 + $0x6c0] sm:$0xff]
    %v4953 = vld [vmem:[#allocation11 + $0x6c8] sm:$0xff]
    %v4954 = vld [vmem:[#allocation11 + $0x6d0] sm:$0xff]
    %v4955 = vld [vmem:[#allocation11 + $0x6d8] sm:$0xff]
    %v4956 = vld [vmem:[#allocation11 + $0x6e0] sm:$0xff]
    %v4957 = vld [vmem:[#allocation11 + $0x6e8] sm:$0xff]
    %v4958 = vld [vmem:[#allocation11 + $0x6f0] sm:$0xff]
    %v4959 = vld [vmem:[#allocation11 + $0x6f8] sm:$0xff]
    %v4960 = vld [vmem:[#allocation11 + $0x700] sm:$0xff]
    %v4961 = vld [vmem:[#allocation11 + $0x708] sm:$0xff]
    %v4962 = vld [vmem:[#allocation11 + $0x710] sm:$0xff]
    %v4963 = vld [vmem:[#allocation11 + $0x718] sm:$0xff]
    %v4964 = vld [vmem:[#allocation11 + $0x720] sm:$0xff]
    %v4965 = vld [vmem:[#allocation11 + $0x728] sm:$0xff]
    %v4966 = vld [vmem:[#allocation11 + $0x730] sm:$0xff]
    %v4967 = vld [vmem:[#allocation11 + $0x738] sm:$0xff]
    %v4968 = vld [vmem:[#allocation11 + $0x740] sm:$0xff]
    %v4969 = vld [vmem:[#allocation11 + $0x748] sm:$0xff]
    %v4970 = vld [vmem:[#allocation11 + $0x750] sm:$0xff]
    %v4971 = vld [vmem:[#allocation11 + $0x758] sm:$0xff]
    %v4972 = vld [vmem:[#allocation11 + $0x760] sm:$0xff]
    %v4973 = vld [vmem:[#allocation11 + $0x768] sm:$0xff]
    %v4974 = vld [vmem:[#allocation11 + $0x770] sm:$0xff]
    %v4975 = vld [vmem:[#allocation11 + $0x778] sm:$0xff]
    %v4976 = vld [vmem:[#allocation11 + $0x780] sm:$0xff]
    %v4977 = vld [vmem:[#allocation11 + $0x788] sm:$0xff]
    %v4978 = vld [vmem:[#allocation11 + $0x790] sm:$0xff]
    %v4979 = vld [vmem:[#allocation11 + $0x798] sm:$0xff]
    %v4980 = vld [vmem:[#allocation11 + $0x7a0] sm:$0xff]
    %v4981 = vld [vmem:[#allocation11 + $0x7a8] sm:$0xff]
    %v4982 = vld [vmem:[#allocation11 + $0x7b0] sm:$0xff]
    %v4983 = vld [vmem:[#allocation11 + $0x7b8] sm:$0xff]
    %v4984 = vld [vmem:[#allocation11 + $0x7c0] sm:$0xff]
    %v4985 = vld [vmem:[#allocation11 + $0x7c8] sm:$0xff]
    %v4986 = vld [vmem:[#allocation11 + $0x7d0] sm:$0xff]
    %v4987 = vld [vmem:[#allocation11 + $0x7d8] sm:$0xff]
    %v4988 = vld [vmem:[#allocation11 + $0x7e0] sm:$0xff]
    %v4989 = vld [vmem:[#allocation11 + $0x7e8] sm:$0xff]
    %v4990 = vld [vmem:[#allocation11 + $0x7f0] sm:$0xff]
    %v4991 = vld [vmem:[#allocation11 + $0x7f8] sm:$0xff]
    %v4992 = vld [vmem:[#allocation11 + $0x800] sm:$0xff]
    %v4993 = vld [vmem:[#allocation11 + $0x808] sm:$0xff]
    %v4994 = vld [vmem:[#allocation11 + $0x810] sm:$0xff]
    %v4995 = vld [vmem:[#allocation11 + $0x818] sm:$0xff]
    %v4996 = vld [vmem:[#allocation11 + $0x820] sm:$0xff]
    %v4997 = vld [vmem:[#allocation11 + $0x828] sm:$0xff]
    %v4998 = vld [vmem:[#allocation11 + $0x830] sm:$0xff]
    %v4999 = vld [vmem:[#allocation11 + $0x838] sm:$0xff]
    %v5000 = vld [vmem:[#allocation11 + $0x840] sm:$0xff]
    %v5001 = vld [vmem:[#allocation11 + $0x848] sm:$0xff]
    %v5002 = vld [vmem:[#allocation11 + $0x850] sm:$0xff]
    %v5003 = vld [vmem:[#allocation11 + $0x858] sm:$0xff]
    %v5004 = vld [vmem:[#allocation11 + $0x860] sm:$0xff]
    %v5005 = vld [vmem:[#allocation11 + $0x868] sm:$0xff]
    %v5006 = vld [vmem:[#allocation11 + $0x870] sm:$0xff]
    %v5007 = vld [vmem:[#allocation11 + $0x878] sm:$0xff]
    %v5008 = vld [vmem:[#allocation11 + $0x880] sm:$0xff]
    %v5009 = vld [vmem:[#allocation11 + $0x888] sm:$0xff]
    %v5010 = vld [vmem:[#allocation11 + $0x890] sm:$0xff]
    %v5011 = vld [vmem:[#allocation11 + $0x898] sm:$0xff]
    %v5012 = vld [vmem:[#allocation11 + $0x8a0] sm:$0xff]
    %v5013 = vld [vmem:[#allocation11 + $0x8a8] sm:$0xff]
    %v5014 = vld [vmem:[#allocation11 + $0x8b0] sm:$0xff]
    %v5015 = vld [vmem:[#allocation11 + $0x8b8] sm:$0xff]
    %v5016 = vld [vmem:[#allocation11 + $0x8c0] sm:$0xff]
    %v5017 = vld [vmem:[#allocation11 + $0x8c8] sm:$0xff]
    %v5018 = vld [vmem:[#allocation11 + $0x8d0] sm:$0xff]
    %v5019 = vld [vmem:[#allocation11 + $0x8d8] sm:$0xff]
    %v5020 = vld [vmem:[#allocation11 + $0x8e0] sm:$0xff]
    %v5021 = vld [vmem:[#allocation11 + $0x8e8] sm:$0xff]
    %v5022 = vld [vmem:[#allocation11 + $0x8f0] sm:$0xff]
    %v5023 = vld [vmem:[#allocation11 + $0x8f8] sm:$0xff]
    %v5312 = vunpack.c.l.b16 %v4736
    %v5313 = vunpack.c.h.b16 %v4736
    %v5314 = vunpack.c.l.b16 %v4737
    %v5315 = vunpack.c.h.b16 %v4737
    %v5316 = vunpack.c.l.b16 %v4738
    %v5317 = vunpack.c.h.b16 %v4738
    %v5318 = vunpack.c.l.b16 %v4739
    %v5319 = vunpack.c.h.b16 %v4739
    %v5320 = vunpack.c.l.b16 %v4740
    %v5321 = vunpack.c.h.b16 %v4740
    %v5322 = vunpack.c.l.b16 %v4741
    %v5323 = vunpack.c.h.b16 %v4741
    %v5324 = vunpack.c.l.b16 %v4742
    %v5325 = vunpack.c.h.b16 %v4742
    %v5326 = vunpack.c.l.b16 %v4743
    %v5327 = vunpack.c.h.b16 %v4743
    %v5328 = vunpack.c.l.b16 %v4744
    %v5329 = vunpack.c.h.b16 %v4744
    %v5330 = vunpack.c.l.b16 %v4745
    %v5331 = vunpack.c.h.b16 %v4745
    %v5332 = vunpack.c.l.b16 %v4746
    %v5333 = vunpack.c.h.b16 %v4746
    %v5334 = vunpack.c.l.b16 %v4747
    %v5335 = vunpack.c.h.b16 %v4747
    %v5336 = vunpack.c.l.b16 %v4748
    %v5337 = vunpack.c.h.b16 %v4748
    %v5338 = vunpack.c.l.b16 %v4749
    %v5339 = vunpack.c.h.b16 %v4749
    %v5340 = vunpack.c.l.b16 %v4750
    %v5341 = vunpack.c.h.b16 %v4750
    %v5342 = vunpack.c.l.b16 %v4751
    %v5343 = vunpack.c.h.b16 %v4751
    %v5344 = vunpack.c.l.b16 %v4752
    %v5345 = vunpack.c.h.b16 %v4752
    %v5346 = vunpack.c.l.b16 %v4753
    %v5347 = vunpack.c.h.b16 %v4753
    %v5348 = vunpack.c.l.b16 %v4754
    %v5349 = vunpack.c.h.b16 %v4754
    %v5350 = vunpack.c.l.b16 %v4755
    %v5351 = vunpack.c.h.b16 %v4755
    %v5352 = vunpack.c.l.b16 %v4756
    %v5353 = vunpack.c.h.b16 %v4756
    %v5354 = vunpack.c.l.b16 %v4757
    %v5355 = vunpack.c.h.b16 %v4757
    %v5356 = vunpack.c.l.b16 %v4758
    %v5357 = vunpack.c.h.b16 %v4758
    %v5358 = vunpack.c.l.b16 %v4759
    %v5359 = vunpack.c.h.b16 %v4759
    %v5360 = vunpack.c.l.b16 %v4760
    %v5361 = vunpack.c.h.b16 %v4760
    %v5362 = vunpack.c.l.b16 %v4761
    %v5363 = vunpack.c.h.b16 %v4761
    %v5364 = vunpack.c.l.b16 %v4762
    %v5365 = vunpack.c.h.b16 %v4762
    %v5366 = vunpack.c.l.b16 %v4763
    %v5367 = vunpack.c.h.b16 %v4763
    %v5368 = vunpack.c.l.b16 %v4764
    %v5369 = vunpack.c.h.b16 %v4764
    %v5370 = vunpack.c.l.b16 %v4765
    %v5371 = vunpack.c.h.b16 %v4765
    %v5372 = vunpack.c.l.b16 %v4766
    %v5373 = vunpack.c.h.b16 %v4766
    %v5374 = vunpack.c.l.b16 %v4767
    %v5375 = vunpack.c.h.b16 %v4767
    %v5376 = vunpack.c.l.b16 %v4768
    %v5377 = vunpack.c.h.b16 %v4768
    %v5378 = vunpack.c.l.b16 %v4769
    %v5379 = vunpack.c.h.b16 %v4769
    %v5380 = vunpack.c.l.b16 %v4770
    %v5381 = vunpack.c.h.b16 %v4770
    %v5382 = vunpack.c.l.b16 %v4771
    %v5383 = vunpack.c.h.b16 %v4771
    %v5384 = vunpack.c.l.b16 %v4772
    %v5385 = vunpack.c.h.b16 %v4772
    %v5386 = vunpack.c.l.b16 %v4773
    %v5387 = vunpack.c.h.b16 %v4773
    %v5388 = vunpack.c.l.b16 %v4774
    %v5389 = vunpack.c.h.b16 %v4774
    %v5390 = vunpack.c.l.b16 %v4775
    %v5391 = vunpack.c.h.b16 %v4775
    %v5392 = vunpack.c.l.b16 %v4776
    %v5393 = vunpack.c.h.b16 %v4776
    %v5394 = vunpack.c.l.b16 %v4777
    %v5395 = vunpack.c.h.b16 %v4777
    %v5396 = vunpack.c.l.b16 %v4778
    %v5397 = vunpack.c.h.b16 %v4778
    %v5398 = vunpack.c.l.b16 %v4779
    %v5399 = vunpack.c.h.b16 %v4779
    %v5400 = vunpack.c.l.b16 %v4780
    %v5401 = vunpack.c.h.b16 %v4780
    %v5402 = vunpack.c.l.b16 %v4781
    %v5403 = vunpack.c.h.b16 %v4781
    %v5404 = vunpack.c.l.b16 %v4782
    %v5405 = vunpack.c.h.b16 %v4782
    %v5406 = vunpack.c.l.b16 %v4783
    %v5407 = vunpack.c.h.b16 %v4783
    %v5408 = vunpack.c.l.b16 %v4784
    %v5409 = vunpack.c.h.b16 %v4784
    %v5410 = vunpack.c.l.b16 %v4785
    %v5411 = vunpack.c.h.b16 %v4785
    %v5412 = vunpack.c.l.b16 %v4786
    %v5413 = vunpack.c.h.b16 %v4786
    %v5414 = vunpack.c.l.b16 %v4787
    %v5415 = vunpack.c.h.b16 %v4787
    %v5416 = vunpack.c.l.b16 %v4788
    %v5417 = vunpack.c.h.b16 %v4788
    %v5418 = vunpack.c.l.b16 %v4789
    %v5419 = vunpack.c.h.b16 %v4789
    %v5420 = vunpack.c.l.b16 %v4790
    %v5421 = vunpack.c.h.b16 %v4790
    %v5422 = vunpack.c.l.b16 %v4791
    %v5423 = vunpack.c.h.b16 %v4791
    %v5424 = vunpack.c.l.b16 %v4792
    %v5425 = vunpack.c.h.b16 %v4792
    %v5426 = vunpack.c.l.b16 %v4793
    %v5427 = vunpack.c.h.b16 %v4793
    %v5428 = vunpack.c.l.b16 %v4794
    %v5429 = vunpack.c.h.b16 %v4794
    %v5430 = vunpack.c.l.b16 %v4795
    %v5431 = vunpack.c.h.b16 %v4795
    %v5432 = vunpack.c.l.b16 %v4796
    %v5433 = vunpack.c.h.b16 %v4796
    %v5434 = vunpack.c.l.b16 %v4797
    %v5435 = vunpack.c.h.b16 %v4797
    %v5436 = vunpack.c.l.b16 %v4798
    %v5437 = vunpack.c.h.b16 %v4798
    %v5438 = vunpack.c.l.b16 %v4799
    %v5439 = vunpack.c.h.b16 %v4799
    %v5440 = vunpack.c.l.b16 %v4800
    %v5441 = vunpack.c.h.b16 %v4800
    %v5442 = vunpack.c.l.b16 %v4801
    %v5443 = vunpack.c.h.b16 %v4801
    %v5444 = vunpack.c.l.b16 %v4802
    %v5445 = vunpack.c.h.b16 %v4802
    %v5446 = vunpack.c.l.b16 %v4803
    %v5447 = vunpack.c.h.b16 %v4803
    %v5448 = vunpack.c.l.b16 %v4804
    %v5449 = vunpack.c.h.b16 %v4804
    %v5450 = vunpack.c.l.b16 %v4805
    %v5451 = vunpack.c.h.b16 %v4805
    %v5452 = vunpack.c.l.b16 %v4806
    %v5453 = vunpack.c.h.b16 %v4806
    %v5454 = vunpack.c.l.b16 %v4807
    %v5455 = vunpack.c.h.b16 %v4807
    %v5456 = vunpack.c.l.b16 %v4808
    %v5457 = vunpack.c.h.b16 %v4808
    %v5458 = vunpack.c.l.b16 %v4809
    %v5459 = vunpack.c.h.b16 %v4809
    %v5460 = vunpack.c.l.b16 %v4810
    %v5461 = vunpack.c.h.b16 %v4810
    %v5462 = vunpack.c.l.b16 %v4811
    %v5463 = vunpack.c.h.b16 %v4811
    %v5464 = vunpack.c.l.b16 %v4812
    %v5465 = vunpack.c.h.b16 %v4812
    %v5466 = vunpack.c.l.b16 %v4813
    %v5467 = vunpack.c.h.b16 %v4813
    %v5468 = vunpack.c.l.b16 %v4814
    %v5469 = vunpack.c.h.b16 %v4814
    %v5470 = vunpack.c.l.b16 %v4815
    %v5471 = vunpack.c.h.b16 %v4815
    %v5472 = vunpack.c.l.b16 %v4816
    %v5473 = vunpack.c.h.b16 %v4816
    %v5474 = vunpack.c.l.b16 %v4817
    %v5475 = vunpack.c.h.b16 %v4817
    %v5476 = vunpack.c.l.b16 %v4818
    %v5477 = vunpack.c.h.b16 %v4818
    %v5478 = vunpack.c.l.b16 %v4819
    %v5479 = vunpack.c.h.b16 %v4819
    %v5480 = vunpack.c.l.b16 %v4820
    %v5481 = vunpack.c.h.b16 %v4820
    %v5482 = vunpack.c.l.b16 %v4821
    %v5483 = vunpack.c.h.b16 %v4821
    %v5484 = vunpack.c.l.b16 %v4822
    %v5485 = vunpack.c.h.b16 %v4822
    %v5486 = vunpack.c.l.b16 %v4823
    %v5487 = vunpack.c.h.b16 %v4823
    %v5488 = vunpack.c.l.b16 %v4824
    %v5489 = vunpack.c.h.b16 %v4824
    %v5490 = vunpack.c.l.b16 %v4825
    %v5491 = vunpack.c.h.b16 %v4825
    %v5492 = vunpack.c.l.b16 %v4826
    %v5493 = vunpack.c.h.b16 %v4826
    %v5494 = vunpack.c.l.b16 %v4827
    %v5495 = vunpack.c.h.b16 %v4827
    %v5496 = vunpack.c.l.b16 %v4828
    %v5497 = vunpack.c.h.b16 %v4828
    %v5498 = vunpack.c.l.b16 %v4829
    %v5499 = vunpack.c.h.b16 %v4829
    %v5500 = vunpack.c.l.b16 %v4830
    %v5501 = vunpack.c.h.b16 %v4830
    %v5502 = vunpack.c.l.b16 %v4831
    %v5503 = vunpack.c.h.b16 %v4831
    %v5504 = vunpack.c.l.b16 %v4832
    %v5505 = vunpack.c.h.b16 %v4832
    %v5506 = vunpack.c.l.b16 %v4833
    %v5507 = vunpack.c.h.b16 %v4833
    %v5508 = vunpack.c.l.b16 %v4834
    %v5509 = vunpack.c.h.b16 %v4834
    %v5510 = vunpack.c.l.b16 %v4835
    %v5511 = vunpack.c.h.b16 %v4835
    %v5512 = vunpack.c.l.b16 %v4836
    %v5513 = vunpack.c.h.b16 %v4836
    %v5514 = vunpack.c.l.b16 %v4837
    %v5515 = vunpack.c.h.b16 %v4837
    %v5516 = vunpack.c.l.b16 %v4838
    %v5517 = vunpack.c.h.b16 %v4838
    %v5518 = vunpack.c.l.b16 %v4839
    %v5519 = vunpack.c.h.b16 %v4839
    %v5520 = vunpack.c.l.b16 %v4840
    %v5521 = vunpack.c.h.b16 %v4840
    %v5522 = vunpack.c.l.b16 %v4841
    %v5523 = vunpack.c.h.b16 %v4841
    %v5524 = vunpack.c.l.b16 %v4842
    %v5525 = vunpack.c.h.b16 %v4842
    %v5526 = vunpack.c.l.b16 %v4843
    %v5527 = vunpack.c.h.b16 %v4843
    %v5528 = vunpack.c.l.b16 %v4844
    %v5529 = vunpack.c.h.b16 %v4844
    %v5530 = vunpack.c.l.b16 %v4845
    %v5531 = vunpack.c.h.b16 %v4845
    %v5532 = vunpack.c.l.b16 %v4846
    %v5533 = vunpack.c.h.b16 %v4846
    %v5534 = vunpack.c.l.b16 %v4847
    %v5535 = vunpack.c.h.b16 %v4847
    %v5536 = vunpack.c.l.b16 %v4848
    %v5537 = vunpack.c.h.b16 %v4848
    %v5538 = vunpack.c.l.b16 %v4849
    %v5539 = vunpack.c.h.b16 %v4849
    %v5540 = vunpack.c.l.b16 %v4850
    %v5541 = vunpack.c.h.b16 %v4850
    %v5542 = vunpack.c.l.b16 %v4851
    %v5543 = vunpack.c.h.b16 %v4851
    %v5544 = vunpack.c.l.b16 %v4852
    %v5545 = vunpack.c.h.b16 %v4852
    %v5546 = vunpack.c.l.b16 %v4853
    %v5547 = vunpack.c.h.b16 %v4853
    %v5548 = vunpack.c.l.b16 %v4854
    %v5549 = vunpack.c.h.b16 %v4854
    %v5550 = vunpack.c.l.b16 %v4855
    %v5551 = vunpack.c.h.b16 %v4855
    %v5552 = vunpack.c.l.b16 %v4856
    %v5553 = vunpack.c.h.b16 %v4856
    %v5554 = vunpack.c.l.b16 %v4857
    %v5555 = vunpack.c.h.b16 %v4857
    %v5556 = vunpack.c.l.b16 %v4858
    %v5557 = vunpack.c.h.b16 %v4858
    %v5558 = vunpack.c.l.b16 %v4859
    %v5559 = vunpack.c.h.b16 %v4859
    %v5560 = vunpack.c.l.b16 %v4860
    %v5561 = vunpack.c.h.b16 %v4860
    %v5562 = vunpack.c.l.b16 %v4861
    %v5563 = vunpack.c.h.b16 %v4861
    %v5564 = vunpack.c.l.b16 %v4862
    %v5565 = vunpack.c.h.b16 %v4862
    %v5566 = vunpack.c.l.b16 %v4863
    %v5567 = vunpack.c.h.b16 %v4863
    %v5568 = vunpack.c.l.b16 %v4864
    %v5569 = vunpack.c.h.b16 %v4864
    %v5570 = vunpack.c.l.b16 %v4865
    %v5571 = vunpack.c.h.b16 %v4865
    %v5572 = vunpack.c.l.b16 %v4866
    %v5573 = vunpack.c.h.b16 %v4866
    %v5574 = vunpack.c.l.b16 %v4867
    %v5575 = vunpack.c.h.b16 %v4867
    %v5576 = vunpack.c.l.b16 %v4868
    %v5577 = vunpack.c.h.b16 %v4868
    %v5578 = vunpack.c.l.b16 %v4869
    %v5579 = vunpack.c.h.b16 %v4869
    %v5580 = vunpack.c.l.b16 %v4870
    %v5581 = vunpack.c.h.b16 %v4870
    %v5582 = vunpack.c.l.b16 %v4871
    %v5583 = vunpack.c.h.b16 %v4871
    %v5584 = vunpack.c.l.b16 %v4872
    %v5585 = vunpack.c.h.b16 %v4872
    %v5586 = vunpack.c.l.b16 %v4873
    %v5587 = vunpack.c.h.b16 %v4873
    %v5588 = vunpack.c.l.b16 %v4874
    %v5589 = vunpack.c.h.b16 %v4874
    %v5590 = vunpack.c.l.b16 %v4875
    %v5591 = vunpack.c.h.b16 %v4875
    %v5592 = vunpack.c.l.b16 %v4876
    %v5593 = vunpack.c.h.b16 %v4876
    %v5594 = vunpack.c.l.b16 %v4877
    %v5595 = vunpack.c.h.b16 %v4877
    %v5596 = vunpack.c.l.b16 %v4878
    %v5597 = vunpack.c.h.b16 %v4878
    %v5598 = vunpack.c.l.b16 %v4879
    %v5599 = vunpack.c.h.b16 %v4879
    %v5600 = vunpack.c.l.b16 %v4880
    %v5601 = vunpack.c.h.b16 %v4880
    %v5602 = vunpack.c.l.b16 %v4881
    %v5603 = vunpack.c.h.b16 %v4881
    %v5604 = vunpack.c.l.b16 %v4882
    %v5605 = vunpack.c.h.b16 %v4882
    %v5606 = vunpack.c.l.b16 %v4883
    %v5607 = vunpack.c.h.b16 %v4883
    %v5608 = vunpack.c.l.b16 %v4884
    %v5609 = vunpack.c.h.b16 %v4884
    %v5610 = vunpack.c.l.b16 %v4885
    %v5611 = vunpack.c.h.b16 %v4885
    %v5612 = vunpack.c.l.b16 %v4886
    %v5613 = vunpack.c.h.b16 %v4886
    %v5614 = vunpack.c.l.b16 %v4887
    %v5615 = vunpack.c.h.b16 %v4887
    %v5616 = vunpack.c.l.b16 %v4888
    %v5617 = vunpack.c.h.b16 %v4888
    %v5618 = vunpack.c.l.b16 %v4889
    %v5619 = vunpack.c.h.b16 %v4889
    %v5620 = vunpack.c.l.b16 %v4890
    %v5621 = vunpack.c.h.b16 %v4890
    %v5622 = vunpack.c.l.b16 %v4891
    %v5623 = vunpack.c.h.b16 %v4891
    %v5624 = vunpack.c.l.b16 %v4892
    %v5625 = vunpack.c.h.b16 %v4892
    %v5626 = vunpack.c.l.b16 %v4893
    %v5627 = vunpack.c.h.b16 %v4893
    %v5628 = vunpack.c.l.b16 %v4894
    %v5629 = vunpack.c.h.b16 %v4894
    %v5630 = vunpack.c.l.b16 %v4895
    %v5631 = vunpack.c.h.b16 %v4895
    %v5632 = vunpack.c.l.b16 %v4896
    %v5633 = vunpack.c.h.b16 %v4896
    %v5634 = vunpack.c.l.b16 %v4897
    %v5635 = vunpack.c.h.b16 %v4897
    %v5636 = vunpack.c.l.b16 %v4898
    %v5637 = vunpack.c.h.b16 %v4898
    %v5638 = vunpack.c.l.b16 %v4899
    %v5639 = vunpack.c.h.b16 %v4899
    %v5640 = vunpack.c.l.b16 %v4900
    %v5641 = vunpack.c.h.b16 %v4900
    %v5642 = vunpack.c.l.b16 %v4901
    %v5643 = vunpack.c.h.b16 %v4901
    %v5644 = vunpack.c.l.b16 %v4902
    %v5645 = vunpack.c.h.b16 %v4902
    %v5646 = vunpack.c.l.b16 %v4903
    %v5647 = vunpack.c.h.b16 %v4903
    %v5648 = vunpack.c.l.b16 %v4904
    %v5649 = vunpack.c.h.b16 %v4904
    %v5650 = vunpack.c.l.b16 %v4905
    %v5651 = vunpack.c.h.b16 %v4905
    %v5652 = vunpack.c.l.b16 %v4906
    %v5653 = vunpack.c.h.b16 %v4906
    %v5654 = vunpack.c.l.b16 %v4907
    %v5655 = vunpack.c.h.b16 %v4907
    %v5656 = vunpack.c.l.b16 %v4908
    %v5657 = vunpack.c.h.b16 %v4908
    %v5658 = vunpack.c.l.b16 %v4909
    %v5659 = vunpack.c.h.b16 %v4909
    %v5660 = vunpack.c.l.b16 %v4910
    %v5661 = vunpack.c.h.b16 %v4910
    %v5662 = vunpack.c.l.b16 %v4911
    %v5663 = vunpack.c.h.b16 %v4911
    %v5664 = vunpack.c.l.b16 %v4912
    %v5665 = vunpack.c.h.b16 %v4912
    %v5666 = vunpack.c.l.b16 %v4913
    %v5667 = vunpack.c.h.b16 %v4913
    %v5668 = vunpack.c.l.b16 %v4914
    %v5669 = vunpack.c.h.b16 %v4914
    %v5670 = vunpack.c.l.b16 %v4915
    %v5671 = vunpack.c.h.b16 %v4915
    %v5672 = vunpack.c.l.b16 %v4916
    %v5673 = vunpack.c.h.b16 %v4916
    %v5674 = vunpack.c.l.b16 %v4917
    %v5675 = vunpack.c.h.b16 %v4917
    %v5676 = vunpack.c.l.b16 %v4918
    %v5677 = vunpack.c.h.b16 %v4918
    %v5678 = vunpack.c.l.b16 %v4919
    %v5679 = vunpack.c.h.b16 %v4919
    %v5680 = vunpack.c.l.b16 %v4920
    %v5681 = vunpack.c.h.b16 %v4920
    %v5682 = vunpack.c.l.b16 %v4921
    %v5683 = vunpack.c.h.b16 %v4921
    %v5684 = vunpack.c.l.b16 %v4922
    %v5685 = vunpack.c.h.b16 %v4922
    %v5686 = vunpack.c.l.b16 %v4923
    %v5687 = vunpack.c.h.b16 %v4923
    %v5688 = vunpack.c.l.b16 %v4924
    %v5689 = vunpack.c.h.b16 %v4924
    %v5690 = vunpack.c.l.b16 %v4925
    %v5691 = vunpack.c.h.b16 %v4925
    %v5692 = vunpack.c.l.b16 %v4926
    %v5693 = vunpack.c.h.b16 %v4926
    %v5694 = vunpack.c.l.b16 %v4927
    %v5695 = vunpack.c.h.b16 %v4927
    %v5696 = vunpack.c.l.b16 %v4928
    %v5697 = vunpack.c.h.b16 %v4928
    %v5698 = vunpack.c.l.b16 %v4929
    %v5699 = vunpack.c.h.b16 %v4929
    %v5700 = vunpack.c.l.b16 %v4930
    %v5701 = vunpack.c.h.b16 %v4930
    %v5702 = vunpack.c.l.b16 %v4931
    %v5703 = vunpack.c.h.b16 %v4931
    %v5704 = vunpack.c.l.b16 %v4932
    %v5705 = vunpack.c.h.b16 %v4932
    %v5706 = vunpack.c.l.b16 %v4933
    %v5707 = vunpack.c.h.b16 %v4933
    %v5708 = vunpack.c.l.b16 %v4934
    %v5709 = vunpack.c.h.b16 %v4934
    %v5710 = vunpack.c.l.b16 %v4935
    %v5711 = vunpack.c.h.b16 %v4935
    %v5712 = vunpack.c.l.b16 %v4936
    %v5713 = vunpack.c.h.b16 %v4936
    %v5714 = vunpack.c.l.b16 %v4937
    %v5715 = vunpack.c.h.b16 %v4937
    %v5716 = vunpack.c.l.b16 %v4938
    %v5717 = vunpack.c.h.b16 %v4938
    %v5718 = vunpack.c.l.b16 %v4939
    %v5719 = vunpack.c.h.b16 %v4939
    %v5720 = vunpack.c.l.b16 %v4940
    %v5721 = vunpack.c.h.b16 %v4940
    %v5722 = vunpack.c.l.b16 %v4941
    %v5723 = vunpack.c.h.b16 %v4941
    %v5724 = vunpack.c.l.b16 %v4942
    %v5725 = vunpack.c.h.b16 %v4942
    %v5726 = vunpack.c.l.b16 %v4943
    %v5727 = vunpack.c.h.b16 %v4943
    %v5728 = vunpack.c.l.b16 %v4944
    %v5729 = vunpack.c.h.b16 %v4944
    %v5730 = vunpack.c.l.b16 %v4945
    %v5731 = vunpack.c.h.b16 %v4945
    %v5732 = vunpack.c.l.b16 %v4946
    %v5733 = vunpack.c.h.b16 %v4946
    %v5734 = vunpack.c.l.b16 %v4947
    %v5735 = vunpack.c.h.b16 %v4947
    %v5736 = vunpack.c.l.b16 %v4948
    %v5737 = vunpack.c.h.b16 %v4948
    %v5738 = vunpack.c.l.b16 %v4949
    %v5739 = vunpack.c.h.b16 %v4949
    %v5740 = vunpack.c.l.b16 %v4950
    %v5741 = vunpack.c.h.b16 %v4950
    %v5742 = vunpack.c.l.b16 %v4951
    %v5743 = vunpack.c.h.b16 %v4951
    %v5744 = vunpack.c.l.b16 %v4952
    %v5745 = vunpack.c.h.b16 %v4952
    %v5746 = vunpack.c.l.b16 %v4953
    %v5747 = vunpack.c.h.b16 %v4953
    %v5748 = vunpack.c.l.b16 %v4954
    %v5749 = vunpack.c.h.b16 %v4954
    %v5750 = vunpack.c.l.b16 %v4955
    %v5751 = vunpack.c.h.b16 %v4955
    %v5752 = vunpack.c.l.b16 %v4956
    %v5753 = vunpack.c.h.b16 %v4956
    %v5754 = vunpack.c.l.b16 %v4957
    %v5755 = vunpack.c.h.b16 %v4957
    %v5756 = vunpack.c.l.b16 %v4958
    %v5757 = vunpack.c.h.b16 %v4958
    %v5758 = vunpack.c.l.b16 %v4959
    %v5759 = vunpack.c.h.b16 %v4959
    %v5760 = vunpack.c.l.b16 %v4960
    %v5761 = vunpack.c.h.b16 %v4960
    %v5762 = vunpack.c.l.b16 %v4961
    %v5763 = vunpack.c.h.b16 %v4961
    %v5764 = vunpack.c.l.b16 %v4962
    %v5765 = vunpack.c.h.b16 %v4962
    %v5766 = vunpack.c.l.b16 %v4963
    %v5767 = vunpack.c.h.b16 %v4963
    %v5768 = vunpack.c.l.b16 %v4964
    %v5769 = vunpack.c.h.b16 %v4964
    %v5770 = vunpack.c.l.b16 %v4965
    %v5771 = vunpack.c.h.b16 %v4965
    %v5772 = vunpack.c.l.b16 %v4966
    %v5773 = vunpack.c.h.b16 %v4966
    %v5774 = vunpack.c.l.b16 %v4967
    %v5775 = vunpack.c.h.b16 %v4967
    %v5776 = vunpack.c.l.b16 %v4968
    %v5777 = vunpack.c.h.b16 %v4968
    %v5778 = vunpack.c.l.b16 %v4969
    %v5779 = vunpack.c.h.b16 %v4969
    %v5780 = vunpack.c.l.b16 %v4970
    %v5781 = vunpack.c.h.b16 %v4970
    %v5782 = vunpack.c.l.b16 %v4971
    %v5783 = vunpack.c.h.b16 %v4971
    %v5784 = vunpack.c.l.b16 %v4972
    %v5785 = vunpack.c.h.b16 %v4972
    %v5786 = vunpack.c.l.b16 %v4973
    %v5787 = vunpack.c.h.b16 %v4973
    %v5788 = vunpack.c.l.b16 %v4974
    %v5789 = vunpack.c.h.b16 %v4974
    %v5790 = vunpack.c.l.b16 %v4975
    %v5791 = vunpack.c.h.b16 %v4975
    %v5792 = vunpack.c.l.b16 %v4976
    %v5793 = vunpack.c.h.b16 %v4976
    %v5794 = vunpack.c.l.b16 %v4977
    %v5795 = vunpack.c.h.b16 %v4977
    %v5796 = vunpack.c.l.b16 %v4978
    %v5797 = vunpack.c.h.b16 %v4978
    %v5798 = vunpack.c.l.b16 %v4979
    %v5799 = vunpack.c.h.b16 %v4979
    %v5800 = vunpack.c.l.b16 %v4980
    %v5801 = vunpack.c.h.b16 %v4980
    %v5802 = vunpack.c.l.b16 %v4981
    %v5803 = vunpack.c.h.b16 %v4981
    %v5804 = vunpack.c.l.b16 %v4982
    %v5805 = vunpack.c.h.b16 %v4982
    %v5806 = vunpack.c.l.b16 %v4983
    %v5807 = vunpack.c.h.b16 %v4983
    %v5808 = vunpack.c.l.b16 %v4984
    %v5809 = vunpack.c.h.b16 %v4984
    %v5810 = vunpack.c.l.b16 %v4985
    %v5811 = vunpack.c.h.b16 %v4985
    %v5812 = vunpack.c.l.b16 %v4986
    %v5813 = vunpack.c.h.b16 %v4986
    %v5814 = vunpack.c.l.b16 %v4987
    %v5815 = vunpack.c.h.b16 %v4987
    %v5816 = vunpack.c.l.b16 %v4988
    %v5817 = vunpack.c.h.b16 %v4988
    %v5818 = vunpack.c.l.b16 %v4989
    %v5819 = vunpack.c.h.b16 %v4989
    %v5820 = vunpack.c.l.b16 %v4990
    %v5821 = vunpack.c.h.b16 %v4990
    %v5822 = vunpack.c.l.b16 %v4991
    %v5823 = vunpack.c.h.b16 %v4991
    %v5824 = vunpack.c.l.b16 %v4992
    %v5825 = vunpack.c.h.b16 %v4992
    %v5826 = vunpack.c.l.b16 %v4993
    %v5827 = vunpack.c.h.b16 %v4993
    %v5828 = vunpack.c.l.b16 %v4994
    %v5829 = vunpack.c.h.b16 %v4994
    %v5830 = vunpack.c.l.b16 %v4995
    %v5831 = vunpack.c.h.b16 %v4995
    %v5832 = vunpack.c.l.b16 %v4996
    %v5833 = vunpack.c.h.b16 %v4996
    %v5834 = vunpack.c.l.b16 %v4997
    %v5835 = vunpack.c.h.b16 %v4997
    %v5836 = vunpack.c.l.b16 %v4998
    %v5837 = vunpack.c.h.b16 %v4998
    %v5838 = vunpack.c.l.b16 %v4999
    %v5839 = vunpack.c.h.b16 %v4999
    %v5840 = vunpack.c.l.b16 %v5000
    %v5841 = vunpack.c.h.b16 %v5000
    %v5842 = vunpack.c.l.b16 %v5001
    %v5843 = vunpack.c.h.b16 %v5001
    %v5844 = vunpack.c.l.b16 %v5002
    %v5845 = vunpack.c.h.b16 %v5002
    %v5846 = vunpack.c.l.b16 %v5003
    %v5847 = vunpack.c.h.b16 %v5003
    %v5848 = vunpack.c.l.b16 %v5004
    %v5849 = vunpack.c.h.b16 %v5004
    %v5850 = vunpack.c.l.b16 %v5005
    %v5851 = vunpack.c.h.b16 %v5005
    %v5852 = vunpack.c.l.b16 %v5006
    %v5853 = vunpack.c.h.b16 %v5006
    %v5854 = vunpack.c.l.b16 %v5007
    %v5855 = vunpack.c.h.b16 %v5007
    %v5856 = vunpack.c.l.b16 %v5008
    %v5857 = vunpack.c.h.b16 %v5008
    %v5858 = vunpack.c.l.b16 %v5009
    %v5859 = vunpack.c.h.b16 %v5009
    %v5860 = vunpack.c.l.b16 %v5010
    %v5861 = vunpack.c.h.b16 %v5010
    %v5862 = vunpack.c.l.b16 %v5011
    %v5863 = vunpack.c.h.b16 %v5011
    %v5864 = vunpack.c.l.b16 %v5012
    %v5865 = vunpack.c.h.b16 %v5012
    %v5866 = vunpack.c.l.b16 %v5013
    %v5867 = vunpack.c.h.b16 %v5013
    %v5868 = vunpack.c.l.b16 %v5014
    %v5869 = vunpack.c.h.b16 %v5014
    %v5870 = vunpack.c.l.b16 %v5015
    %v5871 = vunpack.c.h.b16 %v5015
    %v5872 = vunpack.c.l.b16 %v5016
    %v5873 = vunpack.c.h.b16 %v5016
    %v5874 = vunpack.c.l.b16 %v5017
    %v5875 = vunpack.c.h.b16 %v5017
    %v5876 = vunpack.c.l.b16 %v5018
    %v5877 = vunpack.c.h.b16 %v5018
    %v5878 = vunpack.c.l.b16 %v5019
    %v5879 = vunpack.c.h.b16 %v5019
    %v5880 = vunpack.c.l.b16 %v5020
    %v5881 = vunpack.c.h.b16 %v5020
    %v5882 = vunpack.c.l.b16 %v5021
    %v5883 = vunpack.c.h.b16 %v5021
    %v5884 = vunpack.c.l.b16 %v5022
    %v5885 = vunpack.c.h.b16 %v5022
    %v5886 = vunpack.c.l.b16 %v5023
    %v5887 = vunpack.c.h.b16 %v5023
    %v5888 = vpack.c.b16 %v5318, %v5312
    %v5889 = vpack.c.b16 %v5319, %v5313
    %v5890 = vpack.c.b16 %v5320, %v5314
    %v5891 = vpack.c.b16 %v5321, %v5315
    %v5892 = vpack.c.b16 %v5322, %v5316
    %v5893 = vpack.c.b16 %v5323, %v5317
    %v5894 = vpack.c.b16 %v5330, %v5324
    %v5895 = vpack.c.b16 %v5331, %v5325
    %v5896 = vpack.c.b16 %v5332, %v5326
    %v5897 = vpack.c.b16 %v5333, %v5327
    %v5898 = vpack.c.b16 %v5334, %v5328
    %v5899 = vpack.c.b16 %v5335, %v5329
    %v5900 = vpack.c.b16 %v5342, %v5336
    %v5901 = vpack.c.b16 %v5343, %v5337
    %v5902 = vpack.c.b16 %v5344, %v5338
    %v5903 = vpack.c.b16 %v5345, %v5339
    %v5904 = vpack.c.b16 %v5346, %v5340
    %v5905 = vpack.c.b16 %v5347, %v5341
    %v5906 = vpack.c.b16 %v5354, %v5348
    %v5907 = vpack.c.b16 %v5355, %v5349
    %v5908 = vpack.c.b16 %v5356, %v5350
    %v5909 = vpack.c.b16 %v5357, %v5351
    %v5910 = vpack.c.b16 %v5358, %v5352
    %v5911 = vpack.c.b16 %v5359, %v5353
    %v5912 = vpack.c.b16 %v5366, %v5360
    %v5913 = vpack.c.b16 %v5367, %v5361
    %v5914 = vpack.c.b16 %v5368, %v5362
    %v5915 = vpack.c.b16 %v5369, %v5363
    %v5916 = vpack.c.b16 %v5370, %v5364
    %v5917 = vpack.c.b16 %v5371, %v5365
    %v5918 = vpack.c.b16 %v5378, %v5372
    %v5919 = vpack.c.b16 %v5379, %v5373
    %v5920 = vpack.c.b16 %v5380, %v5374
    %v5921 = vpack.c.b16 %v5381, %v5375
    %v5922 = vpack.c.b16 %v5382, %v5376
    %v5923 = vpack.c.b16 %v5383, %v5377
    %v5924 = vpack.c.b16 %v5390, %v5384
    %v5925 = vpack.c.b16 %v5391, %v5385
    %v5926 = vpack.c.b16 %v5392, %v5386
    %v5927 = vpack.c.b16 %v5393, %v5387
    %v5928 = vpack.c.b16 %v5394, %v5388
    %v5929 = vpack.c.b16 %v5395, %v5389
    %v5930 = vpack.c.b16 %v5402, %v5396
    %v5931 = vpack.c.b16 %v5403, %v5397
    %v5932 = vpack.c.b16 %v5404, %v5398
    %v5933 = vpack.c.b16 %v5405, %v5399
    %v5934 = vpack.c.b16 %v5406, %v5400
    %v5935 = vpack.c.b16 %v5407, %v5401
    %v5936 = vpack.c.b16 %v5414, %v5408
    %v5937 = vpack.c.b16 %v5415, %v5409
    %v5938 = vpack.c.b16 %v5416, %v5410
    %v5939 = vpack.c.b16 %v5417, %v5411
    %v5940 = vpack.c.b16 %v5418, %v5412
    %v5941 = vpack.c.b16 %v5419, %v5413
    %v5942 = vpack.c.b16 %v5426, %v5420
    %v5943 = vpack.c.b16 %v5427, %v5421
    %v5944 = vpack.c.b16 %v5428, %v5422
    %v5945 = vpack.c.b16 %v5429, %v5423
    %v5946 = vpack.c.b16 %v5430, %v5424
    %v5947 = vpack.c.b16 %v5431, %v5425
    %v5948 = vpack.c.b16 %v5438, %v5432
    %v5949 = vpack.c.b16 %v5439, %v5433
    %v5950 = vpack.c.b16 %v5440, %v5434
    %v5951 = vpack.c.b16 %v5441, %v5435
    %v5952 = vpack.c.b16 %v5442, %v5436
    %v5953 = vpack.c.b16 %v5443, %v5437
    %v5954 = vpack.c.b16 %v5450, %v5444
    %v5955 = vpack.c.b16 %v5451, %v5445
    %v5956 = vpack.c.b16 %v5452, %v5446
    %v5957 = vpack.c.b16 %v5453, %v5447
    %v5958 = vpack.c.b16 %v5454, %v5448
    %v5959 = vpack.c.b16 %v5455, %v5449
    %v5960 = vpack.c.b16 %v5462, %v5456
    %v5961 = vpack.c.b16 %v5463, %v5457
    %v5962 = vpack.c.b16 %v5464, %v5458
    %v5963 = vpack.c.b16 %v5465, %v5459
    %v5964 = vpack.c.b16 %v5466, %v5460
    %v5965 = vpack.c.b16 %v5467, %v5461
    %v5966 = vpack.c.b16 %v5474, %v5468
    %v5967 = vpack.c.b16 %v5475, %v5469
    %v5968 = vpack.c.b16 %v5476, %v5470
    %v5969 = vpack.c.b16 %v5477, %v5471
    %v5970 = vpack.c.b16 %v5478, %v5472
    %v5971 = vpack.c.b16 %v5479, %v5473
    %v5972 = vpack.c.b16 %v5486, %v5480
    %v5973 = vpack.c.b16 %v5487, %v5481
    %v5974 = vpack.c.b16 %v5488, %v5482
    %v5975 = vpack.c.b16 %v5489, %v5483
    %v5976 = vpack.c.b16 %v5490, %v5484
    %v5977 = vpack.c.b16 %v5491, %v5485
    %v5978 = vpack.c.b16 %v5498, %v5492
    %v5979 = vpack.c.b16 %v5499, %v5493
    %v5980 = vpack.c.b16 %v5500, %v5494
    %v5981 = vpack.c.b16 %v5501, %v5495
    %v5982 = vpack.c.b16 %v5502, %v5496
    %v5983 = vpack.c.b16 %v5503, %v5497
    %v5984 = vpack.c.b16 %v5510, %v5504
    %v5985 = vpack.c.b16 %v5511, %v5505
    %v5986 = vpack.c.b16 %v5512, %v5506
    %v5987 = vpack.c.b16 %v5513, %v5507
    %v5988 = vpack.c.b16 %v5514, %v5508
    %v5989 = vpack.c.b16 %v5515, %v5509
    %v5990 = vpack.c.b16 %v5522, %v5516
    %v5991 = vpack.c.b16 %v5523, %v5517
    %v5992 = vpack.c.b16 %v5524, %v5518
    %v5993 = vpack.c.b16 %v5525, %v5519
    %v5994 = vpack.c.b16 %v5526, %v5520
    %v5995 = vpack.c.b16 %v5527, %v5521
    %v5996 = vpack.c.b16 %v5534, %v5528
    %v5997 = vpack.c.b16 %v5535, %v5529
    %v5998 = vpack.c.b16 %v5536, %v5530
    %v5999 = vpack.c.b16 %v5537, %v5531
    %v6000 = vpack.c.b16 %v5538, %v5532
    %v6001 = vpack.c.b16 %v5539, %v5533
    %v6002 = vpack.c.b16 %v5546, %v5540
    %v6003 = vpack.c.b16 %v5547, %v5541
    %v6004 = vpack.c.b16 %v5548, %v5542
    %v6005 = vpack.c.b16 %v5549, %v5543
    %v6006 = vpack.c.b16 %v5550, %v5544
    %v6007 = vpack.c.b16 %v5551, %v5545
    %v6008 = vpack.c.b16 %v5558, %v5552
    %v6009 = vpack.c.b16 %v5559, %v5553
    %v6010 = vpack.c.b16 %v5560, %v5554
    %v6011 = vpack.c.b16 %v5561, %v5555
    %v6012 = vpack.c.b16 %v5562, %v5556
    %v6013 = vpack.c.b16 %v5563, %v5557
    %v6014 = vpack.c.b16 %v5570, %v5564
    %v6015 = vpack.c.b16 %v5571, %v5565
    %v6016 = vpack.c.b16 %v5572, %v5566
    %v6017 = vpack.c.b16 %v5573, %v5567
    %v6018 = vpack.c.b16 %v5574, %v5568
    %v6019 = vpack.c.b16 %v5575, %v5569
    %v6020 = vpack.c.b16 %v5582, %v5576
    %v6021 = vpack.c.b16 %v5583, %v5577
    %v6022 = vpack.c.b16 %v5584, %v5578
    %v6023 = vpack.c.b16 %v5585, %v5579
    %v6024 = vpack.c.b16 %v5586, %v5580
    %v6025 = vpack.c.b16 %v5587, %v5581
    %v6026 = vpack.c.b16 %v5594, %v5588
    %v6027 = vpack.c.b16 %v5595, %v5589
    %v6028 = vpack.c.b16 %v5596, %v5590
    %v6029 = vpack.c.b16 %v5597, %v5591
    %v6030 = vpack.c.b16 %v5598, %v5592
    %v6031 = vpack.c.b16 %v5599, %v5593
    %v6032 = vpack.c.b16 %v5606, %v5600
    %v6033 = vpack.c.b16 %v5607, %v5601
    %v6034 = vpack.c.b16 %v5608, %v5602
    %v6035 = vpack.c.b16 %v5609, %v5603
    %v6036 = vpack.c.b16 %v5610, %v5604
    %v6037 = vpack.c.b16 %v5611, %v5605
    %v6038 = vpack.c.b16 %v5618, %v5612
    %v6039 = vpack.c.b16 %v5619, %v5613
    %v6040 = vpack.c.b16 %v5620, %v5614
    %v6041 = vpack.c.b16 %v5621, %v5615
    %v6042 = vpack.c.b16 %v5622, %v5616
    %v6043 = vpack.c.b16 %v5623, %v5617
    %v6044 = vpack.c.b16 %v5630, %v5624
    %v6045 = vpack.c.b16 %v5631, %v5625
    %v6046 = vpack.c.b16 %v5632, %v5626
    %v6047 = vpack.c.b16 %v5633, %v5627
    %v6048 = vpack.c.b16 %v5634, %v5628
    %v6049 = vpack.c.b16 %v5635, %v5629
    %v6050 = vpack.c.b16 %v5642, %v5636
    %v6051 = vpack.c.b16 %v5643, %v5637
    %v6052 = vpack.c.b16 %v5644, %v5638
    %v6053 = vpack.c.b16 %v5645, %v5639
    %v6054 = vpack.c.b16 %v5646, %v5640
    %v6055 = vpack.c.b16 %v5647, %v5641
    %v6056 = vpack.c.b16 %v5654, %v5648
    %v6057 = vpack.c.b16 %v5655, %v5649
    %v6058 = vpack.c.b16 %v5656, %v5650
    %v6059 = vpack.c.b16 %v5657, %v5651
    %v6060 = vpack.c.b16 %v5658, %v5652
    %v6061 = vpack.c.b16 %v5659, %v5653
    %v6062 = vpack.c.b16 %v5666, %v5660
    %v6063 = vpack.c.b16 %v5667, %v5661
    %v6064 = vpack.c.b16 %v5668, %v5662
    %v6065 = vpack.c.b16 %v5669, %v5663
    %v6066 = vpack.c.b16 %v5670, %v5664
    %v6067 = vpack.c.b16 %v5671, %v5665
    %v6068 = vpack.c.b16 %v5678, %v5672
    %v6069 = vpack.c.b16 %v5679, %v5673
    %v6070 = vpack.c.b16 %v5680, %v5674
    %v6071 = vpack.c.b16 %v5681, %v5675
    %v6072 = vpack.c.b16 %v5682, %v5676
    %v6073 = vpack.c.b16 %v5683, %v5677
    %v6074 = vpack.c.b16 %v5690, %v5684
    %v6075 = vpack.c.b16 %v5691, %v5685
    %v6076 = vpack.c.b16 %v5692, %v5686
    %v6077 = vpack.c.b16 %v5693, %v5687
    %v6078 = vpack.c.b16 %v5694, %v5688
    %v6079 = vpack.c.b16 %v5695, %v5689
    %v6080 = vpack.c.b16 %v5702, %v5696
    %v6081 = vpack.c.b16 %v5703, %v5697
    %v6082 = vpack.c.b16 %v5704, %v5698
    %v6083 = vpack.c.b16 %v5705, %v5699
    %v6084 = vpack.c.b16 %v5706, %v5700
    %v6085 = vpack.c.b16 %v5707, %v5701
    %v6086 = vpack.c.b16 %v5714, %v5708
    %v6087 = vpack.c.b16 %v5715, %v5709
    %v6088 = vpack.c.b16 %v5716, %v5710
    %v6089 = vpack.c.b16 %v5717, %v5711
    %v6090 = vpack.c.b16 %v5718, %v5712
    %v6091 = vpack.c.b16 %v5719, %v5713
    %v6092 = vpack.c.b16 %v5726, %v5720
    %v6093 = vpack.c.b16 %v5727, %v5721
    %v6094 = vpack.c.b16 %v5728, %v5722
    %v6095 = vpack.c.b16 %v5729, %v5723
    %v6096 = vpack.c.b16 %v5730, %v5724
    %v6097 = vpack.c.b16 %v5731, %v5725
    %v6098 = vpack.c.b16 %v5738, %v5732
    %v6099 = vpack.c.b16 %v5739, %v5733
    %v6100 = vpack.c.b16 %v5740, %v5734
    %v6101 = vpack.c.b16 %v5741, %v5735
    %v6102 = vpack.c.b16 %v5742, %v5736
    %v6103 = vpack.c.b16 %v5743, %v5737
    %v6104 = vpack.c.b16 %v5750, %v5744
    %v6105 = vpack.c.b16 %v5751, %v5745
    %v6106 = vpack.c.b16 %v5752, %v5746
    %v6107 = vpack.c.b16 %v5753, %v5747
    %v6108 = vpack.c.b16 %v5754, %v5748
    %v6109 = vpack.c.b16 %v5755, %v5749
    %v6110 = vpack.c.b16 %v5762, %v5756
    %v6111 = vpack.c.b16 %v5763, %v5757
    %v6112 = vpack.c.b16 %v5764, %v5758
    %v6113 = vpack.c.b16 %v5765, %v5759
    %v6114 = vpack.c.b16 %v5766, %v5760
    %v6115 = vpack.c.b16 %v5767, %v5761
    %v6116 = vpack.c.b16 %v5774, %v5768
    %v6117 = vpack.c.b16 %v5775, %v5769
    %v6118 = vpack.c.b16 %v5776, %v5770
    %v6119 = vpack.c.b16 %v5777, %v5771
    %v6120 = vpack.c.b16 %v5778, %v5772
    %v6121 = vpack.c.b16 %v5779, %v5773
    %v6122 = vpack.c.b16 %v5786, %v5780
    %v6123 = vpack.c.b16 %v5787, %v5781
    %v6124 = vpack.c.b16 %v5788, %v5782
    %v6125 = vpack.c.b16 %v5789, %v5783
    %v6126 = vpack.c.b16 %v5790, %v5784
    %v6127 = vpack.c.b16 %v5791, %v5785
    %v6128 = vpack.c.b16 %v5798, %v5792
    %v6129 = vpack.c.b16 %v5799, %v5793
    %v6130 = vpack.c.b16 %v5800, %v5794
    %v6131 = vpack.c.b16 %v5801, %v5795
    %v6132 = vpack.c.b16 %v5802, %v5796
    %v6133 = vpack.c.b16 %v5803, %v5797
    %v6134 = vpack.c.b16 %v5810, %v5804
    %v6135 = vpack.c.b16 %v5811, %v5805
    %v6136 = vpack.c.b16 %v5812, %v5806
    %v6137 = vpack.c.b16 %v5813, %v5807
    %v6138 = vpack.c.b16 %v5814, %v5808
    %v6139 = vpack.c.b16 %v5815, %v5809
    %v6140 = vpack.c.b16 %v5822, %v5816
    %v6141 = vpack.c.b16 %v5823, %v5817
    %v6142 = vpack.c.b16 %v5824, %v5818
    %v6143 = vpack.c.b16 %v5825, %v5819
    %v6144 = vpack.c.b16 %v5826, %v5820
    %v6145 = vpack.c.b16 %v5827, %v5821
    %v6146 = vpack.c.b16 %v5834, %v5828
    %v6147 = vpack.c.b16 %v5835, %v5829
    %v6148 = vpack.c.b16 %v5836, %v5830
    %v6149 = vpack.c.b16 %v5837, %v5831
    %v6150 = vpack.c.b16 %v5838, %v5832
    %v6151 = vpack.c.b16 %v5839, %v5833
    %v6152 = vpack.c.b16 %v5846, %v5840
    %v6153 = vpack.c.b16 %v5847, %v5841
    %v6154 = vpack.c.b16 %v5848, %v5842
    %v6155 = vpack.c.b16 %v5849, %v5843
    %v6156 = vpack.c.b16 %v5850, %v5844
    %v6157 = vpack.c.b16 %v5851, %v5845
    %v6158 = vpack.c.b16 %v5858, %v5852
    %v6159 = vpack.c.b16 %v5859, %v5853
    %v6160 = vpack.c.b16 %v5860, %v5854
    %v6161 = vpack.c.b16 %v5861, %v5855
    %v6162 = vpack.c.b16 %v5862, %v5856
    %v6163 = vpack.c.b16 %v5863, %v5857
    %v6164 = vpack.c.b16 %v5870, %v5864
    %v6165 = vpack.c.b16 %v5871, %v5865
    %v6166 = vpack.c.b16 %v5872, %v5866
    %v6167 = vpack.c.b16 %v5873, %v5867
    %v6168 = vpack.c.b16 %v5874, %v5868
    %v6169 = vpack.c.b16 %v5875, %v5869
    %v6170 = vpack.c.b16 %v5882, %v5876
    %v6171 = vpack.c.b16 %v5883, %v5877
    %v6172 = vpack.c.b16 %v5884, %v5878
    %v6173 = vpack.c.b16 %v5885, %v5879
    %v6174 = vpack.c.b16 %v5886, %v5880
    %v6175 = vpack.c.b16 %v5887, %v5881
    %6464 = vmatprep.subr.bf16.mxu0 %v5889
    %6465 = vmatpush1.bf16.msra.mxu0 %v5888
    %6466 = vmatprep.subr.bf16.mxu0 %v5895
    %6467 = vmatpush1.bf16.msra.mxu0 %v5894
    %6468 = vmatprep.subr.bf16.mxu0 %v5901
    %6469 = vmatpush1.bf16.msra.mxu0 %v5900
    %6470 = vmatprep.subr.bf16.mxu0 %v5907
    %6471 = vmatpush1.bf16.msra.mxu0 %v5906
    %6472 = vmatprep.subr.bf16.mxu0 %v5913
    %6473 = vmatpush1.bf16.msra.mxu0 %v5912
    %6474 = vmatprep.subr.bf16.mxu0 %v5919
    %6475 = vmatpush1.bf16.msra.mxu0 %v5918
    %6476 = vmatprep.subr.bf16.mxu0 %v5925
    %6477 = vmatpush1.bf16.msra.mxu0 %v5924
    %6478 = vmatprep.subr.bf16.mxu0 %v5931
    %6479 = vmatpush1.bf16.msra.mxu0 %v5930
    %6480 = vmatprep.subr.bf16.mxu0 %v5937
    %6481 = vmatpush1.bf16.msra.mxu0 %v5936
    %6482 = vmatprep.subr.bf16.mxu0 %v5943
    %6483 = vmatpush1.bf16.msra.mxu0 %v5942
    %6484 = vmatprep.subr.bf16.mxu0 %v5949
    %6485 = vmatpush1.bf16.msra.mxu0 %v5948
    %6486 = vmatprep.subr.bf16.mxu0 %v5955
    %6487 = vmatpush1.bf16.msra.mxu0 %v5954
    %6488 = vmatprep.subr.bf16.mxu0 %v5961
    %6489 = vmatpush1.bf16.msra.mxu0 %v5960
    %6490 = vmatprep.subr.bf16.mxu0 %v5967
    %6491 = vmatpush1.bf16.msra.mxu0 %v5966
    %6492 = vmatprep.subr.bf16.mxu0 %v5973
    %6493 = vmatpush1.bf16.msra.mxu0 %v5972
    %6494 = vmatprep.subr.bf16.mxu0 %v5979
    %6495 = vmatpush1.bf16.msra.mxu0 %v5978
    %6496 = vmatprep.mubr.bf16.mxu0 %v729
    %6497 = vmatmul.mubr.bf16.gmra.mrb[0].mxu0 %v728
    %v6498 = vpop.f32.mrb[0].mxu0
    %v6499 = vadd.f32 0.0, %v6498
    %v6500 = vpop.f32.mrb[0].mxu0
    %v6501 = vadd.f32 0.0, %v6500
    %v6502 = vpop.f32.mrb[0].mxu0
    %v6503 = vpop.f32.mrb[0].mxu0
    %6504 = vdwg.mxu0
    %6505 = vmatprep.subr.bf16.mxu0 %v5985
    %6506 = vmatpush1.bf16.msra.mxu0 %v5984
    %6507 = vmatprep.subr.bf16.mxu0 %v5991
    %6508 = vmatpush1.bf16.msra.mxu0 %v5990
    %6509 = vmatprep.subr.bf16.mxu0 %v5997
    %6510 = vmatpush1.bf16.msra.mxu0 %v5996
    %6511 = vmatprep.subr.bf16.mxu0 %v6003
    %6512 = vmatpush1.bf16.msra.mxu0 %v6002
    %6513 = vmatprep.subr.bf16.mxu0 %v6009
    %6514 = vmatpush1.bf16.msra.mxu0 %v6008
    %6515 = vmatprep.subr.bf16.mxu0 %v6015
    %6516 = vmatpush1.bf16.msra.mxu0 %v6014
    %6517 = vmatprep.subr.bf16.mxu0 %v6021
    %6518 = vmatpush1.bf16.msra.mxu0 %v6020
    %6519 = vmatprep.subr.bf16.mxu0 %v6027
    %6520 = vmatpush1.bf16.msra.mxu0 %v6026
    %6521 = vmatprep.subr.bf16.mxu0 %v6033
    %6522 = vmatpush1.bf16.msra.mxu0 %v6032
    %6523 = vmatprep.subr.bf16.mxu0 %v6039
    %6524 = vmatpush1.bf16.msra.mxu0 %v6038
    %6525 = vmatprep.subr.bf16.mxu0 %v6045
    %6526 = vmatpush1.bf16.msra.mxu0 %v6044
    %6527 = vmatprep.subr.bf16.mxu0 %v6051
    %6528 = vmatpush1.bf16.msra.mxu0 %v6050
    %6529 = vmatprep.subr.bf16.mxu0 %v6057
    %6530 = vmatpush1.bf16.msra.mxu0 %v6056
    %6531 = vmatprep.subr.bf16.mxu0 %v6063
    %6532 = vmatpush1.bf16.msra.mxu0 %v6062
    %6533 = vmatprep.subr.bf16.mxu0 %v6069
    %6534 = vmatpush1.bf16.msra.mxu0 %v6068
    %6535 = vmatprep.subr.bf16.mxu0 %v6075
    %6536 = vmatpush1.bf16.msra.mxu0 %v6074
    %6537 = vmatprep.mubr.bf16.mxu0 %v731
    %6538 = vmatmul.mubr.bf16.gmra.mrb[0].mxu0 %v730
    %v6539 = vpop.f32.mrb[0].mxu0
    %v6540 = vadd.f32 %v6499, %v6539
    %v6541 = vpop.f32.mrb[0].mxu0
    %v6542 = vadd.f32 %v6501, %v6541
    %v6543 = vpop.f32.mrb[0].mxu0
    %v6544 = vpop.f32.mrb[0].mxu0
    %6545 = vdwg.mxu0
    %6546 = vmatprep.subr.bf16.mxu0 %v6081
    %6547 = vmatpush1.bf16.msra.mxu0 %v6080
    %6548 = vmatprep.subr.bf16.mxu0 %v6087
    %6549 = vmatpush1.bf16.msra.mxu0 %v6086
    %6550 = vmatprep.subr.bf16.mxu0 %v6093
    %6551 = vmatpush1.bf16.msra.mxu0 %v6092
    %6552 = vmatprep.subr.bf16.mxu0 %v6099
    %6553 = vmatpush1.bf16.msra.mxu0 %v6098
    %6554 = vmatprep.subr.bf16.mxu0 %v6105
    %6555 = vmatpush1.bf16.msra.mxu0 %v6104
    %6556 = vmatprep.subr.bf16.mxu0 %v6111
    %6557 = vmatpush1.bf16.msra.mxu0 %v6110
    %6558 = vmatprep.subr.bf16.mxu0 %v6117
    %6559 = vmatpush1.bf16.msra.mxu0 %v6116
    %6560 = vmatprep.subr.bf16.mxu0 %v6123
    %6561 = vmatpush1.bf16.msra.mxu0 %v6122
    %6562 = vmatprep.subr.bf16.mxu0 %v6129
    %6563 = vmatpush1.bf16.msra.mxu0 %v6128
    %6564 = vmatprep.subr.bf16.mxu0 %v6135
    %6565 = vmatpush1.bf16.msra.mxu0 %v6134
    %6566 = vmatprep.subr.bf16.mxu0 %v6141
    %6567 = vmatpush1.bf16.msra.mxu0 %v6140
    %6568 = vmatprep.subr.bf16.mxu0 %v6147
    %6569 = vmatpush1.bf16.msra.mxu0 %v6146
    %6570 = vmatprep.subr.bf16.mxu0 %v6153
    %6571 = vmatpush1.bf16.msra.mxu0 %v6152
    %6572 = vmatprep.subr.bf16.mxu0 %v6159
    %6573 = vmatpush1.bf16.msra.mxu0 %v6158
    %6574 = vmatprep.subr.bf16.mxu0 %v6165
    %6575 = vmatpush1.bf16.msra.mxu0 %v6164
    %6576 = vmatprep.subr.bf16.mxu0 %v6171
    %6577 = vmatpush1.bf16.msra.mxu0 %v6170
    %6578 = vmatprep.mubr.bf16.mxu0 %v733
    %6579 = vmatmul.mubr.bf16.gmra.mrb[0].mxu0 %v732
    %v6580 = vpop.f32.mrb[0].mxu0
    %v6581 = vadd.f32 %v6540, %v6580
    %v6582 = vpop.f32.mrb[0].mxu0
    %v6583 = vadd.f32 %v6542, %v6582
    %v6584 = vpop.f32.mrb[0].mxu0
    %v6585 = vpop.f32.mrb[0].mxu0
    %6586 = vdwg.mxu0
    %6587 = vmatprep.subr.bf16.mxu0 %v5891
    %6588 = vmatpush1.bf16.msra.mxu0 %v5890
    %6589 = vmatprep.subr.bf16.mxu0 %v5897
    %6590 = vmatpush1.bf16.msra.mxu0 %v5896
    %6591 = vmatprep.subr.bf16.mxu0 %v5903
    %6592 = vmatpush1.bf16.msra.mxu0 %v5902
    %6593 = vmatprep.subr.bf16.mxu0 %v5909
    %6594 = vmatpush1.bf16.msra.mxu0 %v5908
    %6595 = vmatprep.subr.bf16.mxu0 %v5915
    %6596 = vmatpush1.bf16.msra.mxu0 %v5914
    %6597 = vmatprep.subr.bf16.mxu0 %v5921
    %6598 = vmatpush1.bf16.msra.mxu0 %v5920
    %6599 = vmatprep.subr.bf16.mxu0 %v5927
    %6600 = vmatpush1.bf16.msra.mxu0 %v5926
    %6601 = vmatprep.subr.bf16.mxu0 %v5933
    %6602 = vmatpush1.bf16.msra.mxu0 %v5932
    %6603 = vmatprep.subr.bf16.mxu0 %v5939
    %6604 = vmatpush1.bf16.msra.mxu0 %v5938
    %6605 = vmatprep.subr.bf16.mxu0 %v5945
    %6606 = vmatpush1.bf16.msra.mxu0 %v5944
    %6607 = vmatprep.subr.bf16.mxu0 %v5951
    %6608 = vmatpush1.bf16.msra.mxu0 %v5950
    %6609 = vmatprep.subr.bf16.mxu0 %v5957
    %6610 = vmatpush1.bf16.msra.mxu0 %v5956
    %6611 = vmatprep.subr.bf16.mxu0 %v5963
    %6612 = vmatpush1.bf16.msra.mxu0 %v5962
    %6613 = vmatprep.subr.bf16.mxu0 %v5969
    %6614 = vmatpush1.bf16.msra.mxu0 %v5968
    %6615 = vmatprep.subr.bf16.mxu0 %v5975
    %6616 = vmatpush1.bf16.msra.mxu0 %v5974
    %6617 = vmatprep.subr.bf16.mxu0 %v5981
    %6618 = vmatpush1.bf16.msra.mxu0 %v5980
    %6619 = vmatprep.mubr.bf16.mxu0 %v729
    %6620 = vmatmul.mubr.bf16.gmra.mrb[0].mxu0 %v728
    %v6621 = vpop.f32.mrb[0].mxu0
    %v6622 = vadd.f32 0.0, %v6621
    %v6623 = vpop.f32.mrb[0].mxu0
    %v6624 = vadd.f32 0.0, %v6623
    %v6625 = vpop.f32.mrb[0].mxu0
    %v6626 = vpop.f32.mrb[0].mxu0
    %6627 = vdwg.mxu0
    %6628 = vmatprep.subr.bf16.mxu0 %v5987
    %6629 = vmatpush1.bf16.msra.mxu0 %v5986
    %6630 = vmatprep.subr.bf16.mxu0 %v5993
    %6631 = vmatpush1.bf16.msra.mxu0 %v5992
    %6632 = vmatprep.subr.bf16.mxu0 %v5999
    %6633 = vmatpush1.bf16.msra.mxu0 %v5998
    %6634 = vmatprep.subr.bf16.mxu0 %v6005
    %6635 = vmatpush1.bf16.msra.mxu0 %v6004
    %6636 = vmatprep.subr.bf16.mxu0 %v6011
    %6637 = vmatpush1.bf16.msra.mxu0 %v6010
    %6638 = vmatprep.subr.bf16.mxu0 %v6017
    %6639 = vmatpush1.bf16.msra.mxu0 %v6016
    %6640 = vmatprep.subr.bf16.mxu0 %v6023
    %6641 = vmatpush1.bf16.msra.mxu0 %v6022
    %6642 = vmatprep.subr.bf16.mxu0 %v6029
    %6643 = vmatpush1.bf16.msra.mxu0 %v6028
    %6644 = vmatprep.subr.bf16.mxu0 %v6035
    %6645 = vmatpush1.bf16.msra.mxu0 %v6034
    %6646 = vmatprep.subr.bf16.mxu0 %v6041
    %6647 = vmatpush1.bf16.msra.mxu0 %v6040
    %6648 = vmatprep.subr.bf16.mxu0 %v6047
    %6649 = vmatpush1.bf16.msra.mxu0 %v6046
    %6650 = vmatprep.subr.bf16.mxu0 %v6053
    %6651 = vmatpush1.bf16.msra.mxu0 %v6052
    %6652 = vmatprep.subr.bf16.mxu0 %v6059
    %6653 = vmatpush1.bf16.msra.mxu0 %v6058
    %6654 = vmatprep.subr.bf16.mxu0 %v6065
    %6655 = vmatpush1.bf16.msra.mxu0 %v6064
    %6656 = vmatprep.subr.bf16.mxu0 %v6071
    %6657 = vmatpush1.bf16.msra.mxu0 %v6070
    %6658 = vmatprep.subr.bf16.mxu0 %v6077
    %6659 = vmatpush1.bf16.msra.mxu0 %v6076
    %6660 = vmatprep.mubr.bf16.mxu0 %v731
    %6661 = vmatmul.mubr.bf16.gmra.mrb[0].mxu0 %v730
    %v6662 = vpop.f32.mrb[0].mxu0
    %v6663 = vadd.f32 %v6622, %v6662
    %v6664 = vpop.f32.mrb[0].mxu0
    %v6665 = vadd.f32 %v6624, %v6664
    %v6666 = vpop.f32.mrb[0].mxu0
    %v6667 = vpop.f32.mrb[0].mxu0
    %6668 = vdwg.mxu0
    %6669 = vmatprep.subr.bf16.mxu0 %v6083
    %6670 = vmatpush1.bf16.msra.mxu0 %v6082
    %6671 = vmatprep.subr.bf16.mxu0 %v6089
    %6672 = vmatpush1.bf16.msra.mxu0 %v6088
    %6673 = vmatprep.subr.bf16.mxu0 %v6095
    %6674 = vmatpush1.bf16.msra.mxu0 %v6094
    %6675 = vmatprep.subr.bf16.mxu0 %v6101
    %6676 = vmatpush1.bf16.msra.mxu0 %v6100
    %6677 = vmatprep.subr.bf16.mxu0 %v6107
    %6678 = vmatpush1.bf16.msra.mxu0 %v6106
    %6679 = vmatprep.subr.bf16.mxu0 %v6113
    %6680 = vmatpush1.bf16.msra.mxu0 %v6112
    %6681 = vmatprep.subr.bf16.mxu0 %v6119
    %6682 = vmatpush1.bf16.msra.mxu0 %v6118
    %6683 = vmatprep.subr.bf16.mxu0 %v6125
    %6684 = vmatpush1.bf16.msra.mxu0 %v6124
    %6685 = vmatprep.subr.bf16.mxu0 %v6131
    %6686 = vmatpush1.bf16.msra.mxu0 %v6130
    %6687 = vmatprep.subr.bf16.mxu0 %v6137
    %6688 = vmatpush1.bf16.msra.mxu0 %v6136
    %6689 = vmatprep.subr.bf16.mxu0 %v6143
    %6690 = vmatpush1.bf16.msra.mxu0 %v6142
    %6691 = vmatprep.subr.bf16.mxu0 %v6149
    %6692 = vmatpush1.bf16.msra.mxu0 %v6148
    %6693 = vmatprep.subr.bf16.mxu0 %v6155
    %6694 = vmatpush1.bf16.msra.mxu0 %v6154
    %6695 = vmatprep.subr.bf16.mxu0 %v6161
    %6696 = vmatpush1.bf16.msra.mxu0 %v6160
    %6697 = vmatprep.subr.bf16.mxu0 %v6167
    %6698 = vmatpush1.bf16.msra.mxu0 %v6166
    %6699 = vmatprep.subr.bf16.mxu0 %v6173
    %6700 = vmatpush1.bf16.msra.mxu0 %v6172
    %6701 = vmatprep.mubr.bf16.mxu0 %v733
    %6702 = vmatmul.mubr.bf16.gmra.mrb[0].mxu0 %v732
    %v6703 = vpop.f32.mrb[0].mxu0
    %v6704 = vadd.f32 %v6663, %v6703
    %v6705 = vpop.f32.mrb[0].mxu0
    %v6706 = vadd.f32 %v6665, %v6705
    %v6707 = vpop.f32.mrb[0].mxu0
    %v6708 = vpop.f32.mrb[0].mxu0
    %6709 = vdwg.mxu0
    %6710 = vmatprep.subr.bf16.mxu0 %v5893
    %6711 = vmatpush1.bf16.msra.mxu0 %v5892
    %6712 = vmatprep.subr.bf16.mxu0 %v5899
    %6713 = vmatpush1.bf16.msra.mxu0 %v5898
    %6714 = vmatprep.subr.bf16.mxu0 %v5905
    %6715 = vmatpush1.bf16.msra.mxu0 %v5904
    %6716 = vmatprep.subr.bf16.mxu0 %v5911
    %6717 = vmatpush1.bf16.msra.mxu0 %v5910
    %6718 = vmatprep.subr.bf16.mxu0 %v5917
    %6719 = vmatpush1.bf16.msra.mxu0 %v5916
    %6720 = vmatprep.subr.bf16.mxu0 %v5923
    %6721 = vmatpush1.bf16.msra.mxu0 %v5922
    %6722 = vmatprep.subr.bf16.mxu0 %v5929
    %6723 = vmatpush1.bf16.msra.mxu0 %v5928
    %6724 = vmatprep.subr.bf16.mxu0 %v5935
    %6725 = vmatpush1.bf16.msra.mxu0 %v5934
    %6726 = vmatprep.subr.bf16.mxu0 %v5941
    %6727 = vmatpush1.bf16.msra.mxu0 %v5940
    %6728 = vmatprep.subr.bf16.mxu0 %v5947
    %6729 = vmatpush1.bf16.msra.mxu0 %v5946
    %6730 = vmatprep.subr.bf16.mxu0 %v5953
    %6731 = vmatpush1.bf16.msra.mxu0 %v5952
    %6732 = vmatprep.subr.bf16.mxu0 %v5959
    %6733 = vmatpush1.bf16.msra.mxu0 %v5958
    %6734 = vmatprep.subr.bf16.mxu0 %v5965
    %6735 = vmatpush1.bf16.msra.mxu0 %v5964
    %6736 = vmatprep.subr.bf16.mxu0 %v5971
    %6737 = vmatpush1.bf16.msra.mxu0 %v5970
    %6738 = vmatprep.subr.bf16.mxu0 %v5977
    %6739 = vmatpush1.bf16.msra.mxu0 %v5976
    %6740 = vmatprep.subr.bf16.mxu0 %v5983
    %6741 = vmatpush1.bf16.msra.mxu0 %v5982
    %6742 = vmatprep.mubr.bf16.mxu0 %v729
    %6743 = vmatmul.mubr.bf16.gmra.mrb[0].mxu0 %v728
    %v6744 = vpop.f32.mrb[0].mxu0
    %v6745 = vadd.f32 0.0, %v6744
    %v6746 = vpop.f32.mrb[0].mxu0
    %v6747 = vadd.f32 0.0, %v6746
    %v6748 = vpop.f32.mrb[0].mxu0
    %v6749 = vpop.f32.mrb[0].mxu0
    %6750 = vdwg.mxu0
    %6751 = vmatprep.subr.bf16.mxu0 %v5989
    %6752 = vmatpush1.bf16.msra.mxu0 %v5988
    %6753 = vmatprep.subr.bf16.mxu0 %v5995
    %6754 = vmatpush1.bf16.msra.mxu0 %v5994
    %6755 = vmatprep.subr.bf16.mxu0 %v6001
    %6756 = vmatpush1.bf16.msra.mxu0 %v6000
    %6757 = vmatprep.subr.bf16.mxu0 %v6007
    %6758 = vmatpush1.bf16.msra.mxu0 %v6006
    %6759 = vmatprep.subr.bf16.mxu0 %v6013
    %6760 = vmatpush1.bf16.msra.mxu0 %v6012
    %6761 = vmatprep.subr.bf16.mxu0 %v6019
    %6762 = vmatpush1.bf16.msra.mxu0 %v6018
    %6763 = vmatprep.subr.bf16.mxu0 %v6025
    %6764 = vmatpush1.bf16.msra.mxu0 %v6024
    %6765 = vmatprep.subr.bf16.mxu0 %v6031
    %6766 = vmatpush1.bf16.msra.mxu0 %v6030
    %6767 = vmatprep.subr.bf16.mxu0 %v6037
    %6768 = vmatpush1.bf16.msra.mxu0 %v6036
    %6769 = vmatprep.subr.bf16.mxu0 %v6043
    %6770 = vmatpush1.bf16.msra.mxu0 %v6042
    %6771 = vmatprep.subr.bf16.mxu0 %v6049
    %6772 = vmatpush1.bf16.msra.mxu0 %v6048
    %6773 = vmatprep.subr.bf16.mxu0 %v6055
    %6774 = vmatpush1.bf16.msra.mxu0 %v6054
    %6775 = vmatprep.subr.bf16.mxu0 %v6061
    %6776 = vmatpush1.bf16.msra.mxu0 %v6060
    %6777 = vmatprep.subr.bf16.mxu0 %v6067
    %6778 = vmatpush1.bf16.msra.mxu0 %v6066
    %6779 = vmatprep.subr.bf16.mxu0 %v6073
    %6780 = vmatpush1.bf16.msra.mxu0 %v6072
    %6781 = vmatprep.subr.bf16.mxu0 %v6079
    %6782 = vmatpush1.bf16.msra.mxu0 %v6078
    %6783 = vmatprep.mubr.bf16.mxu0 %v731
    %6784 = vmatmul.mubr.bf16.gmra.mrb[0].mxu0 %v730
    %v6785 = vpop.f32.mrb[0].mxu0
    %v6786 = vadd.f32 %v6745, %v6785
    %v6787 = vpop.f32.mrb[0].mxu0
    %v6788 = vadd.f32 %v6747, %v6787
    %v6789 = vpop.f32.mrb[0].mxu0
    %v6790 = vpop.f32.mrb[0].mxu0
    %6791 = vdwg.mxu0
    %6792 = vmatprep.subr.bf16.mxu0 %v6085
    %6793 = vmatpush1.bf16.msra.mxu0 %v6084
    %6794 = vmatprep.subr.bf16.mxu0 %v6091
    %6795 = vmatpush1.bf16.msra.mxu0 %v6090
    %6796 = vmatprep.subr.bf16.mxu0 %v6097
    %6797 = vmatpush1.bf16.msra.mxu0 %v6096
    %6798 = vmatprep.subr.bf16.mxu0 %v6103
    %6799 = vmatpush1.bf16.msra.mxu0 %v6102
    %6800 = vmatprep.subr.bf16.mxu0 %v6109
    %6801 = vmatpush1.bf16.msra.mxu0 %v6108
    %6802 = vmatprep.subr.bf16.mxu0 %v6115
    %6803 = vmatpush1.bf16.msra.mxu0 %v6114
    %6804 = vmatprep.subr.bf16.mxu0 %v6121
    %6805 = vmatpush1.bf16.msra.mxu0 %v6120
    %6806 = vmatprep.subr.bf16.mxu0 %v6127
    %6807 = vmatpush1.bf16.msra.mxu0 %v6126
    %6808 = vmatprep.subr.bf16.mxu0 %v6133
    %6809 = vmatpush1.bf16.msra.mxu0 %v6132
    %6810 = vmatprep.subr.bf16.mxu0 %v6139
    %6811 = vmatpush1.bf16.msra.mxu0 %v6138
    %6812 = vmatprep.subr.bf16.mxu0 %v6145
    %6813 = vmatpush1.bf16.msra.mxu0 %v6144
    %6814 = vmatprep.subr.bf16.mxu0 %v6151
    %6815 = vmatpush1.bf16.msra.mxu0 %v6150
    %6816 = vmatprep.subr.bf16.mxu0 %v6157
    %6817 = vmatpush1.bf16.msra.mxu0 %v6156
    %6818 = vmatprep.subr.bf16.mxu0 %v6163
    %6819 = vmatpush1.bf16.msra.mxu0 %v6162
    %6820 = vmatprep.subr.bf16.mxu0 %v6169
    %6821 = vmatpush1.bf16.msra.mxu0 %v6168
    %6822 = vmatprep.subr.bf16.mxu0 %v6175
    %6823 = vmatpush1.bf16.msra.mxu0 %v6174
    %6824 = vmatprep.mubr.bf16.mxu0 %v733
    %6825 = vmatmul.mubr.bf16.gmra.mrb[0].mxu0 %v732
    %v6826 = vpop.f32.mrb[0].mxu0
    %v6827 = vadd.f32 %v6786, %v6826
    %v6828 = vpop.f32.mrb[0].mxu0
    %v6829 = vadd.f32 %v6788, %v6828
    %v6830 = vpop.f32.mrb[0].mxu0
    %v6831 = vpop.f32.mrb[0].mxu0
    %6832 = vdwg.mxu0
    %v7121 = vunpack.c.l.b16 %v4448
    %v7122 = vunpack.c.h.b16 %v4448
    %v7123 = vunpack.c.l.b16 %v4449
    %v7124 = vunpack.c.h.b16 %v4449
    %v7125 = vunpack.c.l.b16 %v4450
    %v7126 = vunpack.c.h.b16 %v4450
    %v7127 = vunpack.c.l.b16 %v4451
    %v7128 = vunpack.c.h.b16 %v4451
    %v7129 = vunpack.c.l.b16 %v4452
    %v7130 = vunpack.c.h.b16 %v4452
    %v7131 = vunpack.c.l.b16 %v4453
    %v7132 = vunpack.c.h.b16 %v4453
    %v7133 = vunpack.c.l.b16 %v4454
    %v7134 = vunpack.c.h.b16 %v4454
    %v7135 = vunpack.c.l.b16 %v4455
    %v7136 = vunpack.c.h.b16 %v4455
    %v7137 = vunpack.c.l.b16 %v4456
    %v7138 = vunpack.c.h.b16 %v4456
    %v7139 = vunpack.c.l.b16 %v4457
    %v7140 = vunpack.c.h.b16 %v4457
    %v7141 = vunpack.c.l.b16 %v4458
    %v7142 = vunpack.c.h.b16 %v4458
    %v7143 = vunpack.c.l.b16 %v4459
    %v7144 = vunpack.c.h.b16 %v4459
    %v7145 = vunpack.c.l.b16 %v4460
    %v7146 = vunpack.c.h.b16 %v4460
    %v7147 = vunpack.c.l.b16 %v4461
    %v7148 = vunpack.c.h.b16 %v4461
    %v7149 = vunpack.c.l.b16 %v4462
    %v7150 = vunpack.c.h.b16 %v4462
    %v7151 = vunpack.c.l.b16 %v4463
    %v7152 = vunpack.c.h.b16 %v4463
    %v7153 = vunpack.c.l.b16 %v4464
    %v7154 = vunpack.c.h.b16 %v4464
    %v7155 = vunpack.c.l.b16 %v4465
    %v7156 = vunpack.c.h.b16 %v4465
    %v7157 = vunpack.c.l.b16 %v4466
    %v7158 = vunpack.c.h.b16 %v4466
    %v7159 = vunpack.c.l.b16 %v4467
    %v7160 = vunpack.c.h.b16 %v4467
    %v7161 = vunpack.c.l.b16 %v4468
    %v7162 = vunpack.c.h.b16 %v4468
    %v7163 = vunpack.c.l.b16 %v4469
    %v7164 = vunpack.c.h.b16 %v4469
    %v7165 = vunpack.c.l.b16 %v4470
    %v7166 = vunpack.c.h.b16 %v4470
    %v7167 = vunpack.c.l.b16 %v4471
    %v7168 = vunpack.c.h.b16 %v4471
    %v7169 = vunpack.c.l.b16 %v4472
    %v7170 = vunpack.c.h.b16 %v4472
    %v7171 = vunpack.c.l.b16 %v4473
    %v7172 = vunpack.c.h.b16 %v4473
    %v7173 = vunpack.c.l.b16 %v4474
    %v7174 = vunpack.c.h.b16 %v4474
    %v7175 = vunpack.c.l.b16 %v4475
    %v7176 = vunpack.c.h.b16 %v4475
    %v7177 = vunpack.c.l.b16 %v4476
    %v7178 = vunpack.c.h.b16 %v4476
    %v7179 = vunpack.c.l.b16 %v4477
    %v7180 = vunpack.c.h.b16 %v4477
    %v7181 = vunpack.c.l.b16 %v4478
    %v7182 = vunpack.c.h.b16 %v4478
    %v7183 = vunpack.c.l.b16 %v4479
    %v7184 = vunpack.c.h.b16 %v4479
    %v7185 = vunpack.c.l.b16 %v4480
    %v7186 = vunpack.c.h.b16 %v4480
    %v7187 = vunpack.c.l.b16 %v4481
    %v7188 = vunpack.c.h.b16 %v4481
    %v7189 = vunpack.c.l.b16 %v4482
    %v7190 = vunpack.c.h.b16 %v4482
    %v7191 = vunpack.c.l.b16 %v4483
    %v7192 = vunpack.c.h.b16 %v4483
    %v7193 = vunpack.c.l.b16 %v4484
    %v7194 = vunpack.c.h.b16 %v4484
    %v7195 = vunpack.c.l.b16 %v4485
    %v7196 = vunpack.c.h.b16 %v4485
    %v7197 = vunpack.c.l.b16 %v4486
    %v7198 = vunpack.c.h.b16 %v4486
    %v7199 = vunpack.c.l.b16 %v4487
    %v7200 = vunpack.c.h.b16 %v4487
    %v7201 = vunpack.c.l.b16 %v4488
    %v7202 = vunpack.c.h.b16 %v4488
    %v7203 = vunpack.c.l.b16 %v4489
    %v7204 = vunpack.c.h.b16 %v4489
    %v7205 = vunpack.c.l.b16 %v4490
    %v7206 = vunpack.c.h.b16 %v4490
    %v7207 = vunpack.c.l.b16 %v4491
    %v7208 = vunpack.c.h.b16 %v4491
    %v7209 = vunpack.c.l.b16 %v4492
    %v7210 = vunpack.c.h.b16 %v4492
    %v7211 = vunpack.c.l.b16 %v4493
    %v7212 = vunpack.c.h.b16 %v4493
    %v7213 = vunpack.c.l.b16 %v4494
    %v7214 = vunpack.c.h.b16 %v4494
    %v7215 = vunpack.c.l.b16 %v4495
    %v7216 = vunpack.c.h.b16 %v4495
    %v7217 = vunpack.c.l.b16 %v4496
    %v7218 = vunpack.c.h.b16 %v4496
    %v7219 = vunpack.c.l.b16 %v4497
    %v7220 = vunpack.c.h.b16 %v4497
    %v7221 = vunpack.c.l.b16 %v4498
    %v7222 = vunpack.c.h.b16 %v4498
    %v7223 = vunpack.c.l.b16 %v4499
    %v7224 = vunpack.c.h.b16 %v4499
    %v7225 = vunpack.c.l.b16 %v4500
    %v7226 = vunpack.c.h.b16 %v4500
    %v7227 = vunpack.c.l.b16 %v4501
    %v7228 = vunpack.c.h.b16 %v4501
    %v7229 = vunpack.c.l.b16 %v4502
    %v7230 = vunpack.c.h.b16 %v4502
    %v7231 = vunpack.c.l.b16 %v4503
    %v7232 = vunpack.c.h.b16 %v4503
    %v7233 = vunpack.c.l.b16 %v4504
    %v7234 = vunpack.c.h.b16 %v4504
    %v7235 = vunpack.c.l.b16 %v4505
    %v7236 = vunpack.c.h.b16 %v4505
    %v7237 = vunpack.c.l.b16 %v4506
    %v7238 = vunpack.c.h.b16 %v4506
    %v7239 = vunpack.c.l.b16 %v4507
    %v7240 = vunpack.c.h.b16 %v4507
    %v7241 = vunpack.c.l.b16 %v4508
    %v7242 = vunpack.c.h.b16 %v4508
    %v7243 = vunpack.c.l.b16 %v4509
    %v7244 = vunpack.c.h.b16 %v4509
    %v7245 = vunpack.c.l.b16 %v4510
    %v7246 = vunpack.c.h.b16 %v4510
    %v7247 = vunpack.c.l.b16 %v4511
    %v7248 = vunpack.c.h.b16 %v4511
    %v7249 = vunpack.c.l.b16 %v4512
    %v7250 = vunpack.c.h.b16 %v4512
    %v7251 = vunpack.c.l.b16 %v4513
    %v7252 = vunpack.c.h.b16 %v4513
    %v7253 = vunpack.c.l.b16 %v4514
    %v7254 = vunpack.c.h.b16 %v4514
    %v7255 = vunpack.c.l.b16 %v4515
    %v7256 = vunpack.c.h.b16 %v4515
    %v7257 = vunpack.c.l.b16 %v4516
    %v7258 = vunpack.c.h.b16 %v4516
    %v7259 = vunpack.c.l.b16 %v4517
    %v7260 = vunpack.c.h.b16 %v4517
    %v7261 = vunpack.c.l.b16 %v4518
    %v7262 = vunpack.c.h.b16 %v4518
    %v7263 = vunpack.c.l.b16 %v4519
    %v7264 = vunpack.c.h.b16 %v4519
    %v7265 = vunpack.c.l.b16 %v4520
    %v7266 = vunpack.c.h.b16 %v4520
    %v7267 = vunpack.c.l.b16 %v4521
    %v7268 = vunpack.c.h.b16 %v4521
    %v7269 = vunpack.c.l.b16 %v4522
    %v7270 = vunpack.c.h.b16 %v4522
    %v7271 = vunpack.c.l.b16 %v4523
    %v7272 = vunpack.c.h.b16 %v4523
    %v7273 = vunpack.c.l.b16 %v4524
    %v7274 = vunpack.c.h.b16 %v4524
    %v7275 = vunpack.c.l.b16 %v4525
    %v7276 = vunpack.c.h.b16 %v4525
    %v7277 = vunpack.c.l.b16 %v4526
    %v7278 = vunpack.c.h.b16 %v4526
    %v7279 = vunpack.c.l.b16 %v4527
    %v7280 = vunpack.c.h.b16 %v4527
    %v7281 = vunpack.c.l.b16 %v4528
    %v7282 = vunpack.c.h.b16 %v4528
    %v7283 = vunpack.c.l.b16 %v4529
    %v7284 = vunpack.c.h.b16 %v4529
    %v7285 = vunpack.c.l.b16 %v4530
    %v7286 = vunpack.c.h.b16 %v4530
    %v7287 = vunpack.c.l.b16 %v4531
    %v7288 = vunpack.c.h.b16 %v4531
    %v7289 = vunpack.c.l.b16 %v4532
    %v7290 = vunpack.c.h.b16 %v4532
    %v7291 = vunpack.c.l.b16 %v4533
    %v7292 = vunpack.c.h.b16 %v4533
    %v7293 = vunpack.c.l.b16 %v4534
    %v7294 = vunpack.c.h.b16 %v4534
    %v7295 = vunpack.c.l.b16 %v4535
    %v7296 = vunpack.c.h.b16 %v4535
    %v7297 = vunpack.c.l.b16 %v4536
    %v7298 = vunpack.c.h.b16 %v4536
    %v7299 = vunpack.c.l.b16 %v4537
    %v7300 = vunpack.c.h.b16 %v4537
    %v7301 = vunpack.c.l.b16 %v4538
    %v7302 = vunpack.c.h.b16 %v4538
    %v7303 = vunpack.c.l.b16 %v4539
    %v7304 = vunpack.c.h.b16 %v4539
    %v7305 = vunpack.c.l.b16 %v4540
    %v7306 = vunpack.c.h.b16 %v4540
    %v7307 = vunpack.c.l.b16 %v4541
    %v7308 = vunpack.c.h.b16 %v4541
    %v7309 = vunpack.c.l.b16 %v4542
    %v7310 = vunpack.c.h.b16 %v4542
    %v7311 = vunpack.c.l.b16 %v4543
    %v7312 = vunpack.c.h.b16 %v4543
    %v7313 = vunpack.c.l.b16 %v4544
    %v7314 = vunpack.c.h.b16 %v4544
    %v7315 = vunpack.c.l.b16 %v4545
    %v7316 = vunpack.c.h.b16 %v4545
    %v7317 = vunpack.c.l.b16 %v4546
    %v7318 = vunpack.c.h.b16 %v4546
    %v7319 = vunpack.c.l.b16 %v4547
    %v7320 = vunpack.c.h.b16 %v4547
    %v7321 = vunpack.c.l.b16 %v4548
    %v7322 = vunpack.c.h.b16 %v4548
    %v7323 = vunpack.c.l.b16 %v4549
    %v7324 = vunpack.c.h.b16 %v4549
    %v7325 = vunpack.c.l.b16 %v4550
    %v7326 = vunpack.c.h.b16 %v4550
    %v7327 = vunpack.c.l.b16 %v4551
    %v7328 = vunpack.c.h.b16 %v4551
    %v7329 = vunpack.c.l.b16 %v4552
    %v7330 = vunpack.c.h.b16 %v4552
    %v7331 = vunpack.c.l.b16 %v4553
    %v7332 = vunpack.c.h.b16 %v4553
    %v7333 = vunpack.c.l.b16 %v4554
    %v7334 = vunpack.c.h.b16 %v4554
    %v7335 = vunpack.c.l.b16 %v4555
    %v7336 = vunpack.c.h.b16 %v4555
    %v7337 = vunpack.c.l.b16 %v4556
    %v7338 = vunpack.c.h.b16 %v4556
    %v7339 = vunpack.c.l.b16 %v4557
    %v7340 = vunpack.c.h.b16 %v4557
    %v7341 = vunpack.c.l.b16 %v4558
    %v7342 = vunpack.c.h.b16 %v4558
    %v7343 = vunpack.c.l.b16 %v4559
    %v7344 = vunpack.c.h.b16 %v4559
    %v7345 = vunpack.c.l.b16 %v4560
    %v7346 = vunpack.c.h.b16 %v4560
    %v7347 = vunpack.c.l.b16 %v4561
    %v7348 = vunpack.c.h.b16 %v4561
    %v7349 = vunpack.c.l.b16 %v4562
    %v7350 = vunpack.c.h.b16 %v4562
    %v7351 = vunpack.c.l.b16 %v4563
    %v7352 = vunpack.c.h.b16 %v4563
    %v7353 = vunpack.c.l.b16 %v4564
    %v7354 = vunpack.c.h.b16 %v4564
    %v7355 = vunpack.c.l.b16 %v4565
    %v7356 = vunpack.c.h.b16 %v4565
    %v7357 = vunpack.c.l.b16 %v4566
    %v7358 = vunpack.c.h.b16 %v4566
    %v7359 = vunpack.c.l.b16 %v4567
    %v7360 = vunpack.c.h.b16 %v4567
    %v7361 = vunpack.c.l.b16 %v4568
    %v7362 = vunpack.c.h.b16 %v4568
    %v7363 = vunpack.c.l.b16 %v4569
    %v7364 = vunpack.c.h.b16 %v4569
    %v7365 = vunpack.c.l.b16 %v4570
    %v7366 = vunpack.c.h.b16 %v4570
    %v7367 = vunpack.c.l.b16 %v4571
    %v7368 = vunpack.c.h.b16 %v4571
    %v7369 = vunpack.c.l.b16 %v4572
    %v7370 = vunpack.c.h.b16 %v4572
    %v7371 = vunpack.c.l.b16 %v4573
    %v7372 = vunpack.c.h.b16 %v4573
    %v7373 = vunpack.c.l.b16 %v4574
    %v7374 = vunpack.c.h.b16 %v4574
    %v7375 = vunpack.c.l.b16 %v4575
    %v7376 = vunpack.c.h.b16 %v4575
    %v7377 = vunpack.c.l.b16 %v4576
    %v7378 = vunpack.c.h.b16 %v4576
    %v7379 = vunpack.c.l.b16 %v4577
    %v7380 = vunpack.c.h.b16 %v4577
    %v7381 = vunpack.c.l.b16 %v4578
    %v7382 = vunpack.c.h.b16 %v4578
    %v7383 = vunpack.c.l.b16 %v4579
    %v7384 = vunpack.c.h.b16 %v4579
    %v7385 = vunpack.c.l.b16 %v4580
    %v7386 = vunpack.c.h.b16 %v4580
    %v7387 = vunpack.c.l.b16 %v4581
    %v7388 = vunpack.c.h.b16 %v4581
    %v7389 = vunpack.c.l.b16 %v4582
    %v7390 = vunpack.c.h.b16 %v4582
    %v7391 = vunpack.c.l.b16 %v4583
    %v7392 = vunpack.c.h.b16 %v4583
    %v7393 = vunpack.c.l.b16 %v4584
    %v7394 = vunpack.c.h.b16 %v4584
    %v7395 = vunpack.c.l.b16 %v4585
    %v7396 = vunpack.c.h.b16 %v4585
    %v7397 = vunpack.c.l.b16 %v4586
    %v7398 = vunpack.c.h.b16 %v4586
    %v7399 = vunpack.c.l.b16 %v4587
    %v7400 = vunpack.c.h.b16 %v4587
    %v7401 = vunpack.c.l.b16 %v4588
    %v7402 = vunpack.c.h.b16 %v4588
    %v7403 = vunpack.c.l.b16 %v4589
    %v7404 = vunpack.c.h.b16 %v4589
    %v7405 = vunpack.c.l.b16 %v4590
    %v7406 = vunpack.c.h.b16 %v4590
    %v7407 = vunpack.c.l.b16 %v4591
    %v7408 = vunpack.c.h.b16 %v4591
    %v7409 = vunpack.c.l.b16 %v4592
    %v7410 = vunpack.c.h.b16 %v4592
    %v7411 = vunpack.c.l.b16 %v4593
    %v7412 = vunpack.c.h.b16 %v4593
    %v7413 = vunpack.c.l.b16 %v4594
    %v7414 = vunpack.c.h.b16 %v4594
    %v7415 = vunpack.c.l.b16 %v4595
    %v7416 = vunpack.c.h.b16 %v4595
    %v7417 = vunpack.c.l.b16 %v4596
    %v7418 = vunpack.c.h.b16 %v4596
    %v7419 = vunpack.c.l.b16 %v4597
    %v7420 = vunpack.c.h.b16 %v4597
    %v7421 = vunpack.c.l.b16 %v4598
    %v7422 = vunpack.c.h.b16 %v4598
    %v7423 = vunpack.c.l.b16 %v4599
    %v7424 = vunpack.c.h.b16 %v4599
    %v7425 = vunpack.c.l.b16 %v4600
    %v7426 = vunpack.c.h.b16 %v4600
    %v7427 = vunpack.c.l.b16 %v4601
    %v7428 = vunpack.c.h.b16 %v4601
    %v7429 = vunpack.c.l.b16 %v4602
    %v7430 = vunpack.c.h.b16 %v4602
    %v7431 = vunpack.c.l.b16 %v4603
    %v7432 = vunpack.c.h.b16 %v4603
    %v7433 = vunpack.c.l.b16 %v4604
    %v7434 = vunpack.c.h.b16 %v4604
    %v7435 = vunpack.c.l.b16 %v4605
    %v7436 = vunpack.c.h.b16 %v4605
    %v7437 = vunpack.c.l.b16 %v4606
    %v7438 = vunpack.c.h.b16 %v4606
    %v7439 = vunpack.c.l.b16 %v4607
    %v7440 = vunpack.c.h.b16 %v4607
    %v7441 = vunpack.c.l.b16 %v4608
    %v7442 = vunpack.c.h.b16 %v4608
    %v7443 = vunpack.c.l.b16 %v4609
    %v7444 = vunpack.c.h.b16 %v4609
    %v7445 = vunpack.c.l.b16 %v4610
    %v7446 = vunpack.c.h.b16 %v4610
    %v7447 = vunpack.c.l.b16 %v4611
    %v7448 = vunpack.c.h.b16 %v4611
    %v7449 = vunpack.c.l.b16 %v4612
    %v7450 = vunpack.c.h.b16 %v4612
    %v7451 = vunpack.c.l.b16 %v4613
    %v7452 = vunpack.c.h.b16 %v4613
    %v7453 = vunpack.c.l.b16 %v4614
    %v7454 = vunpack.c.h.b16 %v4614
    %v7455 = vunpack.c.l.b16 %v4615
    %v7456 = vunpack.c.h.b16 %v4615
    %v7457 = vunpack.c.l.b16 %v4616
    %v7458 = vunpack.c.h.b16 %v4616
    %v7459 = vunpack.c.l.b16 %v4617
    %v7460 = vunpack.c.h.b16 %v4617
    %v7461 = vunpack.c.l.b16 %v4618
    %v7462 = vunpack.c.h.b16 %v4618
    %v7463 = vunpack.c.l.b16 %v4619
    %v7464 = vunpack.c.h.b16 %v4619
    %v7465 = vunpack.c.l.b16 %v4620
    %v7466 = vunpack.c.h.b16 %v4620
    %v7467 = vunpack.c.l.b16 %v4621
    %v7468 = vunpack.c.h.b16 %v4621
    %v7469 = vunpack.c.l.b16 %v4622
    %v7470 = vunpack.c.h.b16 %v4622
    %v7471 = vunpack.c.l.b16 %v4623
    %v7472 = vunpack.c.h.b16 %v4623
    %v7473 = vunpack.c.l.b16 %v4624
    %v7474 = vunpack.c.h.b16 %v4624
    %v7475 = vunpack.c.l.b16 %v4625
    %v7476 = vunpack.c.h.b16 %v4625
    %v7477 = vunpack.c.l.b16 %v4626
    %v7478 = vunpack.c.h.b16 %v4626
    %v7479 = vunpack.c.l.b16 %v4627
    %v7480 = vunpack.c.h.b16 %v4627
    %v7481 = vunpack.c.l.b16 %v4628
    %v7482 = vunpack.c.h.b16 %v4628
    %v7483 = vunpack.c.l.b16 %v4629
    %v7484 = vunpack.c.h.b16 %v4629
    %v7485 = vunpack.c.l.b16 %v4630
    %v7486 = vunpack.c.h.b16 %v4630
    %v7487 = vunpack.c.l.b16 %v4631
    %v7488 = vunpack.c.h.b16 %v4631
    %v7489 = vunpack.c.l.b16 %v4632
    %v7490 = vunpack.c.h.b16 %v4632
    %v7491 = vunpack.c.l.b16 %v4633
    %v7492 = vunpack.c.h.b16 %v4633
    %v7493 = vunpack.c.l.b16 %v4634
    %v7494 = vunpack.c.h.b16 %v4634
    %v7495 = vunpack.c.l.b16 %v4635
    %v7496 = vunpack.c.h.b16 %v4635
    %v7497 = vunpack.c.l.b16 %v4636
    %v7498 = vunpack.c.h.b16 %v4636
    %v7499 = vunpack.c.l.b16 %v4637
    %v7500 = vunpack.c.h.b16 %v4637
    %v7501 = vunpack.c.l.b16 %v4638
    %v7502 = vunpack.c.h.b16 %v4638
    %v7503 = vunpack.c.l.b16 %v4639
    %v7504 = vunpack.c.h.b16 %v4639
    %v7505 = vunpack.c.l.b16 %v4640
    %v7506 = vunpack.c.h.b16 %v4640
    %v7507 = vunpack.c.l.b16 %v4641
    %v7508 = vunpack.c.h.b16 %v4641
    %v7509 = vunpack.c.l.b16 %v4642
    %v7510 = vunpack.c.h.b16 %v4642
    %v7511 = vunpack.c.l.b16 %v4643
    %v7512 = vunpack.c.h.b16 %v4643
    %v7513 = vunpack.c.l.b16 %v4644
    %v7514 = vunpack.c.h.b16 %v4644
    %v7515 = vunpack.c.l.b16 %v4645
    %v7516 = vunpack.c.h.b16 %v4645
    %v7517 = vunpack.c.l.b16 %v4646
    %v7518 = vunpack.c.h.b16 %v4646
    %v7519 = vunpack.c.l.b16 %v4647
    %v7520 = vunpack.c.h.b16 %v4647
    %v7521 = vunpack.c.l.b16 %v4648
    %v7522 = vunpack.c.h.b16 %v4648
    %v7523 = vunpack.c.l.b16 %v4649
    %v7524 = vunpack.c.h.b16 %v4649
    %v7525 = vunpack.c.l.b16 %v4650
    %v7526 = vunpack.c.h.b16 %v4650
    %v7527 = vunpack.c.l.b16 %v4651
    %v7528 = vunpack.c.h.b16 %v4651
    %v7529 = vunpack.c.l.b16 %v4652
    %v7530 = vunpack.c.h.b16 %v4652
    %v7531 = vunpack.c.l.b16 %v4653
    %v7532 = vunpack.c.h.b16 %v4653
    %v7533 = vunpack.c.l.b16 %v4654
    %v7534 = vunpack.c.h.b16 %v4654
    %v7535 = vunpack.c.l.b16 %v4655
    %v7536 = vunpack.c.h.b16 %v4655
    %v7537 = vunpack.c.l.b16 %v4656
    %v7538 = vunpack.c.h.b16 %v4656
    %v7539 = vunpack.c.l.b16 %v4657
    %v7540 = vunpack.c.h.b16 %v4657
    %v7541 = vunpack.c.l.b16 %v4658
    %v7542 = vunpack.c.h.b16 %v4658
    %v7543 = vunpack.c.l.b16 %v4659
    %v7544 = vunpack.c.h.b16 %v4659
    %v7545 = vunpack.c.l.b16 %v4660
    %v7546 = vunpack.c.h.b16 %v4660
    %v7547 = vunpack.c.l.b16 %v4661
    %v7548 = vunpack.c.h.b16 %v4661
    %v7549 = vunpack.c.l.b16 %v4662
    %v7550 = vunpack.c.h.b16 %v4662
    %v7551 = vunpack.c.l.b16 %v4663
    %v7552 = vunpack.c.h.b16 %v4663
    %v7553 = vunpack.c.l.b16 %v4664
    %v7554 = vunpack.c.h.b16 %v4664
    %v7555 = vunpack.c.l.b16 %v4665
    %v7556 = vunpack.c.h.b16 %v4665
    %v7557 = vunpack.c.l.b16 %v4666
    %v7558 = vunpack.c.h.b16 %v4666
    %v7559 = vunpack.c.l.b16 %v4667
    %v7560 = vunpack.c.h.b16 %v4667
    %v7561 = vunpack.c.l.b16 %v4668
    %v7562 = vunpack.c.h.b16 %v4668
    %v7563 = vunpack.c.l.b16 %v4669
    %v7564 = vunpack.c.h.b16 %v4669
    %v7565 = vunpack.c.l.b16 %v4670
    %v7566 = vunpack.c.h.b16 %v4670
    %v7567 = vunpack.c.l.b16 %v4671
    %v7568 = vunpack.c.h.b16 %v4671
    %v7569 = vunpack.c.l.b16 %v4672
    %v7570 = vunpack.c.h.b16 %v4672
    %v7571 = vunpack.c.l.b16 %v4673
    %v7572 = vunpack.c.h.b16 %v4673
    %v7573 = vunpack.c.l.b16 %v4674
    %v7574 = vunpack.c.h.b16 %v4674
    %v7575 = vunpack.c.l.b16 %v4675
    %v7576 = vunpack.c.h.b16 %v4675
    %v7577 = vunpack.c.l.b16 %v4676
    %v7578 = vunpack.c.h.b16 %v4676
    %v7579 = vunpack.c.l.b16 %v4677
    %v7580 = vunpack.c.h.b16 %v4677
    %v7581 = vunpack.c.l.b16 %v4678
    %v7582 = vunpack.c.h.b16 %v4678
    %v7583 = vunpack.c.l.b16 %v4679
    %v7584 = vunpack.c.h.b16 %v4679
    %v7585 = vunpack.c.l.b16 %v4680
    %v7586 = vunpack.c.h.b16 %v4680
    %v7587 = vunpack.c.l.b16 %v4681
    %v7588 = vunpack.c.h.b16 %v4681
    %v7589 = vunpack.c.l.b16 %v4682
    %v7590 = vunpack.c.h.b16 %v4682
    %v7591 = vunpack.c.l.b16 %v4683
    %v7592 = vunpack.c.h.b16 %v4683
    %v7593 = vunpack.c.l.b16 %v4684
    %v7594 = vunpack.c.h.b16 %v4684
    %v7595 = vunpack.c.l.b16 %v4685
    %v7596 = vunpack.c.h.b16 %v4685
    %v7597 = vunpack.c.l.b16 %v4686
    %v7598 = vunpack.c.h.b16 %v4686
    %v7599 = vunpack.c.l.b16 %v4687
    %v7600 = vunpack.c.h.b16 %v4687
    %v7601 = vunpack.c.l.b16 %v4688
    %v7602 = vunpack.c.h.b16 %v4688
    %v7603 = vunpack.c.l.b16 %v4689
    %v7604 = vunpack.c.h.b16 %v4689
    %v7605 = vunpack.c.l.b16 %v4690
    %v7606 = vunpack.c.h.b16 %v4690
    %v7607 = vunpack.c.l.b16 %v4691
    %v7608 = vunpack.c.h.b16 %v4691
    %v7609 = vunpack.c.l.b16 %v4692
    %v7610 = vunpack.c.h.b16 %v4692
    %v7611 = vunpack.c.l.b16 %v4693
    %v7612 = vunpack.c.h.b16 %v4693
    %v7613 = vunpack.c.l.b16 %v4694
    %v7614 = vunpack.c.h.b16 %v4694
    %v7615 = vunpack.c.l.b16 %v4695
    %v7616 = vunpack.c.h.b16 %v4695
    %v7617 = vunpack.c.l.b16 %v4696
    %v7618 = vunpack.c.h.b16 %v4696
    %v7619 = vunpack.c.l.b16 %v4697
    %v7620 = vunpack.c.h.b16 %v4697
    %v7621 = vunpack.c.l.b16 %v4698
    %v7622 = vunpack.c.h.b16 %v4698
    %v7623 = vunpack.c.l.b16 %v4699
    %v7624 = vunpack.c.h.b16 %v4699
    %v7625 = vunpack.c.l.b16 %v4700
    %v7626 = vunpack.c.h.b16 %v4700
    %v7627 = vunpack.c.l.b16 %v4701
    %v7628 = vunpack.c.h.b16 %v4701
    %v7629 = vunpack.c.l.b16 %v4702
    %v7630 = vunpack.c.h.b16 %v4702
    %v7631 = vunpack.c.l.b16 %v4703
    %v7632 = vunpack.c.h.b16 %v4703
    %v7633 = vunpack.c.l.b16 %v4704
    %v7634 = vunpack.c.h.b16 %v4704
    %v7635 = vunpack.c.l.b16 %v4705
    %v7636 = vunpack.c.h.b16 %v4705
    %v7637 = vunpack.c.l.b16 %v4706
    %v7638 = vunpack.c.h.b16 %v4706
    %v7639 = vunpack.c.l.b16 %v4707
    %v7640 = vunpack.c.h.b16 %v4707
    %v7641 = vunpack.c.l.b16 %v4708
    %v7642 = vunpack.c.h.b16 %v4708
    %v7643 = vunpack.c.l.b16 %v4709
    %v7644 = vunpack.c.h.b16 %v4709
    %v7645 = vunpack.c.l.b16 %v4710
    %v7646 = vunpack.c.h.b16 %v4710
    %v7647 = vunpack.c.l.b16 %v4711
    %v7648 = vunpack.c.h.b16 %v4711
    %v7649 = vunpack.c.l.b16 %v4712
    %v7650 = vunpack.c.h.b16 %v4712
    %v7651 = vunpack.c.l.b16 %v4713
    %v7652 = vunpack.c.h.b16 %v4713
    %v7653 = vunpack.c.l.b16 %v4714
    %v7654 = vunpack.c.h.b16 %v4714
    %v7655 = vunpack.c.l.b16 %v4715
    %v7656 = vunpack.c.h.b16 %v4715
    %v7657 = vunpack.c.l.b16 %v4716
    %v7658 = vunpack.c.h.b16 %v4716
    %v7659 = vunpack.c.l.b16 %v4717
    %v7660 = vunpack.c.h.b16 %v4717
    %v7661 = vunpack.c.l.b16 %v4718
    %v7662 = vunpack.c.h.b16 %v4718
    %v7663 = vunpack.c.l.b16 %v4719
    %v7664 = vunpack.c.h.b16 %v4719
    %v7665 = vunpack.c.l.b16 %v4720
    %v7666 = vunpack.c.h.b16 %v4720
    %v7667 = vunpack.c.l.b16 %v4721
    %v7668 = vunpack.c.h.b16 %v4721
    %v7669 = vunpack.c.l.b16 %v4722
    %v7670 = vunpack.c.h.b16 %v4722
    %v7671 = vunpack.c.l.b16 %v4723
    %v7672 = vunpack.c.h.b16 %v4723
    %v7673 = vunpack.c.l.b16 %v4724
    %v7674 = vunpack.c.h.b16 %v4724
    %v7675 = vunpack.c.l.b16 %v4725
    %v7676 = vunpack.c.h.b16 %v4725
    %v7677 = vunpack.c.l.b16 %v4726
    %v7678 = vunpack.c.h.b16 %v4726
    %v7679 = vunpack.c.l.b16 %v4727
    %v7680 = vunpack.c.h.b16 %v4727
    %v7681 = vunpack.c.l.b16 %v4728
    %v7682 = vunpack.c.h.b16 %v4728
    %v7683 = vunpack.c.l.b16 %v4729
    %v7684 = vunpack.c.h.b16 %v4729
    %v7685 = vunpack.c.l.b16 %v4730
    %v7686 = vunpack.c.h.b16 %v4730
    %v7687 = vunpack.c.l.b16 %v4731
    %v7688 = vunpack.c.h.b16 %v4731
    %v7689 = vunpack.c.l.b16 %v4732
    %v7690 = vunpack.c.h.b16 %v4732
    %v7691 = vunpack.c.l.b16 %v4733
    %v7692 = vunpack.c.h.b16 %v4733
    %v7693 = vunpack.c.l.b16 %v4734
    %v7694 = vunpack.c.h.b16 %v4734
    %v7695 = vunpack.c.l.b16 %v4735
    %v7696 = vunpack.c.h.b16 %v4735
    %v7697 = vpack.c.b16 %v7127, %v7121
    %v7698 = vpack.c.b16 %v7128, %v7122
    %v7699 = vpack.c.b16 %v7129, %v7123
    %v7700 = vpack.c.b16 %v7130, %v7124
    %v7701 = vpack.c.b16 %v7131, %v7125
    %v7702 = vpack.c.b16 %v7132, %v7126
    %v7703 = vpack.c.b16 %v7139, %v7133
    %v7704 = vpack.c.b16 %v7140, %v7134
    %v7705 = vpack.c.b16 %v7141, %v7135
    %v7706 = vpack.c.b16 %v7142, %v7136
    %v7707 = vpack.c.b16 %v7143, %v7137
    %v7708 = vpack.c.b16 %v7144, %v7138
    %v7709 = vpack.c.b16 %v7151, %v7145
    %v7710 = vpack.c.b16 %v7152, %v7146
    %v7711 = vpack.c.b16 %v7153, %v7147
    %v7712 = vpack.c.b16 %v7154, %v7148
    %v7713 = vpack.c.b16 %v7155, %v7149
    %v7714 = vpack.c.b16 %v7156, %v7150
    %v7715 = vpack.c.b16 %v7163, %v7157
    %v7716 = vpack.c.b16 %v7164, %v7158
    %v7717 = vpack.c.b16 %v7165, %v7159
    %v7718 = vpack.c.b16 %v7166, %v7160
    %v7719 = vpack.c.b16 %v7167, %v7161
    %v7720 = vpack.c.b16 %v7168, %v7162
    %v7721 = vpack.c.b16 %v7175, %v7169
    %v7722 = vpack.c.b16 %v7176, %v7170
    %v7723 = vpack.c.b16 %v7177, %v7171
    %v7724 = vpack.c.b16 %v7178, %v7172
    %v7725 = vpack.c.b16 %v7179, %v7173
    %v7726 = vpack.c.b16 %v7180, %v7174
    %v7727 = vpack.c.b16 %v7187, %v7181
    %v7728 = vpack.c.b16 %v7188, %v7182
    %v7729 = vpack.c.b16 %v7189, %v7183
    %v7730 = vpack.c.b16 %v7190, %v7184
    %v7731 = vpack.c.b16 %v7191, %v7185
    %v7732 = vpack.c.b16 %v7192, %v7186
    %v7733 = vpack.c.b16 %v7199, %v7193
    %v7734 = vpack.c.b16 %v7200, %v7194
    %v7735 = vpack.c.b16 %v7201, %v7195
    %v7736 = vpack.c.b16 %v7202, %v7196
    %v7737 = vpack.c.b16 %v7203, %v7197
    %v7738 = vpack.c.b16 %v7204, %v7198
    %v7739 = vpack.c.b16 %v7211, %v7205
    %v7740 = vpack.c.b16 %v7212, %v7206
    %v7741 = vpack.c.b16 %v7213, %v7207
    %v7742 = vpack.c.b16 %v7214, %v7208
    %v7743 = vpack.c.b16 %v7215, %v7209
    %v7744 = vpack.c.b16 %v7216, %v7210
    %v7745 = vpack.c.b16 %v7223, %v7217
    %v7746 = vpack.c.b16 %v7224, %v7218
    %v7747 = vpack.c.b16 %v7225, %v7219
    %v7748 = vpack.c.b16 %v7226, %v7220
    %v7749 = vpack.c.b16 %v7227, %v7221
    %v7750 = vpack.c.b16 %v7228, %v7222
    %v7751 = vpack.c.b16 %v7235, %v7229
    %v7752 = vpack.c.b16 %v7236, %v7230
    %v7753 = vpack.c.b16 %v7237, %v7231
    %v7754 = vpack.c.b16 %v7238, %v7232
    %v7755 = vpack.c.b16 %v7239, %v7233
    %v7756 = vpack.c.b16 %v7240, %v7234
    %v7757 = vpack.c.b16 %v7247, %v7241
    %v7758 = vpack.c.b16 %v7248, %v7242
    %v7759 = vpack.c.b16 %v7249, %v7243
    %v7760 = vpack.c.b16 %v7250, %v7244
    %v7761 = vpack.c.b16 %v7251, %v7245
    %v7762 = vpack.c.b16 %v7252, %v7246
    %v7763 = vpack.c.b16 %v7259, %v7253
    %v7764 = vpack.c.b16 %v7260, %v7254
    %v7765 = vpack.c.b16 %v7261, %v7255
    %v7766 = vpack.c.b16 %v7262, %v7256
    %v7767 = vpack.c.b16 %v7263, %v7257
    %v7768 = vpack.c.b16 %v7264, %v7258
    %v7769 = vpack.c.b16 %v7271, %v7265
    %v7770 = vpack.c.b16 %v7272, %v7266
    %v7771 = vpack.c.b16 %v7273, %v7267
    %v7772 = vpack.c.b16 %v7274, %v7268
    %v7773 = vpack.c.b16 %v7275, %v7269
    %v7774 = vpack.c.b16 %v7276, %v7270
    %v7775 = vpack.c.b16 %v7283, %v7277
    %v7776 = vpack.c.b16 %v7284, %v7278
    %v7777 = vpack.c.b16 %v7285, %v7279
    %v7778 = vpack.c.b16 %v7286, %v7280
    %v7779 = vpack.c.b16 %v7287, %v7281
    %v7780 = vpack.c.b16 %v7288, %v7282
    %v7781 = vpack.c.b16 %v7295, %v7289
    %v7782 = vpack.c.b16 %v7296, %v7290
    %v7783 = vpack.c.b16 %v7297, %v7291
    %v7784 = vpack.c.b16 %v7298, %v7292
    %v7785 = vpack.c.b16 %v7299, %v7293
    %v7786 = vpack.c.b16 %v7300, %v7294
    %v7787 = vpack.c.b16 %v7307, %v7301
    %v7788 = vpack.c.b16 %v7308, %v7302
    %v7789 = vpack.c.b16 %v7309, %v7303
    %v7790 = vpack.c.b16 %v7310, %v7304
    %v7791 = vpack.c.b16 %v7311, %v7305
    %v7792 = vpack.c.b16 %v7312, %v7306
    %v7793 = vpack.c.b16 %v7319, %v7313
    %v7794 = vpack.c.b16 %v7320, %v7314
    %v7795 = vpack.c.b16 %v7321, %v7315
    %v7796 = vpack.c.b16 %v7322, %v7316
    %v7797 = vpack.c.b16 %v7323, %v7317
    %v7798 = vpack.c.b16 %v7324, %v7318
    %v7799 = vpack.c.b16 %v7331, %v7325
    %v7800 = vpack.c.b16 %v7332, %v7326
    %v7801 = vpack.c.b16 %v7333, %v7327
    %v7802 = vpack.c.b16 %v7334, %v7328
    %v7803 = vpack.c.b16 %v7335, %v7329
    %v7804 = vpack.c.b16 %v7336, %v7330
    %v7805 = vpack.c.b16 %v7343, %v7337
    %v7806 = vpack.c.b16 %v7344, %v7338
    %v7807 = vpack.c.b16 %v7345, %v7339
    %v7808 = vpack.c.b16 %v7346, %v7340
    %v7809 = vpack.c.b16 %v7347, %v7341
    %v7810 = vpack.c.b16 %v7348, %v7342
    %v7811 = vpack.c.b16 %v7355, %v7349
    %v7812 = vpack.c.b16 %v7356, %v7350
    %v7813 = vpack.c.b16 %v7357, %v7351
    %v7814 = vpack.c.b16 %v7358, %v7352
    %v7815 = vpack.c.b16 %v7359, %v7353
    %v7816 = vpack.c.b16 %v7360, %v7354
    %v7817 = vpack.c.b16 %v7367, %v7361
    %v7818 = vpack.c.b16 %v7368, %v7362
    %v7819 = vpack.c.b16 %v7369, %v7363
    %v7820 = vpack.c.b16 %v7370, %v7364
    %v7821 = vpack.c.b16 %v7371, %v7365
    %v7822 = vpack.c.b16 %v7372, %v7366
    %v7823 = vpack.c.b16 %v7379, %v7373
    %v7824 = vpack.c.b16 %v7380, %v7374
    %v7825 = vpack.c.b16 %v7381, %v7375
    %v7826 = vpack.c.b16 %v7382, %v7376
    %v7827 = vpack.c.b16 %v7383, %v7377
    %v7828 = vpack.c.b16 %v7384, %v7378
    %v7829 = vpack.c.b16 %v7391, %v7385
    %v7830 = vpack.c.b16 %v7392, %v7386
    %v7831 = vpack.c.b16 %v7393, %v7387
    %v7832 = vpack.c.b16 %v7394, %v7388
    %v7833 = vpack.c.b16 %v7395, %v7389
    %v7834 = vpack.c.b16 %v7396, %v7390
    %v7835 = vpack.c.b16 %v7403, %v7397
    %v7836 = vpack.c.b16 %v7404, %v7398
    %v7837 = vpack.c.b16 %v7405, %v7399
    %v7838 = vpack.c.b16 %v7406, %v7400
    %v7839 = vpack.c.b16 %v7407, %v7401
    %v7840 = vpack.c.b16 %v7408, %v7402
    %v7841 = vpack.c.b16 %v7415, %v7409
    %v7842 = vpack.c.b16 %v7416, %v7410
    %v7843 = vpack.c.b16 %v7417, %v7411
    %v7844 = vpack.c.b16 %v7418, %v7412
    %v7845 = vpack.c.b16 %v7419, %v7413
    %v7846 = vpack.c.b16 %v7420, %v7414
    %v7847 = vpack.c.b16 %v7427, %v7421
    %v7848 = vpack.c.b16 %v7428, %v7422
    %v7849 = vpack.c.b16 %v7429, %v7423
    %v7850 = vpack.c.b16 %v7430, %v7424
    %v7851 = vpack.c.b16 %v7431, %v7425
    %v7852 = vpack.c.b16 %v7432, %v7426
    %v7853 = vpack.c.b16 %v7439, %v7433
    %v7854 = vpack.c.b16 %v7440, %v7434
    %v7855 = vpack.c.b16 %v7441, %v7435
    %v7856 = vpack.c.b16 %v7442, %v7436
    %v7857 = vpack.c.b16 %v7443, %v7437
    %v7858 = vpack.c.b16 %v7444, %v7438
    %v7859 = vpack.c.b16 %v7451, %v7445
    %v7860 = vpack.c.b16 %v7452, %v7446
    %v7861 = vpack.c.b16 %v7453, %v7447
    %v7862 = vpack.c.b16 %v7454, %v7448
    %v7863 = vpack.c.b16 %v7455, %v7449
    %v7864 = vpack.c.b16 %v7456, %v7450
    %v7865 = vpack.c.b16 %v7463, %v7457
    %v7866 = vpack.c.b16 %v7464, %v7458
    %v7867 = vpack.c.b16 %v7465, %v7459
    %v7868 = vpack.c.b16 %v7466, %v7460
    %v7869 = vpack.c.b16 %v7467, %v7461
    %v7870 = vpack.c.b16 %v7468, %v7462
    %v7871 = vpack.c.b16 %v7475, %v7469
    %v7872 = vpack.c.b16 %v7476, %v7470
    %v7873 = vpack.c.b16 %v7477, %v7471
    %v7874 = vpack.c.b16 %v7478, %v7472
    %v7875 = vpack.c.b16 %v7479, %v7473
    %v7876 = vpack.c.b16 %v7480, %v7474
    %v7877 = vpack.c.b16 %v7487, %v7481
    %v7878 = vpack.c.b16 %v7488, %v7482
    %v7879 = vpack.c.b16 %v7489, %v7483
    %v7880 = vpack.c.b16 %v7490, %v7484
    %v7881 = vpack.c.b16 %v7491, %v7485
    %v7882 = vpack.c.b16 %v7492, %v7486
    %v7883 = vpack.c.b16 %v7499, %v7493
    %v7884 = vpack.c.b16 %v7500, %v7494
    %v7885 = vpack.c.b16 %v7501, %v7495
    %v7886 = vpack.c.b16 %v7502, %v7496
    %v7887 = vpack.c.b16 %v7503, %v7497
    %v7888 = vpack.c.b16 %v7504, %v7498
    %v7889 = vpack.c.b16 %v7511, %v7505
    %v7890 = vpack.c.b16 %v7512, %v7506
    %v7891 = vpack.c.b16 %v7513, %v7507
    %v7892 = vpack.c.b16 %v7514, %v7508
    %v7893 = vpack.c.b16 %v7515, %v7509
    %v7894 = vpack.c.b16 %v7516, %v7510
    %v7895 = vpack.c.b16 %v7523, %v7517
    %v7896 = vpack.c.b16 %v7524, %v7518
    %v7897 = vpack.c.b16 %v7525, %v7519
    %v7898 = vpack.c.b16 %v7526, %v7520
    %v7899 = vpack.c.b16 %v7527, %v7521
    %v7900 = vpack.c.b16 %v7528, %v7522
    %v7901 = vpack.c.b16 %v7535, %v7529
    %v7902 = vpack.c.b16 %v7536, %v7530
    %v7903 = vpack.c.b16 %v7537, %v7531
    %v7904 = vpack.c.b16 %v7538, %v7532
    %v7905 = vpack.c.b16 %v7539, %v7533
    %v7906 = vpack.c.b16 %v7540, %v7534
    %v7907 = vpack.c.b16 %v7547, %v7541
    %v7908 = vpack.c.b16 %v7548, %v7542
    %v7909 = vpack.c.b16 %v7549, %v7543
    %v7910 = vpack.c.b16 %v7550, %v7544
    %v7911 = vpack.c.b16 %v7551, %v7545
    %v7912 = vpack.c.b16 %v7552, %v7546
    %v7913 = vpack.c.b16 %v7559, %v7553
    %v7914 = vpack.c.b16 %v7560, %v7554
    %v7915 = vpack.c.b16 %v7561, %v7555
    %v7916 = vpack.c.b16 %v7562, %v7556
    %v7917 = vpack.c.b16 %v7563, %v7557
    %v7918 = vpack.c.b16 %v7564, %v7558
    %v7919 = vpack.c.b16 %v7571, %v7565
    %v7920 = vpack.c.b16 %v7572, %v7566
    %v7921 = vpack.c.b16 %v7573, %v7567
    %v7922 = vpack.c.b16 %v7574, %v7568
    %v7923 = vpack.c.b16 %v7575, %v7569
    %v7924 = vpack.c.b16 %v7576, %v7570
    %v7925 = vpack.c.b16 %v7583, %v7577
    %v7926 = vpack.c.b16 %v7584, %v7578
    %v7927 = vpack.c.b16 %v7585, %v7579
    %v7928 = vpack.c.b16 %v7586, %v7580
    %v7929 = vpack.c.b16 %v7587, %v7581
    %v7930 = vpack.c.b16 %v7588, %v7582
    %v7931 = vpack.c.b16 %v7595, %v7589
    %v7932 = vpack.c.b16 %v7596, %v7590
    %v7933 = vpack.c.b16 %v7597, %v7591
    %v7934 = vpack.c.b16 %v7598, %v7592
    %v7935 = vpack.c.b16 %v7599, %v7593
    %v7936 = vpack.c.b16 %v7600, %v7594
    %v7937 = vpack.c.b16 %v7607, %v7601
    %v7938 = vpack.c.b16 %v7608, %v7602
    %v7939 = vpack.c.b16 %v7609, %v7603
    %v7940 = vpack.c.b16 %v7610, %v7604
    %v7941 = vpack.c.b16 %v7611, %v7605
    %v7942 = vpack.c.b16 %v7612, %v7606
    %v7943 = vpack.c.b16 %v7619, %v7613
    %v7944 = vpack.c.b16 %v7620, %v7614
    %v7945 = vpack.c.b16 %v7621, %v7615
    %v7946 = vpack.c.b16 %v7622, %v7616
    %v7947 = vpack.c.b16 %v7623, %v7617
    %v7948 = vpack.c.b16 %v7624, %v7618
    %v7949 = vpack.c.b16 %v7631, %v7625
    %v7950 = vpack.c.b16 %v7632, %v7626
    %v7951 = vpack.c.b16 %v7633, %v7627
    %v7952 = vpack.c.b16 %v7634, %v7628
    %v7953 = vpack.c.b16 %v7635, %v7629
    %v7954 = vpack.c.b16 %v7636, %v7630
    %v7955 = vpack.c.b16 %v7643, %v7637
    %v7956 = vpack.c.b16 %v7644, %v7638
    %v7957 = vpack.c.b16 %v7645, %v7639
    %v7958 = vpack.c.b16 %v7646, %v7640
    %v7959 = vpack.c.b16 %v7647, %v7641
    %v7960 = vpack.c.b16 %v7648, %v7642
    %v7961 = vpack.c.b16 %v7655, %v7649
    %v7962 = vpack.c.b16 %v7656, %v7650
    %v7963 = vpack.c.b16 %v7657, %v7651
    %v7964 = vpack.c.b16 %v7658, %v7652
    %v7965 = vpack.c.b16 %v7659, %v7653
    %v7966 = vpack.c.b16 %v7660, %v7654
    %v7967 = vpack.c.b16 %v7667, %v7661
    %v7968 = vpack.c.b16 %v7668, %v7662
    %v7969 = vpack.c.b16 %v7669, %v7663
    %v7970 = vpack.c.b16 %v7670, %v7664
    %v7971 = vpack.c.b16 %v7671, %v7665
    %v7972 = vpack.c.b16 %v7672, %v7666
    %v7973 = vpack.c.b16 %v7679, %v7673
    %v7974 = vpack.c.b16 %v7680, %v7674
    %v7975 = vpack.c.b16 %v7681, %v7675
    %v7976 = vpack.c.b16 %v7682, %v7676
    %v7977 = vpack.c.b16 %v7683, %v7677
    %v7978 = vpack.c.b16 %v7684, %v7678
    %v7979 = vpack.c.b16 %v7691, %v7685
    %v7980 = vpack.c.b16 %v7692, %v7686
    %v7981 = vpack.c.b16 %v7693, %v7687
    %v7982 = vpack.c.b16 %v7694, %v7688
    %v7983 = vpack.c.b16 %v7695, %v7689
    %v7984 = vpack.c.b16 %v7696, %v7690
    %8273 = vmatprep.subr.bf16.mxu0 %v7698
    %8274 = vmatpush1.bf16.msra.mxu0 %v7697
    %8275 = vmatprep.subr.bf16.mxu0 %v7704
    %8276 = vmatpush1.bf16.msra.mxu0 %v7703
    %8277 = vmatprep.subr.bf16.mxu0 %v7710
    %8278 = vmatpush1.bf16.msra.mxu0 %v7709
    %8279 = vmatprep.subr.bf16.mxu0 %v7716
    %8280 = vmatpush1.bf16.msra.mxu0 %v7715
    %8281 = vmatprep.subr.bf16.mxu0 %v7722
    %8282 = vmatpush1.bf16.msra.mxu0 %v7721
    %8283 = vmatprep.subr.bf16.mxu0 %v7728
    %8284 = vmatpush1.bf16.msra.mxu0 %v7727
    %8285 = vmatprep.subr.bf16.mxu0 %v7734
    %8286 = vmatpush1.bf16.msra.mxu0 %v7733
    %8287 = vmatprep.subr.bf16.mxu0 %v7740
    %8288 = vmatpush1.bf16.msra.mxu0 %v7739
    %8289 = vmatprep.subr.bf16.mxu0 %v7746
    %8290 = vmatpush1.bf16.msra.mxu0 %v7745
    %8291 = vmatprep.subr.bf16.mxu0 %v7752
    %8292 = vmatpush1.bf16.msra.mxu0 %v7751
    %8293 = vmatprep.subr.bf16.mxu0 %v7758
    %8294 = vmatpush1.bf16.msra.mxu0 %v7757
    %8295 = vmatprep.subr.bf16.mxu0 %v7764
    %8296 = vmatpush1.bf16.msra.mxu0 %v7763
    %8297 = vmatprep.subr.bf16.mxu0 %v7770
    %8298 = vmatpush1.bf16.msra.mxu0 %v7769
    %8299 = vmatprep.subr.bf16.mxu0 %v7776
    %8300 = vmatpush1.bf16.msra.mxu0 %v7775
    %8301 = vmatprep.subr.bf16.mxu0 %v7782
    %8302 = vmatpush1.bf16.msra.mxu0 %v7781
    %8303 = vmatprep.subr.bf16.mxu0 %v7788
    %8304 = vmatpush1.bf16.msra.mxu0 %v7787
    %8305 = vmatprep.mubr.bf16.mxu0 %v2559
    %8306 = vmatmul.mubr.bf16.gmra.mrb[0].mxu0 %v2558
    %v8307 = vpop.f32.mrb[0].mxu0
    %v8308 = vadd.f32 %v6581, %v8307
    %v8309 = vpop.f32.mrb[0].mxu0
    %v8310 = vadd.f32 %v6583, %v8309
    %v8311 = vpop.f32.mrb[0].mxu0
    %v8312 = vpop.f32.mrb[0].mxu0
    %8313 = vdwg.mxu0
    %8314 = vmatprep.subr.bf16.mxu0 %v7794
    %8315 = vmatpush1.bf16.msra.mxu0 %v7793
    %8316 = vmatprep.subr.bf16.mxu0 %v7800
    %8317 = vmatpush1.bf16.msra.mxu0 %v7799
    %8318 = vmatprep.subr.bf16.mxu0 %v7806
    %8319 = vmatpush1.bf16.msra.mxu0 %v7805
    %8320 = vmatprep.subr.bf16.mxu0 %v7812
    %8321 = vmatpush1.bf16.msra.mxu0 %v7811
    %8322 = vmatprep.subr.bf16.mxu0 %v7818
    %8323 = vmatpush1.bf16.msra.mxu0 %v7817
    %8324 = vmatprep.subr.bf16.mxu0 %v7824
    %8325 = vmatpush1.bf16.msra.mxu0 %v7823
    %8326 = vmatprep.subr.bf16.mxu0 %v7830
    %8327 = vmatpush1.bf16.msra.mxu0 %v7829
    %8328 = vmatprep.subr.bf16.mxu0 %v7836
    %8329 = vmatpush1.bf16.msra.mxu0 %v7835
    %8330 = vmatprep.subr.bf16.mxu0 %v7842
    %8331 = vmatpush1.bf16.msra.mxu0 %v7841
    %8332 = vmatprep.subr.bf16.mxu0 %v7848
    %8333 = vmatpush1.bf16.msra.mxu0 %v7847
    %8334 = vmatprep.subr.bf16.mxu0 %v7854
    %8335 = vmatpush1.bf16.msra.mxu0 %v7853
    %8336 = vmatprep.subr.bf16.mxu0 %v7860
    %8337 = vmatpush1.bf16.msra.mxu0 %v7859
    %8338 = vmatprep.subr.bf16.mxu0 %v7866
    %8339 = vmatpush1.bf16.msra.mxu0 %v7865
    %8340 = vmatprep.subr.bf16.mxu0 %v7872
    %8341 = vmatpush1.bf16.msra.mxu0 %v7871
    %8342 = vmatprep.subr.bf16.mxu0 %v7878
    %8343 = vmatpush1.bf16.msra.mxu0 %v7877
    %8344 = vmatprep.subr.bf16.mxu0 %v7884
    %8345 = vmatpush1.bf16.msra.mxu0 %v7883
    %8346 = vmatprep.mubr.bf16.mxu0 %v2561
    %8347 = vmatmul.mubr.bf16.gmra.mrb[0].mxu0 %v2560
    %v8348 = vpop.f32.mrb[0].mxu0
    %v8349 = vadd.f32 %v8308, %v8348
    %v8350 = vpop.f32.mrb[0].mxu0
    %v8351 = vadd.f32 %v8310, %v8350
    %v8352 = vpop.f32.mrb[0].mxu0
    %v8353 = vpop.f32.mrb[0].mxu0
    %8354 = vdwg.mxu0
    %8355 = vmatprep.subr.bf16.mxu0 %v7890
    %8356 = vmatpush1.bf16.msra.mxu0 %v7889
    %8357 = vmatprep.subr.bf16.mxu0 %v7896
    %8358 = vmatpush1.bf16.msra.mxu0 %v7895
    %8359 = vmatprep.subr.bf16.mxu0 %v7902
    %8360 = vmatpush1.bf16.msra.mxu0 %v7901
    %8361 = vmatprep.subr.bf16.mxu0 %v7908
    %8362 = vmatpush1.bf16.msra.mxu0 %v7907
    %8363 = vmatprep.subr.bf16.mxu0 %v7914
    %8364 = vmatpush1.bf16.msra.mxu0 %v7913
    %8365 = vmatprep.subr.bf16.mxu0 %v7920
    %8366 = vmatpush1.bf16.msra.mxu0 %v7919
    %8367 = vmatprep.subr.bf16.mxu0 %v7926
    %8368 = vmatpush1.bf16.msra.mxu0 %v7925
    %8369 = vmatprep.subr.bf16.mxu0 %v7932
    %8370 = vmatpush1.bf16.msra.mxu0 %v7931
    %8371 = vmatprep.subr.bf16.mxu0 %v7938
    %8372 = vmatpush1.bf16.msra.mxu0 %v7937
    %8373 = vmatprep.subr.bf16.mxu0 %v7944
    %8374 = vmatpush1.bf16.msra.mxu0 %v7943
    %8375 = vmatprep.subr.bf16.mxu0 %v7950
    %8376 = vmatpush1.bf16.msra.mxu0 %v7949
    %8377 = vmatprep.subr.bf16.mxu0 %v7956
    %8378 = vmatpush1.bf16.msra.mxu0 %v7955
    %8379 = vmatprep.subr.bf16.mxu0 %v7962
    %8380 = vmatpush1.bf16.msra.mxu0 %v7961
    %8381 = vmatprep.subr.bf16.mxu0 %v7968
    %8382 = vmatpush1.bf16.msra.mxu0 %v7967
    %8383 = vmatprep.subr.bf16.mxu0 %v7974
    %8384 = vmatpush1.bf16.msra.mxu0 %v7973
    %8385 = vmatprep.subr.bf16.mxu0 %v7980
    %8386 = vmatpush1.bf16.msra.mxu0 %v7979
    %8387 = vmatprep.mubr.bf16.mxu0 %v2563
    %8388 = vmatmul.mubr.bf16.gmra.mrb[0].mxu0 %v2562
    %v8389 = vpop.f32.mrb[0].mxu0
    %v8390 = vadd.f32 %v8349, %v8389
    %v8391 = vpop.f32.mrb[0].mxu0
    %v8392 = vadd.f32 %v8351, %v8391
    %v8393 = vpop.f32.mrb[0].mxu0
    %v8394 = vpop.f32.mrb[0].mxu0
    %8395 = vdwg.mxu0
    %8396 = vmatprep.subr.bf16.mxu0 %v7700
    %8397 = vmatpush1.bf16.msra.mxu0 %v7699
    %8398 = vmatprep.subr.bf16.mxu0 %v7706
    %8399 = vmatpush1.bf16.msra.mxu0 %v7705
    %8400 = vmatprep.subr.bf16.mxu0 %v7712
    %8401 = vmatpush1.bf16.msra.mxu0 %v7711
    %8402 = vmatprep.subr.bf16.mxu0 %v7718
    %8403 = vmatpush1.bf16.msra.mxu0 %v7717
    %8404 = vmatprep.subr.bf16.mxu0 %v7724
    %8405 = vmatpush1.bf16.msra.mxu0 %v7723
    %8406 = vmatprep.subr.bf16.mxu0 %v7730
    %8407 = vmatpush1.bf16.msra.mxu0 %v7729
    %8408 = vmatprep.subr.bf16.mxu0 %v7736
    %8409 = vmatpush1.bf16.msra.mxu0 %v7735
    %8410 = vmatprep.subr.bf16.mxu0 %v7742
    %8411 = vmatpush1.bf16.msra.mxu0 %v7741
    %8412 = vmatprep.subr.bf16.mxu0 %v7748
    %8413 = vmatpush1.bf16.msra.mxu0 %v7747
    %8414 = vmatprep.subr.bf16.mxu0 %v7754
    %8415 = vmatpush1.bf16.msra.mxu0 %v7753
    %8416 = vmatprep.subr.bf16.mxu0 %v7760
    %8417 = vmatpush1.bf16.msra.mxu0 %v7759
    %8418 = vmatprep.subr.bf16.mxu0 %v7766
    %8419 = vmatpush1.bf16.msra.mxu0 %v7765
    %8420 = vmatprep.subr.bf16.mxu0 %v7772
    %8421 = vmatpush1.bf16.msra.mxu0 %v7771
    %8422 = vmatprep.subr.bf16.mxu0 %v7778
    %8423 = vmatpush1.bf16.msra.mxu0 %v7777
    %8424 = vmatprep.subr.bf16.mxu0 %v7784
    %8425 = vmatpush1.bf16.msra.mxu0 %v7783
    %8426 = vmatprep.subr.bf16.mxu0 %v7790
    %8427 = vmatpush1.bf16.msra.mxu0 %v7789
    %8428 = vmatprep.mubr.bf16.mxu0 %v2559
    %8429 = vmatmul.mubr.bf16.gmra.mrb[0].mxu0 %v2558
    %v8430 = vpop.f32.mrb[0].mxu0
    %v8431 = vadd.f32 %v6704, %v8430
    %v8432 = vpop.f32.mrb[0].mxu0
    %v8433 = vadd.f32 %v6706, %v8432
    %v8434 = vpop.f32.mrb[0].mxu0
    %v8435 = vpop.f32.mrb[0].mxu0
    %8436 = vdwg.mxu0
    %8437 = vmatprep.subr.bf16.mxu0 %v7796
    %8438 = vmatpush1.bf16.msra.mxu0 %v7795
    %8439 = vmatprep.subr.bf16.mxu0 %v7802
    %8440 = vmatpush1.bf16.msra.mxu0 %v7801
    %8441 = vmatprep.subr.bf16.mxu0 %v7808
    %8442 = vmatpush1.bf16.msra.mxu0 %v7807
    %8443 = vmatprep.subr.bf16.mxu0 %v7814
    %8444 = vmatpush1.bf16.msra.mxu0 %v7813
    %8445 = vmatprep.subr.bf16.mxu0 %v7820
    %8446 = vmatpush1.bf16.msra.mxu0 %v7819
    %8447 = vmatprep.subr.bf16.mxu0 %v7826
    %8448 = vmatpush1.bf16.msra.mxu0 %v7825
    %8449 = vmatprep.subr.bf16.mxu0 %v7832
    %8450 = vmatpush1.bf16.msra.mxu0 %v7831
    %8451 = vmatprep.subr.bf16.mxu0 %v7838
    %8452 = vmatpush1.bf16.msra.mxu0 %v7837
    %8453 = vmatprep.subr.bf16.mxu0 %v7844
    %8454 = vmatpush1.bf16.msra.mxu0 %v7843
    %8455 = vmatprep.subr.bf16.mxu0 %v7850
    %8456 = vmatpush1.bf16.msra.mxu0 %v7849
    %8457 = vmatprep.subr.bf16.mxu0 %v7856
    %8458 = vmatpush1.bf16.msra.mxu0 %v7855
    %8459 = vmatprep.subr.bf16.mxu0 %v7862
    %8460 = vmatpush1.bf16.msra.mxu0 %v7861
    %8461 = vmatprep.subr.bf16.mxu0 %v7868
    %8462 = vmatpush1.bf16.msra.mxu0 %v7867
    %8463 = vmatprep.subr.bf16.mxu0 %v7874
    %8464 = vmatpush1.bf16.msra.mxu0 %v7873
    %8465 = vmatprep.subr.bf16.mxu0 %v7880
    %8466 = vmatpush1.bf16.msra.mxu0 %v7879
    %8467 = vmatprep.subr.bf16.mxu0 %v7886
    %8468 = vmatpush1.bf16.msra.mxu0 %v7885
    %8469 = vmatprep.mubr.bf16.mxu0 %v2561
    %8470 = vmatmul.mubr.bf16.gmra.mrb[0].mxu0 %v2560
    %v8471 = vpop.f32.mrb[0].mxu0
    %v8472 = vadd.f32 %v8431, %v8471
    %v8473 = vpop.f32.mrb[0].mxu0
    %v8474 = vadd.f32 %v8433, %v8473
    %v8475 = vpop.f32.mrb[0].mxu0
    %v8476 = vpop.f32.mrb[0].mxu0
    %8477 = vdwg.mxu0
    %8478 = vmatprep.subr.bf16.mxu0 %v7892
    %8479 = vmatpush1.bf16.msra.mxu0 %v7891
    %8480 = vmatprep.subr.bf16.mxu0 %v7898
    %8481 = vmatpush1.bf16.msra.mxu0 %v7897
    %8482 = vmatprep.subr.bf16.mxu0 %v7904
    %8483 = vmatpush1.bf16.msra.mxu0 %v7903
    %8484 = vmatprep.subr.bf16.mxu0 %v7910
    %8485 = vmatpush1.bf16.msra.mxu0 %v7909
    %8486 = vmatprep.subr.bf16.mxu0 %v7916
    %8487 = vmatpush1.bf16.msra.mxu0 %v7915
    %8488 = vmatprep.subr.bf16.mxu0 %v7922
    %8489 = vmatpush1.bf16.msra.mxu0 %v7921
    %8490 = vmatprep.subr.bf16.mxu0 %v7928
    %8491 = vmatpush1.bf16.msra.mxu0 %v7927
    %8492 = vmatprep.subr.bf16.mxu0 %v7934
    %8493 = vmatpush1.bf16.msra.mxu0 %v7933
    %8494 = vmatprep.subr.bf16.mxu0 %v7940
    %8495 = vmatpush1.bf16.msra.mxu0 %v7939
    %8496 = vmatprep.subr.bf16.mxu0 %v7946
    %8497 = vmatpush1.bf16.msra.mxu0 %v7945
    %8498 = vmatprep.subr.bf16.mxu0 %v7952
    %8499 = vmatpush1.bf16.msra.mxu0 %v7951
    %8500 = vmatprep.subr.bf16.mxu0 %v7958
    %8501 = vmatpush1.bf16.msra.mxu0 %v7957
    %8502 = vmatprep.subr.bf16.mxu0 %v7964
    %8503 = vmatpush1.bf16.msra.mxu0 %v7963
    %8504 = vmatprep.subr.bf16.mxu0 %v7970
    %8505 = vmatpush1.bf16.msra.mxu0 %v7969
    %8506 = vmatprep.subr.bf16.mxu0 %v7976
    %8507 = vmatpush1.bf16.msra.mxu0 %v7975
    %8508 = vmatprep.subr.bf16.mxu0 %v7982
    %8509 = vmatpush1.bf16.msra.mxu0 %v7981
    %8510 = vmatprep.mubr.bf16.mxu0 %v2563
    %8511 = vmatmul.mubr.bf16.gmra.mrb[0].mxu0 %v2562
    %v8512 = vpop.f32.mrb[0].mxu0
    %v8513 = vadd.f32 %v8472, %v8512
    %v8514 = vpop.f32.mrb[0].mxu0
    %v8515 = vadd.f32 %v8474, %v8514
    %v8516 = vpop.f32.mrb[0].mxu0
    %v8517 = vpop.f32.mrb[0].mxu0
    %8518 = vdwg.mxu0
    %8519 = vmatprep.subr.bf16.mxu0 %v7702
    %8520 = vmatpush1.bf16.msra.mxu0 %v7701
    %8521 = vmatprep.subr.bf16.mxu0 %v7708
    %8522 = vmatpush1.bf16.msra.mxu0 %v7707
    %8523 = vmatprep.subr.bf16.mxu0 %v7714
    %8524 = vmatpush1.bf16.msra.mxu0 %v7713
    %8525 = vmatprep.subr.bf16.mxu0 %v7720
    %8526 = vmatpush1.bf16.msra.mxu0 %v7719
    %8527 = vmatprep.subr.bf16.mxu0 %v7726
    %8528 = vmatpush1.bf16.msra.mxu0 %v7725
    %8529 = vmatprep.subr.bf16.mxu0 %v7732
    %8530 = vmatpush1.bf16.msra.mxu0 %v7731
    %8531 = vmatprep.subr.bf16.mxu0 %v7738
    %8532 = vmatpush1.bf16.msra.mxu0 %v7737
    %8533 = vmatprep.subr.bf16.mxu0 %v7744
    %8534 = vmatpush1.bf16.msra.mxu0 %v7743
    %8535 = vmatprep.subr.bf16.mxu0 %v7750
    %8536 = vmatpush1.bf16.msra.mxu0 %v7749
    %8537 = vmatprep.subr.bf16.mxu0 %v7756
    %8538 = vmatpush1.bf16.msra.mxu0 %v7755
    %8539 = vmatprep.subr.bf16.mxu0 %v7762
    %8540 = vmatpush1.bf16.msra.mxu0 %v7761
    %8541 = vmatprep.subr.bf16.mxu0 %v7768
    %8542 = vmatpush1.bf16.msra.mxu0 %v7767
    %8543 = vmatprep.subr.bf16.mxu0 %v7774
    %8544 = vmatpush1.bf16.msra.mxu0 %v7773
    %8545 = vmatprep.subr.bf16.mxu0 %v7780
    %8546 = vmatpush1.bf16.msra.mxu0 %v7779
    %8547 = vmatprep.subr.bf16.mxu0 %v7786
    %8548 = vmatpush1.bf16.msra.mxu0 %v7785
    %8549 = vmatprep.subr.bf16.mxu0 %v7792
    %8550 = vmatpush1.bf16.msra.mxu0 %v7791
    %8551 = vmatprep.mubr.bf16.mxu0 %v2559
    %8552 = vmatmul.mubr.bf16.gmra.mrb[0].mxu0 %v2558
    %v8553 = vpop.f32.mrb[0].mxu0
    %v8554 = vadd.f32 %v6827, %v8553
    %v8555 = vpop.f32.mrb[0].mxu0
    %v8556 = vadd.f32 %v6829, %v8555
    %v8557 = vpop.f32.mrb[0].mxu0
    %v8558 = vpop.f32.mrb[0].mxu0
    %8559 = vdwg.mxu0
    %8560 = vmatprep.subr.bf16.mxu0 %v7798
    %8561 = vmatpush1.bf16.msra.mxu0 %v7797
    %8562 = vmatprep.subr.bf16.mxu0 %v7804
    %8563 = vmatpush1.bf16.msra.mxu0 %v7803
    %8564 = vmatprep.subr.bf16.mxu0 %v7810
    %8565 = vmatpush1.bf16.msra.mxu0 %v7809
    %8566 = vmatprep.subr.bf16.mxu0 %v7816
    %8567 = vmatpush1.bf16.msra.mxu0 %v7815
    %8568 = vmatprep.subr.bf16.mxu0 %v7822
    %8569 = vmatpush1.bf16.msra.mxu0 %v7821
    %8570 = vmatprep.subr.bf16.mxu0 %v7828
    %8571 = vmatpush1.bf16.msra.mxu0 %v7827
    %8572 = vmatprep.subr.bf16.mxu0 %v7834
    %8573 = vmatpush1.bf16.msra.mxu0 %v7833
    %8574 = vmatprep.subr.bf16.mxu0 %v7840
    %8575 = vmatpush1.bf16.msra.mxu0 %v7839
    %8576 = vmatprep.subr.bf16.mxu0 %v7846
    %8577 = vmatpush1.bf16.msra.mxu0 %v7845
    %8578 = vmatprep.subr.bf16.mxu0 %v7852
    %8579 = vmatpush1.bf16.msra.mxu0 %v7851
    %8580 = vmatprep.subr.bf16.mxu0 %v7858
    %8581 = vmatpush1.bf16.msra.mxu0 %v7857
    %8582 = vmatprep.subr.bf16.mxu0 %v7864
    %8583 = vmatpush1.bf16.msra.mxu0 %v7863
    %8584 = vmatprep.subr.bf16.mxu0 %v7870
    %8585 = vmatpush1.bf16.msra.mxu0 %v7869
    %8586 = vmatprep.subr.bf16.mxu0 %v7876
    %8587 = vmatpush1.bf16.msra.mxu0 %v7875
    %8588 = vmatprep.subr.bf16.mxu0 %v7882
    %8589 = vmatpush1.bf16.msra.mxu0 %v7881
    %8590 = vmatprep.subr.bf16.mxu0 %v7888
    %8591 = vmatpush1.bf16.msra.mxu0 %v7887
    %8592 = vmatprep.mubr.bf16.mxu0 %v2561
    %8593 = vmatmul.mubr.bf16.gmra.mrb[0].mxu0 %v2560
    %v8594 = vpop.f32.mrb[0].mxu0
    %v8595 = vadd.f32 %v8554, %v8594
    %v8596 = vpop.f32.mrb[0].mxu0
    %v8597 = vadd.f32 %v8556, %v8596
    %v8598 = vpop.f32.mrb[0].mxu0
    %v8599 = vpop.f32.mrb[0].mxu0
    %8600 = vdwg.mxu0
    %8601 = vmatprep.subr.bf16.mxu0 %v7894
    %8602 = vmatpush1.bf16.msra.mxu0 %v7893
    %8603 = vmatprep.subr.bf16.mxu0 %v7900
    %8604 = vmatpush1.bf16.msra.mxu0 %v7899
    %8605 = vmatprep.subr.bf16.mxu0 %v7906
    %8606 = vmatpush1.bf16.msra.mxu0 %v7905
    %8607 = vmatprep.subr.bf16.mxu0 %v7912
    %8608 = vmatpush1.bf16.msra.mxu0 %v7911
    %8609 = vmatprep.subr.bf16.mxu0 %v7918
    %8610 = vmatpush1.bf16.msra.mxu0 %v7917
    %8611 = vmatprep.subr.bf16.mxu0 %v7924
    %8612 = vmatpush1.bf16.msra.mxu0 %v7923
    %8613 = vmatprep.subr.bf16.mxu0 %v7930
    %8614 = vmatpush1.bf16.msra.mxu0 %v7929
    %8615 = vmatprep.subr.bf16.mxu0 %v7936
    %8616 = vmatpush1.bf16.msra.mxu0 %v7935
    %8617 = vmatprep.subr.bf16.mxu0 %v7942
    %8618 = vmatpush1.bf16.msra.mxu0 %v7941
    %8619 = vmatprep.subr.bf16.mxu0 %v7948
    %8620 = vmatpush1.bf16.msra.mxu0 %v7947
    %8621 = vmatprep.subr.bf16.mxu0 %v7954
    %8622 = vmatpush1.bf16.msra.mxu0 %v7953
    %8623 = vmatprep.subr.bf16.mxu0 %v7960
    %8624 = vmatpush1.bf16.msra.mxu0 %v7959
    %8625 = vmatprep.subr.bf16.mxu0 %v7966
    %8626 = vmatpush1.bf16.msra.mxu0 %v7965
    %8627 = vmatprep.subr.bf16.mxu0 %v7972
    %8628 = vmatpush1.bf16.msra.mxu0 %v7971
    %8629 = vmatprep.subr.bf16.mxu0 %v7978
    %8630 = vmatpush1.bf16.msra.mxu0 %v7977
    %8631 = vmatprep.subr.bf16.mxu0 %v7984
    %8632 = vmatpush1.bf16.msra.mxu0 %v7983
    %8633 = vmatprep.mubr.bf16.mxu0 %v2563
    %8634 = vmatmul.mubr.bf16.gmra.mrb[0].mxu0 %v2562
    %v8635 = vpop.f32.mrb[0].mxu0
    %v8636 = vadd.f32 %v8595, %v8635
    %v8637 = vpop.f32.mrb[0].mxu0
    %v8638 = vadd.f32 %v8597, %v8637
    %v8639 = vpop.f32.mrb[0].mxu0
    %v8640 = vpop.f32.mrb[0].mxu0
    %8641 = vdwg.mxu0
    %v8645 = vlaneseq
    %v8646 = vshrl.u32 %v8645, 7
    %v8647 = vsub.s32 0, %v8646
    %v8648 = vrot.slane %v140, %v8647
    %v8649 = vlaneseq
    %v8650 = vshrl.u32 %v8649, 7
    %v8651 = vsub.s32 4, %v8650
    %v8652 = vrot.slane %v140, %v8651
    %v8653 = vlaneseq
    %v8654 = vshrl.u32 %v8653, 7
    %v8655 = vsub.s32 0, %v8654
    %v8656 = vrot.slane %v141, %v8655
    %v8657 = vlaneseq
    %v8658 = vshrl.u32 %v8657, 7
    %v8659 = vsub.s32 4, %v8658
    %v8660 = vrot.slane %v141, %v8659
    %v8661 = vlaneseq
    %v8662 = vshrl.u32 %v8661, 7
    %v8663 = vsub.s32 0, %v8662
    %v8664 = vrot.slane %v142, %v8663
    %v8665 = vlaneseq
    %v8666 = vshrl.u32 %v8665, 7
    %v8667 = vsub.s32 4, %v8666
    %v8668 = vrot.slane %v142, %v8667
    %v8675 = vlaneseq
    %v8676 = vshrl.u32 %v8675, 7
    %v8677 = vsub.s32 0, %v8676
    %v8678 = vrot.slane %v8648, %v8677
    %v8679 = vlaneseq
    %v8680 = vshrl.u32 %v8679, 7
    %v8681 = vsub.s32 0, %v8680
    %v8682 = vrot.slane %v8652, %v8681
    %v8683 = vlaneseq
    %v8684 = vshrl.u32 %v8683, 7
    %v8685 = vsub.s32 0, %v8684
    %v8686 = vrot.slane %v8656, %v8685
    %v8687 = vlaneseq
    %v8688 = vshrl.u32 %v8687, 7
    %v8689 = vsub.s32 0, %v8688
    %v8690 = vrot.slane %v8660, %v8689
    %v8691 = vlaneseq
    %v8692 = vshrl.u32 %v8691, 7
    %v8693 = vsub.s32 0, %v8692
    %v8694 = vrot.slane %v8664, %v8693
    %v8695 = vlaneseq
    %v8696 = vshrl.u32 %v8695, 7
    %v8697 = vsub.s32 0, %v8696
    %v8698 = vrot.slane %v8668, %v8697
    %v8699 = vadd.f32 %v8390, %v8678
    %v8700 = vadd.f32 %v8392, %v8682
    %v8701 = vadd.f32 %v8513, %v8686
    %v8702 = vadd.f32 %v8515, %v8690
    %v8703 = vadd.f32 %v8636, %v8694
    %v8704 = vadd.f32 %v8638, %v8698
    %v8705 = vadd.f32 %v8699, %v131
    %v8706 = vadd.f32 %v8700, %v132
    %v8707 = vadd.f32 %v8701, %v133
    %v8708 = vadd.f32 %v8702, %v134
    %v8709 = vadd.f32 %v8703, %v135
    %v8710 = vadd.f32 %v8704, %v136
    %v8711 = vadd.f32 %v4442, %v4443
    %v8712 = vadd.f32 %v8711, %v4444
    %v8713 = vadd.f32 %v8712, %v4445
    %v8714 = vadd.f32 %v8713, %v4446
    %v8715 = vadd.f32 %v8714, %v4447
    %8716 = vadd.xlane.f32.xlu0 %v8715
    %v8717 = vpop.xlane.xlu0 %8716
    %v8718 = vadd.f32 %v8705, %v8706
    %v8719 = vadd.f32 %v8718, %v8707
    %v8720 = vadd.f32 %v8719, %v8708
    %v8721 = vadd.f32 %v8720, %v8709
    %v8722 = vadd.f32 %v8721, %v8710
    %8723 = vadd.xlane.f32.xlu0 %v8722
    %v8724 = vpop.xlane.xlu0 %8723
    %v8725 = vadd.f32 %v8717, %v8724
    %v8726 = vmul.f32 %v8725, 0.0006510417
    %v8727 = vsub.f32 %v4442, %v8726
    %v8728 = vsub.f32 %v4443, %v8726
    %v8729 = vsub.f32 %v4444, %v8726
    %v8730 = vsub.f32 %v4445, %v8726
    %v8731 = vsub.f32 %v4446, %v8726
    %v8732 = vsub.f32 %v4447, %v8726
    %v8733 = vsub.f32 %v8705, %v8726
    %v8734 = vsub.f32 %v8706, %v8726
    %v8735 = vsub.f32 %v8707, %v8726
    %v8736 = vsub.f32 %v8708, %v8726
    %v8737 = vsub.f32 %v8709, %v8726
    %v8738 = vsub.f32 %v8710, %v8726
    %v8739 = vmul.f32 %v8727, %v8727
    %v8740 = vmul.f32 %v8728, %v8728
    %v8741 = vmul.f32 %v8729, %v8729
    %v8742 = vmul.f32 %v8730, %v8730
    %v8743 = vmul.f32 %v8731, %v8731
    %v8744 = vmul.f32 %v8732, %v8732
    %v8745 = vadd.f32 %v8739, %v8740
    %v8746 = vadd.f32 %v8745, %v8741
    %v8747 = vadd.f32 %v8746, %v8742
    %v8748 = vadd.f32 %v8747, %v8743
    %v8749 = vadd.f32 %v8748, %v8744
    %8750 = vadd.xlane.f32.xlu0 %v8749
    %v8751 = vpop.xlane.xlu0 %8750
    %v8752 = vmul.f32 %v8733, %v8733
    %v8753 = vmul.f32 %v8734, %v8734
    %v8754 = vmul.f32 %v8735, %v8735
    %v8755 = vmul.f32 %v8736, %v8736
    %v8756 = vmul.f32 %v8737, %v8737
    %v8757 = vmul.f32 %v8738, %v8738
    %v8758 = vadd.f32 %v8752, %v8753
    %v8759 = vadd.f32 %v8758, %v8754
    %v8760 = vadd.f32 %v8759, %v8755
    %v8761 = vadd.f32 %v8760, %v8756
    %v8762 = vadd.f32 %v8761, %v8757
    %8763 = vadd.xlane.f32.xlu0 %v8762
    %v8764 = vpop.xlane.xlu0 %8763
    %v8765 = vadd.f32 %v8751, %v8764
    %v8766 = vmul.f32 %v8765, 0.0006510417
    %v8767 = vadd.f32 %v8766, 1e-05
    %v8768 = vrsqrt.pop %v8767
    %v8769 = vmul.f32 %v8727, %v8768
    %v8770 = vmul.f32 %v8728, %v8768
    %v8771 = vmul.f32 %v8729, %v8768
    %v8772 = vmul.f32 %v8730, %v8768
    %v8773 = vmul.f32 %v8731, %v8768
    %v8774 = vmul.f32 %v8732, %v8768
    %v8775 = vlaneseq
    %v8776 = vshrl.u32 %v8775, 7
    %v8777 = vsub.s32 1, %v8776
    %v8778 = vrot.slane %v137, %v8777
    %v8779 = vlaneseq
    %v8780 = vshrl.u32 %v8779, 7
    %v8781 = vsub.s32 5, %v8780
    %v8782 = vrot.slane %v137, %v8781
    %v8783 = vlaneseq
    %v8784 = vshrl.u32 %v8783, 7
    %v8785 = vsub.s32 1, %v8784
    %v8786 = vrot.slane %v138, %v8785
    %v8787 = vlaneseq
    %v8788 = vshrl.u32 %v8787, 7
    %v8789 = vsub.s32 5, %v8788
    %v8790 = vrot.slane %v138, %v8789
    %v8791 = vlaneseq
    %v8792 = vshrl.u32 %v8791, 7
    %v8793 = vsub.s32 1, %v8792
    %v8794 = vrot.slane %v139, %v8793
    %v8795 = vlaneseq
    %v8796 = vshrl.u32 %v8795, 7
    %v8797 = vsub.s32 5, %v8796
    %v8798 = vrot.slane %v139, %v8797
    %v8805 = vlaneseq
    %v8806 = vshrl.u32 %v8805, 7
    %v8807 = vsub.s32 1, %v8806
    %v8808 = vrot.slane %v8778, %v8807
    %v8809 = vlaneseq
    %v8810 = vshrl.u32 %v8809, 7
    %v8811 = vsub.s32 1, %v8810
    %v8812 = vrot.slane %v8782, %v8811
    %v8813 = vlaneseq
    %v8814 = vshrl.u32 %v8813, 7
    %v8815 = vsub.s32 1, %v8814
    %v8816 = vrot.slane %v8786, %v8815
    %v8817 = vlaneseq
    %v8818 = vshrl.u32 %v8817, 7
    %v8819 = vsub.s32 1, %v8818
    %v8820 = vrot.slane %v8790, %v8819
    %v8821 = vlaneseq
    %v8822 = vshrl.u32 %v8821, 7
    %v8823 = vsub.s32 1, %v8822
    %v8824 = vrot.slane %v8794, %v8823
    %v8825 = vlaneseq
    %v8826 = vshrl.u32 %v8825, 7
    %v8827 = vsub.s32 1, %v8826
    %v8828 = vrot.slane %v8798, %v8827
    %v8829 = vmul.f32 %v8769, %v8808
    %v8830 = vmul.f32 %v8770, %v8812
    %v8831 = vmul.f32 %v8771, %v8816
    %v8832 = vmul.f32 %v8772, %v8820
    %v8833 = vmul.f32 %v8773, %v8824
    %v8834 = vmul.f32 %v8774, %v8828
    %v8835 = vlaneseq
    %v8836 = vshrl.u32 %v8835, 7
    %v8837 = vsub.s32 2, %v8836
    %v8838 = vrot.slane %v137, %v8837
    %v8839 = vlaneseq
    %v8840 = vshrl.u32 %v8839, 7
    %v8841 = vsub.s32 6, %v8840
    %v8842 = vrot.slane %v137, %v8841
    %v8843 = vlaneseq
    %v8844 = vshrl.u32 %v8843, 7
    %v8845 = vsub.s32 2, %v8844
    %v8846 = vrot.slane %v138, %v8845
    %v8847 = vlaneseq
    %v8848 = vshrl.u32 %v8847, 7
    %v8849 = vsub.s32 6, %v8848
    %v8850 = vrot.slane %v138, %v8849
    %v8851 = vlaneseq
    %v8852 = vshrl.u32 %v8851, 7
    %v8853 = vsub.s32 2, %v8852
    %v8854 = vrot.slane %v139, %v8853
    %v8855 = vlaneseq
    %v8856 = vshrl.u32 %v8855, 7
    %v8857 = vsub.s32 6, %v8856
    %v8858 = vrot.slane %v139, %v8857
    %v8865 = vlaneseq
    %v8866 = vshrl.u32 %v8865, 7
    %v8867 = vsub.s32 2, %v8866
    %v8868 = vrot.slane %v8838, %v8867
    %v8869 = vlaneseq
    %v8870 = vshrl.u32 %v8869, 7
    %v8871 = vsub.s32 2, %v8870
    %v8872 = vrot.slane %v8842, %v8871
    %v8873 = vlaneseq
    %v8874 = vshrl.u32 %v8873, 7
    %v8875 = vsub.s32 2, %v8874
    %v8876 = vrot.slane %v8846, %v8875
    %v8877 = vlaneseq
    %v8878 = vshrl.u32 %v8877, 7
    %v8879 = vsub.s32 2, %v8878
    %v8880 = vrot.slane %v8850, %v8879
    %v8881 = vlaneseq
    %v8882 = vshrl.u32 %v8881, 7
    %v8883 = vsub.s32 2, %v8882
    %v8884 = vrot.slane %v8854, %v8883
    %v8885 = vlaneseq
    %v8886 = vshrl.u32 %v8885, 7
    %v8887 = vsub.s32 2, %v8886
    %v8888 = vrot.slane %v8858, %v8887
    %v8889 = vadd.f32 %v8829, %v8868
    %v8890 = vadd.f32 %v8830, %v8872
    %v8891 = vadd.f32 %v8831, %v8876
    %v8892 = vadd.f32 %v8832, %v8880
    %v8893 = vadd.f32 %v8833, %v8884
    %v8894 = vadd.f32 %v8834, %v8888
    %v8895 = vmax.f32 %v8889, 0.0
    %v8896 = vmax.f32 %v8890, 0.0
    %v8897 = vmax.f32 %v8891, 0.0
    %v8898 = vmax.f32 %v8892, 0.0
    %v8899 = vmax.f32 %v8893, 0.0
    %v8900 = vmax.f32 %v8894, 0.0
    %v8901 = vmul.f32 %v8733, %v8768
    %v8902 = vmul.f32 %v8734, %v8768
    %v8903 = vmul.f32 %v8735, %v8768
    %v8904 = vmul.f32 %v8736, %v8768
    %v8905 = vmul.f32 %v8737, %v8768
    %v8906 = vmul.f32 %v8738, %v8768
    %v8907 = vlaneseq
    %v8908 = vshrl.u32 %v8907, 7
    %v8909 = vsub.s32 1, %v8908
    %v8910 = vrot.slane %v140, %v8909
    %v8911 = vlaneseq
    %v8912 = vshrl.u32 %v8911, 7
    %v8913 = vsub.s32 5, %v8912
    %v8914 = vrot.slane %v140, %v8913
    %v8915 = vlaneseq
    %v8916 = vshrl.u32 %v8915, 7
    %v8917 = vsub.s32 1, %v8916
    %v8918 = vrot.slane %v141, %v8917
    %v8919 = vlaneseq
    %v8920 = vshrl.u32 %v8919, 7
    %v8921 = vsub.s32 5, %v8920
    %v8922 = vrot.slane %v141, %v8921
    %v8923 = vlaneseq
    %v8924 = vshrl.u32 %v8923, 7
    %v8925 = vsub.s32 1, %v8924
    %v8926 = vrot.slane %v142, %v8925
    %v8927 = vlaneseq
    %v8928 = vshrl.u32 %v8927, 7
    %v8929 = vsub.s32 5, %v8928
    %v8930 = vrot.slane %v142, %v8929
    %v8937 = vlaneseq
    %v8938 = vshrl.u32 %v8937, 7
    %v8939 = vsub.s32 1, %v8938
    %v8940 = vrot.slane %v8910, %v8939
    %v8941 = vlaneseq
    %v8942 = vshrl.u32 %v8941, 7
    %v8943 = vsub.s32 1, %v8942
    %v8944 = vrot.slane %v8914, %v8943
    %v8945 = vlaneseq
    %v8946 = vshrl.u32 %v8945, 7
    %v8947 = vsub.s32 1, %v8946
    %v8948 = vrot.slane %v8918, %v8947
    %v8949 = vlaneseq
    %v8950 = vshrl.u32 %v8949, 7
    %v8951 = vsub.s32 1, %v8950
    %v8952 = vrot.slane %v8922, %v8951
    %v8953 = vlaneseq
    %v8954 = vshrl.u32 %v8953, 7
    %v8955 = vsub.s32 1, %v8954
    %v8956 = vrot.slane %v8926, %v8955
    %v8957 = vlaneseq
    %v8958 = vshrl.u32 %v8957, 7
    %v8959 = vsub.s32 1, %v8958
    %v8960 = vrot.slane %v8930, %v8959
    %v8961 = vmul.f32 %v8901, %v8940
    %v8962 = vmul.f32 %v8902, %v8944
    %v8963 = vmul.f32 %v8903, %v8948
    %v8964 = vmul.f32 %v8904, %v8952
    %v8965 = vmul.f32 %v8905, %v8956
    %v8966 = vmul.f32 %v8906, %v8960
    %v8967 = vlaneseq
    %v8968 = vshrl.u32 %v8967, 7
    %v8969 = vsub.s32 2, %v8968
    %v8970 = vrot.slane %v140, %v8969
    %v8971 = vlaneseq
    %v8972 = vshrl.u32 %v8971, 7
    %v8973 = vsub.s32 6, %v8972
    %v8974 = vrot.slane %v140, %v8973
    %v8975 = vlaneseq
    %v8976 = vshrl.u32 %v8975, 7
    %v8977 = vsub.s32 2, %v8976
    %v8978 = vrot.slane %v141, %v8977
    %v8979 = vlaneseq
    %v8980 = vshrl.u32 %v8979, 7
    %v8981 = vsub.s32 6, %v8980
    %v8982 = vrot.slane %v141, %v8981
    %v8983 = vlaneseq
    %v8984 = vshrl.u32 %v8983, 7
    %v8985 = vsub.s32 2, %v8984
    %v8986 = vrot.slane %v142, %v8985
    %v8987 = vlaneseq
    %v8988 = vshrl.u32 %v8987, 7
    %v8989 = vsub.s32 6, %v8988
    %v8990 = vrot.slane %v142, %v8989
    %v8997 = vlaneseq
    %v8998 = vshrl.u32 %v8997, 7
    %v8999 = vsub.s32 2, %v8998
    %v9000 = vrot.slane %v8970, %v8999
    %v9001 = vlaneseq
    %v9002 = vshrl.u32 %v9001, 7
    %v9003 = vsub.s32 2, %v9002
    %v9004 = vrot.slane %v8974, %v9003
    %v9005 = vlaneseq
    %v9006 = vshrl.u32 %v9005, 7
    %v9007 = vsub.s32 2, %v9006
    %v9008 = vrot.slane %v8978, %v9007
    %v9009 = vlaneseq
    %v9010 = vshrl.u32 %v9009, 7
    %v9011 = vsub.s32 2, %v9010
    %v9012 = vrot.slane %v8982, %v9011
    %v9013 = vlaneseq
    %v9014 = vshrl.u32 %v9013, 7
    %v9015 = vsub.s32 2, %v9014
    %v9016 = vrot.slane %v8986, %v9015
    %v9017 = vlaneseq
    %v9018 = vshrl.u32 %v9017, 7
    %v9019 = vsub.s32 2, %v9018
    %v9020 = vrot.slane %v8990, %v9019
    %v9021 = vadd.f32 %v8961, %v9000
    %v9022 = vadd.f32 %v8962, %v9004
    %v9023 = vadd.f32 %v8963, %v9008
    %v9024 = vadd.f32 %v8964, %v9012
    %v9025 = vadd.f32 %v8965, %v9016
    %v9026 = vadd.f32 %v8966, %v9020
    %v9027 = vmax.f32 %v9021, 0.0
    %v9028 = vmax.f32 %v9022, 0.0
    %v9029 = vmax.f32 %v9023, 0.0
    %v9030 = vmax.f32 %v9024, 0.0
    %v9031 = vmax.f32 %v9025, 0.0
    %v9032 = vmax.f32 %v9026, 0.0
    %v9033 = vlaneseq
    %v9034 = vshrl.u32 %v9033, 7
    %v9035 = vsub.s32 3, %v9034
    %v9036 = vrot.slane %v137, %v9035
    %v9037 = vlaneseq
    %v9038 = vshrl.u32 %v9037, 7
    %v9039 = vsub.s32 7, %v9038
    %v9040 = vrot.slane %v137, %v9039
    %v9041 = vlaneseq
    %v9042 = vshrl.u32 %v9041, 7
    %v9043 = vsub.s32 3, %v9042
    %v9044 = vrot.slane %v138, %v9043
    %v9045 = vlaneseq
    %v9046 = vshrl.u32 %v9045, 7
    %v9047 = vsub.s32 7, %v9046
    %v9048 = vrot.slane %v138, %v9047
    %v9049 = vlaneseq
    %v9050 = vshrl.u32 %v9049, 7
    %v9051 = vsub.s32 3, %v9050
    %v9052 = vrot.slane %v139, %v9051
    %v9053 = vlaneseq
    %v9054 = vshrl.u32 %v9053, 7
    %v9055 = vsub.s32 7, %v9054
    %v9056 = vrot.slane %v139, %v9055
    %v9063 = vlaneseq
    %v9064 = vshrl.u32 %v9063, 7
    %v9065 = vsub.s32 3, %v9064
    %v9066 = vrot.slane %v9036, %v9065
    %v9067 = vlaneseq
    %v9068 = vshrl.u32 %v9067, 7
    %v9069 = vsub.s32 3, %v9068
    %v9070 = vrot.slane %v9040, %v9069
    %v9071 = vlaneseq
    %v9072 = vshrl.u32 %v9071, 7
    %v9073 = vsub.s32 3, %v9072
    %v9074 = vrot.slane %v9044, %v9073
    %v9075 = vlaneseq
    %v9076 = vshrl.u32 %v9075, 7
    %v9077 = vsub.s32 3, %v9076
    %v9078 = vrot.slane %v9048, %v9077
    %v9079 = vlaneseq
    %v9080 = vshrl.u32 %v9079, 7
    %v9081 = vsub.s32 3, %v9080
    %v9082 = vrot.slane %v9052, %v9081
    %v9083 = vlaneseq
    %v9084 = vshrl.u32 %v9083, 7
    %v9085 = vsub.s32 3, %v9084
    %v9086 = vrot.slane %v9056, %v9085
    %v9087 = vmul.f32 %v8895, %v9066
    %v9088 = vmul.f32 %v8896, %v9070
    %v9089 = vmul.f32 %v8897, %v9074
    %v9090 = vmul.f32 %v8898, %v9078
    %v9091 = vmul.f32 %v8899, %v9082
    %v9092 = vmul.f32 %v8900, %v9086
    %v9093 = vadd.f32 %v9087, %v9088
    %v9094 = vadd.f32 %v9093, %v9089
    %v9095 = vadd.f32 %v9094, %v9090
    %v9096 = vadd.f32 %v9095, %v9091
    %v9097 = vadd.f32 %v9096, %v9092
    %9098 = vadd.xlane.f32.xlu0 %v9097
    %v9099 = vpop.xlane.xlu0 %9098
    %v9100 = vlaneseq
    %v9101 = vshrl.u32 %v9100, 7
    %v9102 = vsub.s32 3, %v9101
    %v9103 = vrot.slane %v140, %v9102
    %v9104 = vlaneseq
    %v9105 = vshrl.u32 %v9104, 7
    %v9106 = vsub.s32 7, %v9105
    %v9107 = vrot.slane %v140, %v9106
    %v9108 = vlaneseq
    %v9109 = vshrl.u32 %v9108, 7
    %v9110 = vsub.s32 3, %v9109
    %v9111 = vrot.slane %v141, %v9110
    %v9112 = vlaneseq
    %v9113 = vshrl.u32 %v9112, 7
    %v9114 = vsub.s32 7, %v9113
    %v9115 = vrot.slane %v141, %v9114
    %v9116 = vlaneseq
    %v9117 = vshrl.u32 %v9116, 7
    %v9118 = vsub.s32 3, %v9117
    %v9119 = vrot.slane %v142, %v9118
    %v9120 = vlaneseq
    %v9121 = vshrl.u32 %v9120, 7
    %v9122 = vsub.s32 7, %v9121
    %v9123 = vrot.slane %v142, %v9122
    %v9130 = vlaneseq
    %v9131 = vshrl.u32 %v9130, 7
    %v9132 = vsub.s32 3, %v9131
    %v9133 = vrot.slane %v9103, %v9132
    %v9134 = vlaneseq
    %v9135 = vshrl.u32 %v9134, 7
    %v9136 = vsub.s32 3, %v9135
    %v9137 = vrot.slane %v9107, %v9136
    %v9138 = vlaneseq
    %v9139 = vshrl.u32 %v9138, 7
    %v9140 = vsub.s32 3, %v9139
    %v9141 = vrot.slane %v9111, %v9140
    %v9142 = vlaneseq
    %v9143 = vshrl.u32 %v9142, 7
    %v9144 = vsub.s32 3, %v9143
    %v9145 = vrot.slane %v9115, %v9144
    %v9146 = vlaneseq
    %v9147 = vshrl.u32 %v9146, 7
    %v9148 = vsub.s32 3, %v9147
    %v9149 = vrot.slane %v9119, %v9148
    %v9150 = vlaneseq
    %v9151 = vshrl.u32 %v9150, 7
    %v9152 = vsub.s32 3, %v9151
    %v9153 = vrot.slane %v9123, %v9152
    %v9154 = vmul.f32 %v9027, %v9133
    %v9155 = vmul.f32 %v9028, %v9137
    %v9156 = vmul.f32 %v9029, %v9141
    %v9157 = vmul.f32 %v9030, %v9145
    %v9158 = vmul.f32 %v9031, %v9149
    %v9159 = vmul.f32 %v9032, %v9153
    %v9160 = vadd.f32 %v9154, %v9155
    %v9161 = vadd.f32 %v9160, %v9156
    %v9162 = vadd.f32 %v9161, %v9157
    %v9163 = vadd.f32 %v9162, %v9158
    %v9164 = vadd.f32 %v9163, %v9159
    %9165 = vadd.xlane.f32.xlu0 %v9164
    %v9166 = vpop.xlane.xlu0 %9165
    %v9167 = vadd.f32 %v9099, %v9166
    %s9168 = sld [smem:[#allocation2]]
    %v9169 = vstv %s9168
    %v9170 = vadd.f32 %v9167, %v9169
    %v9171 = vxor.u32 %v9170, 2147483648
    %v9172 = vmul.f32 %v9171, 1.442695
    %v9173 = vpow.pop %v9172
    %v9174 = vadd.f32 %v9173, 1.0
    %v9175 = vrcp.pop %v9174
    %v9176 = vmul.f32 1.0, %v9175
    %vm9177 = vcmask 7168
    %9178 = vst.msk [vmem:[%s8] sm:$0xff] %vm9177, %v9176
    // Predicated region
    $region62: #{tpu_custom_call.1} parent=1 // pred_check
      _
    $region63: #{tpu_custom_call.1} parent=1 // pred_check_branch
      %9180 = sbr.rel (0) target = $region65
    $region64: #{tpu_custom_call.1} parent=1 // pred_region
      _
    $region65: #{tpu_custom_call.1} parent=1 // pred_fallthru
      _
    // Predicated region
    $region66: #{tpu_custom_call.1} parent=1 // pred_check
      _
    $region67: #{tpu_custom_call.1} parent=1 // pred_check_branch
      %9182 = sbr.rel (0) target = $region69
    $region68: #{tpu_custom_call.1} parent=1 // pred_region
      _
    $region69: #{tpu_custom_call.1} parent=1 // pred_fallthru
      _
    %9183 = vsyncpa [#allocation4], 1
    %9184 = vsyncpa [#allocation6], 1
    %9185 = vsyncpa [#allocation9], 1
    %9186 = vsyncpa [#allocation12], 1

</llo_original>
